<compile_context>
chip_gen: v7x
topology: tpu7x:2x2x1
jax: 0.10.0
libtpu: 0.0.40
codegen_flags: <defaults>
</compile_context>

<pallas_src>
import jax
import jax.numpy as jnp
import numpy as np
from jax.experimental import pallas as pl
from jax.experimental.pallas import tpu as pltpu


# ----------------------------- Pallas kernel --------------------------------
def darnn_kernel(
    x_ref, yh_ref,
    e_w_ref, e_b_ref, e_awh_ref, e_awc_ref, e_awt_ref, e_ab_ref,
    d_w1hc_ref, d_w1e_ref, d_a1b_ref, d_a2w_ref, d_a2b_ref,
    d_w_ref, d_b_ref,
    fc_wc_ref, fc_wy_ref, fc_b_ref,
    ff_w_ref, ff_b_ref,
    out_ref,
):
    f32 = jnp.float32

    X = x_ref[...]                     # (B, T, N)
    yh = yh_ref[...]                   # (B, T)
    B, T, N = X.shape

    e_w = e_w_ref[...]                 # (N+EH, 4*EH)   fused [w_ih; w_hh], pre-transposed
    e_b = e_b_ref[...]                 # (1, 4*EH)      b_ih + b_hh folded
    aw_h = e_awh_ref[...]              # (1, EH)
    aw_c = e_awc_ref[...]              # (1, EH)
    aw_t = e_awt_ref[...]              # (T, 1)
    e_ab = e_ab_ref[0, 0]              # scalar (SMEM)

    w1hc = d_w1hc_ref[...]             # (2*DH, EH)     fused hidden+cell attn proj
    w1e = d_w1e_ref[...]               # (EH, EH)
    a1b = d_a1b_ref[...]               # (1, EH)
    a2w = d_a2w_ref[...]               # (1, EH)
    a2b = d_a2b_ref[0, 0]              # scalar (SMEM)
    d_w = d_w_ref[...]                 # (OUT+DH, 4*DH) fused [w_ih; w_hh], pre-transposed
    d_b = d_b_ref[...]                 # (1, 4*DH)

    fc_wc = fc_wc_ref[...]             # (EH, OUT)
    fc_wy = fc_wy_ref[...]             # (1, OUT)
    fc_b = fc_b_ref[...]               # (1, OUT)
    ff_w = ff_w_ref[...]               # (DH+EH, OUT)   fused final linear
    ff_b = ff_b_ref[...]               # (1, OUT)

    EH = w1e.shape[0]
    DH = w1hc.shape[0] // 2
    OUT = fc_b.shape[1]

    def softmax_axis(s, axis):
        s = s - jnp.max(s, axis=axis, keepdims=True)
        e = jnp.exp(s)
        return e * pl.reciprocal(jnp.sum(e, axis=axis, keepdims=True), approx=True)

    def lstm_step(xc, c, w_fused, bias_b, H):
        # single fused MXU push: (B, IN+H) @ (IN+H, 4H); gate order i, f, g, o
        gates = jnp.dot(xc, w_fused, preferred_element_type=f32) + bias_b
        i = jax.nn.sigmoid(gates[:, :H])
        f = jax.nn.sigmoid(gates[:, H:2 * H])
        g = jnp.tanh(gates[:, 2 * H:3 * H])
        o = jax.nn.sigmoid(gates[:, 3 * H:])
        c_new = f * c + i * g
        h_new = o * jnp.tanh(c_new)
        return h_new, c_new

    # ---- hoisted loop-invariant broadcasts (JAX does not CSE broadcast_in_dim)
    e_b_b = jnp.broadcast_to(e_b, (B, 4 * EH))
    d_b_b = jnp.broadcast_to(d_b, (B, 4 * DH))
    fc_b_b = jnp.broadcast_to(fc_b, (B, OUT))
    aw_h_b = jnp.broadcast_to(aw_h, (B, EH))
    aw_c_b = jnp.broadcast_to(aw_c, (B, EH))
    a2w_b = jnp.broadcast_to(a2w.reshape(1, 1, EH), (B, T, EH))

    # ---------------- Encoder (input attention + LSTM) ----------------
    # time-series part of the attention score: one contraction over T
    # s_x[b, n] = sum_t X[b, t, n] * e_aw[0, 2EH + t]
    s_x = jnp.sum(X * aw_t[None, :, :], axis=1) + e_ab                  # (B, N)

    h = jnp.zeros((B, EH), f32)
    c = jnp.zeros((B, EH), f32)
    enc_states = []
    for t in range(T):
        # hidden/cell contribution: VPU multiply + lane reduce (no width-1 dots)
        s_hc = jnp.sum(h * aw_h_b + c * aw_c_b, axis=1, keepdims=True)  # (B, 1)
        attn = softmax_axis(s_x + s_hc, axis=1)                         # (B, N)
        weighted = attn * X[:, t, :]                                    # (B, N)
        xc = jnp.concatenate([weighted, h], axis=1)                     # (B, N+EH)
        h, c = lstm_step(xc, c, e_w, e_b_b, EH)
        enc_states.append(h)

    enc = jnp.stack(enc_states, axis=1)                                 # (B, T, EH)

    # ---------------- Decoder (temporal attention + LSTM) ----------------
    # encoder projection for the attention MLP: ONE batched matmul (+ a1b folded)
    enc_proj = (jnp.dot(enc.reshape(B * T, EH), w1e, preferred_element_type=f32)
                + a1b).reshape(B, T, EH)                                # (B, T, EH)

    hd = jnp.zeros((B, DH), f32)
    cd = jnp.zeros((B, DH), f32)
    context = jnp.zeros((B, EH), f32)
    for t in range(T):
        # fused hidden+cell projection: one MXU push on the critical path
        hc = jnp.concatenate([hd, cd], axis=1)                          # (B, 2*DH)
        hc_part = jnp.dot(hc, w1hc, preferred_element_type=f32)         # (B, EH)
        hid1 = jnp.tanh(enc_proj + hc_part[:, None, :])                 # (B, T, EH)
        scores = jnp.sum(hid1 * a2w_b, axis=2, keepdims=True) + a2b     # (B, T, 1)
        beta = softmax_axis(scores, axis=1)                             # (B, T, 1)
        context = jnp.sum(beta * enc, axis=1)                           # (B, EH)

        y_t = yh[:, t:t + 1]                                            # (B, 1)
        # y_tilde = fc([context, y_history[:, t]]); the y term is a scalar
        # broadcast multiply (fc weight column), not a (B,1)@(1,OUT) matmul.
        y_tilde = (jnp.dot(context, fc_wc, preferred_element_type=f32)
                   + y_t * fc_wy + fc_b_b)                              # (B, OUT)

        xc = jnp.concatenate([y_tilde, hd], axis=1)                     # (B, OUT+DH)
        hd, cd = lstm_step(xc, cd, d_w, d_b_b, DH)

    # final linear on [hidden, context]: one fused matmul
    hdctx = jnp.concatenate([hd, context], axis=1)                      # (B, DH+EH)
    y_pred = jnp.dot(hdctx, ff_w, preferred_element_type=f32) + ff_b    # (B, OUT)
    out_ref[...] = y_pred.astype(out_ref.dtype)


# ----------------------------- wrapper ---------------------------------------
def darnn_forward(X, y_history, p):
    B, T, N = X.shape
    EH = p["e_whh"].shape[1]
    DH = p["d_whh"].shape[1]
    OUT = p["fc_b"].shape[-1]

    # Host/trace-time layout plumbing: pre-transpose to (in, out) and fuse the
    # LSTM input/hidden weights so the kernel never transposes a loaded ref.
    e_w_t = jnp.concatenate([p["e_wih"].T, p["e_whh"].T], axis=0)        # (N+EH, 4EH)
    e_aw_h = p["e_aw"][:, :EH]                                           # (1, EH)
    e_aw_c = p["e_aw"][:, EH:2 * EH]                                     # (1, EH)
    e_aw_t = p["e_aw"][:, 2 * EH:].reshape(T, 1)                         # (T, 1)
    d_w1hc_t = p["d_a1w"][:, :2 * DH].T                                  # (2DH, EH)  fused [hidden; cell]
    d_w1e_t = p["d_a1w"][:, 2 * DH:].T                                   # (EH, EH)
    d_w_t = jnp.concatenate([p["d_wih"].T, p["d_whh"].T], axis=0)        # (OUT+DH, 4DH)
    fc_wc_t = p["fc_w"][:, :EH].T                                        # (EH, OUT)
    fc_wy_t = p["fc_w"][:, EH:].T                                        # (1, OUT)  (single y column, as in torch model)
    ff_w_t = p["ff_w"].T                                                 # (DH+EH, OUT)

    args = (X, y_history,
            e_w_t, p["e_b"], e_aw_h, e_aw_c, e_aw_t, p["e_ab"],
            d_w1hc_t, d_w1e_t, p["d_a1b"], p["d_a2w"], p["d_a2b"],
            d_w_t, p["d_b"],
            fc_wc_t, fc_wy_t, p["fc_b"],
            ff_w_t, p["ff_b"])

    vmem = pl.BlockSpec(memory_space=pltpu.MemorySpace.VMEM)
    smem = pl.BlockSpec(memory_space=pltpu.MemorySpace.SMEM)
    smem_idx = {7, 12}   # e_ab, d_a2b: true (1,1) scalars live in SMEM
    in_specs = [smem if i in smem_idx else vmem for i in range(len(args))]

    return pl.pallas_call(
        darnn_kernel,
        out_shape=jax.ShapeDtypeStruct((B, OUT), jnp.float32),
        in_specs=in_specs,
        out_specs=vmem,
    )(*args)


# ----------------------------- pure-JAX reference -----------------------------
def darnn_reference(X, yh, p):
    B, T, N = X.shape
    EH = p["e_whh"].shape[1]
    DH = p["d_whh"].shape[1]

    def sig(x):
        return jax.nn.sigmoid(x)

    # encoder
    h = jnp.zeros((B, EH), jnp.float32)
    c = jnp.zeros((B, EH), jnp.float32)
    enc = []
    for t in range(T):
        x_cat = jnp.concatenate(
            [jnp.broadcast_to(h[:, None, :], (B, N, EH)),
             jnp.broadcast_to(c[:, None, :], (B, N, EH)),
             jnp.transpose(X, (0, 2, 1))], axis=2)
        s = x_cat.reshape(-1, 2 * EH + T) @ p["e_aw"].T + p["e_ab"]
        attn = jax.nn.softmax(s.reshape(B, N), axis=1)
        wx = attn * X[:, t, :]
        gates = wx @ p["e_wih"].T + h @ p["e_whh"].T + p["e_b"]
        i, f = sig(gates[:, :EH]), sig(gates[:, EH:2 * EH])
        g, o = jnp.tanh(gates[:, 2 * EH:3 * EH]), sig(gates[:, 3 * EH:])
        c = f * c + i * g
        h = o * jnp.tanh(c)
        enc.append(h)
    enc = jnp.stack(enc, axis=1)   # (B, T, EH)

    # decoder
    hd = jnp.zeros((B, DH), jnp.float32)
    cd = jnp.zeros((B, DH), jnp.float32)
    ctx = jnp.zeros((B, EH), jnp.float32)
    for t in range(T):
        x_cat = jnp.concatenate(
            [jnp.broadcast_to(hd[:, None, :], (B, T, DH)),
             jnp.broadcast_to(cd[:, None, :], (B, T, DH)),
             enc], axis=2)
        hid1 = jnp.tanh(x_cat.reshape(-1, 2 * DH + EH) @ p["d_a1w"].T + p["d_a1b"])
        sc = hid1 @ p["d_a2w"].T + p["d_a2b"]
        beta = jax.nn.softmax(sc.reshape(B, T), axis=1)
        ctx = jnp.einsum("bt,bte->be", beta, enc)
        y_tilde = jnp.concatenate([ctx, yh[:, t:t + 1]], axis=1) @ p["fc_w"].T + p["fc_b"]
        gates = y_tilde @ p["d_wih"].T + hd @ p["d_whh"].T + p["d_b"]
        i, f = sig(gates[:, :DH]), sig(gates[:, DH:2 * DH])
        g, o = jnp.tanh(gates[:, 2 * DH:3 * DH]), sig(gates[:, 3 * DH:])
        cd = f * cd + i * g
        hd = o * jnp.tanh(cd)
    return jnp.concatenate([hd, ctx], axis=1) @ p["ff_w"].T + p["ff_b"]


# ----------------------------- parameter init ---------------------------------
def make_params(key, *, input_size, T, enc_h, dec_h, out_feats):
    ks = jax.random.split(key, 16)

    def w(k, shape, scale):
        return (jax.random.normal(k, shape, jnp.float32) * scale).astype(jnp.float32)

    se = 1.0 / np.sqrt(enc_h)
    sd = 1.0 / np.sqrt(dec_h)
    p = {
        # encoder LSTM (input_size -> enc_h)
        "e_wih": w(ks[0], (4 * enc_h, input_size), se),
        "e_whh": w(ks[1], (4 * enc_h, enc_h), se),
        "e_b":   w(ks[2], (1, 4 * enc_h), se),           # b_ih + b_hh folded together
        # encoder attention linear (2*enc_h + T -> 1)
        "e_aw":  w(ks[3], (1, 2 * enc_h + T), 1.0 / np.sqrt(2 * enc_h + T)),
        "e_ab":  w(ks[4], (1, 1), 0.1),
        # decoder attention layer: Linear(2*dec_h+enc_h -> enc_h), Tanh, Linear(enc_h -> 1)
        "d_a1w": w(ks[5], (enc_h, 2 * dec_h + enc_h), 1.0 / np.sqrt(2 * dec_h + enc_h)),
        "d_a1b": w(ks[6], (1, enc_h), 0.1),
        "d_a2w": w(ks[7], (1, enc_h), se),
        "d_a2b": w(ks[8], (1, 1), 0.1),
        # decoder LSTM (out_feats -> dec_h)
        "d_wih": w(ks[9], (4 * dec_h, out_feats), sd),
        "d_whh": w(ks[10], (4 * dec_h, dec_h), sd),
        "d_b":   w(ks[11], (1, 4 * dec_h), sd),
        # fc: Linear(enc_h + out_feats -> out_feats)  (torch init: normal_())
        "fc_w":  w(ks[12], (out_feats, enc_h + out_feats), 0.1),
        "fc_b":  w(ks[13], (1, out_feats), 0.1),
        # fc_final: Linear(dec_h + enc_h -> out_feats)
        "ff_w":  w(ks[14], (out_feats, dec_h + enc_h), 1.0 / np.sqrt(dec_h + enc_h)),
        "ff_b":  w(ks[15], (1, out_feats), 0.1),
    }
    return p


# TODO(synk): MSELoss / Adam optimizers in DaRnn.__init__ are training-only and
# are not part of the forward pass, so they are intentionally not implemented.

if __name__ == "__main__":
    B, T, INPUT_SIZE = 4, 8, 16
    ENC_H, DEC_H, OUT_FEATS = 32, 32, 1

    key = jax.random.PRNGKey(0)
    kx, ky, kp = jax.random.split(key, 3)
    X = jax.random.normal(kx, (B, T, INPUT_SIZE), jnp.float32)
    y_history = jax.random.normal(ky, (B, T), jnp.float32)
    params = make_params(kp, input_size=INPUT_SIZE, T=T,
                         enc_h=ENC_H, dec_h=DEC_H, out_feats=OUT_FEATS)

    y_pred = darnn_forward(X, y_history, params)
    y_pred = jax.block_until_ready(y_pred)

    y_ref = jax.block_until_ready(darnn_reference(X, y_history, params))

    assert y_pred.shape == (B, OUT_FEATS)
    assert np.all(np.isfinite(np.asarray(y_pred)))
    np.testing.assert_allclose(np.asarray(y_pred), np.asarray(y_ref),
                               rtol=2e-2, atol=2e-2)
    print("KERNEL_OK")
</pallas_src>

<mosaic_0001>
module attributes {stable_mosaic.version = 11 : i64} {
  func.func @darnn_kernel(%arg0: memref<4x8x16xf32, #tpu.memory_space<vmem>>, %arg1: memref<4x8xf32, #tpu.memory_space<vmem>>, %arg2: memref<48x128xf32, #tpu.memory_space<vmem>>, %arg3: memref<1x128xf32, #tpu.memory_space<vmem>>, %arg4: memref<1x32xf32, #tpu.memory_space<vmem>>, %arg5: memref<1x32xf32, #tpu.memory_space<vmem>>, %arg6: memref<8x1xf32, #tpu.memory_space<vmem>>, %arg7: memref<1x1xf32, #tpu.memory_space<smem>>, %arg8: memref<64x32xf32, #tpu.memory_space<vmem>>, %arg9: memref<32x32xf32, #tpu.memory_space<vmem>>, %arg10: memref<1x32xf32, #tpu.memory_space<vmem>>, %arg11: memref<1x32xf32, #tpu.memory_space<vmem>>, %arg12: memref<1x1xf32, #tpu.memory_space<smem>>, %arg13: memref<33x128xf32, #tpu.memory_space<vmem>>, %arg14: memref<1x128xf32, #tpu.memory_space<vmem>>, %arg15: memref<32x1xf32, #tpu.memory_space<vmem>>, %arg16: memref<1x1xf32, #tpu.memory_space<vmem>>, %arg17: memref<1x1xf32, #tpu.memory_space<vmem>>, %arg18: memref<64x1xf32, #tpu.memory_space<vmem>>, %arg19: memref<1x1xf32, #tpu.memory_space<vmem>>, %arg20: memref<4x1xf32, #tpu.memory_space<vmem>>) attributes {dimension_semantics = [], scalar_prefetch = 0 : i64, scratch_operands = 0 : i64, tpu.core_type = #tpu.core_type<tc>} {
    %c0 = arith.constant 0 : index
    %c0_0 = arith.constant 0 : index
    %c0_1 = arith.constant 0 : index
    %0 = vector.load %arg0[%c0, %c0_0, %c0_1] : memref<4x8x16xf32, #tpu.memory_space<vmem>>, vector<4x8x16xf32>
    %c0_2 = arith.constant 0 : index
    %c0_3 = arith.constant 0 : index
    %1 = vector.load %arg1[%c0_2, %c0_3] : memref<4x8xf32, #tpu.memory_space<vmem>>, vector<4x8xf32>
    %c0_4 = arith.constant 0 : index
    %c0_5 = arith.constant 0 : index
    %2 = vector.load %arg2[%c0_4, %c0_5] : memref<48x128xf32, #tpu.memory_space<vmem>>, vector<48x128xf32>
    %c0_6 = arith.constant 0 : index
    %c0_7 = arith.constant 0 : index
    %3 = vector.load %arg3[%c0_6, %c0_7] : memref<1x128xf32, #tpu.memory_space<vmem>>, vector<1x128xf32>
    %c0_8 = arith.constant 0 : index
    %c0_9 = arith.constant 0 : index
    %4 = vector.load %arg4[%c0_8, %c0_9] : memref<1x32xf32, #tpu.memory_space<vmem>>, vector<1x32xf32>
    %c0_10 = arith.constant 0 : index
    %c0_11 = arith.constant 0 : index
    %5 = vector.load %arg5[%c0_10, %c0_11] : memref<1x32xf32, #tpu.memory_space<vmem>>, vector<1x32xf32>
    %c0_12 = arith.constant 0 : index
    %c0_13 = arith.constant 0 : index
    %6 = vector.load %arg6[%c0_12, %c0_13] : memref<8x1xf32, #tpu.memory_space<vmem>>, vector<8x1xf32>
    %c0_14 = arith.constant 0 : index
    %c0_15 = arith.constant 0 : index
    %7 = memref.load %arg7[%c0_14, %c0_15] : memref<1x1xf32, #tpu.memory_space<smem>>
    %c0_16 = arith.constant 0 : index
    %c0_17 = arith.constant 0 : index
    %8 = vector.load %arg8[%c0_16, %c0_17] : memref<64x32xf32, #tpu.memory_space<vmem>>, vector<64x32xf32>
    %c0_18 = arith.constant 0 : index
    %c0_19 = arith.constant 0 : index
    %9 = vector.load %arg9[%c0_18, %c0_19] : memref<32x32xf32, #tpu.memory_space<vmem>>, vector<32x32xf32>
    %c0_20 = arith.constant 0 : index
    %c0_21 = arith.constant 0 : index
    %10 = vector.load %arg10[%c0_20, %c0_21] : memref<1x32xf32, #tpu.memory_space<vmem>>, vector<1x32xf32>
    %c0_22 = arith.constant 0 : index
    %c0_23 = arith.constant 0 : index
    %11 = vector.load %arg11[%c0_22, %c0_23] : memref<1x32xf32, #tpu.memory_space<vmem>>, vector<1x32xf32>
    %c0_24 = arith.constant 0 : index
    %c0_25 = arith.constant 0 : index
    %12 = memref.load %arg12[%c0_24, %c0_25] : memref<1x1xf32, #tpu.memory_space<smem>>
    %c0_26 = arith.constant 0 : index
    %c0_27 = arith.constant 0 : index
    %13 = vector.load %arg13[%c0_26, %c0_27] : memref<33x128xf32, #tpu.memory_space<vmem>>, vector<33x128xf32>
    %c0_28 = arith.constant 0 : index
    %c0_29 = arith.constant 0 : index
    %14 = vector.load %arg14[%c0_28, %c0_29] : memref<1x128xf32, #tpu.memory_space<vmem>>, vector<1x128xf32>
    %c0_30 = arith.constant 0 : index
    %c0_31 = arith.constant 0 : index
    %15 = vector.load %arg15[%c0_30, %c0_31] : memref<32x1xf32, #tpu.memory_space<vmem>>, vector<32x1xf32>
    %c0_32 = arith.constant 0 : index
    %c0_33 = arith.constant 0 : index
    %16 = vector.load %arg16[%c0_32, %c0_33] : memref<1x1xf32, #tpu.memory_space<vmem>>, vector<1x1xf32>
    %c0_34 = arith.constant 0 : index
    %c0_35 = arith.constant 0 : index
    %17 = vector.load %arg17[%c0_34, %c0_35] : memref<1x1xf32, #tpu.memory_space<vmem>>, vector<1x1xf32>
    %c0_36 = arith.constant 0 : index
    %c0_37 = arith.constant 0 : index
    %18 = vector.load %arg18[%c0_36, %c0_37] : memref<64x1xf32, #tpu.memory_space<vmem>>, vector<64x1xf32>
    %c0_38 = arith.constant 0 : index
    %c0_39 = arith.constant 0 : index
    %19 = vector.load %arg19[%c0_38, %c0_39] : memref<1x1xf32, #tpu.memory_space<vmem>>, vector<1x1xf32>
    %20 = vector.shape_cast %3 : vector<1x128xf32> to vector<1x128xf32>
    %21 = vector.broadcast %20 : vector<1x128xf32> to vector<4x128xf32>
    %22 = vector.shape_cast %14 : vector<1x128xf32> to vector<1x128xf32>
    %23 = vector.broadcast %22 : vector<1x128xf32> to vector<4x128xf32>
    %24 = vector.shape_cast %17 : vector<1x1xf32> to vector<1x1xf32>
    %25 = vector.broadcast %24 : vector<1x1xf32> to vector<4x1xf32>
    %26 = vector.shape_cast %4 : vector<1x32xf32> to vector<1x32xf32>
    %27 = vector.broadcast %26 : vector<1x32xf32> to vector<4x32xf32>
    %28 = vector.shape_cast %5 : vector<1x32xf32> to vector<1x32xf32>
    %29 = vector.broadcast %28 : vector<1x32xf32> to vector<4x32xf32>
    %30 = vector.shape_cast %11 : vector<1x32xf32> to vector<1x1x32xf32>
    %31 = vector.shape_cast %30 : vector<1x1x32xf32> to vector<1x1x32xf32>
    %32 = vector.broadcast %31 : vector<1x1x32xf32> to vector<4x8x32xf32>
    %33 = vector.shape_cast %6 : vector<8x1xf32> to vector<1x8x1xf32>
    %34 = vector.broadcast %33 : vector<1x8x1xf32> to vector<4x8x16xf32>
    %35 = arith.mulf %0, %34 : vector<4x8x16xf32>
    %cst = arith.constant dense<0.000000e+00> : vector<4x16xf32>
    %36 = vector.multi_reduction <add>, %35, %cst [1] : vector<4x8x16xf32> to vector<4x16xf32>
    %37 = vector.broadcast %7 : f32 to vector<4x16xf32>
    %38 = arith.addf %36, %37 : vector<4x16xf32>
    %cst_40 = arith.constant 0.000000e+00 : f32
    %39 = vector.broadcast %cst_40 : f32 to vector<4x32xf32>
    %cst_41 = arith.constant 0.000000e+00 : f32
    %40 = vector.broadcast %cst_41 : f32 to vector<4x32xf32>
    %41 = arith.mulf %39, %27 : vector<4x32xf32>
    %42 = arith.mulf %40, %29 : vector<4x32xf32>
    %43 = arith.addf %41, %42 : vector<4x32xf32>
    %cst_42 = arith.constant dense<0.000000e+00> : vector<4xf32>
    %44 = vector.multi_reduction <add>, %43, %cst_42 [1] : vector<4x32xf32> to vector<4xf32>
    %45 = vector.shape_cast %44 : vector<4xf32> to vector<4x1xf32>
    %46 = vector.broadcast %45 : vector<4x1xf32> to vector<4x16xf32>
    %47 = arith.addf %38, %46 : vector<4x16xf32>
    %cst_43 = arith.constant dense<0xFF800000> : vector<4xf32>
    %48 = vector.multi_reduction <maximumf>, %47, %cst_43 [1] : vector<4x16xf32> to vector<4xf32>
    %49 = vector.shape_cast %48 : vector<4xf32> to vector<4x1xf32>
    %50 = vector.broadcast %49 : vector<4x1xf32> to vector<4x16xf32>
    %51 = arith.subf %47, %50 : vector<4x16xf32>
    %52 = math.exp %51 : vector<4x16xf32>
    %cst_44 = arith.constant dense<0.000000e+00> : vector<4xf32>
    %53 = vector.multi_reduction <add>, %52, %cst_44 [1] : vector<4x16xf32> to vector<4xf32>
    %54 = vector.shape_cast %53 : vector<4xf32> to vector<4x1xf32>
    %55 = tpu.reciprocal %54 {approx = true} : vector<4x1xf32> -> vector<4x1xf32>
    %56 = vector.broadcast %55 : vector<4x1xf32> to vector<4x16xf32>
    %57 = arith.mulf %52, %56 : vector<4x16xf32>
    %58 = vector.extract_strided_slice %0 {offsets = [0, 0, 0], sizes = [4, 1, 16], strides = [1, 1, 1]} : vector<4x8x16xf32> to vector<4x1x16xf32>
    %59 = vector.shape_cast %58 : vector<4x1x16xf32> to vector<4x16xf32>
    %60 = arith.mulf %57, %59 : vector<4x16xf32>
    %61 = tpu.concatenate %60, %39 in 1 : vector<4x16xf32>, vector<4x32xf32> -> vector<4x48xf32>
    %cst_45 = arith.constant dense<0.000000e+00> : vector<4x128xf32>
    %62 = tpu.matmul %61, %2, %cst_45 {dimension_numbers = #tpu.dot_dimension_numbers<[1], [0], [0], [1], [0, 0, 1, 1], [], []>} : vector<4x48xf32>, vector<48x128xf32>, vector<4x128xf32> -> vector<4x128xf32>
    %63 = arith.addf %62, %21 : vector<4x128xf32>
    %64 = vector.extract_strided_slice %63 {offsets = [0, 0], sizes = [4, 32], strides = [1, 1]} : vector<4x128xf32> to vector<4x32xf32>
    %65 = arith.negf %64 : vector<4x32xf32>
    %66 = math.exp %65 : vector<4x32xf32>
    %cst_46 = arith.constant 1.000000e+00 : f32
    %67 = vector.broadcast %cst_46 : f32 to vector<4x32xf32>
    %68 = arith.addf %67, %66 : vector<4x32xf32>
    %69 = arith.divf %67, %68 : vector<4x32xf32>
    %70 = vector.extract_strided_slice %63 {offsets = [0, 32], sizes = [4, 32], strides = [1, 1]} : vector<4x128xf32> to vector<4x32xf32>
    %71 = arith.negf %70 : vector<4x32xf32>
    %72 = math.exp %71 : vector<4x32xf32>
    %cst_47 = arith.constant 1.000000e+00 : f32
    %73 = vector.broadcast %cst_47 : f32 to vector<4x32xf32>
    %74 = arith.addf %73, %72 : vector<4x32xf32>
    %75 = arith.divf %73, %74 : vector<4x32xf32>
    %76 = vector.extract_strided_slice %63 {offsets = [0, 64], sizes = [4, 32], strides = [1, 1]} : vector<4x128xf32> to vector<4x32xf32>
    %77 = math.tanh %76 : vector<4x32xf32>
    %78 = vector.extract_strided_slice %63 {offsets = [0, 96], sizes = [4, 32], strides = [1, 1]} : vector<4x128xf32> to vector<4x32xf32>
    %79 = arith.negf %78 : vector<4x32xf32>
    %80 = math.exp %79 : vector<4x32xf32>
    %cst_48 = arith.constant 1.000000e+00 : f32
    %81 = vector.broadcast %cst_48 : f32 to vector<4x32xf32>
    %82 = arith.addf %81, %80 : vector<4x32xf32>
    %83 = arith.divf %81, %82 : vector<4x32xf32>
    %84 = arith.mulf %75, %40 : vector<4x32xf32>
    %85 = arith.mulf %69, %77 : vector<4x32xf32>
    %86 = arith.addf %84, %85 : vector<4x32xf32>
    %87 = math.tanh %86 : vector<4x32xf32>
    %88 = arith.mulf %83, %87 : vector<4x32xf32>
    %89 = arith.mulf %88, %27 : vector<4x32xf32>
    %90 = arith.mulf %86, %29 : vector<4x32xf32>
    %91 = arith.addf %89, %90 : vector<4x32xf32>
    %cst_49 = arith.constant dense<0.000000e+00> : vector<4xf32>
    %92 = vector.multi_reduction <add>, %91, %cst_49 [1] : vector<4x32xf32> to vector<4xf32>
    %93 = vector.shape_cast %92 : vector<4xf32> to vector<4x1xf32>
    %94 = vector.broadcast %93 : vector<4x1xf32> to vector<4x16xf32>
    %95 = arith.addf %38, %94 : vector<4x16xf32>
    %cst_50 = arith.constant dense<0xFF800000> : vector<4xf32>
    %96 = vector.multi_reduction <maximumf>, %95, %cst_50 [1] : vector<4x16xf32> to vector<4xf32>
    %97 = vector.shape_cast %96 : vector<4xf32> to vector<4x1xf32>
    %98 = vector.broadcast %97 : vector<4x1xf32> to vector<4x16xf32>
    %99 = arith.subf %95, %98 : vector<4x16xf32>
    %100 = math.exp %99 : vector<4x16xf32>
    %cst_51 = arith.constant dense<0.000000e+00> : vector<4xf32>
    %101 = vector.multi_reduction <add>, %100, %cst_51 [1] : vector<4x16xf32> to vector<4xf32>
    %102 = vector.shape_cast %101 : vector<4xf32> to vector<4x1xf32>
    %103 = tpu.reciprocal %102 {approx = true} : vector<4x1xf32> -> vector<4x1xf32>
    %104 = vector.broadcast %103 : vector<4x1xf32> to vector<4x16xf32>
    %105 = arith.mulf %100, %104 : vector<4x16xf32>
    %106 = vector.extract_strided_slice %0 {offsets = [0, 1, 0], sizes = [4, 1, 16], strides = [1, 1, 1]} : vector<4x8x16xf32> to vector<4x1x16xf32>
    %107 = vector.shape_cast %106 : vector<4x1x16xf32> to vector<4x16xf32>
    %108 = arith.mulf %105, %107 : vector<4x16xf32>
    %109 = tpu.concatenate %108, %88 in 1 : vector<4x16xf32>, vector<4x32xf32> -> vector<4x48xf32>
    %cst_52 = arith.constant dense<0.000000e+00> : vector<4x128xf32>
    %110 = tpu.matmul %109, %2, %cst_52 {dimension_numbers = #tpu.dot_dimension_numbers<[1], [0], [0], [1], [0, 0, 1, 1], [], []>} : vector<4x48xf32>, vector<48x128xf32>, vector<4x128xf32> -> vector<4x128xf32>
    %111 = arith.addf %110, %21 : vector<4x128xf32>
    %112 = vector.extract_strided_slice %111 {offsets = [0, 0], sizes = [4, 32], strides = [1, 1]} : vector<4x128xf32> to vector<4x32xf32>
    %113 = arith.negf %112 : vector<4x32xf32>
    %114 = math.exp %113 : vector<4x32xf32>
    %cst_53 = arith.constant 1.000000e+00 : f32
    %115 = vector.broadcast %cst_53 : f32 to vector<4x32xf32>
    %116 = arith.addf %115, %114 : vector<4x32xf32>
    %117 = arith.divf %115, %116 : vector<4x32xf32>
    %118 = vector.extract_strided_slice %111 {offsets = [0, 32], sizes = [4, 32], strides = [1, 1]} : vector<4x128xf32> to vector<4x32xf32>
    %119 = arith.negf %118 : vector<4x32xf32>
    %120 = math.exp %119 : vector<4x32xf32>
    %cst_54 = arith.constant 1.000000e+00 : f32
    %121 = vector.broadcast %cst_54 : f32 to vector<4x32xf32>
    %122 = arith.addf %121, %120 : vector<4x32xf32>
    %123 = arith.divf %121, %122 : vector<4x32xf32>
    %124 = vector.extract_strided_slice %111 {offsets = [0, 64], sizes = [4, 32], strides = [1, 1]} : vector<4x128xf32> to vector<4x32xf32>
    %125 = math.tanh %124 : vector<4x32xf32>
    %126 = vector.extract_strided_slice %111 {offsets = [0, 96], sizes = [4, 32], strides = [1, 1]} : vector<4x128xf32> to vector<4x32xf32>
    %127 = arith.negf %126 : vector<4x32xf32>
    %128 = math.exp %127 : vector<4x32xf32>
    %cst_55 = arith.constant 1.000000e+00 : f32
    %129 = vector.broadcast %cst_55 : f32 to vector<4x32xf32>
    %130 = arith.addf %129, %128 : vector<4x32xf32>
    %131 = arith.divf %129, %130 : vector<4x32xf32>
    %132 = arith.mulf %123, %86 : vector<4x32xf32>
    %133 = arith.mulf %117, %125 : vector<4x32xf32>
    %134 = arith.addf %132, %133 : vector<4x32xf32>
    %135 = math.tanh %134 : vector<4x32xf32>
    %136 = arith.mulf %131, %135 : vector<4x32xf32>
    %137 = arith.mulf %136, %27 : vector<4x32xf32>
    %138 = arith.mulf %134, %29 : vector<4x32xf32>
    %139 = arith.addf %137, %138 : vector<4x32xf32>
    %cst_56 = arith.constant dense<0.000000e+00> : vector<4xf32>
    %140 = vector.multi_reduction <add>, %139, %cst_56 [1] : vector<4x32xf32> to vector<4xf32>
    %141 = vector.shape_cast %140 : vector<4xf32> to vector<4x1xf32>
    %142 = vector.broadcast %141 : vector<4x1xf32> to vector<4x16xf32>
    %143 = arith.addf %38, %142 : vector<4x16xf32>
    %cst_57 = arith.constant dense<0xFF800000> : vector<4xf32>
    %144 = vector.multi_reduction <maximumf>, %143, %cst_57 [1] : vector<4x16xf32> to vector<4xf32>
    %145 = vector.shape_cast %144 : vector<4xf32> to vector<4x1xf32>
    %146 = vector.broadcast %145 : vector<4x1xf32> to vector<4x16xf32>
    %147 = arith.subf %143, %146 : vector<4x16xf32>
    %148 = math.exp %147 : vector<4x16xf32>
    %cst_58 = arith.constant dense<0.000000e+00> : vector<4xf32>
    %149 = vector.multi_reduction <add>, %148, %cst_58 [1] : vector<4x16xf32> to vector<4xf32>
    %150 = vector.shape_cast %149 : vector<4xf32> to vector<4x1xf32>
    %151 = tpu.reciprocal %150 {approx = true} : vector<4x1xf32> -> vector<4x1xf32>
    %152 = vector.broadcast %151 : vector<4x1xf32> to vector<4x16xf32>
    %153 = arith.mulf %148, %152 : vector<4x16xf32>
    %154 = vector.extract_strided_slice %0 {offsets = [0, 2, 0], sizes = [4, 1, 16], strides = [1, 1, 1]} : vector<4x8x16xf32> to vector<4x1x16xf32>
    %155 = vector.shape_cast %154 : vector<4x1x16xf32> to vector<4x16xf32>
    %156 = arith.mulf %153, %155 : vector<4x16xf32>
    %157 = tpu.concatenate %156, %136 in 1 : vector<4x16xf32>, vector<4x32xf32> -> vector<4x48xf32>
    %cst_59 = arith.constant dense<0.000000e+00> : vector<4x128xf32>
    %158 = tpu.matmul %157, %2, %cst_59 {dimension_numbers = #tpu.dot_dimension_numbers<[1], [0], [0], [1], [0, 0, 1, 1], [], []>} : vector<4x48xf32>, vector<48x128xf32>, vector<4x128xf32> -> vector<4x128xf32>
    %159 = arith.addf %158, %21 : vector<4x128xf32>
    %160 = vector.extract_strided_slice %159 {offsets = [0, 0], sizes = [4, 32], strides = [1, 1]} : vector<4x128xf32> to vector<4x32xf32>
    %161 = arith.negf %160 : vector<4x32xf32>
    %162 = math.exp %161 : vector<4x32xf32>
    %cst_60 = arith.constant 1.000000e+00 : f32
    %163 = vector.broadcast %cst_60 : f32 to vector<4x32xf32>
    %164 = arith.addf %163, %162 : vector<4x32xf32>
    %165 = arith.divf %163, %164 : vector<4x32xf32>
    %166 = vector.extract_strided_slice %159 {offsets = [0, 32], sizes = [4, 32], strides = [1, 1]} : vector<4x128xf32> to vector<4x32xf32>
    %167 = arith.negf %166 : vector<4x32xf32>
    %168 = math.exp %167 : vector<4x32xf32>
    %cst_61 = arith.constant 1.000000e+00 : f32
    %169 = vector.broadcast %cst_61 : f32 to vector<4x32xf32>
    %170 = arith.addf %169, %168 : vector<4x32xf32>
    %171 = arith.divf %169, %170 : vector<4x32xf32>
    %172 = vector.extract_strided_slice %159 {offsets = [0, 64], sizes = [4, 32], strides = [1, 1]} : vector<4x128xf32> to vector<4x32xf32>
    %173 = math.tanh %172 : vector<4x32xf32>
    %174 = vector.extract_strided_slice %159 {offsets = [0, 96], sizes = [4, 32], strides = [1, 1]} : vector<4x128xf32> to vector<4x32xf32>
    %175 = arith.negf %174 : vector<4x32xf32>
    %176 = math.exp %175 : vector<4x32xf32>
    %cst_62 = arith.constant 1.000000e+00 : f32
    %177 = vector.broadcast %cst_62 : f32 to vector<4x32xf32>
    %178 = arith.addf %177, %176 : vector<4x32xf32>
    %179 = arith.divf %177, %178 : vector<4x32xf32>
    %180 = arith.mulf %171, %134 : vector<4x32xf32>
    %181 = arith.mulf %165, %173 : vector<4x32xf32>
    %182 = arith.addf %180, %181 : vector<4x32xf32>
    %183 = math.tanh %182 : vector<4x32xf32>
    %184 = arith.mulf %179, %183 : vector<4x32xf32>
    %185 = arith.mulf %184, %27 : vector<4x32xf32>
    %186 = arith.mulf %182, %29 : vector<4x32xf32>
    %187 = arith.addf %185, %186 : vector<4x32xf32>
    %cst_63 = arith.constant dense<0.000000e+00> : vector<4xf32>
    %188 = vector.multi_reduction <add>, %187, %cst_63 [1] : vector<4x32xf32> to vector<4xf32>
    %189 = vector.shape_cast %188 : vector<4xf32> to vector<4x1xf32>
    %190 = vector.broadcast %189 : vector<4x1xf32> to vector<4x16xf32>
    %191 = arith.addf %38, %190 : vector<4x16xf32>
    %cst_64 = arith.constant dense<0xFF800000> : vector<4xf32>
    %192 = vector.multi_reduction <maximumf>, %191, %cst_64 [1] : vector<4x16xf32> to vector<4xf32>
    %193 = vector.shape_cast %192 : vector<4xf32> to vector<4x1xf32>
    %194 = vector.broadcast %193 : vector<4x1xf32> to vector<4x16xf32>
    %195 = arith.subf %191, %194 : vector<4x16xf32>
    %196 = math.exp %195 : vector<4x16xf32>
    %cst_65 = arith.constant dense<0.000000e+00> : vector<4xf32>
    %197 = vector.multi_reduction <add>, %196, %cst_65 [1] : vector<4x16xf32> to vector<4xf32>
    %198 = vector.shape_cast %197 : vector<4xf32> to vector<4x1xf32>
    %199 = tpu.reciprocal %198 {approx = true} : vector<4x1xf32> -> vector<4x1xf32>
    %200 = vector.broadcast %199 : vector<4x1xf32> to vector<4x16xf32>
    %201 = arith.mulf %196, %200 : vector<4x16xf32>
    %202 = vector.extract_strided_slice %0 {offsets = [0, 3, 0], sizes = [4, 1, 16], strides = [1, 1, 1]} : vector<4x8x16xf32> to vector<4x1x16xf32>
    %203 = vector.shape_cast %202 : vector<4x1x16xf32> to vector<4x16xf32>
    %204 = arith.mulf %201, %203 : vector<4x16xf32>
    %205 = tpu.concatenate %204, %184 in 1 : vector<4x16xf32>, vector<4x32xf32> -> vector<4x48xf32>
    %cst_66 = arith.constant dense<0.000000e+00> : vector<4x128xf32>
    %206 = tpu.matmul %205, %2, %cst_66 {dimension_numbers = #tpu.dot_dimension_numbers<[1], [0], [0], [1], [0, 0, 1, 1], [], []>} : vector<4x48xf32>, vector<48x128xf32>, vector<4x128xf32> -> vector<4x128xf32>
    %207 = arith.addf %206, %21 : vector<4x128xf32>
    %208 = vector.extract_strided_slice %207 {offsets = [0, 0], sizes = [4, 32], strides = [1, 1]} : vector<4x128xf32> to vector<4x32xf32>
    %209 = arith.negf %208 : vector<4x32xf32>
    %210 = math.exp %209 : vector<4x32xf32>
    %cst_67 = arith.constant 1.000000e+00 : f32
    %211 = vector.broadcast %cst_67 : f32 to vector<4x32xf32>
    %212 = arith.addf %211, %210 : vector<4x32xf32>
    %213 = arith.divf %211, %212 : vector<4x32xf32>
    %214 = vector.extract_strided_slice %207 {offsets = [0, 32], sizes = [4, 32], strides = [1, 1]} : vector<4x128xf32> to vector<4x32xf32>
    %215 = arith.negf %214 : vector<4x32xf32>
    %216 = math.exp %215 : vector<4x32xf32>
    %cst_68 = arith.constant 1.000000e+00 : f32
    %217 = vector.broadcast %cst_68 : f32 to vector<4x32xf32>
    %218 = arith.addf %217, %216 : vector<4x32xf32>
    %219 = arith.divf %217, %218 : vector<4x32xf32>
    %220 = vector.extract_strided_slice %207 {offsets = [0, 64], sizes = [4, 32], strides = [1, 1]} : vector<4x128xf32> to vector<4x32xf32>
    %221 = math.tanh %220 : vector<4x32xf32>
    %222 = vector.extract_strided_slice %207 {offsets = [0, 96], sizes = [4, 32], strides = [1, 1]} : vector<4x128xf32> to vector<4x32xf32>
    %223 = arith.negf %222 : vector<4x32xf32>
    %224 = math.exp %223 : vector<4x32xf32>
    %cst_69 = arith.constant 1.000000e+00 : f32
    %225 = vector.broadcast %cst_69 : f32 to vector<4x32xf32>
    %226 = arith.addf %225, %224 : vector<4x32xf32>
    %227 = arith.divf %225, %226 : vector<4x32xf32>
    %228 = arith.mulf %219, %182 : vector<4x32xf32>
    %229 = arith.mulf %213, %221 : vector<4x32xf32>
    %230 = arith.addf %228, %229 : vector<4x32xf32>
    %231 = math.tanh %230 : vector<4x32xf32>
    %232 = arith.mulf %227, %231 : vector<4x32xf32>
    %233 = arith.mulf %232, %27 : vector<4x32xf32>
    %234 = arith.mulf %230, %29 : vector<4x32xf32>
    %235 = arith.addf %233, %234 : vector<4x32xf32>
    %cst_70 = arith.constant dense<0.000000e+00> : vector<4xf32>
    %236 = vector.multi_reduction <add>, %235, %cst_70 [1] : vector<4x32xf32> to vector<4xf32>
    %237 = vector.shape_cast %236 : vector<4xf32> to vector<4x1xf32>
    %238 = vector.broadcast %237 : vector<4x1xf32> to vector<4x16xf32>
    %239 = arith.addf %38, %238 : vector<4x16xf32>
    %cst_71 = arith.constant dense<0xFF800000> : vector<4xf32>
    %240 = vector.multi_reduction <maximumf>, %239, %cst_71 [1] : vector<4x16xf32> to vector<4xf32>
    %241 = vector.shape_cast %240 : vector<4xf32> to vector<4x1xf32>
    %242 = vector.broadcast %241 : vector<4x1xf32> to vector<4x16xf32>
    %243 = arith.subf %239, %242 : vector<4x16xf32>
    %244 = math.exp %243 : vector<4x16xf32>
    %cst_72 = arith.constant dense<0.000000e+00> : vector<4xf32>
    %245 = vector.multi_reduction <add>, %244, %cst_72 [1] : vector<4x16xf32> to vector<4xf32>
    %246 = vector.shape_cast %245 : vector<4xf32> to vector<4x1xf32>
    %247 = tpu.reciprocal %246 {approx = true} : vector<4x1xf32> -> vector<4x1xf32>
    %248 = vector.broadcast %247 : vector<4x1xf32> to vector<4x16xf32>
    %249 = arith.mulf %244, %248 : vector<4x16xf32>
    %250 = vector.extract_strided_slice %0 {offsets = [0, 4, 0], sizes = [4, 1, 16], strides = [1, 1, 1]} : vector<4x8x16xf32> to vector<4x1x16xf32>
    %251 = vector.shape_cast %250 : vector<4x1x16xf32> to vector<4x16xf32>
    %252 = arith.mulf %249, %251 : vector<4x16xf32>
    %253 = tpu.concatenate %252, %232 in 1 : vector<4x16xf32>, vector<4x32xf32> -> vector<4x48xf32>
    %cst_73 = arith.constant dense<0.000000e+00> : vector<4x128xf32>
    %254 = tpu.matmul %253, %2, %cst_73 {dimension_numbers = #tpu.dot_dimension_numbers<[1], [0], [0], [1], [0, 0, 1, 1], [], []>} : vector<4x48xf32>, vector<48x128xf32>, vector<4x128xf32> -> vector<4x128xf32>
    %255 = arith.addf %254, %21 : vector<4x128xf32>
    %256 = vector.extract_strided_slice %255 {offsets = [0, 0], sizes = [4, 32], strides = [1, 1]} : vector<4x128xf32> to vector<4x32xf32>
    %257 = arith.negf %256 : vector<4x32xf32>
    %258 = math.exp %257 : vector<4x32xf32>
    %cst_74 = arith.constant 1.000000e+00 : f32
    %259 = vector.broadcast %cst_74 : f32 to vector<4x32xf32>
    %260 = arith.addf %259, %258 : vector<4x32xf32>
    %261 = arith.divf %259, %260 : vector<4x32xf32>
    %262 = vector.extract_strided_slice %255 {offsets = [0, 32], sizes = [4, 32], strides = [1, 1]} : vector<4x128xf32> to vector<4x32xf32>
    %263 = arith.negf %262 : vector<4x32xf32>
    %264 = math.exp %263 : vector<4x32xf32>
    %cst_75 = arith.constant 1.000000e+00 : f32
    %265 = vector.broadcast %cst_75 : f32 to vector<4x32xf32>
    %266 = arith.addf %265, %264 : vector<4x32xf32>
    %267 = arith.divf %265, %266 : vector<4x32xf32>
    %268 = vector.extract_strided_slice %255 {offsets = [0, 64], sizes = [4, 32], strides = [1, 1]} : vector<4x128xf32> to vector<4x32xf32>
    %269 = math.tanh %268 : vector<4x32xf32>
    %270 = vector.extract_strided_slice %255 {offsets = [0, 96], sizes = [4, 32], strides = [1, 1]} : vector<4x128xf32> to vector<4x32xf32>
    %271 = arith.negf %270 : vector<4x32xf32>
    %272 = math.exp %271 : vector<4x32xf32>
    %cst_76 = arith.constant 1.000000e+00 : f32
    %273 = vector.broadcast %cst_76 : f32 to vector<4x32xf32>
    %274 = arith.addf %273, %272 : vector<4x32xf32>
    %275 = arith.divf %273, %274 : vector<4x32xf32>
    %276 = arith.mulf %267, %230 : vector<4x32xf32>
    %277 = arith.mulf %261, %269 : vector<4x32xf32>
    %278 = arith.addf %276, %277 : vector<4x32xf32>
    %279 = math.tanh %278 : vector<4x32xf32>
    %280 = arith.mulf %275, %279 : vector<4x32xf32>
    %281 = arith.mulf %280, %27 : vector<4x32xf32>
    %282 = arith.mulf %278, %29 : vector<4x32xf32>
    %283 = arith.addf %281, %282 : vector<4x32xf32>
    %cst_77 = arith.constant dense<0.000000e+00> : vector<4xf32>
    %284 = vector.multi_reduction <add>, %283, %cst_77 [1] : vector<4x32xf32> to vector<4xf32>
    %285 = vector.shape_cast %284 : vector<4xf32> to vector<4x1xf32>
    %286 = vector.broadcast %285 : vector<4x1xf32> to vector<4x16xf32>
    %287 = arith.addf %38, %286 : vector<4x16xf32>
    %cst_78 = arith.constant dense<0xFF800000> : vector<4xf32>
    %288 = vector.multi_reduction <maximumf>, %287, %cst_78 [1] : vector<4x16xf32> to vector<4xf32>
    %289 = vector.shape_cast %288 : vector<4xf32> to vector<4x1xf32>
    %290 = vector.broadcast %289 : vector<4x1xf32> to vector<4x16xf32>
    %291 = arith.subf %287, %290 : vector<4x16xf32>
    %292 = math.exp %291 : vector<4x16xf32>
    %cst_79 = arith.constant dense<0.000000e+00> : vector<4xf32>
    %293 = vector.multi_reduction <add>, %292, %cst_79 [1] : vector<4x16xf32> to vector<4xf32>
    %294 = vector.shape_cast %293 : vector<4xf32> to vector<4x1xf32>
    %295 = tpu.reciprocal %294 {approx = true} : vector<4x1xf32> -> vector<4x1xf32>
    %296 = vector.broadcast %295 : vector<4x1xf32> to vector<4x16xf32>
    %297 = arith.mulf %292, %296 : vector<4x16xf32>
    %298 = vector.extract_strided_slice %0 {offsets = [0, 5, 0], sizes = [4, 1, 16], strides = [1, 1, 1]} : vector<4x8x16xf32> to vector<4x1x16xf32>
    %299 = vector.shape_cast %298 : vector<4x1x16xf32> to vector<4x16xf32>
    %300 = arith.mulf %297, %299 : vector<4x16xf32>
    %301 = tpu.concatenate %300, %280 in 1 : vector<4x16xf32>, vector<4x32xf32> -> vector<4x48xf32>
    %cst_80 = arith.constant dense<0.000000e+00> : vector<4x128xf32>
    %302 = tpu.matmul %301, %2, %cst_80 {dimension_numbers = #tpu.dot_dimension_numbers<[1], [0], [0], [1], [0, 0, 1, 1], [], []>} : vector<4x48xf32>, vector<48x128xf32>, vector<4x128xf32> -> vector<4x128xf32>
    %303 = arith.addf %302, %21 : vector<4x128xf32>
    %304 = vector.extract_strided_slice %303 {offsets = [0, 0], sizes = [4, 32], strides = [1, 1]} : vector<4x128xf32> to vector<4x32xf32>
    %305 = arith.negf %304 : vector<4x32xf32>
    %306 = math.exp %305 : vector<4x32xf32>
    %cst_81 = arith.constant 1.000000e+00 : f32
    %307 = vector.broadcast %cst_81 : f32 to vector<4x32xf32>
    %308 = arith.addf %307, %306 : vector<4x32xf32>
    %309 = arith.divf %307, %308 : vector<4x32xf32>
    %310 = vector.extract_strided_slice %303 {offsets = [0, 32], sizes = [4, 32], strides = [1, 1]} : vector<4x128xf32> to vector<4x32xf32>
    %311 = arith.negf %310 : vector<4x32xf32>
    %312 = math.exp %311 : vector<4x32xf32>
    %cst_82 = arith.constant 1.000000e+00 : f32
    %313 = vector.broadcast %cst_82 : f32 to vector<4x32xf32>
    %314 = arith.addf %313, %312 : vector<4x32xf32>
    %315 = arith.divf %313, %314 : vector<4x32xf32>
    %316 = vector.extract_strided_slice %303 {offsets = [0, 64], sizes = [4, 32], strides = [1, 1]} : vector<4x128xf32> to vector<4x32xf32>
    %317 = math.tanh %316 : vector<4x32xf32>
    %318 = vector.extract_strided_slice %303 {offsets = [0, 96], sizes = [4, 32], strides = [1, 1]} : vector<4x128xf32> to vector<4x32xf32>
    %319 = arith.negf %318 : vector<4x32xf32>
    %320 = math.exp %319 : vector<4x32xf32>
    %cst_83 = arith.constant 1.000000e+00 : f32
    %321 = vector.broadcast %cst_83 : f32 to vector<4x32xf32>
    %322 = arith.addf %321, %320 : vector<4x32xf32>
    %323 = arith.divf %321, %322 : vector<4x32xf32>
    %324 = arith.mulf %315, %278 : vector<4x32xf32>
    %325 = arith.mulf %309, %317 : vector<4x32xf32>
    %326 = arith.addf %324, %325 : vector<4x32xf32>
    %327 = math.tanh %326 : vector<4x32xf32>
    %328 = arith.mulf %323, %327 : vector<4x32xf32>
    %329 = arith.mulf %328, %27 : vector<4x32xf32>
    %330 = arith.mulf %326, %29 : vector<4x32xf32>
    %331 = arith.addf %329, %330 : vector<4x32xf32>
    %cst_84 = arith.constant dense<0.000000e+00> : vector<4xf32>
    %332 = vector.multi_reduction <add>, %331, %cst_84 [1] : vector<4x32xf32> to vector<4xf32>
    %333 = vector.shape_cast %332 : vector<4xf32> to vector<4x1xf32>
    %334 = vector.broadcast %333 : vector<4x1xf32> to vector<4x16xf32>
    %335 = arith.addf %38, %334 : vector<4x16xf32>
    %cst_85 = arith.constant dense<0xFF800000> : vector<4xf32>
    %336 = vector.multi_reduction <maximumf>, %335, %cst_85 [1] : vector<4x16xf32> to vector<4xf32>
    %337 = vector.shape_cast %336 : vector<4xf32> to vector<4x1xf32>
    %338 = vector.broadcast %337 : vector<4x1xf32> to vector<4x16xf32>
    %339 = arith.subf %335, %338 : vector<4x16xf32>
    %340 = math.exp %339 : vector<4x16xf32>
    %cst_86 = arith.constant dense<0.000000e+00> : vector<4xf32>
    %341 = vector.multi_reduction <add>, %340, %cst_86 [1] : vector<4x16xf32> to vector<4xf32>
    %342 = vector.shape_cast %341 : vector<4xf32> to vector<4x1xf32>
    %343 = tpu.reciprocal %342 {approx = true} : vector<4x1xf32> -> vector<4x1xf32>
    %344 = vector.broadcast %343 : vector<4x1xf32> to vector<4x16xf32>
    %345 = arith.mulf %340, %344 : vector<4x16xf32>
    %346 = vector.extract_strided_slice %0 {offsets = [0, 6, 0], sizes = [4, 1, 16], strides = [1, 1, 1]} : vector<4x8x16xf32> to vector<4x1x16xf32>
    %347 = vector.shape_cast %346 : vector<4x1x16xf32> to vector<4x16xf32>
    %348 = arith.mulf %345, %347 : vector<4x16xf32>
    %349 = tpu.concatenate %348, %328 in 1 : vector<4x16xf32>, vector<4x32xf32> -> vector<4x48xf32>
    %cst_87 = arith.constant dense<0.000000e+00> : vector<4x128xf32>
    %350 = tpu.matmul %349, %2, %cst_87 {dimension_numbers = #tpu.dot_dimension_numbers<[1], [0], [0], [1], [0, 0, 1, 1], [], []>} : vector<4x48xf32>, vector<48x128xf32>, vector<4x128xf32> -> vector<4x128xf32>
    %351 = arith.addf %350, %21 : vector<4x128xf32>
    %352 = vector.extract_strided_slice %351 {offsets = [0, 0], sizes = [4, 32], strides = [1, 1]} : vector<4x128xf32> to vector<4x32xf32>
    %353 = arith.negf %352 : vector<4x32xf32>
    %354 = math.exp %353 : vector<4x32xf32>
    %cst_88 = arith.constant 1.000000e+00 : f32
    %355 = vector.broadcast %cst_88 : f32 to vector<4x32xf32>
    %356 = arith.addf %355, %354 : vector<4x32xf32>
    %357 = arith.divf %355, %356 : vector<4x32xf32>
    %358 = vector.extract_strided_slice %351 {offsets = [0, 32], sizes = [4, 32], strides = [1, 1]} : vector<4x128xf32> to vector<4x32xf32>
    %359 = arith.negf %358 : vector<4x32xf32>
    %360 = math.exp %359 : vector<4x32xf32>
    %cst_89 = arith.constant 1.000000e+00 : f32
    %361 = vector.broadcast %cst_89 : f32 to vector<4x32xf32>
    %362 = arith.addf %361, %360 : vector<4x32xf32>
    %363 = arith.divf %361, %362 : vector<4x32xf32>
    %364 = vector.extract_strided_slice %351 {offsets = [0, 64], sizes = [4, 32], strides = [1, 1]} : vector<4x128xf32> to vector<4x32xf32>
    %365 = math.tanh %364 : vector<4x32xf32>
    %366 = vector.extract_strided_slice %351 {offsets = [0, 96], sizes = [4, 32], strides = [1, 1]} : vector<4x128xf32> to vector<4x32xf32>
    %367 = arith.negf %366 : vector<4x32xf32>
    %368 = math.exp %367 : vector<4x32xf32>
    %cst_90 = arith.constant 1.000000e+00 : f32
    %369 = vector.broadcast %cst_90 : f32 to vector<4x32xf32>
    %370 = arith.addf %369, %368 : vector<4x32xf32>
    %371 = arith.divf %369, %370 : vector<4x32xf32>
    %372 = arith.mulf %363, %326 : vector<4x32xf32>
    %373 = arith.mulf %357, %365 : vector<4x32xf32>
    %374 = arith.addf %372, %373 : vector<4x32xf32>
    %375 = math.tanh %374 : vector<4x32xf32>
    %376 = arith.mulf %371, %375 : vector<4x32xf32>
    %377 = arith.mulf %376, %27 : vector<4x32xf32>
    %378 = arith.mulf %374, %29 : vector<4x32xf32>
    %379 = arith.addf %377, %378 : vector<4x32xf32>
    %cst_91 = arith.constant dense<0.000000e+00> : vector<4xf32>
    %380 = vector.multi_reduction <add>, %379, %cst_91 [1] : vector<4x32xf32> to vector<4xf32>
    %381 = vector.shape_cast %380 : vector<4xf32> to vector<4x1xf32>
    %382 = vector.broadcast %381 : vector<4x1xf32> to vector<4x16xf32>
    %383 = arith.addf %38, %382 : vector<4x16xf32>
    %cst_92 = arith.constant dense<0xFF800000> : vector<4xf32>
    %384 = vector.multi_reduction <maximumf>, %383, %cst_92 [1] : vector<4x16xf32> to vector<4xf32>
    %385 = vector.shape_cast %384 : vector<4xf32> to vector<4x1xf32>
    %386 = vector.broadcast %385 : vector<4x1xf32> to vector<4x16xf32>
    %387 = arith.subf %383, %386 : vector<4x16xf32>
    %388 = math.exp %387 : vector<4x16xf32>
    %cst_93 = arith.constant dense<0.000000e+00> : vector<4xf32>
    %389 = vector.multi_reduction <add>, %388, %cst_93 [1] : vector<4x16xf32> to vector<4xf32>
    %390 = vector.shape_cast %389 : vector<4xf32> to vector<4x1xf32>
    %391 = tpu.reciprocal %390 {approx = true} : vector<4x1xf32> -> vector<4x1xf32>
    %392 = vector.broadcast %391 : vector<4x1xf32> to vector<4x16xf32>
    %393 = arith.mulf %388, %392 : vector<4x16xf32>
    %394 = vector.extract_strided_slice %0 {offsets = [0, 7, 0], sizes = [4, 1, 16], strides = [1, 1, 1]} : vector<4x8x16xf32> to vector<4x1x16xf32>
    %395 = vector.shape_cast %394 : vector<4x1x16xf32> to vector<4x16xf32>
    %396 = arith.mulf %393, %395 : vector<4x16xf32>
    %397 = tpu.concatenate %396, %376 in 1 : vector<4x16xf32>, vector<4x32xf32> -> vector<4x48xf32>
    %cst_94 = arith.constant dense<0.000000e+00> : vector<4x128xf32>
    %398 = tpu.matmul %397, %2, %cst_94 {dimension_numbers = #tpu.dot_dimension_numbers<[1], [0], [0], [1], [0, 0, 1, 1], [], []>} : vector<4x48xf32>, vector<48x128xf32>, vector<4x128xf32> -> vector<4x128xf32>
    %399 = arith.addf %398, %21 : vector<4x128xf32>
    %400 = vector.extract_strided_slice %399 {offsets = [0, 0], sizes = [4, 32], strides = [1, 1]} : vector<4x128xf32> to vector<4x32xf32>
    %401 = arith.negf %400 : vector<4x32xf32>
    %402 = math.exp %401 : vector<4x32xf32>
    %cst_95 = arith.constant 1.000000e+00 : f32
    %403 = vector.broadcast %cst_95 : f32 to vector<4x32xf32>
    %404 = arith.addf %403, %402 : vector<4x32xf32>
    %405 = arith.divf %403, %404 : vector<4x32xf32>
    %406 = vector.extract_strided_slice %399 {offsets = [0, 32], sizes = [4, 32], strides = [1, 1]} : vector<4x128xf32> to vector<4x32xf32>
    %407 = arith.negf %406 : vector<4x32xf32>
    %408 = math.exp %407 : vector<4x32xf32>
    %cst_96 = arith.constant 1.000000e+00 : f32
    %409 = vector.broadcast %cst_96 : f32 to vector<4x32xf32>
    %410 = arith.addf %409, %408 : vector<4x32xf32>
    %411 = arith.divf %409, %410 : vector<4x32xf32>
    %412 = vector.extract_strided_slice %399 {offsets = [0, 64], sizes = [4, 32], strides = [1, 1]} : vector<4x128xf32> to vector<4x32xf32>
    %413 = math.tanh %412 : vector<4x32xf32>
    %414 = vector.extract_strided_slice %399 {offsets = [0, 96], sizes = [4, 32], strides = [1, 1]} : vector<4x128xf32> to vector<4x32xf32>
    %415 = arith.negf %414 : vector<4x32xf32>
    %416 = math.exp %415 : vector<4x32xf32>
    %cst_97 = arith.constant 1.000000e+00 : f32
    %417 = vector.broadcast %cst_97 : f32 to vector<4x32xf32>
    %418 = arith.addf %417, %416 : vector<4x32xf32>
    %419 = arith.divf %417, %418 : vector<4x32xf32>
    %420 = arith.mulf %411, %374 : vector<4x32xf32>
    %421 = arith.mulf %405, %413 : vector<4x32xf32>
    %422 = arith.addf %420, %421 : vector<4x32xf32>
    %423 = math.tanh %422 : vector<4x32xf32>
    %424 = arith.mulf %419, %423 : vector<4x32xf32>
    %425 = vector.shape_cast %88 : vector<4x32xf32> to vector<4x1x32xf32>
    %426 = vector.shape_cast %136 : vector<4x32xf32> to vector<4x1x32xf32>
    %427 = vector.shape_cast %184 : vector<4x32xf32> to vector<4x1x32xf32>
    %428 = vector.shape_cast %232 : vector<4x32xf32> to vector<4x1x32xf32>
    %429 = vector.shape_cast %280 : vector<4x32xf32> to vector<4x1x32xf32>
    %430 = vector.shape_cast %328 : vector<4x32xf32> to vector<4x1x32xf32>
    %431 = vector.shape_cast %376 : vector<4x32xf32> to vector<4x1x32xf32>
    %432 = vector.shape_cast %424 : vector<4x32xf32> to vector<4x1x32xf32>
    %433 = tpu.concatenate %425, %426, %427, %428, %429, %430, %431, %432 in 1 : vector<4x1x32xf32>, vector<4x1x32xf32>, vector<4x1x32xf32>, vector<4x1x32xf32>, vector<4x1x32xf32>, vector<4x1x32xf32>, vector<4x1x32xf32>, vector<4x1x32xf32> -> vector<4x8x32xf32>
    %434 = vector.shape_cast %433 : vector<4x8x32xf32> to vector<32x32xf32>
    %cst_98 = arith.constant dense<0.000000e+00> : vector<32x32xf32>
    %435 = tpu.matmul %434, %9, %cst_98 {dimension_numbers = #tpu.dot_dimension_numbers<[1], [0], [0], [1], [0, 0, 1, 1], [], []>} : vector<32x32xf32>, vector<32x32xf32>, vector<32x32xf32> -> vector<32x32xf32>
    %436 = vector.broadcast %10 : vector<1x32xf32> to vector<32x32xf32>
    %437 = arith.addf %435, %436 : vector<32x32xf32>
    %438 = vector.shape_cast %437 : vector<32x32xf32> to vector<4x8x32xf32>
    %cst_99 = arith.constant 0.000000e+00 : f32
    %439 = vector.broadcast %cst_99 : f32 to vector<4x32xf32>
    %cst_100 = arith.constant 0.000000e+00 : f32
    %440 = vector.broadcast %cst_100 : f32 to vector<4x32xf32>
    %441 = tpu.concatenate %439, %440 in 1 : vector<4x32xf32>, vector<4x32xf32> -> vector<4x64xf32>
    %cst_101 = arith.constant dense<0.000000e+00> : vector<4x32xf32>
    %442 = tpu.matmul %441, %8, %cst_101 {dimension_numbers = #tpu.dot_dimension_numbers<[1], [0], [0], [1], [0, 0, 1, 1], [], []>} : vector<4x64xf32>, vector<64x32xf32>, vector<4x32xf32> -> vector<4x32xf32>
    %443 = vector.shape_cast %442 : vector<4x32xf32> to vector<4x1x32xf32>
    %444 = vector.broadcast %443 : vector<4x1x32xf32> to vector<4x8x32xf32>
    %445 = arith.addf %438, %444 : vector<4x8x32xf32>
    %446 = math.tanh %445 : vector<4x8x32xf32>
    %447 = arith.mulf %446, %32 : vector<4x8x32xf32>
    %cst_102 = arith.constant dense<0.000000e+00> : vector<4x8xf32>
    %448 = vector.multi_reduction <add>, %447, %cst_102 [2] : vector<4x8x32xf32> to vector<4x8xf32>
    %449 = vector.shape_cast %448 : vector<4x8xf32> to vector<4x8x1xf32>
    %450 = vector.broadcast %12 : f32 to vector<4x8x1xf32>
    %451 = arith.addf %449, %450 : vector<4x8x1xf32>
    %cst_103 = arith.constant dense<0xFF800000> : vector<4x1xf32>
    %452 = vector.multi_reduction <maximumf>, %451, %cst_103 [1] : vector<4x8x1xf32> to vector<4x1xf32>
    %453 = vector.shape_cast %452 : vector<4x1xf32> to vector<4x1x1xf32>
    %454 = vector.broadcast %453 : vector<4x1x1xf32> to vector<4x8x1xf32>
    %455 = arith.subf %451, %454 : vector<4x8x1xf32>
    %456 = math.exp %455 : vector<4x8x1xf32>
    %cst_104 = arith.constant dense<0.000000e+00> : vector<4x1xf32>
    %457 = vector.multi_reduction <add>, %456, %cst_104 [1] : vector<4x8x1xf32> to vector<4x1xf32>
    %458 = vector.shape_cast %457 : vector<4x1xf32> to vector<4x1x1xf32>
    %459 = tpu.reciprocal %458 {approx = true} : vector<4x1x1xf32> -> vector<4x1x1xf32>
    %460 = vector.broadcast %459 : vector<4x1x1xf32> to vector<4x8x1xf32>
    %461 = arith.mulf %456, %460 : vector<4x8x1xf32>
    %462 = vector.broadcast %461 : vector<4x8x1xf32> to vector<4x8x32xf32>
    %463 = arith.mulf %462, %433 : vector<4x8x32xf32>
    %cst_105 = arith.constant dense<0.000000e+00> : vector<4x32xf32>
    %464 = vector.multi_reduction <add>, %463, %cst_105 [1] : vector<4x8x32xf32> to vector<4x32xf32>
    %465 = vector.extract_strided_slice %1 {offsets = [0, 0], sizes = [4, 1], strides = [1, 1]} : vector<4x8xf32> to vector<4x1xf32>
    %cst_106 = arith.constant dense<0.000000e+00> : vector<4x1xf32>
    %466 = tpu.matmul %464, %15, %cst_106 {dimension_numbers = #tpu.dot_dimension_numbers<[1], [0], [0], [1], [0, 0, 1, 1], [], []>} : vector<4x32xf32>, vector<32x1xf32>, vector<4x1xf32> -> vector<4x1xf32>
    %467 = vector.broadcast %16 : vector<1x1xf32> to vector<4x1xf32>
    %468 = arith.mulf %465, %467 : vector<4x1xf32>
    %469 = arith.addf %466, %468 : vector<4x1xf32>
    %470 = arith.addf %469, %25 : vector<4x1xf32>
    %471 = tpu.concatenate %470, %439 in 1 : vector<4x1xf32>, vector<4x32xf32> -> vector<4x33xf32>
    %cst_107 = arith.constant dense<0.000000e+00> : vector<4x128xf32>
    %472 = tpu.matmul %471, %13, %cst_107 {dimension_numbers = #tpu.dot_dimension_numbers<[1], [0], [0], [1], [0, 0, 1, 1], [], []>} : vector<4x33xf32>, vector<33x128xf32>, vector<4x128xf32> -> vector<4x128xf32>
    %473 = arith.addf %472, %23 : vector<4x128xf32>
    %474 = vector.extract_strided_slice %473 {offsets = [0, 0], sizes = [4, 32], strides = [1, 1]} : vector<4x128xf32> to vector<4x32xf32>
    %475 = arith.negf %474 : vector<4x32xf32>
    %476 = math.exp %475 : vector<4x32xf32>
    %cst_108 = arith.constant 1.000000e+00 : f32
    %477 = vector.broadcast %cst_108 : f32 to vector<4x32xf32>
    %478 = arith.addf %477, %476 : vector<4x32xf32>
    %479 = arith.divf %477, %478 : vector<4x32xf32>
    %480 = vector.extract_strided_slice %473 {offsets = [0, 32], sizes = [4, 32], strides = [1, 1]} : vector<4x128xf32> to vector<4x32xf32>
    %481 = arith.negf %480 : vector<4x32xf32>
    %482 = math.exp %481 : vector<4x32xf32>
    %cst_109 = arith.constant 1.000000e+00 : f32
    %483 = vector.broadcast %cst_109 : f32 to vector<4x32xf32>
    %484 = arith.addf %483, %482 : vector<4x32xf32>
    %485 = arith.divf %483, %484 : vector<4x32xf32>
    %486 = vector.extract_strided_slice %473 {offsets = [0, 64], sizes = [4, 32], strides = [1, 1]} : vector<4x128xf32> to vector<4x32xf32>
    %487 = math.tanh %486 : vector<4x32xf32>
    %488 = vector.extract_strided_slice %473 {offsets = [0, 96], sizes = [4, 32], strides = [1, 1]} : vector<4x128xf32> to vector<4x32xf32>
    %489 = arith.negf %488 : vector<4x32xf32>
    %490 = math.exp %489 : vector<4x32xf32>
    %cst_110 = arith.constant 1.000000e+00 : f32
    %491 = vector.broadcast %cst_110 : f32 to vector<4x32xf32>
    %492 = arith.addf %491, %490 : vector<4x32xf32>
    %493 = arith.divf %491, %492 : vector<4x32xf32>
    %494 = arith.mulf %485, %440 : vector<4x32xf32>
    %495 = arith.mulf %479, %487 : vector<4x32xf32>
    %496 = arith.addf %494, %495 : vector<4x32xf32>
    %497 = math.tanh %496 : vector<4x32xf32>
    %498 = arith.mulf %493, %497 : vector<4x32xf32>
    %499 = tpu.concatenate %498, %496 in 1 : vector<4x32xf32>, vector<4x32xf32> -> vector<4x64xf32>
    %cst_111 = arith.constant dense<0.000000e+00> : vector<4x32xf32>
    %500 = tpu.matmul %499, %8, %cst_111 {dimension_numbers = #tpu.dot_dimension_numbers<[1], [0], [0], [1], [0, 0, 1, 1], [], []>} : vector<4x64xf32>, vector<64x32xf32>, vector<4x32xf32> -> vector<4x32xf32>
    %501 = vector.shape_cast %500 : vector<4x32xf32> to vector<4x1x32xf32>
    %502 = vector.broadcast %501 : vector<4x1x32xf32> to vector<4x8x32xf32>
    %503 = arith.addf %438, %502 : vector<4x8x32xf32>
    %504 = math.tanh %503 : vector<4x8x32xf32>
    %505 = arith.mulf %504, %32 : vector<4x8x32xf32>
    %cst_112 = arith.constant dense<0.000000e+00> : vector<4x8xf32>
    %506 = vector.multi_reduction <add>, %505, %cst_112 [2] : vector<4x8x32xf32> to vector<4x8xf32>
    %507 = vector.shape_cast %506 : vector<4x8xf32> to vector<4x8x1xf32>
    %508 = vector.broadcast %12 : f32 to vector<4x8x1xf32>
    %509 = arith.addf %507, %508 : vector<4x8x1xf32>
    %cst_113 = arith.constant dense<0xFF800000> : vector<4x1xf32>
    %510 = vector.multi_reduction <maximumf>, %509, %cst_113 [1] : vector<4x8x1xf32> to vector<4x1xf32>
    %511 = vector.shape_cast %510 : vector<4x1xf32> to vector<4x1x1xf32>
    %512 = vector.broadcast %511 : vector<4x1x1xf32> to vector<4x8x1xf32>
    %513 = arith.subf %509, %512 : vector<4x8x1xf32>
    %514 = math.exp %513 : vector<4x8x1xf32>
    %cst_114 = arith.constant dense<0.000000e+00> : vector<4x1xf32>
    %515 = vector.multi_reduction <add>, %514, %cst_114 [1] : vector<4x8x1xf32> to vector<4x1xf32>
    %516 = vector.shape_cast %515 : vector<4x1xf32> to vector<4x1x1xf32>
    %517 = tpu.reciprocal %516 {approx = true} : vector<4x1x1xf32> -> vector<4x1x1xf32>
    %518 = vector.broadcast %517 : vector<4x1x1xf32> to vector<4x8x1xf32>
    %519 = arith.mulf %514, %518 : vector<4x8x1xf32>
    %520 = vector.broadcast %519 : vector<4x8x1xf32> to vector<4x8x32xf32>
    %521 = arith.mulf %520, %433 : vector<4x8x32xf32>
    %cst_115 = arith.constant dense<0.000000e+00> : vector<4x32xf32>
    %522 = vector.multi_reduction <add>, %521, %cst_115 [1] : vector<4x8x32xf32> to vector<4x32xf32>
    %523 = vector.extract_strided_slice %1 {offsets = [0, 1], sizes = [4, 1], strides = [1, 1]} : vector<4x8xf32> to vector<4x1xf32>
    %cst_116 = arith.constant dense<0.000000e+00> : vector<4x1xf32>
    %524 = tpu.matmul %522, %15, %cst_116 {dimension_numbers = #tpu.dot_dimension_numbers<[1], [0], [0], [1], [0, 0, 1, 1], [], []>} : vector<4x32xf32>, vector<32x1xf32>, vector<4x1xf32> -> vector<4x1xf32>
    %525 = vector.broadcast %16 : vector<1x1xf32> to vector<4x1xf32>
    %526 = arith.mulf %523, %525 : vector<4x1xf32>
    %527 = arith.addf %524, %526 : vector<4x1xf32>
    %528 = arith.addf %527, %25 : vector<4x1xf32>
    %529 = tpu.concatenate %528, %498 in 1 : vector<4x1xf32>, vector<4x32xf32> -> vector<4x33xf32>
    %cst_117 = arith.constant dense<0.000000e+00> : vector<4x128xf32>
    %530 = tpu.matmul %529, %13, %cst_117 {dimension_numbers = #tpu.dot_dimension_numbers<[1], [0], [0], [1], [0, 0, 1, 1], [], []>} : vector<4x33xf32>, vector<33x128xf32>, vector<4x128xf32> -> vector<4x128xf32>
    %531 = arith.addf %530, %23 : vector<4x128xf32>
    %532 = vector.extract_strided_slice %531 {offsets = [0, 0], sizes = [4, 32], strides = [1, 1]} : vector<4x128xf32> to vector<4x32xf32>
    %533 = arith.negf %532 : vector<4x32xf32>
    %534 = math.exp %533 : vector<4x32xf32>
    %cst_118 = arith.constant 1.000000e+00 : f32
    %535 = vector.broadcast %cst_118 : f32 to vector<4x32xf32>
    %536 = arith.addf %535, %534 : vector<4x32xf32>
    %537 = arith.divf %535, %536 : vector<4x32xf32>
    %538 = vector.extract_strided_slice %531 {offsets = [0, 32], sizes = [4, 32], strides = [1, 1]} : vector<4x128xf32> to vector<4x32xf32>
    %539 = arith.negf %538 : vector<4x32xf32>
    %540 = math.exp %539 : vector<4x32xf32>
    %cst_119 = arith.constant 1.000000e+00 : f32
    %541 = vector.broadcast %cst_119 : f32 to vector<4x32xf32>
    %542 = arith.addf %541, %540 : vector<4x32xf32>
    %543 = arith.divf %541, %542 : vector<4x32xf32>
    %544 = vector.extract_strided_slice %531 {offsets = [0, 64], sizes = [4, 32], strides = [1, 1]} : vector<4x128xf32> to vector<4x32xf32>
    %545 = math.tanh %544 : vector<4x32xf32>
    %546 = vector.extract_strided_slice %531 {offsets = [0, 96], sizes = [4, 32], strides = [1, 1]} : vector<4x128xf32> to vector<4x32xf32>
    %547 = arith.negf %546 : vector<4x32xf32>
    %548 = math.exp %547 : vector<4x32xf32>
    %cst_120 = arith.constant 1.000000e+00 : f32
    %549 = vector.broadcast %cst_120 : f32 to vector<4x32xf32>
    %550 = arith.addf %549, %548 : vector<4x32xf32>
    %551 = arith.divf %549, %550 : vector<4x32xf32>
    %552 = arith.mulf %543, %496 : vector<4x32xf32>
    %553 = arith.mulf %537, %545 : vector<4x32xf32>
    %554 = arith.addf %552, %553 : vector<4x32xf32>
    %555 = math.tanh %554 : vector<4x32xf32>
    %556 = arith.mulf %551, %555 : vector<4x32xf32>
    %557 = tpu.concatenate %556, %554 in 1 : vector<4x32xf32>, vector<4x32xf32> -> vector<4x64xf32>
    %cst_121 = arith.constant dense<0.000000e+00> : vector<4x32xf32>
    %558 = tpu.matmul %557, %8, %cst_121 {dimension_numbers = #tpu.dot_dimension_numbers<[1], [0], [0], [1], [0, 0, 1, 1], [], []>} : vector<4x64xf32>, vector<64x32xf32>, vector<4x32xf32> -> vector<4x32xf32>
    %559 = vector.shape_cast %558 : vector<4x32xf32> to vector<4x1x32xf32>
    %560 = vector.broadcast %559 : vector<4x1x32xf32> to vector<4x8x32xf32>
    %561 = arith.addf %438, %560 : vector<4x8x32xf32>
    %562 = math.tanh %561 : vector<4x8x32xf32>
    %563 = arith.mulf %562, %32 : vector<4x8x32xf32>
    %cst_122 = arith.constant dense<0.000000e+00> : vector<4x8xf32>
    %564 = vector.multi_reduction <add>, %563, %cst_122 [2] : vector<4x8x32xf32> to vector<4x8xf32>
    %565 = vector.shape_cast %564 : vector<4x8xf32> to vector<4x8x1xf32>
    %566 = vector.broadcast %12 : f32 to vector<4x8x1xf32>
    %567 = arith.addf %565, %566 : vector<4x8x1xf32>
    %cst_123 = arith.constant dense<0xFF800000> : vector<4x1xf32>
    %568 = vector.multi_reduction <maximumf>, %567, %cst_123 [1] : vector<4x8x1xf32> to vector<4x1xf32>
    %569 = vector.shape_cast %568 : vector<4x1xf32> to vector<4x1x1xf32>
    %570 = vector.broadcast %569 : vector<4x1x1xf32> to vector<4x8x1xf32>
    %571 = arith.subf %567, %570 : vector<4x8x1xf32>
    %572 = math.exp %571 : vector<4x8x1xf32>
    %cst_124 = arith.constant dense<0.000000e+00> : vector<4x1xf32>
    %573 = vector.multi_reduction <add>, %572, %cst_124 [1] : vector<4x8x1xf32> to vector<4x1xf32>
    %574 = vector.shape_cast %573 : vector<4x1xf32> to vector<4x1x1xf32>
    %575 = tpu.reciprocal %574 {approx = true} : vector<4x1x1xf32> -> vector<4x1x1xf32>
    %576 = vector.broadcast %575 : vector<4x1x1xf32> to vector<4x8x1xf32>
    %577 = arith.mulf %572, %576 : vector<4x8x1xf32>
    %578 = vector.broadcast %577 : vector<4x8x1xf32> to vector<4x8x32xf32>
    %579 = arith.mulf %578, %433 : vector<4x8x32xf32>
    %cst_125 = arith.constant dense<0.000000e+00> : vector<4x32xf32>
    %580 = vector.multi_reduction <add>, %579, %cst_125 [1] : vector<4x8x32xf32> to vector<4x32xf32>
    %581 = vector.extract_strided_slice %1 {offsets = [0, 2], sizes = [4, 1], strides = [1, 1]} : vector<4x8xf32> to vector<4x1xf32>
    %cst_126 = arith.constant dense<0.000000e+00> : vector<4x1xf32>
    %582 = tpu.matmul %580, %15, %cst_126 {dimension_numbers = #tpu.dot_dimension_numbers<[1], [0], [0], [1], [0, 0, 1, 1], [], []>} : vector<4x32xf32>, vector<32x1xf32>, vector<4x1xf32> -> vector<4x1xf32>
    %583 = vector.broadcast %16 : vector<1x1xf32> to vector<4x1xf32>
    %584 = arith.mulf %581, %583 : vector<4x1xf32>
    %585 = arith.addf %582, %584 : vector<4x1xf32>
    %586 = arith.addf %585, %25 : vector<4x1xf32>
    %587 = tpu.concatenate %586, %556 in 1 : vector<4x1xf32>, vector<4x32xf32> -> vector<4x33xf32>
    %cst_127 = arith.constant dense<0.000000e+00> : vector<4x128xf32>
    %588 = tpu.matmul %587, %13, %cst_127 {dimension_numbers = #tpu.dot_dimension_numbers<[1], [0], [0], [1], [0, 0, 1, 1], [], []>} : vector<4x33xf32>, vector<33x128xf32>, vector<4x128xf32> -> vector<4x128xf32>
    %589 = arith.addf %588, %23 : vector<4x128xf32>
    %590 = vector.extract_strided_slice %589 {offsets = [0, 0], sizes = [4, 32], strides = [1, 1]} : vector<4x128xf32> to vector<4x32xf32>
    %591 = arith.negf %590 : vector<4x32xf32>
    %592 = math.exp %591 : vector<4x32xf32>
    %cst_128 = arith.constant 1.000000e+00 : f32
    %593 = vector.broadcast %cst_128 : f32 to vector<4x32xf32>
    %594 = arith.addf %593, %592 : vector<4x32xf32>
    %595 = arith.divf %593, %594 : vector<4x32xf32>
    %596 = vector.extract_strided_slice %589 {offsets = [0, 32], sizes = [4, 32], strides = [1, 1]} : vector<4x128xf32> to vector<4x32xf32>
    %597 = arith.negf %596 : vector<4x32xf32>
    %598 = math.exp %597 : vector<4x32xf32>
    %cst_129 = arith.constant 1.000000e+00 : f32
    %599 = vector.broadcast %cst_129 : f32 to vector<4x32xf32>
    %600 = arith.addf %599, %598 : vector<4x32xf32>
    %601 = arith.divf %599, %600 : vector<4x32xf32>
    %602 = vector.extract_strided_slice %589 {offsets = [0, 64], sizes = [4, 32], strides = [1, 1]} : vector<4x128xf32> to vector<4x32xf32>
    %603 = math.tanh %602 : vector<4x32xf32>
    %604 = vector.extract_strided_slice %589 {offsets = [0, 96], sizes = [4, 32], strides = [1, 1]} : vector<4x128xf32> to vector<4x32xf32>
    %605 = arith.negf %604 : vector<4x32xf32>
    %606 = math.exp %605 : vector<4x32xf32>
    %cst_130 = arith.constant 1.000000e+00 : f32
    %607 = vector.broadcast %cst_130 : f32 to vector<4x32xf32>
    %608 = arith.addf %607, %606 : vector<4x32xf32>
    %609 = arith.divf %607, %608 : vector<4x32xf32>
    %610 = arith.mulf %601, %554 : vector<4x32xf32>
    %611 = arith.mulf %595, %603 : vector<4x32xf32>
    %612 = arith.addf %610, %611 : vector<4x32xf32>
    %613 = math.tanh %612 : vector<4x32xf32>
    %614 = arith.mulf %609, %613 : vector<4x32xf32>
    %615 = tpu.concatenate %614, %612 in 1 : vector<4x32xf32>, vector<4x32xf32> -> vector<4x64xf32>
    %cst_131 = arith.constant dense<0.000000e+00> : vector<4x32xf32>
    %616 = tpu.matmul %615, %8, %cst_131 {dimension_numbers = #tpu.dot_dimension_numbers<[1], [0], [0], [1], [0, 0, 1, 1], [], []>} : vector<4x64xf32>, vector<64x32xf32>, vector<4x32xf32> -> vector<4x32xf32>
    %617 = vector.shape_cast %616 : vector<4x32xf32> to vector<4x1x32xf32>
    %618 = vector.broadcast %617 : vector<4x1x32xf32> to vector<4x8x32xf32>
    %619 = arith.addf %438, %618 : vector<4x8x32xf32>
    %620 = math.tanh %619 : vector<4x8x32xf32>
    %621 = arith.mulf %620, %32 : vector<4x8x32xf32>
    %cst_132 = arith.constant dense<0.000000e+00> : vector<4x8xf32>
    %622 = vector.multi_reduction <add>, %621, %cst_132 [2] : vector<4x8x32xf32> to vector<4x8xf32>
    %623 = vector.shape_cast %622 : vector<4x8xf32> to vector<4x8x1xf32>
    %624 = vector.broadcast %12 : f32 to vector<4x8x1xf32>
    %625 = arith.addf %623, %624 : vector<4x8x1xf32>
    %cst_133 = arith.constant dense<0xFF800000> : vector<4x1xf32>
    %626 = vector.multi_reduction <maximumf>, %625, %cst_133 [1] : vector<4x8x1xf32> to vector<4x1xf32>
    %627 = vector.shape_cast %626 : vector<4x1xf32> to vector<4x1x1xf32>
    %628 = vector.broadcast %627 : vector<4x1x1xf32> to vector<4x8x1xf32>
    %629 = arith.subf %625, %628 : vector<4x8x1xf32>
    %630 = math.exp %629 : vector<4x8x1xf32>
    %cst_134 = arith.constant dense<0.000000e+00> : vector<4x1xf32>
    %631 = vector.multi_reduction <add>, %630, %cst_134 [1] : vector<4x8x1xf32> to vector<4x1xf32>
    %632 = vector.shape_cast %631 : vector<4x1xf32> to vector<4x1x1xf32>
    %633 = tpu.reciprocal %632 {approx = true} : vector<4x1x1xf32> -> vector<4x1x1xf32>
    %634 = vector.broadcast %633 : vector<4x1x1xf32> to vector<4x8x1xf32>
    %635 = arith.mulf %630, %634 : vector<4x8x1xf32>
    %636 = vector.broadcast %635 : vector<4x8x1xf32> to vector<4x8x32xf32>
    %637 = arith.mulf %636, %433 : vector<4x8x32xf32>
    %cst_135 = arith.constant dense<0.000000e+00> : vector<4x32xf32>
    %638 = vector.multi_reduction <add>, %637, %cst_135 [1] : vector<4x8x32xf32> to vector<4x32xf32>
    %639 = vector.extract_strided_slice %1 {offsets = [0, 3], sizes = [4, 1], strides = [1, 1]} : vector<4x8xf32> to vector<4x1xf32>
    %cst_136 = arith.constant dense<0.000000e+00> : vector<4x1xf32>
    %640 = tpu.matmul %638, %15, %cst_136 {dimension_numbers = #tpu.dot_dimension_numbers<[1], [0], [0], [1], [0, 0, 1, 1], [], []>} : vector<4x32xf32>, vector<32x1xf32>, vector<4x1xf32> -> vector<4x1xf32>
    %641 = vector.broadcast %16 : vector<1x1xf32> to vector<4x1xf32>
    %642 = arith.mulf %639, %641 : vector<4x1xf32>
    %643 = arith.addf %640, %642 : vector<4x1xf32>
    %644 = arith.addf %643, %25 : vector<4x1xf32>
    %645 = tpu.concatenate %644, %614 in 1 : vector<4x1xf32>, vector<4x32xf32> -> vector<4x33xf32>
    %cst_137 = arith.constant dense<0.000000e+00> : vector<4x128xf32>
    %646 = tpu.matmul %645, %13, %cst_137 {dimension_numbers = #tpu.dot_dimension_numbers<[1], [0], [0], [1], [0, 0, 1, 1], [], []>} : vector<4x33xf32>, vector<33x128xf32>, vector<4x128xf32> -> vector<4x128xf32>
    %647 = arith.addf %646, %23 : vector<4x128xf32>
    %648 = vector.extract_strided_slice %647 {offsets = [0, 0], sizes = [4, 32], strides = [1, 1]} : vector<4x128xf32> to vector<4x32xf32>
    %649 = arith.negf %648 : vector<4x32xf32>
    %650 = math.exp %649 : vector<4x32xf32>
    %cst_138 = arith.constant 1.000000e+00 : f32
    %651 = vector.broadcast %cst_138 : f32 to vector<4x32xf32>
    %652 = arith.addf %651, %650 : vector<4x32xf32>
    %653 = arith.divf %651, %652 : vector<4x32xf32>
    %654 = vector.extract_strided_slice %647 {offsets = [0, 32], sizes = [4, 32], strides = [1, 1]} : vector<4x128xf32> to vector<4x32xf32>
    %655 = arith.negf %654 : vector<4x32xf32>
    %656 = math.exp %655 : vector<4x32xf32>
    %cst_139 = arith.constant 1.000000e+00 : f32
    %657 = vector.broadcast %cst_139 : f32 to vector<4x32xf32>
    %658 = arith.addf %657, %656 : vector<4x32xf32>
    %659 = arith.divf %657, %658 : vector<4x32xf32>
    %660 = vector.extract_strided_slice %647 {offsets = [0, 64], sizes = [4, 32], strides = [1, 1]} : vector<4x128xf32> to vector<4x32xf32>
    %661 = math.tanh %660 : vector<4x32xf32>
    %662 = vector.extract_strided_slice %647 {offsets = [0, 96], sizes = [4, 32], strides = [1, 1]} : vector<4x128xf32> to vector<4x32xf32>
    %663 = arith.negf %662 : vector<4x32xf32>
    %664 = math.exp %663 : vector<4x32xf32>
    %cst_140 = arith.constant 1.000000e+00 : f32
    %665 = vector.broadcast %cst_140 : f32 to vector<4x32xf32>
    %666 = arith.addf %665, %664 : vector<4x32xf32>
    %667 = arith.divf %665, %666 : vector<4x32xf32>
    %668 = arith.mulf %659, %612 : vector<4x32xf32>
    %669 = arith.mulf %653, %661 : vector<4x32xf32>
    %670 = arith.addf %668, %669 : vector<4x32xf32>
    %671 = math.tanh %670 : vector<4x32xf32>
    %672 = arith.mulf %667, %671 : vector<4x32xf32>
    %673 = tpu.concatenate %672, %670 in 1 : vector<4x32xf32>, vector<4x32xf32> -> vector<4x64xf32>
    %cst_141 = arith.constant dense<0.000000e+00> : vector<4x32xf32>
    %674 = tpu.matmul %673, %8, %cst_141 {dimension_numbers = #tpu.dot_dimension_numbers<[1], [0], [0], [1], [0, 0, 1, 1], [], []>} : vector<4x64xf32>, vector<64x32xf32>, vector<4x32xf32> -> vector<4x32xf32>
    %675 = vector.shape_cast %674 : vector<4x32xf32> to vector<4x1x32xf32>
    %676 = vector.broadcast %675 : vector<4x1x32xf32> to vector<4x8x32xf32>
    %677 = arith.addf %438, %676 : vector<4x8x32xf32>
    %678 = math.tanh %677 : vector<4x8x32xf32>
    %679 = arith.mulf %678, %32 : vector<4x8x32xf32>
    %cst_142 = arith.constant dense<0.000000e+00> : vector<4x8xf32>
    %680 = vector.multi_reduction <add>, %679, %cst_142 [2] : vector<4x8x32xf32> to vector<4x8xf32>
    %681 = vector.shape_cast %680 : vector<4x8xf32> to vector<4x8x1xf32>
    %682 = vector.broadcast %12 : f32 to vector<4x8x1xf32>
    %683 = arith.addf %681, %682 : vector<4x8x1xf32>
    %cst_143 = arith.constant dense<0xFF800000> : vector<4x1xf32>
    %684 = vector.multi_reduction <maximumf>, %683, %cst_143 [1] : vector<4x8x1xf32> to vector<4x1xf32>
    %685 = vector.shape_cast %684 : vector<4x1xf32> to vector<4x1x1xf32>
    %686 = vector.broadcast %685 : vector<4x1x1xf32> to vector<4x8x1xf32>
    %687 = arith.subf %683, %686 : vector<4x8x1xf32>
    %688 = math.exp %687 : vector<4x8x1xf32>
    %cst_144 = arith.constant dense<0.000000e+00> : vector<4x1xf32>
    %689 = vector.multi_reduction <add>, %688, %cst_144 [1] : vector<4x8x1xf32> to vector<4x1xf32>
    %690 = vector.shape_cast %689 : vector<4x1xf32> to vector<4x1x1xf32>
    %691 = tpu.reciprocal %690 {approx = true} : vector<4x1x1xf32> -> vector<4x1x1xf32>
    %692 = vector.broadcast %691 : vector<4x1x1xf32> to vector<4x8x1xf32>
    %693 = arith.mulf %688, %692 : vector<4x8x1xf32>
    %694 = vector.broadcast %693 : vector<4x8x1xf32> to vector<4x8x32xf32>
    %695 = arith.mulf %694, %433 : vector<4x8x32xf32>
    %cst_145 = arith.constant dense<0.000000e+00> : vector<4x32xf32>
    %696 = vector.multi_reduction <add>, %695, %cst_145 [1] : vector<4x8x32xf32> to vector<4x32xf32>
    %697 = vector.extract_strided_slice %1 {offsets = [0, 4], sizes = [4, 1], strides = [1, 1]} : vector<4x8xf32> to vector<4x1xf32>
    %cst_146 = arith.constant dense<0.000000e+00> : vector<4x1xf32>
    %698 = tpu.matmul %696, %15, %cst_146 {dimension_numbers = #tpu.dot_dimension_numbers<[1], [0], [0], [1], [0, 0, 1, 1], [], []>} : vector<4x32xf32>, vector<32x1xf32>, vector<4x1xf32> -> vector<4x1xf32>
    %699 = vector.broadcast %16 : vector<1x1xf32> to vector<4x1xf32>
    %700 = arith.mulf %697, %699 : vector<4x1xf32>
    %701 = arith.addf %698, %700 : vector<4x1xf32>
    %702 = arith.addf %701, %25 : vector<4x1xf32>
    %703 = tpu.concatenate %702, %672 in 1 : vector<4x1xf32>, vector<4x32xf32> -> vector<4x33xf32>
    %cst_147 = arith.constant dense<0.000000e+00> : vector<4x128xf32>
    %704 = tpu.matmul %703, %13, %cst_147 {dimension_numbers = #tpu.dot_dimension_numbers<[1], [0], [0], [1], [0, 0, 1, 1], [], []>} : vector<4x33xf32>, vector<33x128xf32>, vector<4x128xf32> -> vector<4x128xf32>
    %705 = arith.addf %704, %23 : vector<4x128xf32>
    %706 = vector.extract_strided_slice %705 {offsets = [0, 0], sizes = [4, 32], strides = [1, 1]} : vector<4x128xf32> to vector<4x32xf32>
    %707 = arith.negf %706 : vector<4x32xf32>
    %708 = math.exp %707 : vector<4x32xf32>
    %cst_148 = arith.constant 1.000000e+00 : f32
    %709 = vector.broadcast %cst_148 : f32 to vector<4x32xf32>
    %710 = arith.addf %709, %708 : vector<4x32xf32>
    %711 = arith.divf %709, %710 : vector<4x32xf32>
    %712 = vector.extract_strided_slice %705 {offsets = [0, 32], sizes = [4, 32], strides = [1, 1]} : vector<4x128xf32> to vector<4x32xf32>
    %713 = arith.negf %712 : vector<4x32xf32>
    %714 = math.exp %713 : vector<4x32xf32>
    %cst_149 = arith.constant 1.000000e+00 : f32
    %715 = vector.broadcast %cst_149 : f32 to vector<4x32xf32>
    %716 = arith.addf %715, %714 : vector<4x32xf32>
    %717 = arith.divf %715, %716 : vector<4x32xf32>
    %718 = vector.extract_strided_slice %705 {offsets = [0, 64], sizes = [4, 32], strides = [1, 1]} : vector<4x128xf32> to vector<4x32xf32>
    %719 = math.tanh %718 : vector<4x32xf32>
    %720 = vector.extract_strided_slice %705 {offsets = [0, 96], sizes = [4, 32], strides = [1, 1]} : vector<4x128xf32> to vector<4x32xf32>
    %721 = arith.negf %720 : vector<4x32xf32>
    %722 = math.exp %721 : vector<4x32xf32>
    %cst_150 = arith.constant 1.000000e+00 : f32
    %723 = vector.broadcast %cst_150 : f32 to vector<4x32xf32>
    %724 = arith.addf %723, %722 : vector<4x32xf32>
    %725 = arith.divf %723, %724 : vector<4x32xf32>
    %726 = arith.mulf %717, %670 : vector<4x32xf32>
    %727 = arith.mulf %711, %719 : vector<4x32xf32>
    %728 = arith.addf %726, %727 : vector<4x32xf32>
    %729 = math.tanh %728 : vector<4x32xf32>
    %730 = arith.mulf %725, %729 : vector<4x32xf32>
    %731 = tpu.concatenate %730, %728 in 1 : vector<4x32xf32>, vector<4x32xf32> -> vector<4x64xf32>
    %cst_151 = arith.constant dense<0.000000e+00> : vector<4x32xf32>
    %732 = tpu.matmul %731, %8, %cst_151 {dimension_numbers = #tpu.dot_dimension_numbers<[1], [0], [0], [1], [0, 0, 1, 1], [], []>} : vector<4x64xf32>, vector<64x32xf32>, vector<4x32xf32> -> vector<4x32xf32>
    %733 = vector.shape_cast %732 : vector<4x32xf32> to vector<4x1x32xf32>
    %734 = vector.broadcast %733 : vector<4x1x32xf32> to vector<4x8x32xf32>
    %735 = arith.addf %438, %734 : vector<4x8x32xf32>
    %736 = math.tanh %735 : vector<4x8x32xf32>
    %737 = arith.mulf %736, %32 : vector<4x8x32xf32>
    %cst_152 = arith.constant dense<0.000000e+00> : vector<4x8xf32>
    %738 = vector.multi_reduction <add>, %737, %cst_152 [2] : vector<4x8x32xf32> to vector<4x8xf32>
    %739 = vector.shape_cast %738 : vector<4x8xf32> to vector<4x8x1xf32>
    %740 = vector.broadcast %12 : f32 to vector<4x8x1xf32>
    %741 = arith.addf %739, %740 : vector<4x8x1xf32>
    %cst_153 = arith.constant dense<0xFF800000> : vector<4x1xf32>
    %742 = vector.multi_reduction <maximumf>, %741, %cst_153 [1] : vector<4x8x1xf32> to vector<4x1xf32>
    %743 = vector.shape_cast %742 : vector<4x1xf32> to vector<4x1x1xf32>
    %744 = vector.broadcast %743 : vector<4x1x1xf32> to vector<4x8x1xf32>
    %745 = arith.subf %741, %744 : vector<4x8x1xf32>
    %746 = math.exp %745 : vector<4x8x1xf32>
    %cst_154 = arith.constant dense<0.000000e+00> : vector<4x1xf32>
    %747 = vector.multi_reduction <add>, %746, %cst_154 [1] : vector<4x8x1xf32> to vector<4x1xf32>
    %748 = vector.shape_cast %747 : vector<4x1xf32> to vector<4x1x1xf32>
    %749 = tpu.reciprocal %748 {approx = true} : vector<4x1x1xf32> -> vector<4x1x1xf32>
    %750 = vector.broadcast %749 : vector<4x1x1xf32> to vector<4x8x1xf32>
    %751 = arith.mulf %746, %750 : vector<4x8x1xf32>
    %752 = vector.broadcast %751 : vector<4x8x1xf32> to vector<4x8x32xf32>
    %753 = arith.mulf %752, %433 : vector<4x8x32xf32>
    %cst_155 = arith.constant dense<0.000000e+00> : vector<4x32xf32>
    %754 = vector.multi_reduction <add>, %753, %cst_155 [1] : vector<4x8x32xf32> to vector<4x32xf32>
    %755 = vector.extract_strided_slice %1 {offsets = [0, 5], sizes = [4, 1], strides = [1, 1]} : vector<4x8xf32> to vector<4x1xf32>
    %cst_156 = arith.constant dense<0.000000e+00> : vector<4x1xf32>
    %756 = tpu.matmul %754, %15, %cst_156 {dimension_numbers = #tpu.dot_dimension_numbers<[1], [0], [0], [1], [0, 0, 1, 1], [], []>} : vector<4x32xf32>, vector<32x1xf32>, vector<4x1xf32> -> vector<4x1xf32>
    %757 = vector.broadcast %16 : vector<1x1xf32> to vector<4x1xf32>
    %758 = arith.mulf %755, %757 : vector<4x1xf32>
    %759 = arith.addf %756, %758 : vector<4x1xf32>
    %760 = arith.addf %759, %25 : vector<4x1xf32>
    %761 = tpu.concatenate %760, %730 in 1 : vector<4x1xf32>, vector<4x32xf32> -> vector<4x33xf32>
    %cst_157 = arith.constant dense<0.000000e+00> : vector<4x128xf32>
    %762 = tpu.matmul %761, %13, %cst_157 {dimension_numbers = #tpu.dot_dimension_numbers<[1], [0], [0], [1], [0, 0, 1, 1], [], []>} : vector<4x33xf32>, vector<33x128xf32>, vector<4x128xf32> -> vector<4x128xf32>
    %763 = arith.addf %762, %23 : vector<4x128xf32>
    %764 = vector.extract_strided_slice %763 {offsets = [0, 0], sizes = [4, 32], strides = [1, 1]} : vector<4x128xf32> to vector<4x32xf32>
    %765 = arith.negf %764 : vector<4x32xf32>
    %766 = math.exp %765 : vector<4x32xf32>
    %cst_158 = arith.constant 1.000000e+00 : f32
    %767 = vector.broadcast %cst_158 : f32 to vector<4x32xf32>
    %768 = arith.addf %767, %766 : vector<4x32xf32>
    %769 = arith.divf %767, %768 : vector<4x32xf32>
    %770 = vector.extract_strided_slice %763 {offsets = [0, 32], sizes = [4, 32], strides = [1, 1]} : vector<4x128xf32> to vector<4x32xf32>
    %771 = arith.negf %770 : vector<4x32xf32>
    %772 = math.exp %771 : vector<4x32xf32>
    %cst_159 = arith.constant 1.000000e+00 : f32
    %773 = vector.broadcast %cst_159 : f32 to vector<4x32xf32>
    %774 = arith.addf %773, %772 : vector<4x32xf32>
    %775 = arith.divf %773, %774 : vector<4x32xf32>
    %776 = vector.extract_strided_slice %763 {offsets = [0, 64], sizes = [4, 32], strides = [1, 1]} : vector<4x128xf32> to vector<4x32xf32>
    %777 = math.tanh %776 : vector<4x32xf32>
    %778 = vector.extract_strided_slice %763 {offsets = [0, 96], sizes = [4, 32], strides = [1, 1]} : vector<4x128xf32> to vector<4x32xf32>
    %779 = arith.negf %778 : vector<4x32xf32>
    %780 = math.exp %779 : vector<4x32xf32>
    %cst_160 = arith.constant 1.000000e+00 : f32
    %781 = vector.broadcast %cst_160 : f32 to vector<4x32xf32>
    %782 = arith.addf %781, %780 : vector<4x32xf32>
    %783 = arith.divf %781, %782 : vector<4x32xf32>
    %784 = arith.mulf %775, %728 : vector<4x32xf32>
    %785 = arith.mulf %769, %777 : vector<4x32xf32>
    %786 = arith.addf %784, %785 : vector<4x32xf32>
    %787 = math.tanh %786 : vector<4x32xf32>
    %788 = arith.mulf %783, %787 : vector<4x32xf32>
    %789 = tpu.concatenate %788, %786 in 1 : vector<4x32xf32>, vector<4x32xf32> -> vector<4x64xf32>
    %cst_161 = arith.constant dense<0.000000e+00> : vector<4x32xf32>
    %790 = tpu.matmul %789, %8, %cst_161 {dimension_numbers = #tpu.dot_dimension_numbers<[1], [0], [0], [1], [0, 0, 1, 1], [], []>} : vector<4x64xf32>, vector<64x32xf32>, vector<4x32xf32> -> vector<4x32xf32>
    %791 = vector.shape_cast %790 : vector<4x32xf32> to vector<4x1x32xf32>
    %792 = vector.broadcast %791 : vector<4x1x32xf32> to vector<4x8x32xf32>
    %793 = arith.addf %438, %792 : vector<4x8x32xf32>
    %794 = math.tanh %793 : vector<4x8x32xf32>
    %795 = arith.mulf %794, %32 : vector<4x8x32xf32>
    %cst_162 = arith.constant dense<0.000000e+00> : vector<4x8xf32>
    %796 = vector.multi_reduction <add>, %795, %cst_162 [2] : vector<4x8x32xf32> to vector<4x8xf32>
    %797 = vector.shape_cast %796 : vector<4x8xf32> to vector<4x8x1xf32>
    %798 = vector.broadcast %12 : f32 to vector<4x8x1xf32>
    %799 = arith.addf %797, %798 : vector<4x8x1xf32>
    %cst_163 = arith.constant dense<0xFF800000> : vector<4x1xf32>
    %800 = vector.multi_reduction <maximumf>, %799, %cst_163 [1] : vector<4x8x1xf32> to vector<4x1xf32>
    %801 = vector.shape_cast %800 : vector<4x1xf32> to vector<4x1x1xf32>
    %802 = vector.broadcast %801 : vector<4x1x1xf32> to vector<4x8x1xf32>
    %803 = arith.subf %799, %802 : vector<4x8x1xf32>
    %804 = math.exp %803 : vector<4x8x1xf32>
    %cst_164 = arith.constant dense<0.000000e+00> : vector<4x1xf32>
    %805 = vector.multi_reduction <add>, %804, %cst_164 [1] : vector<4x8x1xf32> to vector<4x1xf32>
    %806 = vector.shape_cast %805 : vector<4x1xf32> to vector<4x1x1xf32>
    %807 = tpu.reciprocal %806 {approx = true} : vector<4x1x1xf32> -> vector<4x1x1xf32>
    %808 = vector.broadcast %807 : vector<4x1x1xf32> to vector<4x8x1xf32>
    %809 = arith.mulf %804, %808 : vector<4x8x1xf32>
    %810 = vector.broadcast %809 : vector<4x8x1xf32> to vector<4x8x32xf32>
    %811 = arith.mulf %810, %433 : vector<4x8x32xf32>
    %cst_165 = arith.constant dense<0.000000e+00> : vector<4x32xf32>
    %812 = vector.multi_reduction <add>, %811, %cst_165 [1] : vector<4x8x32xf32> to vector<4x32xf32>
    %813 = vector.extract_strided_slice %1 {offsets = [0, 6], sizes = [4, 1], strides = [1, 1]} : vector<4x8xf32> to vector<4x1xf32>
    %cst_166 = arith.constant dense<0.000000e+00> : vector<4x1xf32>
    %814 = tpu.matmul %812, %15, %cst_166 {dimension_numbers = #tpu.dot_dimension_numbers<[1], [0], [0], [1], [0, 0, 1, 1], [], []>} : vector<4x32xf32>, vector<32x1xf32>, vector<4x1xf32> -> vector<4x1xf32>
    %815 = vector.broadcast %16 : vector<1x1xf32> to vector<4x1xf32>
    %816 = arith.mulf %813, %815 : vector<4x1xf32>
    %817 = arith.addf %814, %816 : vector<4x1xf32>
    %818 = arith.addf %817, %25 : vector<4x1xf32>
    %819 = tpu.concatenate %818, %788 in 1 : vector<4x1xf32>, vector<4x32xf32> -> vector<4x33xf32>
    %cst_167 = arith.constant dense<0.000000e+00> : vector<4x128xf32>
    %820 = tpu.matmul %819, %13, %cst_167 {dimension_numbers = #tpu.dot_dimension_numbers<[1], [0], [0], [1], [0, 0, 1, 1], [], []>} : vector<4x33xf32>, vector<33x128xf32>, vector<4x128xf32> -> vector<4x128xf32>
    %821 = arith.addf %820, %23 : vector<4x128xf32>
    %822 = vector.extract_strided_slice %821 {offsets = [0, 0], sizes = [4, 32], strides = [1, 1]} : vector<4x128xf32> to vector<4x32xf32>
    %823 = arith.negf %822 : vector<4x32xf32>
    %824 = math.exp %823 : vector<4x32xf32>
    %cst_168 = arith.constant 1.000000e+00 : f32
    %825 = vector.broadcast %cst_168 : f32 to vector<4x32xf32>
    %826 = arith.addf %825, %824 : vector<4x32xf32>
    %827 = arith.divf %825, %826 : vector<4x32xf32>
    %828 = vector.extract_strided_slice %821 {offsets = [0, 32], sizes = [4, 32], strides = [1, 1]} : vector<4x128xf32> to vector<4x32xf32>
    %829 = arith.negf %828 : vector<4x32xf32>
    %830 = math.exp %829 : vector<4x32xf32>
    %cst_169 = arith.constant 1.000000e+00 : f32
    %831 = vector.broadcast %cst_169 : f32 to vector<4x32xf32>
    %832 = arith.addf %831, %830 : vector<4x32xf32>
    %833 = arith.divf %831, %832 : vector<4x32xf32>
    %834 = vector.extract_strided_slice %821 {offsets = [0, 64], sizes = [4, 32], strides = [1, 1]} : vector<4x128xf32> to vector<4x32xf32>
    %835 = math.tanh %834 : vector<4x32xf32>
    %836 = vector.extract_strided_slice %821 {offsets = [0, 96], sizes = [4, 32], strides = [1, 1]} : vector<4x128xf32> to vector<4x32xf32>
    %837 = arith.negf %836 : vector<4x32xf32>
    %838 = math.exp %837 : vector<4x32xf32>
    %cst_170 = arith.constant 1.000000e+00 : f32
    %839 = vector.broadcast %cst_170 : f32 to vector<4x32xf32>
    %840 = arith.addf %839, %838 : vector<4x32xf32>
    %841 = arith.divf %839, %840 : vector<4x32xf32>
    %842 = arith.mulf %833, %786 : vector<4x32xf32>
    %843 = arith.mulf %827, %835 : vector<4x32xf32>
    %844 = arith.addf %842, %843 : vector<4x32xf32>
    %845 = math.tanh %844 : vector<4x32xf32>
    %846 = arith.mulf %841, %845 : vector<4x32xf32>
    %847 = tpu.concatenate %846, %844 in 1 : vector<4x32xf32>, vector<4x32xf32> -> vector<4x64xf32>
    %cst_171 = arith.constant dense<0.000000e+00> : vector<4x32xf32>
    %848 = tpu.matmul %847, %8, %cst_171 {dimension_numbers = #tpu.dot_dimension_numbers<[1], [0], [0], [1], [0, 0, 1, 1], [], []>} : vector<4x64xf32>, vector<64x32xf32>, vector<4x32xf32> -> vector<4x32xf32>
    %849 = vector.shape_cast %848 : vector<4x32xf32> to vector<4x1x32xf32>
    %850 = vector.broadcast %849 : vector<4x1x32xf32> to vector<4x8x32xf32>
    %851 = arith.addf %438, %850 : vector<4x8x32xf32>
    %852 = math.tanh %851 : vector<4x8x32xf32>
    %853 = arith.mulf %852, %32 : vector<4x8x32xf32>
    %cst_172 = arith.constant dense<0.000000e+00> : vector<4x8xf32>
    %854 = vector.multi_reduction <add>, %853, %cst_172 [2] : vector<4x8x32xf32> to vector<4x8xf32>
    %855 = vector.shape_cast %854 : vector<4x8xf32> to vector<4x8x1xf32>
    %856 = vector.broadcast %12 : f32 to vector<4x8x1xf32>
    %857 = arith.addf %855, %856 : vector<4x8x1xf32>
    %cst_173 = arith.constant dense<0xFF800000> : vector<4x1xf32>
    %858 = vector.multi_reduction <maximumf>, %857, %cst_173 [1] : vector<4x8x1xf32> to vector<4x1xf32>
    %859 = vector.shape_cast %858 : vector<4x1xf32> to vector<4x1x1xf32>
    %860 = vector.broadcast %859 : vector<4x1x1xf32> to vector<4x8x1xf32>
    %861 = arith.subf %857, %860 : vector<4x8x1xf32>
    %862 = math.exp %861 : vector<4x8x1xf32>
    %cst_174 = arith.constant dense<0.000000e+00> : vector<4x1xf32>
    %863 = vector.multi_reduction <add>, %862, %cst_174 [1] : vector<4x8x1xf32> to vector<4x1xf32>
    %864 = vector.shape_cast %863 : vector<4x1xf32> to vector<4x1x1xf32>
    %865 = tpu.reciprocal %864 {approx = true} : vector<4x1x1xf32> -> vector<4x1x1xf32>
    %866 = vector.broadcast %865 : vector<4x1x1xf32> to vector<4x8x1xf32>
    %867 = arith.mulf %862, %866 : vector<4x8x1xf32>
    %868 = vector.broadcast %867 : vector<4x8x1xf32> to vector<4x8x32xf32>
    %869 = arith.mulf %868, %433 : vector<4x8x32xf32>
    %cst_175 = arith.constant dense<0.000000e+00> : vector<4x32xf32>
    %870 = vector.multi_reduction <add>, %869, %cst_175 [1] : vector<4x8x32xf32> to vector<4x32xf32>
    %871 = vector.extract_strided_slice %1 {offsets = [0, 7], sizes = [4, 1], strides = [1, 1]} : vector<4x8xf32> to vector<4x1xf32>
    %cst_176 = arith.constant dense<0.000000e+00> : vector<4x1xf32>
    %872 = tpu.matmul %870, %15, %cst_176 {dimension_numbers = #tpu.dot_dimension_numbers<[1], [0], [0], [1], [0, 0, 1, 1], [], []>} : vector<4x32xf32>, vector<32x1xf32>, vector<4x1xf32> -> vector<4x1xf32>
    %873 = vector.broadcast %16 : vector<1x1xf32> to vector<4x1xf32>
    %874 = arith.mulf %871, %873 : vector<4x1xf32>
    %875 = arith.addf %872, %874 : vector<4x1xf32>
    %876 = arith.addf %875, %25 : vector<4x1xf32>
    %877 = tpu.concatenate %876, %846 in 1 : vector<4x1xf32>, vector<4x32xf32> -> vector<4x33xf32>
    %cst_177 = arith.constant dense<0.000000e+00> : vector<4x128xf32>
    %878 = tpu.matmul %877, %13, %cst_177 {dimension_numbers = #tpu.dot_dimension_numbers<[1], [0], [0], [1], [0, 0, 1, 1], [], []>} : vector<4x33xf32>, vector<33x128xf32>, vector<4x128xf32> -> vector<4x128xf32>
    %879 = arith.addf %878, %23 : vector<4x128xf32>
    %880 = vector.extract_strided_slice %879 {offsets = [0, 0], sizes = [4, 32], strides = [1, 1]} : vector<4x128xf32> to vector<4x32xf32>
    %881 = arith.negf %880 : vector<4x32xf32>
    %882 = math.exp %881 : vector<4x32xf32>
    %cst_178 = arith.constant 1.000000e+00 : f32
    %883 = vector.broadcast %cst_178 : f32 to vector<4x32xf32>
    %884 = arith.addf %883, %882 : vector<4x32xf32>
    %885 = arith.divf %883, %884 : vector<4x32xf32>
    %886 = vector.extract_strided_slice %879 {offsets = [0, 32], sizes = [4, 32], strides = [1, 1]} : vector<4x128xf32> to vector<4x32xf32>
    %887 = arith.negf %886 : vector<4x32xf32>
    %888 = math.exp %887 : vector<4x32xf32>
    %cst_179 = arith.constant 1.000000e+00 : f32
    %889 = vector.broadcast %cst_179 : f32 to vector<4x32xf32>
    %890 = arith.addf %889, %888 : vector<4x32xf32>
    %891 = arith.divf %889, %890 : vector<4x32xf32>
    %892 = vector.extract_strided_slice %879 {offsets = [0, 64], sizes = [4, 32], strides = [1, 1]} : vector<4x128xf32> to vector<4x32xf32>
    %893 = math.tanh %892 : vector<4x32xf32>
    %894 = vector.extract_strided_slice %879 {offsets = [0, 96], sizes = [4, 32], strides = [1, 1]} : vector<4x128xf32> to vector<4x32xf32>
    %895 = arith.negf %894 : vector<4x32xf32>
    %896 = math.exp %895 : vector<4x32xf32>
    %cst_180 = arith.constant 1.000000e+00 : f32
    %897 = vector.broadcast %cst_180 : f32 to vector<4x32xf32>
    %898 = arith.addf %897, %896 : vector<4x32xf32>
    %899 = arith.divf %897, %898 : vector<4x32xf32>
    %900 = arith.mulf %891, %844 : vector<4x32xf32>
    %901 = arith.mulf %885, %893 : vector<4x32xf32>
    %902 = arith.addf %900, %901 : vector<4x32xf32>
    %903 = math.tanh %902 : vector<4x32xf32>
    %904 = arith.mulf %899, %903 : vector<4x32xf32>
    %905 = tpu.concatenate %904, %870 in 1 : vector<4x32xf32>, vector<4x32xf32> -> vector<4x64xf32>
    %cst_181 = arith.constant dense<0.000000e+00> : vector<4x1xf32>
    %906 = tpu.matmul %905, %18, %cst_181 {dimension_numbers = #tpu.dot_dimension_numbers<[1], [0], [0], [1], [0, 0, 1, 1], [], []>} : vector<4x64xf32>, vector<64x1xf32>, vector<4x1xf32> -> vector<4x1xf32>
    %907 = vector.broadcast %19 : vector<1x1xf32> to vector<4x1xf32>
    %908 = arith.addf %906, %907 : vector<4x1xf32>
    %c0_182 = arith.constant 0 : index
    %c0_183 = arith.constant 0 : index
    %909 = vector.load %arg20[%c0_182, %c0_183] : memref<4x1xf32, #tpu.memory_space<vmem>>, vector<4x1xf32>
    tpu.vector_store %arg20[%c0_182, %c0_183], %908 {strides = array<i32>} : memref<4x1xf32, #tpu.memory_space<vmem>>, vector<4x1xf32>,
    return
  }
}

</mosaic_0001>

<llo_original>
// kernel: tpu_custom_call.1
$region0: #{tpu_custom_call.1}
  #allocation0 [shape = 'u32[]', space=smem, size = 0x4, offset = 0x4, fixed_abs, tag = 'smem constant byte address 0x4 - core index']
  #allocation1 [shape = 'u32[144,128]{1,0:T(1,128)}', space=vmem, size = 0x12000, scoped, tag = 'internal scratch']
  #allocation2 [shape = 'f32[1,1]{1,0:T(1,128)S(6)}', space=smem, size = 0x200, scoped, tag = 'scoped memory for tpu_custom_call.1']
  #allocation3 [shape = 'f32[1,1]{1,0:T(1,128)S(6)}', space=smem, size = 0x200, scoped, tag = 'scoped memory for tpu_custom_call.1']
  #allocation4 [shape = 'f32[1,1]{1,0:T(1,128)S(1)}', space=vmem, size = 0x200, scoped, tag = 'scoped memory for tpu_custom_call.1']
  #allocation5 [shape = 'f32[1,1]{1,0:T(1,128)S(1)}', space=vmem, size = 0x200, scoped, tag = 'scoped memory for tpu_custom_call.1']
  #allocation6 [shape = 'f32[1,1]{1,0:T(1,128)S(1)}', space=vmem, size = 0x200, scoped, tag = 'scoped memory for tpu_custom_call.1']
  %s0 = inlined_call_operand.vmem [shape: f32[4,8,16], index: 0, kind: input, shape index: {}]
  %s1 = inlined_call_operand.vmem [shape: f32[4,8], index: 1, kind: input, shape index: {}]
  %s2 = inlined_call_operand.vmem [shape: f32[48,128], index: 2, kind: input, shape index: {}]
  %s3 = inlined_call_operand.vmem [shape: f32[1,128], index: 3, kind: input, shape index: {}]
  %s4 = inlined_call_operand.vmem [shape: f32[1,32], index: 4, kind: input, shape index: {}]
  %s5 = inlined_call_operand.vmem [shape: f32[1,32], index: 5, kind: input, shape index: {}]
  %s6 = inlined_call_operand.vmem [shape: f32[8,1], index: 6, kind: input, shape index: {}]
  %s7 = inlined_call_operand.<no memory space> [shape: f32[1,1], index: 7, kind: input, shape index: {}]
  %s8 = inlined_call_operand.vmem [shape: f32[64,32], index: 8, kind: input, shape index: {}]
  %s9 = inlined_call_operand.vmem [shape: f32[32,32], index: 9, kind: input, shape index: {}]
  %s10 = inlined_call_operand.vmem [shape: f32[1,32], index: 10, kind: input, shape index: {}]
  %s11 = inlined_call_operand.vmem [shape: f32[1,32], index: 11, kind: input, shape index: {}]
  %s12 = inlined_call_operand.<no memory space> [shape: f32[1,1], index: 12, kind: input, shape index: {}]
  %s13 = inlined_call_operand.vmem [shape: f32[33,128], index: 13, kind: input, shape index: {}]
  %s14 = inlined_call_operand.vmem [shape: f32[1,128], index: 14, kind: input, shape index: {}]
  %s15 = inlined_call_operand.vmem [shape: f32[32,1], index: 15, kind: input, shape index: {}]
  %s16 = inlined_call_operand.<no memory space> [shape: f32[1,1], index: 16, kind: input, shape index: {}]
  %s17 = inlined_call_operand.<no memory space> [shape: f32[1,1], index: 17, kind: input, shape index: {}]
  %s18 = inlined_call_operand.vmem [shape: f32[64,1], index: 18, kind: input, shape index: {}]
  %s19 = inlined_call_operand.<no memory space> [shape: f32[1,1], index: 19, kind: input, shape index: {}]
  %s20 = inlined_call_operand.vmem [shape: f32[4,1], index: 20, kind: output, shape index: {}]
  %s21 = sld [smem:[#allocation0]]
  $region90: #{tpu_custom_call.1} parent=0
    _
  %s23 = ssub.s32 1, %s21
  %s24 = scalar_select 0, %s23, %s21
  %25 = sst [smem:[#allocation2]] %s7
  %26 = sst [smem:[#allocation3]] %s12
  %v27 = vstv %s16
  %28 = vst [vmem:[#allocation4] sm:$0x1] %v27
  %v29 = vstv %s17
  %30 = vst [vmem:[#allocation5] sm:$0x1] %v29
  %v31 = vstv %s19
  %32 = vst [vmem:[#allocation6] sm:$0x1] %v31
  // Predicated region
  $region2: #{tpu_custom_call.1} parent=0 // pred_check
    _
  $region3: #{tpu_custom_call.1} parent=0 // pred_check_branch
    %34 = sbr.rel (0) target = $region5
  $region4: #{tpu_custom_call.1} parent=0 // pred_region
    _
  $region5: #{tpu_custom_call.1} parent=0 // pred_fallthru
    _
  // Predicated region
  $region6: #{tpu_custom_call.1} parent=0 // pred_check
    _
  $region7: #{tpu_custom_call.1} parent=0 // pred_check_branch
    %36 = sbr.rel (0) target = $region9
  $region8: #{tpu_custom_call.1} parent=0 // pred_region
    _
  $region9: #{tpu_custom_call.1} parent=0 // pred_fallthru
    _
  // Predicated region
  $region10: #{tpu_custom_call.1} parent=0 // pred_check
    _
  $region11: #{tpu_custom_call.1} parent=0 // pred_check_branch
    %38 = sbr.rel (0) target = $region13
  $region12: #{tpu_custom_call.1} parent=0 // pred_region
    _
  $region13: #{tpu_custom_call.1} parent=0 // pred_fallthru
    _
  // Predicated region
  $region14: #{tpu_custom_call.1} parent=0 // pred_check
    _
  $region15: #{tpu_custom_call.1} parent=0 // pred_check_branch
    %40 = sbr.rel (0) target = $region17
  $region16: #{tpu_custom_call.1} parent=0 // pred_region
    _
  $region17: #{tpu_custom_call.1} parent=0 // pred_fallthru
    _
  // Predicated region
  $region18: #{tpu_custom_call.1} parent=0 // pred_check
    _
  $region19: #{tpu_custom_call.1} parent=0 // pred_check_branch
    %42 = sbr.rel (0) target = $region21
  $region20: #{tpu_custom_call.1} parent=0 // pred_region
    _
  $region21: #{tpu_custom_call.1} parent=0 // pred_fallthru
    _
  // Predicated region
  $region22: #{tpu_custom_call.1} parent=0 // pred_check
    _
  $region23: #{tpu_custom_call.1} parent=0 // pred_check_branch
    %44 = sbr.rel (0) target = $region25
  $region24: #{tpu_custom_call.1} parent=0 // pred_region
    _
  $region25: #{tpu_custom_call.1} parent=0 // pred_fallthru
    _
  // Predicated region
  $region26: #{tpu_custom_call.1} parent=0 // pred_check
    _
  $region27: #{tpu_custom_call.1} parent=0 // pred_check_branch
    %46 = sbr.rel (0) target = $region29
  $region28: #{tpu_custom_call.1} parent=0 // pred_region
    _
  $region29: #{tpu_custom_call.1} parent=0 // pred_fallthru
    _
  // Predicated region
  $region30: #{tpu_custom_call.1} parent=0 // pred_check
    _
  $region31: #{tpu_custom_call.1} parent=0 // pred_check_branch
    %48 = sbr.rel (0) target = $region33
  $region32: #{tpu_custom_call.1} parent=0 // pred_region
    _
  $region33: #{tpu_custom_call.1} parent=0 // pred_fallthru
    _
  // Predicated region
  $region34: #{tpu_custom_call.1} parent=0 // pred_check
    _
  $region35: #{tpu_custom_call.1} parent=0 // pred_check_branch
    %50 = sbr.rel (0) target = $region37
  $region36: #{tpu_custom_call.1} parent=0 // pred_region
    _
  $region37: #{tpu_custom_call.1} parent=0 // pred_fallthru
    _
  // Predicated region
  $region38: #{tpu_custom_call.1} parent=0 // pred_check
    _
  $region39: #{tpu_custom_call.1} parent=0 // pred_check_branch
    %52 = sbr.rel (0) target = $region41
  $region40: #{tpu_custom_call.1} parent=0 // pred_region
    _
  $region41: #{tpu_custom_call.1} parent=0 // pred_fallthru
    _
  // Predicated region
  $region42: #{tpu_custom_call.1} parent=0 // pred_check
    _
  $region43: #{tpu_custom_call.1} parent=0 // pred_check_branch
    %54 = sbr.rel (0) target = $region45
  $region44: #{tpu_custom_call.1} parent=0 // pred_region
    _
  $region45: #{tpu_custom_call.1} parent=0 // pred_fallthru
    _
  // Predicated region
  $region46: #{tpu_custom_call.1} parent=0 // pred_check
    _
  $region47: #{tpu_custom_call.1} parent=0 // pred_check_branch
    %56 = sbr.rel (0) target = $region49
  $region48: #{tpu_custom_call.1} parent=0 // pred_region
    _
  $region49: #{tpu_custom_call.1} parent=0 // pred_fallthru
    _
  // Predicated region
  $region50: #{tpu_custom_call.1} parent=0 // pred_check
    _
  $region51: #{tpu_custom_call.1} parent=0 // pred_check_branch
    %58 = sbr.rel (0) target = $region53
  $region52: #{tpu_custom_call.1} parent=0 // pred_region
    _
  $region53: #{tpu_custom_call.1} parent=0 // pred_fallthru
    _
  // Predicated region
  $region54: #{tpu_custom_call.1} parent=0 // pred_check
    _
  $region55: #{tpu_custom_call.1} parent=0 // pred_check_branch
    %60 = sbr.rel (0) target = $region57
  $region56: #{tpu_custom_call.1} parent=0 // pred_region
    _
  $region57: #{tpu_custom_call.1} parent=0 // pred_fallthru
    _
  // Predicated region
  $region58: #{tpu_custom_call.1} parent=0 // pred_check
    _
  $region59: #{tpu_custom_call.1} parent=0 // pred_check_branch
    %62 = sbr.rel (0) target = $region61
  $region60: #{tpu_custom_call.1} parent=0 // pred_region
    _
  $region61: #{tpu_custom_call.1} parent=0 // pred_fallthru
    _
  // Predicated region
  $region62: #{tpu_custom_call.1} parent=0 // pred_check
    _
  $region63: #{tpu_custom_call.1} parent=0 // pred_check_branch
    %64 = sbr.rel (0) target = $region65
  $region64: #{tpu_custom_call.1} parent=0 // pred_region
    _
  $region65: #{tpu_custom_call.1} parent=0 // pred_fallthru
    _
  // Predicated region
  $region66: #{tpu_custom_call.1} parent=0 // pred_check
    _
  $region67: #{tpu_custom_call.1} parent=0 // pred_check_branch
    %66 = sbr.rel (0) target = $region69
  $region68: #{tpu_custom_call.1} parent=0 // pred_region
    _
  $region69: #{tpu_custom_call.1} parent=0 // pred_fallthru
    _
  // Predicated region
  $region70: #{tpu_custom_call.1} parent=0 // pred_check
    _
  $region71: #{tpu_custom_call.1} parent=0 // pred_check_branch
    %68 = sbr.rel (0) target = $region73
  $region72: #{tpu_custom_call.1} parent=0 // pred_region
    _
  $region73: #{tpu_custom_call.1} parent=0 // pred_fallthru
    _
  // Predicated region
  $region74: #{tpu_custom_call.1} parent=0 // pred_check
    _
  $region75: #{tpu_custom_call.1} parent=0 // pred_check_branch
    %70 = sbr.rel (0) target = $region77
  $region76: #{tpu_custom_call.1} parent=0 // pred_region
    _
  $region77: #{tpu_custom_call.1} parent=0 // pred_fallthru
    _
  // Predicated region
  $region78: #{tpu_custom_call.1} parent=0 // pred_check
    _
  $region79: #{tpu_custom_call.1} parent=0 // pred_check_branch
    %72 = sbr.rel (0) target = $region81
  $region80: #{tpu_custom_call.1} parent=0 // pred_region
    _
  $region81: #{tpu_custom_call.1} parent=0 // pred_fallthru
    _
  %v73 = vld [vmem:[%s0] sm:$0xff]
  %v74 = vld [vmem:[%s0 + $0x8] sm:$0xff]
  %v75 = vld [vmem:[%s0 + $0x10] sm:$0xff]
  %v76 = vld [vmem:[%s0 + $0x18] sm:$0xff]
  %v77 = vld [vmem:[%s1] sm:$0xf]
  %v78 = vld [vmem:[%s2] sm:$0xff]
  %v79 = vld [vmem:[%s2 + $0x8] sm:$0xff]
  %v80 = vld [vmem:[%s2 + $0x10] sm:$0xff]
  %v81 = vld [vmem:[%s2 + $0x18] sm:$0xff]
  %v82 = vld [vmem:[%s2 + $0x20] sm:$0xff]
  %v83 = vld [vmem:[%s2 + $0x28] sm:$0xff]
  %v84 = vld [vmem:[%s3] sm:$0x1]
  %v85 = vld [vmem:[%s4] sm:$0x1]
  %v86 = vld [vmem:[%s5] sm:$0x1]
  %v87 = vld [vmem:[%s6] sm:$0xff]
  %s88 = sld [smem:[#allocation2]]
  %v89 = vld [vmem:[%s8] sm:$0xff]
  %v90 = vld [vmem:[%s8 + $0x8] sm:$0xff]
  %v91 = vld [vmem:[%s8 + $0x10] sm:$0xff]
  %v92 = vld [vmem:[%s8 + $0x18] sm:$0xff]
  %v93 = vld [vmem:[%s8 + $0x20] sm:$0xff]
  %v94 = vld [vmem:[%s8 + $0x28] sm:$0xff]
  %v95 = vld [vmem:[%s8 + $0x30] sm:$0xff]
  %v96 = vld [vmem:[%s8 + $0x38] sm:$0xff]
  %v97 = vld [vmem:[%s9] sm:$0xff]
  %v98 = vld [vmem:[%s9 + $0x8] sm:$0xff]
  %v99 = vld [vmem:[%s9 + $0x10] sm:$0xff]
  %v100 = vld [vmem:[%s9 + $0x18] sm:$0xff]
  %v101 = vld [vmem:[%s10] sm:$0x1]
  %v102 = vld [vmem:[%s11] sm:$0x1]
  %s103 = sld [smem:[#allocation3]]
  %v104 = vld [vmem:[%s13] sm:$0xff]
  %v105 = vld [vmem:[%s13 + $0x8] sm:$0xff]
  %v106 = vld [vmem:[%s13 + $0x10] sm:$0xff]
  %v107 = vld [vmem:[%s13 + $0x18] sm:$0xff]
  %v108 = vld [vmem:[%s13 + $0x20] sm:$0x1]
  %v109 = vld [vmem:[%s14] sm:$0x1]
  %v110 = vld [vmem:[%s15] sm:$0xff]
  %v111 = vld [vmem:[%s15 + $0x8] sm:$0xff]
  %v112 = vld [vmem:[%s15 + $0x10] sm:$0xff]
  %v113 = vld [vmem:[%s15 + $0x18] sm:$0xff]
  %v114 = vld [vmem:[#allocation4] sm:$0x1]
  %v115 = vld [vmem:[#allocation5] sm:$0x1]
  %v116 = vld [vmem:[%s18] sm:$0xff]
  %v117 = vld [vmem:[%s18 + $0x8] sm:$0xff]
  %v118 = vld [vmem:[%s18 + $0x10] sm:$0xff]
  %v119 = vld [vmem:[%s18 + $0x18] sm:$0xff]
  %v120 = vld [vmem:[%s18 + $0x20] sm:$0xff]
  %v121 = vld [vmem:[%s18 + $0x28] sm:$0xff]
  %v122 = vld [vmem:[%s18 + $0x30] sm:$0xff]
  %v123 = vld [vmem:[%s18 + $0x38] sm:$0xff]
  %v124 = vld [vmem:[#allocation6] sm:$0x1]
  %v126 = vlaneseq
  %v127 = vshrl.u32 %v126, 7
  %v128 = vsub.s32 0, %v127
  %v129 = vrot.slane %v84, %v128
  %v132 = vlaneseq
  %v133 = vshrl.u32 %v132, 7
  %v134 = vsub.s32 0, %v133
  %v135 = vrot.slane %v109, %v134
  %v138 = vlaneseq
  %v139 = vshrl.u32 %v138, 7
  %v140 = vsub.s32 0, %v139
  %v141 = vrot.slane %v115, %v140
  %v144 = vlaneseq
  %v145 = vshrl.u32 %v144, 7
  %v146 = vsub.s32 0, %v145
  %v147 = vrot.slane %v85, %v146
  %v150 = vlaneseq
  %v151 = vshrl.u32 %v150, 7
  %v152 = vsub.s32 0, %v151
  %v153 = vrot.slane %v86, %v152
  %v156 = vlaneseq
  %v157 = vshrl.u32 %v156, 7
  %v158 = vsub.s32 0, %v157
  %v159 = vrot.slane %v102, %v158
  %162 = vset.pattern.permute.xlu0 0
  %163 = vperm.xlu0 %162, %v87
  %v164 = vpop.permute.xlu0 %163
  %v166 = vmul.f32 %v73, %v164
  %v167 = vmul.f32 %v74, %v164
  %v168 = vmul.f32 %v75, %v164
  %v169 = vmul.f32 %v76, %v164
  %vm170 = vcmask 130048
  %v171 = vsel %vm170, %v166, 0.0
  %v172 = vrot.slane %v171, 4
  %v173 = vadd.f32 %v171, %v172
  %v174 = vrot.slane %v173, 2
  %v175 = vadd.f32 %v173, %v174
  %v176 = vrot.slane %v175, 1
  %v177 = vadd.f32 %v175, %v176
  %v178 = vsel %vm170, %v167, 0.0
  %v179 = vrot.slane %v178, 4
  %v180 = vadd.f32 %v178, %v179
  %v181 = vrot.slane %v180, 2
  %v182 = vadd.f32 %v180, %v181
  %v183 = vrot.slane %v182, 1
  %v184 = vadd.f32 %v182, %v183
  %v185 = vsel %vm170, %v168, 0.0
  %v186 = vrot.slane %v185, 4
  %v187 = vadd.f32 %v185, %v186
  %v188 = vrot.slane %v187, 2
  %v189 = vadd.f32 %v187, %v188
  %v190 = vrot.slane %v189, 1
  %v191 = vadd.f32 %v189, %v190
  %v192 = vsel %vm170, %v169, 0.0
  %v193 = vrot.slane %v192, 4
  %v194 = vadd.f32 %v192, %v193
  %v195 = vrot.slane %v194, 2
  %v196 = vadd.f32 %v194, %v195
  %v197 = vrot.slane %v196, 1
  %v198 = vadd.f32 %v196, %v197
  %v199 = vstv %s88
  %v200 = vadd.f32 %v177, %v199
  %v201 = vadd.f32 %v184, %v199
  %v202 = vadd.f32 %v191, %v199
  %v203 = vadd.f32 %v198, %v199
  %v204 = vmul.f32 %v147, 0.0
  %v205 = vmul.f32 %v153, 0.0
  %v206 = vadd.f32 %v204, %v205
  %vm207 = vcmask 261120
  %v208 = vsel %vm207, %v206, 0.0
  %209 = vadd.xlane.f32.xlu0 %v208
  %v210 = vpop.xlane.xlu0 %209
  %v211 = vadd.f32 %v200, %v210
  %v212 = vadd.f32 %v201, %v210
  %v213 = vadd.f32 %v202, %v210
  %v214 = vadd.f32 %v203, %v210
  %vm219 = vcmask 1041409
  %v220 = vsel %vm219, %v212, %v211
  %vm221 = vcmask 1042434
  %v222 = vsel %vm221, %v213, %v220
  %vm223 = vcmask 1043459
  %v224 = vsel %vm223, %v214, %v222
  %vm226 = vcmask 125952
  %v227 = vsel %vm226, %v224, -inf
  %228 = vmax.xlane.f32.xlu0 %v227
  %v229 = vpop.xlane.xlu0 %228
  %v231 = vrot.slane %v229, 1
  %v232 = vrot.slane %v229, 2
  %v233 = vrot.slane %v229, 3
  %v238 = vsub.f32 %v211, %v229
  %v239 = vsub.f32 %v212, %v231
  %v240 = vsub.f32 %v213, %v232
  %v241 = vsub.f32 %v214, %v233
  %v242 = vmul.f32 %v238, 1.442695
  %v243 = vpow.pop %v242
  %v244 = vmul.f32 %v239, 1.442695
  %v245 = vpow.pop %v244
  %v246 = vmul.f32 %v240, 1.442695
  %v247 = vpow.pop %v246
  %v248 = vmul.f32 %v241, 1.442695
  %v249 = vpow.pop %v248
  %v254 = vrot.slane %v245, 7
  %v255 = vsel %vm219, %v254, %v243
  %v256 = vrot.slane %v247, 6
  %v257 = vsel %vm221, %v256, %v255
  %v258 = vrot.slane %v249, 5
  %v259 = vsel %vm223, %v258, %v257
  %v261 = vsel %vm226, %v259, 0.0
  %262 = vadd.xlane.f32.xlu0 %v261
  %v263 = vpop.xlane.xlu0 %262
  %v264 = vrcp.pop %v263
  %v266 = vrot.slane %v264, 1
  %v267 = vrot.slane %v264, 2
  %v268 = vrot.slane %v264, 3
  %v273 = vmul.f32 %v243, %v264
  %v274 = vmul.f32 %v245, %v266
  %v275 = vmul.f32 %v247, %v267
  %v276 = vmul.f32 %v249, %v268
  %v277 = vmul.f32 %v273, %v73
  %v278 = vmul.f32 %v274, %v74
  %v279 = vmul.f32 %v275, %v75
  %v280 = vmul.f32 %v276, %v76
  %v285 = vrot.slane %v278, 7
  %v286 = vsel %vm219, %v285, %v277
  %v287 = vrot.slane %v279, 6
  %v288 = vsel %vm221, %v287, %v286
  %v289 = vrot.slane %v280, 5
  %v290 = vsel %vm223, %v289, %v288
  %v292 = vsel %vm170, %v290, 0.0
  %vm293 = vcmask 392192
  %v295 = vsel %vm293, %v292, 0
  %297 = vmatprep.subr.mxu0 0.0
  %298 = vmatpush1.msra.mxu0 %v78
  %299 = vmatprep.subr.mxu0 0.0
  %300 = vmatpush1.msra.mxu0 %v79
  %301 = vmatprep.subr.mxu0 0.0
  %302 = vmatpush1.msra.mxu0 %v80
  %303 = vmatprep.subr.mxu0 0.0
  %304 = vmatpush1.msra.mxu0 %v81
  %305 = vmatprep.subr.mxu0 0.0
  %306 = vmatpush1.msra.mxu0 %v82
  %307 = vmatprep.subr.mxu0 0.0
  %308 = vmatpush1.msra.mxu0 %v83
  %309 = vmatprep.subr.mxu0 0.0
  %310 = vmatpush1.msra.mxu0 0.0
  %311 = vmatprep.subr.mxu0 0.0
  %312 = vmatpush1.msra.mxu0 0.0
  %313 = vmatprep.subr.mxu0 0.0
  %314 = vmatpush1.msra.mxu0 0.0
  %315 = vmatprep.subr.mxu0 0.0
  %316 = vmatpush1.msra.mxu0 0.0
  %317 = vmatprep.subr.mxu0 0.0
  %318 = vmatpush1.msra.mxu0 0.0
  %319 = vmatprep.subr.mxu0 0.0
  %320 = vmatpush1.msra.mxu0 0.0
  %321 = vmatprep.subr.mxu0 0.0
  %322 = vmatpush1.msra.mxu0 0.0
  %323 = vmatprep.subr.mxu0 0.0
  %324 = vmatpush1.msra.mxu0 0.0
  %325 = vmatprep.subr.mxu0 0.0
  %326 = vmatpush1.msra.mxu0 0.0
  %327 = vmatprep.subr.mxu0 0.0
  %328 = vmatpush1.msra.mxu0 0.0
  %329 = vmatprep.subr.mxu0 0.0
  %330 = vmatpush1.msra.mxu0 0.0
  %331 = vmatprep.subr.mxu0 0.0
  %332 = vmatpush1.msra.mxu0 0.0
  %333 = vmatprep.subr.mxu0 0.0
  %334 = vmatpush1.msra.mxu0 0.0
  %335 = vmatprep.subr.mxu0 0.0
  %336 = vmatpush1.msra.mxu0 0.0
  %337 = vmatprep.subr.mxu0 0.0
  %338 = vmatpush1.msra.mxu0 0.0
  %339 = vmatprep.subr.mxu0 0.0
  %340 = vmatpush1.msra.mxu0 0.0
  %341 = vmatprep.subr.mxu0 0.0
  %342 = vmatpush1.msra.mxu0 0.0
  %343 = vmatprep.subr.mxu0 0.0
  %344 = vmatpush1.msra.mxu0 0.0
  %345 = vmatprep.subr.mxu0 0.0
  %346 = vmatpush1.msra.mxu0 0.0
  %347 = vmatprep.subr.mxu0 0.0
  %348 = vmatpush1.msra.mxu0 0.0
  %349 = vmatprep.subr.mxu0 0.0
  %350 = vmatpush1.msra.mxu0 0.0
  %351 = vmatprep.subr.mxu0 0.0
  %352 = vmatpush1.msra.mxu0 0.0
  %353 = vmatprep.subr.mxu0 0.0
  %354 = vmatpush1.msra.mxu0 0.0
  %355 = vmatprep.subr.mxu0 0.0
  %356 = vmatpush1.msra.mxu0 0.0
  %357 = vmatprep.subr.mxu0 0.0
  %358 = vmatpush1.msra.mxu0 0.0
  %359 = vmatprep.subr.mxu0 0.0
  %360 = vmatpush1.msra.mxu0 0.0
  %361 = vmatprep.mubr.f32.mxu0 0.0
  %362 = vmatmul.mubr.f32.gmra.mrb[0].mxu0 %v295
  %v363 = vpop.f32.mrb[0].mxu0
  %v364 = vadd.f32 %v129, %v363
  %v365 = vpop.f32.mrb[0].mxu0
  %366 = vdwg.mxu0
  %v367 = vxor.u32 %v364, 2147483648
  %v368 = vmul.f32 %v367, 1.442695
  %v369 = vpow.pop %v368
  %v370 = vadd.f32 %v369, 1.0
  %v371 = vrcp.pop %v370
  %v372 = vmul.f32 1.0, %v371
  %v373 = vtanh.pop %v364
  %v374 = vmul.f32 %v372, 0.0
  %376 = vrot.lane.b32.xlu0 %v373, 64
  %v377 = vpop.permute.xlu0 %376
  %v379 = vmul.f32 %v372, %v377
  %381 = vrot.lane.b32.xlu0 %v379, 32
  %v382 = vpop.permute.xlu0 %381
  %v384 = vadd.f32 %v374, %v382
  %v385 = vtanh.pop %v384
  %387 = vrot.lane.b32.xlu0 %v385, 64
  %v388 = vpop.permute.xlu0 %387
  %v390 = vmul.f32 %v372, %v388
  %391 = vrot.lane.b32.xlu0 %v147, 96
  %v392 = vpop.permute.xlu0 %391
  %v394 = vmul.f32 %v390, %v392
  %395 = vrot.lane.b32.xlu0 %v153, 32
  %v396 = vpop.permute.xlu0 %395
  %v398 = vmul.f32 %v384, %v396
  %400 = vrot.lane.b32.xlu0 %v398, 64
  %v401 = vpop.permute.xlu0 %400
  %v403 = vadd.f32 %v394, %v401
  %405 = vrot.lane.b32.xlu0 %v403, 32
  %v406 = vpop.permute.xlu0 %405
  %vm408 = vcmask 257024
  %v409 = vsel %vm408, %v406, 0.0
  %410 = vadd.xlane.f32.xlu0 %v409
  %v411 = vpop.xlane.xlu0 %410
  %v413 = vrot.slane %v411, 1
  %v414 = vrot.slane %v411, 2
  %v415 = vrot.slane %v411, 3
  %v420 = vadd.f32 %v200, %v411
  %v421 = vadd.f32 %v201, %v413
  %v422 = vadd.f32 %v202, %v414
  %v423 = vadd.f32 %v203, %v415
  %v428 = vrot.slane %v421, 7
  %v429 = vsel %vm219, %v428, %v420
  %v430 = vrot.slane %v422, 6
  %v431 = vsel %vm221, %v430, %v429
  %v432 = vrot.slane %v423, 5
  %v433 = vsel %vm223, %v432, %v431
  %v435 = vsel %vm226, %v433, -inf
  %436 = vmax.xlane.f32.xlu0 %v435
  %v437 = vpop.xlane.xlu0 %436
  %v439 = vrot.slane %v437, 1
  %v440 = vrot.slane %v437, 2
  %v441 = vrot.slane %v437, 3
  %v446 = vsub.f32 %v420, %v437
  %v447 = vsub.f32 %v421, %v439
  %v448 = vsub.f32 %v422, %v440
  %v449 = vsub.f32 %v423, %v441
  %v450 = vmul.f32 %v446, 1.442695
  %v451 = vpow.pop %v450
  %v452 = vmul.f32 %v447, 1.442695
  %v453 = vpow.pop %v452
  %v454 = vmul.f32 %v448, 1.442695
  %v455 = vpow.pop %v454
  %v456 = vmul.f32 %v449, 1.442695
  %v457 = vpow.pop %v456
  %v462 = vrot.slane %v453, 7
  %v463 = vsel %vm219, %v462, %v451
  %v464 = vrot.slane %v455, 6
  %v465 = vsel %vm221, %v464, %v463
  %v466 = vrot.slane %v457, 5
  %v467 = vsel %vm223, %v466, %v465
  %v469 = vsel %vm226, %v467, 0.0
  %470 = vadd.xlane.f32.xlu0 %v469
  %v471 = vpop.xlane.xlu0 %470
  %v472 = vrcp.pop %v471
  %v474 = vrot.slane %v472, 1
  %v475 = vrot.slane %v472, 2
  %v476 = vrot.slane %v472, 3
  %v481 = vmul.f32 %v451, %v472
  %v482 = vmul.f32 %v453, %v474
  %v483 = vmul.f32 %v455, %v475
  %v484 = vmul.f32 %v457, %v476
  %v489 = vrot.slane %v73, 1
  %v490 = vrot.slane %v74, 1
  %v491 = vrot.slane %v75, 1
  %v492 = vrot.slane %v76, 1
  %v497 = vmul.f32 %v481, %v489
  %v498 = vmul.f32 %v482, %v490
  %v499 = vmul.f32 %v483, %v491
  %v500 = vmul.f32 %v484, %v492
  %v505 = vrot.slane %v498, 7
  %v506 = vsel %vm219, %v505, %v497
  %v507 = vrot.slane %v499, 6
  %v508 = vsel %vm221, %v507, %v506
  %v509 = vrot.slane %v500, 5
  %v510 = vsel %vm223, %v509, %v508
  %513 = vrot.lane.b32.xlu0 %v390, 48
  %v514 = vpop.permute.xlu0 %513
  %v516 = vsel %vm170, %v510, %v514
  %v518 = vsel %vm293, %v516, 0
  %520 = vmatprep.subr.mxu0 0.0
  %521 = vmatpush1.msra.mxu0 %v78
  %522 = vmatprep.subr.mxu0 0.0
  %523 = vmatpush1.msra.mxu0 %v79
  %524 = vmatprep.subr.mxu0 0.0
  %525 = vmatpush1.msra.mxu0 %v80
  %526 = vmatprep.subr.mxu0 0.0
  %527 = vmatpush1.msra.mxu0 %v81
  %528 = vmatprep.subr.mxu0 0.0
  %529 = vmatpush1.msra.mxu0 %v82
  %530 = vmatprep.subr.mxu0 0.0
  %531 = vmatpush1.msra.mxu0 %v83
  %532 = vmatprep.subr.mxu0 0.0
  %533 = vmatpush1.msra.mxu0 0.0
  %534 = vmatprep.subr.mxu0 0.0
  %535 = vmatpush1.msra.mxu0 0.0
  %536 = vmatprep.subr.mxu0 0.0
  %537 = vmatpush1.msra.mxu0 0.0
  %538 = vmatprep.subr.mxu0 0.0
  %539 = vmatpush1.msra.mxu0 0.0
  %540 = vmatprep.subr.mxu0 0.0
  %541 = vmatpush1.msra.mxu0 0.0
  %542 = vmatprep.subr.mxu0 0.0
  %543 = vmatpush1.msra.mxu0 0.0
  %544 = vmatprep.subr.mxu0 0.0
  %545 = vmatpush1.msra.mxu0 0.0
  %546 = vmatprep.subr.mxu0 0.0
  %547 = vmatpush1.msra.mxu0 0.0
  %548 = vmatprep.subr.mxu0 0.0
  %549 = vmatpush1.msra.mxu0 0.0
  %550 = vmatprep.subr.mxu0 0.0
  %551 = vmatpush1.msra.mxu0 0.0
  %552 = vmatprep.subr.mxu0 0.0
  %553 = vmatpush1.msra.mxu0 0.0
  %554 = vmatprep.subr.mxu0 0.0
  %555 = vmatpush1.msra.mxu0 0.0
  %556 = vmatprep.subr.mxu0 0.0
  %557 = vmatpush1.msra.mxu0 0.0
  %558 = vmatprep.subr.mxu0 0.0
  %559 = vmatpush1.msra.mxu0 0.0
  %560 = vmatprep.subr.mxu0 0.0
  %561 = vmatpush1.msra.mxu0 0.0
  %562 = vmatprep.subr.mxu0 0.0
  %563 = vmatpush1.msra.mxu0 0.0
  %564 = vmatprep.subr.mxu0 0.0
  %565 = vmatpush1.msra.mxu0 0.0
  %566 = vmatprep.subr.mxu0 0.0
  %567 = vmatpush1.msra.mxu0 0.0
  %568 = vmatprep.subr.mxu0 0.0
  %569 = vmatpush1.msra.mxu0 0.0
  %570 = vmatprep.subr.mxu0 0.0
  %571 = vmatpush1.msra.mxu0 0.0
  %572 = vmatprep.subr.mxu0 0.0
  %573 = vmatpush1.msra.mxu0 0.0
  %574 = vmatprep.subr.mxu0 0.0
  %575 = vmatpush1.msra.mxu0 0.0
  %576 = vmatprep.subr.mxu0 0.0
  %577 = vmatpush1.msra.mxu0 0.0
  %578 = vmatprep.subr.mxu0 0.0
  %579 = vmatpush1.msra.mxu0 0.0
  %580 = vmatprep.subr.mxu0 0.0
  %581 = vmatpush1.msra.mxu0 0.0
  %582 = vmatprep.subr.mxu0 0.0
  %583 = vmatpush1.msra.mxu0 0.0
  %584 = vmatprep.mubr.f32.mxu0 0.0
  %585 = vmatmul.mubr.f32.gmra.mrb[0].mxu0 %v518
  %v586 = vpop.f32.mrb[0].mxu0
  %v587 = vadd.f32 %v129, %v586
  %v588 = vpop.f32.mrb[0].mxu0
  %589 = vdwg.mxu0
  %v590 = vxor.u32 %v587, 2147483648
  %v591 = vmul.f32 %v590, 1.442695
  %v592 = vpow.pop %v591
  %v593 = vadd.f32 %v592, 1.0
  %v594 = vrcp.pop %v593
  %v595 = vmul.f32 1.0, %v594
  %v596 = vtanh.pop %v587
  %v597 = vmul.f32 %v595, %v384
  %599 = vrot.lane.b32.xlu0 %v596, 64
  %v600 = vpop.permute.xlu0 %599
  %v602 = vmul.f32 %v595, %v600
  %604 = vrot.lane.b32.xlu0 %v602, 32
  %v605 = vpop.permute.xlu0 %604
  %v607 = vadd.f32 %v597, %v605
  %v608 = vtanh.pop %v607
  %610 = vrot.lane.b32.xlu0 %v608, 64
  %v611 = vpop.permute.xlu0 %610
  %v613 = vmul.f32 %v595, %v611
  %v614 = vmul.f32 %v613, %v392
  %v615 = vmul.f32 %v607, %v396
  %617 = vrot.lane.b32.xlu0 %v615, 64
  %v618 = vpop.permute.xlu0 %617
  %v620 = vadd.f32 %v614, %v618
  %622 = vrot.lane.b32.xlu0 %v620, 32
  %v623 = vpop.permute.xlu0 %622
  %v625 = vsel %vm408, %v623, 0.0
  %626 = vadd.xlane.f32.xlu0 %v625
  %v627 = vpop.xlane.xlu0 %626
  %v629 = vrot.slane %v627, 1
  %v630 = vrot.slane %v627, 2
  %v631 = vrot.slane %v627, 3
  %v636 = vadd.f32 %v200, %v627
  %v637 = vadd.f32 %v201, %v629
  %v638 = vadd.f32 %v202, %v630
  %v639 = vadd.f32 %v203, %v631
  %v644 = vrot.slane %v637, 7
  %v645 = vsel %vm219, %v644, %v636
  %v646 = vrot.slane %v638, 6
  %v647 = vsel %vm221, %v646, %v645
  %v648 = vrot.slane %v639, 5
  %v649 = vsel %vm223, %v648, %v647
  %v651 = vsel %vm226, %v649, -inf
  %652 = vmax.xlane.f32.xlu0 %v651
  %v653 = vpop.xlane.xlu0 %652
  %v655 = vrot.slane %v653, 1
  %v656 = vrot.slane %v653, 2
  %v657 = vrot.slane %v653, 3
  %v662 = vsub.f32 %v636, %v653
  %v663 = vsub.f32 %v637, %v655
  %v664 = vsub.f32 %v638, %v656
  %v665 = vsub.f32 %v639, %v657
  %v666 = vmul.f32 %v662, 1.442695
  %v667 = vpow.pop %v666
  %v668 = vmul.f32 %v663, 1.442695
  %v669 = vpow.pop %v668
  %v670 = vmul.f32 %v664, 1.442695
  %v671 = vpow.pop %v670
  %v672 = vmul.f32 %v665, 1.442695
  %v673 = vpow.pop %v672
  %v678 = vrot.slane %v669, 7
  %v679 = vsel %vm219, %v678, %v667
  %v680 = vrot.slane %v671, 6
  %v681 = vsel %vm221, %v680, %v679
  %v682 = vrot.slane %v673, 5
  %v683 = vsel %vm223, %v682, %v681
  %v685 = vsel %vm226, %v683, 0.0
  %686 = vadd.xlane.f32.xlu0 %v685
  %v687 = vpop.xlane.xlu0 %686
  %v688 = vrcp.pop %v687
  %v690 = vrot.slane %v688, 1
  %v691 = vrot.slane %v688, 2
  %v692 = vrot.slane %v688, 3
  %v697 = vmul.f32 %v667, %v688
  %v698 = vmul.f32 %v669, %v690
  %v699 = vmul.f32 %v671, %v691
  %v700 = vmul.f32 %v673, %v692
  %v701 = vrot.slane %v73, 2
  %v702 = vrot.slane %v74, 2
  %v703 = vrot.slane %v75, 2
  %v704 = vrot.slane %v76, 2
  %v709 = vmul.f32 %v697, %v701
  %v710 = vmul.f32 %v698, %v702
  %v711 = vmul.f32 %v699, %v703
  %v712 = vmul.f32 %v700, %v704
  %v717 = vrot.slane %v710, 7
  %v718 = vsel %vm219, %v717, %v709
  %v719 = vrot.slane %v711, 6
  %v720 = vsel %vm221, %v719, %v718
  %v721 = vrot.slane %v712, 5
  %v722 = vsel %vm223, %v721, %v720
  %725 = vrot.lane.b32.xlu0 %v613, 48
  %v726 = vpop.permute.xlu0 %725
  %v728 = vsel %vm170, %v722, %v726
  %v730 = vsel %vm293, %v728, 0
  %732 = vmatprep.subr.mxu0 0.0
  %733 = vmatpush1.msra.mxu0 %v78
  %734 = vmatprep.subr.mxu0 0.0
  %735 = vmatpush1.msra.mxu0 %v79
  %736 = vmatprep.subr.mxu0 0.0
  %737 = vmatpush1.msra.mxu0 %v80
  %738 = vmatprep.subr.mxu0 0.0
  %739 = vmatpush1.msra.mxu0 %v81
  %740 = vmatprep.subr.mxu0 0.0
  %741 = vmatpush1.msra.mxu0 %v82
  %742 = vmatprep.subr.mxu0 0.0
  %743 = vmatpush1.msra.mxu0 %v83
  %744 = vmatprep.subr.mxu0 0.0
  %745 = vmatpush1.msra.mxu0 0.0
  %746 = vmatprep.subr.mxu0 0.0
  %747 = vmatpush1.msra.mxu0 0.0
  %748 = vmatprep.subr.mxu0 0.0
  %749 = vmatpush1.msra.mxu0 0.0
  %750 = vmatprep.subr.mxu0 0.0
  %751 = vmatpush1.msra.mxu0 0.0
  %752 = vmatprep.subr.mxu0 0.0
  %753 = vmatpush1.msra.mxu0 0.0
  %754 = vmatprep.subr.mxu0 0.0
  %755 = vmatpush1.msra.mxu0 0.0
  %756 = vmatprep.subr.mxu0 0.0
  %757 = vmatpush1.msra.mxu0 0.0
  %758 = vmatprep.subr.mxu0 0.0
  %759 = vmatpush1.msra.mxu0 0.0
  %760 = vmatprep.subr.mxu0 0.0
  %761 = vmatpush1.msra.mxu0 0.0
  %762 = vmatprep.subr.mxu0 0.0
  %763 = vmatpush1.msra.mxu0 0.0
  %764 = vmatprep.subr.mxu0 0.0
  %765 = vmatpush1.msra.mxu0 0.0
  %766 = vmatprep.subr.mxu0 0.0
  %767 = vmatpush1.msra.mxu0 0.0
  %768 = vmatprep.subr.mxu0 0.0
  %769 = vmatpush1.msra.mxu0 0.0
  %770 = vmatprep.subr.mxu0 0.0
  %771 = vmatpush1.msra.mxu0 0.0
  %772 = vmatprep.subr.mxu0 0.0
  %773 = vmatpush1.msra.mxu0 0.0
  %774 = vmatprep.subr.mxu0 0.0
  %775 = vmatpush1.msra.mxu0 0.0
  %776 = vmatprep.subr.mxu0 0.0
  %777 = vmatpush1.msra.mxu0 0.0
  %778 = vmatprep.subr.mxu0 0.0
  %779 = vmatpush1.msra.mxu0 0.0
  %780 = vmatprep.subr.mxu0 0.0
  %781 = vmatpush1.msra.mxu0 0.0
  %782 = vmatprep.subr.mxu0 0.0
  %783 = vmatpush1.msra.mxu0 0.0
  %784 = vmatprep.subr.mxu0 0.0
  %785 = vmatpush1.msra.mxu0 0.0
  %786 = vmatprep.subr.mxu0 0.0
  %787 = vmatpush1.msra.mxu0 0.0
  %788 = vmatprep.subr.mxu0 0.0
  %789 = vmatpush1.msra.mxu0 0.0
  %790 = vmatprep.subr.mxu0 0.0
  %791 = vmatpush1.msra.mxu0 0.0
  %792 = vmatprep.subr.mxu0 0.0
  %793 = vmatpush1.msra.mxu0 0.0
  %794 = vmatprep.subr.mxu0 0.0
  %795 = vmatpush1.msra.mxu0 0.0
  %796 = vmatprep.mubr.f32.mxu0 0.0
  %797 = vmatmul.mubr.f32.gmra.mrb[0].mxu0 %v730
  %v798 = vpop.f32.mrb[0].mxu0
  %v799 = vadd.f32 %v129, %v798
  %v800 = vpop.f32.mrb[0].mxu0
  %801 = vdwg.mxu0
  %v802 = vxor.u32 %v799, 2147483648
  %v803 = vmul.f32 %v802, 1.442695
  %v804 = vpow.pop %v803
  %v805 = vadd.f32 %v804, 1.0
  %v806 = vrcp.pop %v805
  %v807 = vmul.f32 1.0, %v806
  %v808 = vtanh.pop %v799
  %v809 = vmul.f32 %v807, %v607
  %811 = vrot.lane.b32.xlu0 %v808, 64
  %v812 = vpop.permute.xlu0 %811
  %v814 = vmul.f32 %v807, %v812
  %816 = vrot.lane.b32.xlu0 %v814, 32
  %v817 = vpop.permute.xlu0 %816
  %v819 = vadd.f32 %v809, %v817
  %v820 = vtanh.pop %v819
  %822 = vrot.lane.b32.xlu0 %v820, 64
  %v823 = vpop.permute.xlu0 %822
  %v825 = vmul.f32 %v807, %v823
  %v826 = vmul.f32 %v825, %v392
  %v827 = vmul.f32 %v819, %v396
  %829 = vrot.lane.b32.xlu0 %v827, 64
  %v830 = vpop.permute.xlu0 %829
  %v832 = vadd.f32 %v826, %v830
  %834 = vrot.lane.b32.xlu0 %v832, 32
  %v835 = vpop.permute.xlu0 %834
  %v837 = vsel %vm408, %v835, 0.0
  %838 = vadd.xlane.f32.xlu0 %v837
  %v839 = vpop.xlane.xlu0 %838
  %v841 = vrot.slane %v839, 1
  %v842 = vrot.slane %v839, 2
  %v843 = vrot.slane %v839, 3
  %v848 = vadd.f32 %v200, %v839
  %v849 = vadd.f32 %v201, %v841
  %v850 = vadd.f32 %v202, %v842
  %v851 = vadd.f32 %v203, %v843
  %v856 = vrot.slane %v849, 7
  %v857 = vsel %vm219, %v856, %v848
  %v858 = vrot.slane %v850, 6
  %v859 = vsel %vm221, %v858, %v857
  %v860 = vrot.slane %v851, 5
  %v861 = vsel %vm223, %v860, %v859
  %v863 = vsel %vm226, %v861, -inf
  %864 = vmax.xlane.f32.xlu0 %v863
  %v865 = vpop.xlane.xlu0 %864
  %v867 = vrot.slane %v865, 1
  %v868 = vrot.slane %v865, 2
  %v869 = vrot.slane %v865, 3
  %v874 = vsub.f32 %v848, %v865
  %v875 = vsub.f32 %v849, %v867
  %v876 = vsub.f32 %v850, %v868
  %v877 = vsub.f32 %v851, %v869
  %v878 = vmul.f32 %v874, 1.442695
  %v879 = vpow.pop %v878
  %v880 = vmul.f32 %v875, 1.442695
  %v881 = vpow.pop %v880
  %v882 = vmul.f32 %v876, 1.442695
  %v883 = vpow.pop %v882
  %v884 = vmul.f32 %v877, 1.442695
  %v885 = vpow.pop %v884
  %v890 = vrot.slane %v881, 7
  %v891 = vsel %vm219, %v890, %v879
  %v892 = vrot.slane %v883, 6
  %v893 = vsel %vm221, %v892, %v891
  %v894 = vrot.slane %v885, 5
  %v895 = vsel %vm223, %v894, %v893
  %v897 = vsel %vm226, %v895, 0.0
  %898 = vadd.xlane.f32.xlu0 %v897
  %v899 = vpop.xlane.xlu0 %898
  %v900 = vrcp.pop %v899
  %v902 = vrot.slane %v900, 1
  %v903 = vrot.slane %v900, 2
  %v904 = vrot.slane %v900, 3
  %v909 = vmul.f32 %v879, %v900
  %v910 = vmul.f32 %v881, %v902
  %v911 = vmul.f32 %v883, %v903
  %v912 = vmul.f32 %v885, %v904
  %v913 = vrot.slane %v73, 3
  %v914 = vrot.slane %v74, 3
  %v915 = vrot.slane %v75, 3
  %v916 = vrot.slane %v76, 3
  %v921 = vmul.f32 %v909, %v913
  %v922 = vmul.f32 %v910, %v914
  %v923 = vmul.f32 %v911, %v915
  %v924 = vmul.f32 %v912, %v916
  %v929 = vrot.slane %v922, 7
  %v930 = vsel %vm219, %v929, %v921
  %v931 = vrot.slane %v923, 6
  %v932 = vsel %vm221, %v931, %v930
  %v933 = vrot.slane %v924, 5
  %v934 = vsel %vm223, %v933, %v932
  %937 = vrot.lane.b32.xlu0 %v825, 48
  %v938 = vpop.permute.xlu0 %937
  %v940 = vsel %vm170, %v934, %v938
  %v942 = vsel %vm293, %v940, 0
  %944 = vmatprep.subr.mxu0 0.0
  %945 = vmatpush1.msra.mxu0 %v78
  %946 = vmatprep.subr.mxu0 0.0
  %947 = vmatpush1.msra.mxu0 %v79
  %948 = vmatprep.subr.mxu0 0.0
  %949 = vmatpush1.msra.mxu0 %v80
  %950 = vmatprep.subr.mxu0 0.0
  %951 = vmatpush1.msra.mxu0 %v81
  %952 = vmatprep.subr.mxu0 0.0
  %953 = vmatpush1.msra.mxu0 %v82
  %954 = vmatprep.subr.mxu0 0.0
  %955 = vmatpush1.msra.mxu0 %v83
  %956 = vmatprep.subr.mxu0 0.0
  %957 = vmatpush1.msra.mxu0 0.0
  %958 = vmatprep.subr.mxu0 0.0
  %959 = vmatpush1.msra.mxu0 0.0
  %960 = vmatprep.subr.mxu0 0.0
  %961 = vmatpush1.msra.mxu0 0.0
  %962 = vmatprep.subr.mxu0 0.0
  %963 = vmatpush1.msra.mxu0 0.0
  %964 = vmatprep.subr.mxu0 0.0
  %965 = vmatpush1.msra.mxu0 0.0
  %966 = vmatprep.subr.mxu0 0.0
  %967 = vmatpush1.msra.mxu0 0.0
  %968 = vmatprep.subr.mxu0 0.0
  %969 = vmatpush1.msra.mxu0 0.0
  %970 = vmatprep.subr.mxu0 0.0
  %971 = vmatpush1.msra.mxu0 0.0
  %972 = vmatprep.subr.mxu0 0.0
  %973 = vmatpush1.msra.mxu0 0.0
  %974 = vmatprep.subr.mxu0 0.0
  %975 = vmatpush1.msra.mxu0 0.0
  %976 = vmatprep.subr.mxu0 0.0
  %977 = vmatpush1.msra.mxu0 0.0
  %978 = vmatprep.subr.mxu0 0.0
  %979 = vmatpush1.msra.mxu0 0.0
  %980 = vmatprep.subr.mxu0 0.0
  %981 = vmatpush1.msra.mxu0 0.0
  %982 = vmatprep.subr.mxu0 0.0
  %983 = vmatpush1.msra.mxu0 0.0
  %984 = vmatprep.subr.mxu0 0.0
  %985 = vmatpush1.msra.mxu0 0.0
  %986 = vmatprep.subr.mxu0 0.0
  %987 = vmatpush1.msra.mxu0 0.0
  %988 = vmatprep.subr.mxu0 0.0
  %989 = vmatpush1.msra.mxu0 0.0
  %990 = vmatprep.subr.mxu0 0.0
  %991 = vmatpush1.msra.mxu0 0.0
  %992 = vmatprep.subr.mxu0 0.0
  %993 = vmatpush1.msra.mxu0 0.0
  %994 = vmatprep.subr.mxu0 0.0
  %995 = vmatpush1.msra.mxu0 0.0
  %996 = vmatprep.subr.mxu0 0.0
  %997 = vmatpush1.msra.mxu0 0.0
  %998 = vmatprep.subr.mxu0 0.0
  %999 = vmatpush1.msra.mxu0 0.0
  %1000 = vmatprep.subr.mxu0 0.0
  %1001 = vmatpush1.msra.mxu0 0.0
  %1002 = vmatprep.subr.mxu0 0.0
  %1003 = vmatpush1.msra.mxu0 0.0
  %1004 = vmatprep.subr.mxu0 0.0
  %1005 = vmatpush1.msra.mxu0 0.0
  %1006 = vmatprep.subr.mxu0 0.0
  %1007 = vmatpush1.msra.mxu0 0.0
  %1008 = vmatprep.mubr.f32.mxu0 0.0
  %1009 = vmatmul.mubr.f32.gmra.mrb[0].mxu0 %v942
  %v1010 = vpop.f32.mrb[0].mxu0
  %v1011 = vadd.f32 %v129, %v1010
  %v1012 = vpop.f32.mrb[0].mxu0
  %1013 = vdwg.mxu0
  %v1014 = vxor.u32 %v1011, 2147483648
  %v1015 = vmul.f32 %v1014, 1.442695
  %v1016 = vpow.pop %v1015
  %v1017 = vadd.f32 %v1016, 1.0
  %v1018 = vrcp.pop %v1017
  %v1019 = vmul.f32 1.0, %v1018
  %v1020 = vtanh.pop %v1011
  %v1021 = vmul.f32 %v1019, %v819
  %1023 = vrot.lane.b32.xlu0 %v1020, 64
  %v1024 = vpop.permute.xlu0 %1023
  %v1026 = vmul.f32 %v1019, %v1024
  %1028 = vrot.lane.b32.xlu0 %v1026, 32
  %v1029 = vpop.permute.xlu0 %1028
  %v1031 = vadd.f32 %v1021, %v1029
  %v1032 = vtanh.pop %v1031
  %1034 = vrot.lane.b32.xlu0 %v1032, 64
  %v1035 = vpop.permute.xlu0 %1034
  %v1037 = vmul.f32 %v1019, %v1035
  %v1038 = vmul.f32 %v1037, %v392
  %v1039 = vmul.f32 %v1031, %v396
  %1041 = vrot.lane.b32.xlu0 %v1039, 64
  %v1042 = vpop.permute.xlu0 %1041
  %v1044 = vadd.f32 %v1038, %v1042
  %1046 = vrot.lane.b32.xlu0 %v1044, 32
  %v1047 = vpop.permute.xlu0 %1046
  %v1049 = vsel %vm408, %v1047, 0.0
  %1050 = vadd.xlane.f32.xlu0 %v1049
  %v1051 = vpop.xlane.xlu0 %1050
  %v1053 = vrot.slane %v1051, 1
  %v1054 = vrot.slane %v1051, 2
  %v1055 = vrot.slane %v1051, 3
  %v1060 = vadd.f32 %v200, %v1051
  %v1061 = vadd.f32 %v201, %v1053
  %v1062 = vadd.f32 %v202, %v1054
  %v1063 = vadd.f32 %v203, %v1055
  %v1068 = vrot.slane %v1061, 7
  %v1069 = vsel %vm219, %v1068, %v1060
  %v1070 = vrot.slane %v1062, 6
  %v1071 = vsel %vm221, %v1070, %v1069
  %v1072 = vrot.slane %v1063, 5
  %v1073 = vsel %vm223, %v1072, %v1071
  %v1075 = vsel %vm226, %v1073, -inf
  %1076 = vmax.xlane.f32.xlu0 %v1075
  %v1077 = vpop.xlane.xlu0 %1076
  %v1079 = vrot.slane %v1077, 1
  %v1080 = vrot.slane %v1077, 2
  %v1081 = vrot.slane %v1077, 3
  %v1086 = vsub.f32 %v1060, %v1077
  %v1087 = vsub.f32 %v1061, %v1079
  %v1088 = vsub.f32 %v1062, %v1080
  %v1089 = vsub.f32 %v1063, %v1081
  %v1090 = vmul.f32 %v1086, 1.442695
  %v1091 = vpow.pop %v1090
  %v1092 = vmul.f32 %v1087, 1.442695
  %v1093 = vpow.pop %v1092
  %v1094 = vmul.f32 %v1088, 1.442695
  %v1095 = vpow.pop %v1094
  %v1096 = vmul.f32 %v1089, 1.442695
  %v1097 = vpow.pop %v1096
  %v1102 = vrot.slane %v1093, 7
  %v1103 = vsel %vm219, %v1102, %v1091
  %v1104 = vrot.slane %v1095, 6
  %v1105 = vsel %vm221, %v1104, %v1103
  %v1106 = vrot.slane %v1097, 5
  %v1107 = vsel %vm223, %v1106, %v1105
  %v1109 = vsel %vm226, %v1107, 0.0
  %1110 = vadd.xlane.f32.xlu0 %v1109
  %v1111 = vpop.xlane.xlu0 %1110
  %v1112 = vrcp.pop %v1111
  %v1114 = vrot.slane %v1112, 1
  %v1115 = vrot.slane %v1112, 2
  %v1116 = vrot.slane %v1112, 3
  %v1121 = vmul.f32 %v1091, %v1112
  %v1122 = vmul.f32 %v1093, %v1114
  %v1123 = vmul.f32 %v1095, %v1115
  %v1124 = vmul.f32 %v1097, %v1116
  %v1125 = vrot.slane %v73, 4
  %v1126 = vrot.slane %v74, 4
  %v1127 = vrot.slane %v75, 4
  %v1128 = vrot.slane %v76, 4
  %v1133 = vmul.f32 %v1121, %v1125
  %v1134 = vmul.f32 %v1122, %v1126
  %v1135 = vmul.f32 %v1123, %v1127
  %v1136 = vmul.f32 %v1124, %v1128
  %v1141 = vrot.slane %v1134, 7
  %v1142 = vsel %vm219, %v1141, %v1133
  %v1143 = vrot.slane %v1135, 6
  %v1144 = vsel %vm221, %v1143, %v1142
  %v1145 = vrot.slane %v1136, 5
  %v1146 = vsel %vm223, %v1145, %v1144
  %1149 = vrot.lane.b32.xlu0 %v1037, 48
  %v1150 = vpop.permute.xlu0 %1149
  %v1152 = vsel %vm170, %v1146, %v1150
  %v1154 = vsel %vm293, %v1152, 0
  %1156 = vmatprep.subr.mxu0 0.0
  %1157 = vmatpush1.msra.mxu0 %v78
  %1158 = vmatprep.subr.mxu0 0.0
  %1159 = vmatpush1.msra.mxu0 %v79
  %1160 = vmatprep.subr.mxu0 0.0
  %1161 = vmatpush1.msra.mxu0 %v80
  %1162 = vmatprep.subr.mxu0 0.0
  %1163 = vmatpush1.msra.mxu0 %v81
  %1164 = vmatprep.subr.mxu0 0.0
  %1165 = vmatpush1.msra.mxu0 %v82
  %1166 = vmatprep.subr.mxu0 0.0
  %1167 = vmatpush1.msra.mxu0 %v83
  %1168 = vmatprep.subr.mxu0 0.0
  %1169 = vmatpush1.msra.mxu0 0.0
  %1170 = vmatprep.subr.mxu0 0.0
  %1171 = vmatpush1.msra.mxu0 0.0
  %1172 = vmatprep.subr.mxu0 0.0
  %1173 = vmatpush1.msra.mxu0 0.0
  %1174 = vmatprep.subr.mxu0 0.0
  %1175 = vmatpush1.msra.mxu0 0.0
  %1176 = vmatprep.subr.mxu0 0.0
  %1177 = vmatpush1.msra.mxu0 0.0
  %1178 = vmatprep.subr.mxu0 0.0
  %1179 = vmatpush1.msra.mxu0 0.0
  %1180 = vmatprep.subr.mxu0 0.0
  %1181 = vmatpush1.msra.mxu0 0.0
  %1182 = vmatprep.subr.mxu0 0.0
  %1183 = vmatpush1.msra.mxu0 0.0
  %1184 = vmatprep.subr.mxu0 0.0
  %1185 = vmatpush1.msra.mxu0 0.0
  %1186 = vmatprep.subr.mxu0 0.0
  %1187 = vmatpush1.msra.mxu0 0.0
  %1188 = vmatprep.subr.mxu0 0.0
  %1189 = vmatpush1.msra.mxu0 0.0
  %1190 = vmatprep.subr.mxu0 0.0
  %1191 = vmatpush1.msra.mxu0 0.0
  %1192 = vmatprep.subr.mxu0 0.0
  %1193 = vmatpush1.msra.mxu0 0.0
  %1194 = vmatprep.subr.mxu0 0.0
  %1195 = vmatpush1.msra.mxu0 0.0
  %1196 = vmatprep.subr.mxu0 0.0
  %1197 = vmatpush1.msra.mxu0 0.0
  %1198 = vmatprep.subr.mxu0 0.0
  %1199 = vmatpush1.msra.mxu0 0.0
  %1200 = vmatprep.subr.mxu0 0.0
  %1201 = vmatpush1.msra.mxu0 0.0
  %1202 = vmatprep.subr.mxu0 0.0
  %1203 = vmatpush1.msra.mxu0 0.0
  %1204 = vmatprep.subr.mxu0 0.0
  %1205 = vmatpush1.msra.mxu0 0.0
  %1206 = vmatprep.subr.mxu0 0.0
  %1207 = vmatpush1.msra.mxu0 0.0
  %1208 = vmatprep.subr.mxu0 0.0
  %1209 = vmatpush1.msra.mxu0 0.0
  %1210 = vmatprep.subr.mxu0 0.0
  %1211 = vmatpush1.msra.mxu0 0.0
  %1212 = vmatprep.subr.mxu0 0.0
  %1213 = vmatpush1.msra.mxu0 0.0
  %1214 = vmatprep.subr.mxu0 0.0
  %1215 = vmatpush1.msra.mxu0 0.0
  %1216 = vmatprep.subr.mxu0 0.0
  %1217 = vmatpush1.msra.mxu0 0.0
  %1218 = vmatprep.subr.mxu0 0.0
  %1219 = vmatpush1.msra.mxu0 0.0
  %1220 = vmatprep.mubr.f32.mxu0 0.0
  %1221 = vmatmul.mubr.f32.gmra.mrb[0].mxu0 %v1154
  %v1222 = vpop.f32.mrb[0].mxu0
  %v1223 = vadd.f32 %v129, %v1222
  %v1224 = vpop.f32.mrb[0].mxu0
  %1225 = vdwg.mxu0
  %v1226 = vxor.u32 %v1223, 2147483648
  %v1227 = vmul.f32 %v1226, 1.442695
  %v1228 = vpow.pop %v1227
  %v1229 = vadd.f32 %v1228, 1.0
  %v1230 = vrcp.pop %v1229
  %v1231 = vmul.f32 1.0, %v1230
  %v1232 = vtanh.pop %v1223
  %v1233 = vmul.f32 %v1231, %v1031
  %1235 = vrot.lane.b32.xlu0 %v1232, 64
  %v1236 = vpop.permute.xlu0 %1235
  %v1238 = vmul.f32 %v1231, %v1236
  %1240 = vrot.lane.b32.xlu0 %v1238, 32
  %v1241 = vpop.permute.xlu0 %1240
  %v1243 = vadd.f32 %v1233, %v1241
  %v1244 = vtanh.pop %v1243
  %1246 = vrot.lane.b32.xlu0 %v1244, 64
  %v1247 = vpop.permute.xlu0 %1246
  %v1249 = vmul.f32 %v1231, %v1247
  %v1250 = vmul.f32 %v1249, %v392
  %v1251 = vmul.f32 %v1243, %v396
  %1253 = vrot.lane.b32.xlu0 %v1251, 64
  %v1254 = vpop.permute.xlu0 %1253
  %v1256 = vadd.f32 %v1250, %v1254
  %1258 = vrot.lane.b32.xlu0 %v1256, 32
  %v1259 = vpop.permute.xlu0 %1258
  %v1261 = vsel %vm408, %v1259, 0.0
  %1262 = vadd.xlane.f32.xlu0 %v1261
  %v1263 = vpop.xlane.xlu0 %1262
  %v1265 = vrot.slane %v1263, 1
  %v1266 = vrot.slane %v1263, 2
  %v1267 = vrot.slane %v1263, 3
  %v1272 = vadd.f32 %v200, %v1263
  %v1273 = vadd.f32 %v201, %v1265
  %v1274 = vadd.f32 %v202, %v1266
  %v1275 = vadd.f32 %v203, %v1267
  %v1280 = vrot.slane %v1273, 7
  %v1281 = vsel %vm219, %v1280, %v1272
  %v1282 = vrot.slane %v1274, 6
  %v1283 = vsel %vm221, %v1282, %v1281
  %v1284 = vrot.slane %v1275, 5
  %v1285 = vsel %vm223, %v1284, %v1283
  %v1287 = vsel %vm226, %v1285, -inf
  %1288 = vmax.xlane.f32.xlu0 %v1287
  %v1289 = vpop.xlane.xlu0 %1288
  %v1291 = vrot.slane %v1289, 1
  %v1292 = vrot.slane %v1289, 2
  %v1293 = vrot.slane %v1289, 3
  %v1298 = vsub.f32 %v1272, %v1289
  %v1299 = vsub.f32 %v1273, %v1291
  %v1300 = vsub.f32 %v1274, %v1292
  %v1301 = vsub.f32 %v1275, %v1293
  %v1302 = vmul.f32 %v1298, 1.442695
  %v1303 = vpow.pop %v1302
  %v1304 = vmul.f32 %v1299, 1.442695
  %v1305 = vpow.pop %v1304
  %v1306 = vmul.f32 %v1300, 1.442695
  %v1307 = vpow.pop %v1306
  %v1308 = vmul.f32 %v1301, 1.442695
  %v1309 = vpow.pop %v1308
  %v1314 = vrot.slane %v1305, 7
  %v1315 = vsel %vm219, %v1314, %v1303
  %v1316 = vrot.slane %v1307, 6
  %v1317 = vsel %vm221, %v1316, %v1315
  %v1318 = vrot.slane %v1309, 5
  %v1319 = vsel %vm223, %v1318, %v1317
  %v1321 = vsel %vm226, %v1319, 0.0
  %1322 = vadd.xlane.f32.xlu0 %v1321
  %v1323 = vpop.xlane.xlu0 %1322
  %v1324 = vrcp.pop %v1323
  %v1326 = vrot.slane %v1324, 1
  %v1327 = vrot.slane %v1324, 2
  %v1328 = vrot.slane %v1324, 3
  %v1333 = vmul.f32 %v1303, %v1324
  %v1334 = vmul.f32 %v1305, %v1326
  %v1335 = vmul.f32 %v1307, %v1327
  %v1336 = vmul.f32 %v1309, %v1328
  %v1337 = vrot.slane %v73, 5
  %v1338 = vrot.slane %v74, 5
  %v1339 = vrot.slane %v75, 5
  %v1340 = vrot.slane %v76, 5
  %v1345 = vmul.f32 %v1333, %v1337
  %v1346 = vmul.f32 %v1334, %v1338
  %v1347 = vmul.f32 %v1335, %v1339
  %v1348 = vmul.f32 %v1336, %v1340
  %v1353 = vrot.slane %v1346, 7
  %v1354 = vsel %vm219, %v1353, %v1345
  %v1355 = vrot.slane %v1347, 6
  %v1356 = vsel %vm221, %v1355, %v1354
  %v1357 = vrot.slane %v1348, 5
  %v1358 = vsel %vm223, %v1357, %v1356
  %1361 = vrot.lane.b32.xlu0 %v1249, 48
  %v1362 = vpop.permute.xlu0 %1361
  %v1364 = vsel %vm170, %v1358, %v1362
  %v1366 = vsel %vm293, %v1364, 0
  %1368 = vmatprep.subr.mxu0 0.0
  %1369 = vmatpush1.msra.mxu0 %v78
  %1370 = vmatprep.subr.mxu0 0.0
  %1371 = vmatpush1.msra.mxu0 %v79
  %1372 = vmatprep.subr.mxu0 0.0
  %1373 = vmatpush1.msra.mxu0 %v80
  %1374 = vmatprep.subr.mxu0 0.0
  %1375 = vmatpush1.msra.mxu0 %v81
  %1376 = vmatprep.subr.mxu0 0.0
  %1377 = vmatpush1.msra.mxu0 %v82
  %1378 = vmatprep.subr.mxu0 0.0
  %1379 = vmatpush1.msra.mxu0 %v83
  %1380 = vmatprep.subr.mxu0 0.0
  %1381 = vmatpush1.msra.mxu0 0.0
  %1382 = vmatprep.subr.mxu0 0.0
  %1383 = vmatpush1.msra.mxu0 0.0
  %1384 = vmatprep.subr.mxu0 0.0
  %1385 = vmatpush1.msra.mxu0 0.0
  %1386 = vmatprep.subr.mxu0 0.0
  %1387 = vmatpush1.msra.mxu0 0.0
  %1388 = vmatprep.subr.mxu0 0.0
  %1389 = vmatpush1.msra.mxu0 0.0
  %1390 = vmatprep.subr.mxu0 0.0
  %1391 = vmatpush1.msra.mxu0 0.0
  %1392 = vmatprep.subr.mxu0 0.0
  %1393 = vmatpush1.msra.mxu0 0.0
  %1394 = vmatprep.subr.mxu0 0.0
  %1395 = vmatpush1.msra.mxu0 0.0
  %1396 = vmatprep.subr.mxu0 0.0
  %1397 = vmatpush1.msra.mxu0 0.0
  %1398 = vmatprep.subr.mxu0 0.0
  %1399 = vmatpush1.msra.mxu0 0.0
  %1400 = vmatprep.subr.mxu0 0.0
  %1401 = vmatpush1.msra.mxu0 0.0
  %1402 = vmatprep.subr.mxu0 0.0
  %1403 = vmatpush1.msra.mxu0 0.0
  %1404 = vmatprep.subr.mxu0 0.0
  %1405 = vmatpush1.msra.mxu0 0.0
  %1406 = vmatprep.subr.mxu0 0.0
  %1407 = vmatpush1.msra.mxu0 0.0
  %1408 = vmatprep.subr.mxu0 0.0
  %1409 = vmatpush1.msra.mxu0 0.0
  %1410 = vmatprep.subr.mxu0 0.0
  %1411 = vmatpush1.msra.mxu0 0.0
  %1412 = vmatprep.subr.mxu0 0.0
  %1413 = vmatpush1.msra.mxu0 0.0
  %1414 = vmatprep.subr.mxu0 0.0
  %1415 = vmatpush1.msra.mxu0 0.0
  %1416 = vmatprep.subr.mxu0 0.0
  %1417 = vmatpush1.msra.mxu0 0.0
  %1418 = vmatprep.subr.mxu0 0.0
  %1419 = vmatpush1.msra.mxu0 0.0
  %1420 = vmatprep.subr.mxu0 0.0
  %1421 = vmatpush1.msra.mxu0 0.0
  %1422 = vmatprep.subr.mxu0 0.0
  %1423 = vmatpush1.msra.mxu0 0.0
  %1424 = vmatprep.subr.mxu0 0.0
  %1425 = vmatpush1.msra.mxu0 0.0
  %1426 = vmatprep.subr.mxu0 0.0
  %1427 = vmatpush1.msra.mxu0 0.0
  %1428 = vmatprep.subr.mxu0 0.0
  %1429 = vmatpush1.msra.mxu0 0.0
  %1430 = vmatprep.subr.mxu0 0.0
  %1431 = vmatpush1.msra.mxu0 0.0
  %1432 = vmatprep.mubr.f32.mxu0 0.0
  %1433 = vmatmul.mubr.f32.gmra.mrb[0].mxu0 %v1366
  %v1434 = vpop.f32.mrb[0].mxu0
  %v1435 = vadd.f32 %v129, %v1434
  %v1436 = vpop.f32.mrb[0].mxu0
  %1437 = vdwg.mxu0
  %v1438 = vxor.u32 %v1435, 2147483648
  %v1439 = vmul.f32 %v1438, 1.442695
  %v1440 = vpow.pop %v1439
  %v1441 = vadd.f32 %v1440, 1.0
  %v1442 = vrcp.pop %v1441
  %v1443 = vmul.f32 1.0, %v1442
  %v1444 = vtanh.pop %v1435
  %v1445 = vmul.f32 %v1443, %v1243
  %1447 = vrot.lane.b32.xlu0 %v1444, 64
  %v1448 = vpop.permute.xlu0 %1447
  %v1450 = vmul.f32 %v1443, %v1448
  %1452 = vrot.lane.b32.xlu0 %v1450, 32
  %v1453 = vpop.permute.xlu0 %1452
  %v1455 = vadd.f32 %v1445, %v1453
  %v1456 = vtanh.pop %v1455
  %1458 = vrot.lane.b32.xlu0 %v1456, 64
  %v1459 = vpop.permute.xlu0 %1458
  %v1461 = vmul.f32 %v1443, %v1459
  %v1462 = vmul.f32 %v1461, %v392
  %v1463 = vmul.f32 %v1455, %v396
  %1465 = vrot.lane.b32.xlu0 %v1463, 64
  %v1466 = vpop.permute.xlu0 %1465
  %v1468 = vadd.f32 %v1462, %v1466
  %1470 = vrot.lane.b32.xlu0 %v1468, 32
  %v1471 = vpop.permute.xlu0 %1470
  %v1473 = vsel %vm408, %v1471, 0.0
  %1474 = vadd.xlane.f32.xlu0 %v1473
  %v1475 = vpop.xlane.xlu0 %1474
  %v1477 = vrot.slane %v1475, 1
  %v1478 = vrot.slane %v1475, 2
  %v1479 = vrot.slane %v1475, 3
  %v1484 = vadd.f32 %v200, %v1475
  %v1485 = vadd.f32 %v201, %v1477
  %v1486 = vadd.f32 %v202, %v1478
  %v1487 = vadd.f32 %v203, %v1479
  %v1492 = vrot.slane %v1485, 7
  %v1493 = vsel %vm219, %v1492, %v1484
  %v1494 = vrot.slane %v1486, 6
  %v1495 = vsel %vm221, %v1494, %v1493
  %v1496 = vrot.slane %v1487, 5
  %v1497 = vsel %vm223, %v1496, %v1495
  %v1499 = vsel %vm226, %v1497, -inf
  %1500 = vmax.xlane.f32.xlu0 %v1499
  %v1501 = vpop.xlane.xlu0 %1500
  %v1503 = vrot.slane %v1501, 1
  %v1504 = vrot.slane %v1501, 2
  %v1505 = vrot.slane %v1501, 3
  %v1510 = vsub.f32 %v1484, %v1501
  %v1511 = vsub.f32 %v1485, %v1503
  %v1512 = vsub.f32 %v1486, %v1504
  %v1513 = vsub.f32 %v1487, %v1505
  %v1514 = vmul.f32 %v1510, 1.442695
  %v1515 = vpow.pop %v1514
  %v1516 = vmul.f32 %v1511, 1.442695
  %v1517 = vpow.pop %v1516
  %v1518 = vmul.f32 %v1512, 1.442695
  %v1519 = vpow.pop %v1518
  %v1520 = vmul.f32 %v1513, 1.442695
  %v1521 = vpow.pop %v1520
  %v1526 = vrot.slane %v1517, 7
  %v1527 = vsel %vm219, %v1526, %v1515
  %v1528 = vrot.slane %v1519, 6
  %v1529 = vsel %vm221, %v1528, %v1527
  %v1530 = vrot.slane %v1521, 5
  %v1531 = vsel %vm223, %v1530, %v1529
  %v1533 = vsel %vm226, %v1531, 0.0
  %1534 = vadd.xlane.f32.xlu0 %v1533
  %v1535 = vpop.xlane.xlu0 %1534
  %v1536 = vrcp.pop %v1535
  %v1538 = vrot.slane %v1536, 1
  %v1539 = vrot.slane %v1536, 2
  %v1540 = vrot.slane %v1536, 3
  %v1545 = vmul.f32 %v1515, %v1536
  %v1546 = vmul.f32 %v1517, %v1538
  %v1547 = vmul.f32 %v1519, %v1539
  %v1548 = vmul.f32 %v1521, %v1540
  %v1549 = vrot.slane %v73, 6
  %v1550 = vrot.slane %v74, 6
  %v1551 = vrot.slane %v75, 6
  %v1552 = vrot.slane %v76, 6
  %v1557 = vmul.f32 %v1545, %v1549
  %v1558 = vmul.f32 %v1546, %v1550
  %v1559 = vmul.f32 %v1547, %v1551
  %v1560 = vmul.f32 %v1548, %v1552
  %v1565 = vrot.slane %v1558, 7
  %v1566 = vsel %vm219, %v1565, %v1557
  %v1567 = vrot.slane %v1559, 6
  %v1568 = vsel %vm221, %v1567, %v1566
  %v1569 = vrot.slane %v1560, 5
  %v1570 = vsel %vm223, %v1569, %v1568
  %1573 = vrot.lane.b32.xlu0 %v1461, 48
  %v1574 = vpop.permute.xlu0 %1573
  %v1576 = vsel %vm170, %v1570, %v1574
  %v1578 = vsel %vm293, %v1576, 0
  %1580 = vmatprep.subr.mxu0 0.0
  %1581 = vmatpush1.msra.mxu0 %v78
  %1582 = vmatprep.subr.mxu0 0.0
  %1583 = vmatpush1.msra.mxu0 %v79
  %1584 = vmatprep.subr.mxu0 0.0
  %1585 = vmatpush1.msra.mxu0 %v80
  %1586 = vmatprep.subr.mxu0 0.0
  %1587 = vmatpush1.msra.mxu0 %v81
  %1588 = vmatprep.subr.mxu0 0.0
  %1589 = vmatpush1.msra.mxu0 %v82
  %1590 = vmatprep.subr.mxu0 0.0
  %1591 = vmatpush1.msra.mxu0 %v83
  %1592 = vmatprep.subr.mxu0 0.0
  %1593 = vmatpush1.msra.mxu0 0.0
  %1594 = vmatprep.subr.mxu0 0.0
  %1595 = vmatpush1.msra.mxu0 0.0
  %1596 = vmatprep.subr.mxu0 0.0
  %1597 = vmatpush1.msra.mxu0 0.0
  %1598 = vmatprep.subr.mxu0 0.0
  %1599 = vmatpush1.msra.mxu0 0.0
  %1600 = vmatprep.subr.mxu0 0.0
  %1601 = vmatpush1.msra.mxu0 0.0
  %1602 = vmatprep.subr.mxu0 0.0
  %1603 = vmatpush1.msra.mxu0 0.0
  %1604 = vmatprep.subr.mxu0 0.0
  %1605 = vmatpush1.msra.mxu0 0.0
  %1606 = vmatprep.subr.mxu0 0.0
  %1607 = vmatpush1.msra.mxu0 0.0
  %1608 = vmatprep.subr.mxu0 0.0
  %1609 = vmatpush1.msra.mxu0 0.0
  %1610 = vmatprep.subr.mxu0 0.0
  %1611 = vmatpush1.msra.mxu0 0.0
  %1612 = vmatprep.subr.mxu0 0.0
  %1613 = vmatpush1.msra.mxu0 0.0
  %1614 = vmatprep.subr.mxu0 0.0
  %1615 = vmatpush1.msra.mxu0 0.0
  %1616 = vmatprep.subr.mxu0 0.0
  %1617 = vmatpush1.msra.mxu0 0.0
  %1618 = vmatprep.subr.mxu0 0.0
  %1619 = vmatpush1.msra.mxu0 0.0
  %1620 = vmatprep.subr.mxu0 0.0
  %1621 = vmatpush1.msra.mxu0 0.0
  %1622 = vmatprep.subr.mxu0 0.0
  %1623 = vmatpush1.msra.mxu0 0.0
  %1624 = vmatprep.subr.mxu0 0.0
  %1625 = vmatpush1.msra.mxu0 0.0
  %1626 = vmatprep.subr.mxu0 0.0
  %1627 = vmatpush1.msra.mxu0 0.0
  %1628 = vmatprep.subr.mxu0 0.0
  %1629 = vmatpush1.msra.mxu0 0.0
  %1630 = vmatprep.subr.mxu0 0.0
  %1631 = vmatpush1.msra.mxu0 0.0
  %1632 = vmatprep.subr.mxu0 0.0
  %1633 = vmatpush1.msra.mxu0 0.0
  %1634 = vmatprep.subr.mxu0 0.0
  %1635 = vmatpush1.msra.mxu0 0.0
  %1636 = vmatprep.subr.mxu0 0.0
  %1637 = vmatpush1.msra.mxu0 0.0
  %1638 = vmatprep.subr.mxu0 0.0
  %1639 = vmatpush1.msra.mxu0 0.0
  %1640 = vmatprep.subr.mxu0 0.0
  %1641 = vmatpush1.msra.mxu0 0.0
  %1642 = vmatprep.subr.mxu0 0.0
  %1643 = vmatpush1.msra.mxu0 0.0
  %1644 = vmatprep.mubr.f32.mxu0 0.0
  %1645 = vmatmul.mubr.f32.gmra.mrb[0].mxu0 %v1578
  %v1646 = vpop.f32.mrb[0].mxu0
  %v1647 = vadd.f32 %v129, %v1646
  %v1648 = vpop.f32.mrb[0].mxu0
  %1649 = vdwg.mxu0
  %v1650 = vxor.u32 %v1647, 2147483648
  %v1651 = vmul.f32 %v1650, 1.442695
  %v1652 = vpow.pop %v1651
  %v1653 = vadd.f32 %v1652, 1.0
  %v1654 = vrcp.pop %v1653
  %v1655 = vmul.f32 1.0, %v1654
  %v1656 = vtanh.pop %v1647
  %v1657 = vmul.f32 %v1655, %v1455
  %1659 = vrot.lane.b32.xlu0 %v1656, 64
  %v1660 = vpop.permute.xlu0 %1659
  %v1662 = vmul.f32 %v1655, %v1660
  %1664 = vrot.lane.b32.xlu0 %v1662, 32
  %v1665 = vpop.permute.xlu0 %1664
  %v1667 = vadd.f32 %v1657, %v1665
  %v1668 = vtanh.pop %v1667
  %1670 = vrot.lane.b32.xlu0 %v1668, 64
  %v1671 = vpop.permute.xlu0 %1670
  %v1673 = vmul.f32 %v1655, %v1671
  %v1674 = vmul.f32 %v1673, %v392
  %v1675 = vmul.f32 %v1667, %v396
  %1677 = vrot.lane.b32.xlu0 %v1675, 64
  %v1678 = vpop.permute.xlu0 %1677
  %v1680 = vadd.f32 %v1674, %v1678
  %1682 = vrot.lane.b32.xlu0 %v1680, 32
  %v1683 = vpop.permute.xlu0 %1682
  %v1685 = vsel %vm408, %v1683, 0.0
  %1686 = vadd.xlane.f32.xlu0 %v1685
  %v1687 = vpop.xlane.xlu0 %1686
  %v1689 = vrot.slane %v1687, 1
  %v1690 = vrot.slane %v1687, 2
  %v1691 = vrot.slane %v1687, 3
  %v1696 = vadd.f32 %v200, %v1687
  %v1697 = vadd.f32 %v201, %v1689
  %v1698 = vadd.f32 %v202, %v1690
  %v1699 = vadd.f32 %v203, %v1691
  %v1704 = vrot.slane %v1697, 7
  %v1705 = vsel %vm219, %v1704, %v1696
  %v1706 = vrot.slane %v1698, 6
  %v1707 = vsel %vm221, %v1706, %v1705
  %v1708 = vrot.slane %v1699, 5
  %v1709 = vsel %vm223, %v1708, %v1707
  %v1711 = vsel %vm226, %v1709, -inf
  %1712 = vmax.xlane.f32.xlu0 %v1711
  %v1713 = vpop.xlane.xlu0 %1712
  %v1715 = vrot.slane %v1713, 1
  %v1716 = vrot.slane %v1713, 2
  %v1717 = vrot.slane %v1713, 3
  %v1722 = vsub.f32 %v1696, %v1713
  %v1723 = vsub.f32 %v1697, %v1715
  %v1724 = vsub.f32 %v1698, %v1716
  %v1725 = vsub.f32 %v1699, %v1717
  %v1726 = vmul.f32 %v1722, 1.442695
  %v1727 = vpow.pop %v1726
  %v1728 = vmul.f32 %v1723, 1.442695
  %v1729 = vpow.pop %v1728
  %v1730 = vmul.f32 %v1724, 1.442695
  %v1731 = vpow.pop %v1730
  %v1732 = vmul.f32 %v1725, 1.442695
  %v1733 = vpow.pop %v1732
  %v1738 = vrot.slane %v1729, 7
  %v1739 = vsel %vm219, %v1738, %v1727
  %v1740 = vrot.slane %v1731, 6
  %v1741 = vsel %vm221, %v1740, %v1739
  %v1742 = vrot.slane %v1733, 5
  %v1743 = vsel %vm223, %v1742, %v1741
  %v1745 = vsel %vm226, %v1743, 0.0
  %1746 = vadd.xlane.f32.xlu0 %v1745
  %v1747 = vpop.xlane.xlu0 %1746
  %v1748 = vrcp.pop %v1747
  %v1750 = vrot.slane %v1748, 1
  %v1751 = vrot.slane %v1748, 2
  %v1752 = vrot.slane %v1748, 3
  %v1757 = vmul.f32 %v1727, %v1748
  %v1758 = vmul.f32 %v1729, %v1750
  %v1759 = vmul.f32 %v1731, %v1751
  %v1760 = vmul.f32 %v1733, %v1752
  %v1761 = vrot.slane %v73, 7
  %v1762 = vrot.slane %v74, 7
  %v1763 = vrot.slane %v75, 7
  %v1764 = vrot.slane %v76, 7
  %v1769 = vmul.f32 %v1757, %v1761
  %v1770 = vmul.f32 %v1758, %v1762
  %v1771 = vmul.f32 %v1759, %v1763
  %v1772 = vmul.f32 %v1760, %v1764
  %v1777 = vrot.slane %v1770, 7
  %v1778 = vsel %vm219, %v1777, %v1769
  %v1779 = vrot.slane %v1771, 6
  %v1780 = vsel %vm221, %v1779, %v1778
  %v1781 = vrot.slane %v1772, 5
  %v1782 = vsel %vm223, %v1781, %v1780
  %1785 = vrot.lane.b32.xlu0 %v1673, 48
  %v1786 = vpop.permute.xlu0 %1785
  %v1788 = vsel %vm170, %v1782, %v1786
  %v1790 = vsel %vm293, %v1788, 0
  %1792 = vmatprep.subr.mxu0 0.0
  %1793 = vmatpush1.msra.mxu0 %v78
  %1794 = vmatprep.subr.mxu0 0.0
  %1795 = vmatpush1.msra.mxu0 %v79
  %1796 = vmatprep.subr.mxu0 0.0
  %1797 = vmatpush1.msra.mxu0 %v80
  %1798 = vmatprep.subr.mxu0 0.0
  %1799 = vmatpush1.msra.mxu0 %v81
  %1800 = vmatprep.subr.mxu0 0.0
  %1801 = vmatpush1.msra.mxu0 %v82
  %1802 = vmatprep.subr.mxu0 0.0
  %1803 = vmatpush1.msra.mxu0 %v83
  %1804 = vmatprep.subr.mxu0 0.0
  %1805 = vmatpush1.msra.mxu0 0.0
  %1806 = vmatprep.subr.mxu0 0.0
  %1807 = vmatpush1.msra.mxu0 0.0
  %1808 = vmatprep.subr.mxu0 0.0
  %1809 = vmatpush1.msra.mxu0 0.0
  %1810 = vmatprep.subr.mxu0 0.0
  %1811 = vmatpush1.msra.mxu0 0.0
  %1812 = vmatprep.subr.mxu0 0.0
  %1813 = vmatpush1.msra.mxu0 0.0
  %1814 = vmatprep.subr.mxu0 0.0
  %1815 = vmatpush1.msra.mxu0 0.0
  %1816 = vmatprep.subr.mxu0 0.0
  %1817 = vmatpush1.msra.mxu0 0.0
  %1818 = vmatprep.subr.mxu0 0.0
  %1819 = vmatpush1.msra.mxu0 0.0
  %1820 = vmatprep.subr.mxu0 0.0
  %1821 = vmatpush1.msra.mxu0 0.0
  %1822 = vmatprep.subr.mxu0 0.0
  %1823 = vmatpush1.msra.mxu0 0.0
  %1824 = vmatprep.subr.mxu0 0.0
  %1825 = vmatpush1.msra.mxu0 0.0
  %1826 = vmatprep.subr.mxu0 0.0
  %1827 = vmatpush1.msra.mxu0 0.0
  %1828 = vmatprep.subr.mxu0 0.0
  %1829 = vmatpush1.msra.mxu0 0.0
  %1830 = vmatprep.subr.mxu0 0.0
  %1831 = vmatpush1.msra.mxu0 0.0
  %1832 = vmatprep.subr.mxu0 0.0
  %1833 = vmatpush1.msra.mxu0 0.0
  %1834 = vmatprep.subr.mxu0 0.0
  %1835 = vmatpush1.msra.mxu0 0.0
  %1836 = vmatprep.subr.mxu0 0.0
  %1837 = vmatpush1.msra.mxu0 0.0
  %1838 = vmatprep.subr.mxu0 0.0
  %1839 = vmatpush1.msra.mxu0 0.0
  %1840 = vmatprep.subr.mxu0 0.0
  %1841 = vmatpush1.msra.mxu0 0.0
  %1842 = vmatprep.subr.mxu0 0.0
  %1843 = vmatpush1.msra.mxu0 0.0
  %1844 = vmatprep.subr.mxu0 0.0
  %1845 = vmatpush1.msra.mxu0 0.0
  %1846 = vmatprep.subr.mxu0 0.0
  %1847 = vmatpush1.msra.mxu0 0.0
  %1848 = vmatprep.subr.mxu0 0.0
  %1849 = vmatpush1.msra.mxu0 0.0
  %1850 = vmatprep.subr.mxu0 0.0
  %1851 = vmatpush1.msra.mxu0 0.0
  %1852 = vmatprep.subr.mxu0 0.0
  %1853 = vmatpush1.msra.mxu0 0.0
  %1854 = vmatprep.subr.mxu0 0.0
  %1855 = vmatpush1.msra.mxu0 0.0
  %1856 = vmatprep.mubr.f32.mxu0 0.0
  %1857 = vmatmul.mubr.f32.gmra.mrb[0].mxu0 %v1790
  %v1858 = vpop.f32.mrb[0].mxu0
  %v1859 = vadd.f32 %v129, %v1858
  %v1860 = vpop.f32.mrb[0].mxu0
  %1861 = vdwg.mxu0
  %v1862 = vxor.u32 %v1859, 2147483648
  %v1863 = vmul.f32 %v1862, 1.442695
  %v1864 = vpow.pop %v1863
  %v1865 = vadd.f32 %v1864, 1.0
  %v1866 = vrcp.pop %v1865
  %v1867 = vmul.f32 1.0, %v1866
  %v1868 = vtanh.pop %v1859
  %v1869 = vmul.f32 %v1867, %v1667
  %1871 = vrot.lane.b32.xlu0 %v1868, 64
  %v1872 = vpop.permute.xlu0 %1871
  %v1874 = vmul.f32 %v1867, %v1872
  %1876 = vrot.lane.b32.xlu0 %v1874, 32
  %v1877 = vpop.permute.xlu0 %1876
  %v1879 = vadd.f32 %v1869, %v1877
  %v1880 = vtanh.pop %v1879
  %1882 = vrot.lane.b32.xlu0 %v1880, 64
  %v1883 = vpop.permute.xlu0 %1882
  %v1885 = vmul.f32 %v1867, %v1883
  %v1887 = vunpack.c.l.s4 1966171168
  %v1888 = vunpack.c.0.s8 %v1887
  %v1889 = vlaneseq
  %v1890 = vshrl.u32 %v1889, 7
  %v1891 = vsub.s32 %v1888, %v1890
  %v1892 = vrot.slane %v390, %v1891
  %v1893 = vcombine.high %v1892, %v1892
  %v1895 = vunpack.c.l.s4 1966171168
  %v1896 = vunpack.c.0.s8 %v1895
  %v1897 = vlaneseq
  %v1898 = vshrl.u32 %v1897, 7
  %v1899 = vsub.s32 %v1896, %v1898
  %v1900 = vrot.slane %v1892, %v1899
  %v1902 = vunpack.c.l.s4 1966171168
  %v1903 = vunpack.c.0.s8 %v1902
  %v1904 = vlaneseq
  %v1905 = vshrl.u32 %v1904, 7
  %v1906 = vsub.s32 %v1903, %v1905
  %v1907 = vrot.slane %v1893, %v1906
  %v1908 = vcombine.high %v1900, %v1900
  %v1909 = vcombine.high %v1907, %v1907
  %v1915 = vunpack.c.l.s4 1966171168
  %v1916 = vunpack.c.0.s8 %v1915
  %v1917 = vlaneseq
  %v1918 = vshrl.u32 %v1917, 7
  %v1919 = vsub.s32 %v1916, %v1918
  %v1920 = vrot.slane %v613, %v1919
  %v1921 = vcombine.high %v1920, %v1920
  %v1923 = vunpack.c.l.s4 1966171168
  %v1924 = vunpack.c.0.s8 %v1923
  %v1925 = vlaneseq
  %v1926 = vshrl.u32 %v1925, 7
  %v1927 = vsub.s32 %v1924, %v1926
  %v1928 = vrot.slane %v1920, %v1927
  %v1930 = vunpack.c.l.s4 1966171168
  %v1931 = vunpack.c.0.s8 %v1930
  %v1932 = vlaneseq
  %v1933 = vshrl.u32 %v1932, 7
  %v1934 = vsub.s32 %v1931, %v1933
  %v1935 = vrot.slane %v1921, %v1934
  %v1936 = vcombine.high %v1928, %v1928
  %v1937 = vcombine.high %v1935, %v1935
  %v1939 = vunpack.c.l.s4 1966171168
  %v1940 = vunpack.c.0.s8 %v1939
  %v1941 = vlaneseq
  %v1942 = vshrl.u32 %v1941, 7
  %v1943 = vsub.s32 %v1940, %v1942
  %v1944 = vrot.slane %v825, %v1943
  %v1945 = vcombine.high %v1944, %v1944
  %v1947 = vunpack.c.l.s4 1966171168
  %v1948 = vunpack.c.0.s8 %v1947
  %v1949 = vlaneseq
  %v1950 = vshrl.u32 %v1949, 7
  %v1951 = vsub.s32 %v1948, %v1950
  %v1952 = vrot.slane %v1944, %v1951
  %v1954 = vunpack.c.l.s4 1966171168
  %v1955 = vunpack.c.0.s8 %v1954
  %v1956 = vlaneseq
  %v1957 = vshrl.u32 %v1956, 7
  %v1958 = vsub.s32 %v1955, %v1957
  %v1959 = vrot.slane %v1945, %v1958
  %v1960 = vcombine.high %v1952, %v1952
  %v1961 = vcombine.high %v1959, %v1959
  %v1963 = vunpack.c.l.s4 1966171168
  %v1964 = vunpack.c.0.s8 %v1963
  %v1965 = vlaneseq
  %v1966 = vshrl.u32 %v1965, 7
  %v1967 = vsub.s32 %v1964, %v1966
  %v1968 = vrot.slane %v1037, %v1967
  %v1969 = vcombine.high %v1968, %v1968
  %v1971 = vunpack.c.l.s4 1966171168
  %v1972 = vunpack.c.0.s8 %v1971
  %v1973 = vlaneseq
  %v1974 = vshrl.u32 %v1973, 7
  %v1975 = vsub.s32 %v1972, %v1974
  %v1976 = vrot.slane %v1968, %v1975
  %v1978 = vunpack.c.l.s4 1966171168
  %v1979 = vunpack.c.0.s8 %v1978
  %v1980 = vlaneseq
  %v1981 = vshrl.u32 %v1980, 7
  %v1982 = vsub.s32 %v1979, %v1981
  %v1983 = vrot.slane %v1969, %v1982
  %v1984 = vcombine.high %v1976, %v1976
  %v1985 = vcombine.high %v1983, %v1983
  %v1987 = vunpack.c.l.s4 1966171168
  %v1988 = vunpack.c.0.s8 %v1987
  %v1989 = vlaneseq
  %v1990 = vshrl.u32 %v1989, 7
  %v1991 = vsub.s32 %v1988, %v1990
  %v1992 = vrot.slane %v1249, %v1991
  %v1993 = vcombine.high %v1992, %v1992
  %v1995 = vunpack.c.l.s4 1966171168
  %v1996 = vunpack.c.0.s8 %v1995
  %v1997 = vlaneseq
  %v1998 = vshrl.u32 %v1997, 7
  %v1999 = vsub.s32 %v1996, %v1998
  %v2000 = vrot.slane %v1992, %v1999
  %v2002 = vunpack.c.l.s4 1966171168
  %v2003 = vunpack.c.0.s8 %v2002
  %v2004 = vlaneseq
  %v2005 = vshrl.u32 %v2004, 7
  %v2006 = vsub.s32 %v2003, %v2005
  %v2007 = vrot.slane %v1993, %v2006
  %v2008 = vcombine.high %v2000, %v2000
  %v2009 = vcombine.high %v2007, %v2007
  %v2011 = vunpack.c.l.s4 1966171168
  %v2012 = vunpack.c.0.s8 %v2011
  %v2013 = vlaneseq
  %v2014 = vshrl.u32 %v2013, 7
  %v2015 = vsub.s32 %v2012, %v2014
  %v2016 = vrot.slane %v1461, %v2015
  %v2017 = vcombine.high %v2016, %v2016
  %v2019 = vunpack.c.l.s4 1966171168
  %v2020 = vunpack.c.0.s8 %v2019
  %v2021 = vlaneseq
  %v2022 = vshrl.u32 %v2021, 7
  %v2023 = vsub.s32 %v2020, %v2022
  %v2024 = vrot.slane %v2016, %v2023
  %v2026 = vunpack.c.l.s4 1966171168
  %v2027 = vunpack.c.0.s8 %v2026
  %v2028 = vlaneseq
  %v2029 = vshrl.u32 %v2028, 7
  %v2030 = vsub.s32 %v2027, %v2029
  %v2031 = vrot.slane %v2017, %v2030
  %v2032 = vcombine.high %v2024, %v2024
  %v2033 = vcombine.high %v2031, %v2031
  %v2035 = vunpack.c.l.s4 1966171168
  %v2036 = vunpack.c.0.s8 %v2035
  %v2037 = vlaneseq
  %v2038 = vshrl.u32 %v2037, 7
  %v2039 = vsub.s32 %v2036, %v2038
  %v2040 = vrot.slane %v1673, %v2039
  %v2041 = vcombine.high %v2040, %v2040
  %v2043 = vunpack.c.l.s4 1966171168
  %v2044 = vunpack.c.0.s8 %v2043
  %v2045 = vlaneseq
  %v2046 = vshrl.u32 %v2045, 7
  %v2047 = vsub.s32 %v2044, %v2046
  %v2048 = vrot.slane %v2040, %v2047
  %v2050 = vunpack.c.l.s4 1966171168
  %v2051 = vunpack.c.0.s8 %v2050
  %v2052 = vlaneseq
  %v2053 = vshrl.u32 %v2052, 7
  %v2054 = vsub.s32 %v2051, %v2053
  %v2055 = vrot.slane %v2041, %v2054
  %v2056 = vcombine.high %v2048, %v2048
  %v2057 = vcombine.high %v2055, %v2055
  %v2060 = vunpack.c.l.s4 1966171168
  %v2061 = vunpack.c.0.s8 %v2060
  %v2062 = vlaneseq
  %v2063 = vshrl.u32 %v2062, 7
  %v2064 = vsub.s32 %v2061, %v2063
  %v2065 = vrot.slane %v1885, %v2064
  %v2066 = vcombine.high %v2065, %v2065
  %v2068 = vunpack.c.l.s4 1966171168
  %v2069 = vunpack.c.0.s8 %v2068
  %v2070 = vlaneseq
  %v2071 = vshrl.u32 %v2070, 7
  %v2072 = vsub.s32 %v2069, %v2071
  %v2073 = vrot.slane %v2065, %v2072
  %v2075 = vunpack.c.l.s4 1966171168
  %v2076 = vunpack.c.0.s8 %v2075
  %v2077 = vlaneseq
  %v2078 = vshrl.u32 %v2077, 7
  %v2079 = vsub.s32 %v2076, %v2078
  %v2080 = vrot.slane %v2066, %v2079
  %v2081 = vcombine.high %v2073, %v2073
  %v2082 = vcombine.high %v2080, %v2080
  %v2083 = vlaneseq
  %v2084 = vshrl.u32 %v2083, 7
  %v2085 = vsub.s32 0, %v2084
  %v2086 = vrot.slane %v1928, %v2085
  %v2087 = vlaneseq
  %v2088 = vshrl.u32 %v2087, 7
  %v2089 = vsub.s32 0, %v2088
  %v2090 = vrot.slane %v1935, %v2089
  %v2091 = vlaneseq
  %v2092 = vshrl.u32 %v2091, 7
  %v2093 = vsub.s32 0, %v2092
  %v2094 = vrot.slane %v1936, %v2093
  %v2095 = vlaneseq
  %v2096 = vshrl.u32 %v2095, 7
  %v2097 = vsub.s32 0, %v2096
  %v2098 = vrot.slane %v1937, %v2097
  %v2103 = vlaneseq
  %v2104 = vshrl.u32 %v2103, 7
  %v2105 = vsub.s32 0, %v2104
  %v2106 = vrot.slane %v1952, %v2105
  %v2107 = vlaneseq
  %v2108 = vshrl.u32 %v2107, 7
  %v2109 = vsub.s32 0, %v2108
  %v2110 = vrot.slane %v1959, %v2109
  %v2111 = vlaneseq
  %v2112 = vshrl.u32 %v2111, 7
  %v2113 = vsub.s32 0, %v2112
  %v2114 = vrot.slane %v1960, %v2113
  %v2115 = vlaneseq
  %v2116 = vshrl.u32 %v2115, 7
  %v2117 = vsub.s32 0, %v2116
  %v2118 = vrot.slane %v1961, %v2117
  %v2123 = vlaneseq
  %v2124 = vshrl.u32 %v2123, 7
  %v2125 = vsub.s32 0, %v2124
  %v2126 = vrot.slane %v1976, %v2125
  %v2127 = vlaneseq
  %v2128 = vshrl.u32 %v2127, 7
  %v2129 = vsub.s32 0, %v2128
  %v2130 = vrot.slane %v1983, %v2129
  %v2131 = vlaneseq
  %v2132 = vshrl.u32 %v2131, 7
  %v2133 = vsub.s32 0, %v2132
  %v2134 = vrot.slane %v1984, %v2133
  %v2135 = vlaneseq
  %v2136 = vshrl.u32 %v2135, 7
  %v2137 = vsub.s32 0, %v2136
  %v2138 = vrot.slane %v1985, %v2137
  %v2143 = vlaneseq
  %v2144 = vshrl.u32 %v2143, 7
  %v2145 = vsub.s32 0, %v2144
  %v2146 = vrot.slane %v2000, %v2145
  %v2147 = vlaneseq
  %v2148 = vshrl.u32 %v2147, 7
  %v2149 = vsub.s32 0, %v2148
  %v2150 = vrot.slane %v2007, %v2149
  %v2151 = vlaneseq
  %v2152 = vshrl.u32 %v2151, 7
  %v2153 = vsub.s32 0, %v2152
  %v2154 = vrot.slane %v2008, %v2153
  %v2155 = vlaneseq
  %v2156 = vshrl.u32 %v2155, 7
  %v2157 = vsub.s32 0, %v2156
  %v2158 = vrot.slane %v2009, %v2157
  %v2163 = vlaneseq
  %v2164 = vshrl.u32 %v2163, 7
  %v2165 = vsub.s32 0, %v2164
  %v2166 = vrot.slane %v2024, %v2165
  %v2167 = vlaneseq
  %v2168 = vshrl.u32 %v2167, 7
  %v2169 = vsub.s32 0, %v2168
  %v2170 = vrot.slane %v2031, %v2169
  %v2171 = vlaneseq
  %v2172 = vshrl.u32 %v2171, 7
  %v2173 = vsub.s32 0, %v2172
  %v2174 = vrot.slane %v2032, %v2173
  %v2175 = vlaneseq
  %v2176 = vshrl.u32 %v2175, 7
  %v2177 = vsub.s32 0, %v2176
  %v2178 = vrot.slane %v2033, %v2177
  %v2183 = vlaneseq
  %v2184 = vshrl.u32 %v2183, 7
  %v2185 = vsub.s32 0, %v2184
  %v2186 = vrot.slane %v2048, %v2185
  %v2187 = vlaneseq
  %v2188 = vshrl.u32 %v2187, 7
  %v2189 = vsub.s32 0, %v2188
  %v2190 = vrot.slane %v2055, %v2189
  %v2191 = vlaneseq
  %v2192 = vshrl.u32 %v2191, 7
  %v2193 = vsub.s32 0, %v2192
  %v2194 = vrot.slane %v2056, %v2193
  %v2195 = vlaneseq
  %v2196 = vshrl.u32 %v2195, 7
  %v2197 = vsub.s32 0, %v2196
  %v2198 = vrot.slane %v2057, %v2197
  %v2203 = vlaneseq
  %v2204 = vshrl.u32 %v2203, 7
  %v2205 = vsub.s32 0, %v2204
  %v2206 = vrot.slane %v2073, %v2205
  %v2207 = vlaneseq
  %v2208 = vshrl.u32 %v2207, 7
  %v2209 = vsub.s32 0, %v2208
  %v2210 = vrot.slane %v2080, %v2209
  %v2211 = vlaneseq
  %v2212 = vshrl.u32 %v2211, 7
  %v2213 = vsub.s32 0, %v2212
  %v2214 = vrot.slane %v2081, %v2213
  %v2215 = vlaneseq
  %v2216 = vshrl.u32 %v2215, 7
  %v2217 = vsub.s32 0, %v2216
  %v2218 = vrot.slane %v2082, %v2217
  %vm2223 = vcmask 1040384
  %v2224 = vsel %vm2223, %v1900, %v2086
  %v2225 = vsel %vm2223, %v1907, %v2090
  %v2226 = vsel %vm2223, %v1908, %v2094
  %v2227 = vsel %vm2223, %v1909, %v2098
  %vm2228 = vcmask 1041408
  %v2229 = vsel %vm2228, %v2224, %v2106
  %v2230 = vsel %vm2228, %v2225, %v2110
  %v2231 = vsel %vm2228, %v2226, %v2114
  %v2232 = vsel %vm2228, %v2227, %v2118
  %vm2233 = vcmask 1042432
  %v2234 = vsel %vm2233, %v2229, %v2126
  %v2235 = vsel %vm2233, %v2230, %v2130
  %v2236 = vsel %vm2233, %v2231, %v2134
  %v2237 = vsel %vm2233, %v2232, %v2138
  %vm2238 = vcmask 1043456
  %v2239 = vsel %vm2238, %v2234, %v2146
  %v2240 = vsel %vm2238, %v2235, %v2150
  %v2241 = vsel %vm2238, %v2236, %v2154
  %v2242 = vsel %vm2238, %v2237, %v2158
  %vm2243 = vcmask 1044480
  %v2244 = vsel %vm2243, %v2239, %v2166
  %v2245 = vsel %vm2243, %v2240, %v2170
  %v2246 = vsel %vm2243, %v2241, %v2174
  %v2247 = vsel %vm2243, %v2242, %v2178
  %vm2248 = vcmask 1045504
  %v2249 = vsel %vm2248, %v2244, %v2186
  %v2250 = vsel %vm2248, %v2245, %v2190
  %v2251 = vsel %vm2248, %v2246, %v2194
  %v2252 = vsel %vm2248, %v2247, %v2198
  %vm2253 = vcmask 1046528
  %v2254 = vsel %vm2253, %v2249, %v2206
  %v2255 = vsel %vm2253, %v2250, %v2210
  %v2256 = vsel %vm2253, %v2251, %v2214
  %v2257 = vsel %vm2253, %v2252, %v2218
  %v2259 = vlaneseq
  %v2260 = vshrl.u32 %v2259, 7
  %v2261 = vsub.s32 0, %v2260
  %v2262 = vrot.slane %v101, %v2261
  %2268 = vrot.lane.b32.xlu0 %v2254, 32
  %v2269 = vpop.permute.xlu0 %2268
  %2270 = vrot.lane.b32.xlu0 %v2255, 32
  %v2271 = vpop.permute.xlu0 %2270
  %2272 = vrot.lane.b32.xlu0 %v2256, 32
  %v2273 = vpop.permute.xlu0 %2272
  %2274 = vrot.lane.b32.xlu0 %v2257, 32
  %v2275 = vpop.permute.xlu0 %2274
  %v2276 = vsel %vm207, %v2269, 0
  %v2278 = vsel %vm207, %v2271, 0
  %v2280 = vsel %vm207, %v2273, 0
  %v2282 = vsel %vm207, %v2275, 0
  %2284 = vmatprep.subr.mxu0 0.0
  %2285 = vmatpush1.msra.mxu0 %v97
  %2286 = vmatprep.subr.mxu0 0.0
  %2287 = vmatpush1.msra.mxu0 %v98
  %2288 = vmatprep.subr.mxu0 0.0
  %2289 = vmatpush1.msra.mxu0 %v99
  %2290 = vmatprep.subr.mxu0 0.0
  %2291 = vmatpush1.msra.mxu0 %v100
  %2292 = vmatprep.subr.mxu0 0.0
  %2293 = vmatpush1.msra.mxu0 0.0
  %2294 = vmatprep.subr.mxu0 0.0
  %2295 = vmatpush1.msra.mxu0 0.0
  %2296 = vmatprep.subr.mxu0 0.0
  %2297 = vmatpush1.msra.mxu0 0.0
  %2298 = vmatprep.subr.mxu0 0.0
  %2299 = vmatpush1.msra.mxu0 0.0
  %2300 = vmatprep.subr.mxu0 0.0
  %2301 = vmatpush1.msra.mxu0 0.0
  %2302 = vmatprep.subr.mxu0 0.0
  %2303 = vmatpush1.msra.mxu0 0.0
  %2304 = vmatprep.subr.mxu0 0.0
  %2305 = vmatpush1.msra.mxu0 0.0
  %2306 = vmatprep.subr.mxu0 0.0
  %2307 = vmatpush1.msra.mxu0 0.0
  %2308 = vmatprep.subr.mxu0 0.0
  %2309 = vmatpush1.msra.mxu0 0.0
  %2310 = vmatprep.subr.mxu0 0.0
  %2311 = vmatpush1.msra.mxu0 0.0
  %2312 = vmatprep.subr.mxu0 0.0
  %2313 = vmatpush1.msra.mxu0 0.0
  %2314 = vmatprep.subr.mxu0 0.0
  %2315 = vmatpush1.msra.mxu0 0.0
  %2316 = vmatprep.subr.mxu0 0.0
  %2317 = vmatpush1.msra.mxu0 0.0
  %2318 = vmatprep.subr.mxu0 0.0
  %2319 = vmatpush1.msra.mxu0 0.0
  %2320 = vmatprep.subr.mxu0 0.0
  %2321 = vmatpush1.msra.mxu0 0.0
  %2322 = vmatprep.subr.mxu0 0.0
  %2323 = vmatpush1.msra.mxu0 0.0
  %2324 = vmatprep.subr.mxu0 0.0
  %2325 = vmatpush1.msra.mxu0 0.0
  %2326 = vmatprep.subr.mxu0 0.0
  %2327 = vmatpush1.msra.mxu0 0.0
  %2328 = vmatprep.subr.mxu0 0.0
  %2329 = vmatpush1.msra.mxu0 0.0
  %2330 = vmatprep.subr.mxu0 0.0
  %2331 = vmatpush1.msra.mxu0 0.0
  %2332 = vmatprep.subr.mxu0 0.0
  %2333 = vmatpush1.msra.mxu0 0.0
  %2334 = vmatprep.subr.mxu0 0.0
  %2335 = vmatpush1.msra.mxu0 0.0
  %2336 = vmatprep.subr.mxu0 0.0
  %2337 = vmatpush1.msra.mxu0 0.0
  %2338 = vmatprep.subr.mxu0 0.0
  %2339 = vmatpush1.msra.mxu0 0.0
  %2340 = vmatprep.subr.mxu0 0.0
  %2341 = vmatpush1.msra.mxu0 0.0
  %2342 = vmatprep.subr.mxu0 0.0
  %2343 = vmatpush1.msra.mxu0 0.0
  %2344 = vmatprep.subr.mxu0 0.0
  %2345 = vmatpush1.msra.mxu0 0.0
  %2346 = vmatprep.subr.mxu0 0.0
  %2347 = vmatpush1.msra.mxu0 0.0
  %2348 = vmatprep.mubr.f32.mxu0 0.0
  %2349 = vmatmul.mubr.f32.gmra.mrb[0].mxu0 %v2276
  %v2350 = vpop.f32.mrb[0].mxu0
  %v2351 = vadd.f32 %v2262, %v2350
  %v2352 = vpop.f32.mrb[0].mxu0
  %2353 = vmatprep.mubr.f32.mxu0 0.0
  %2354 = vmatmul.mubr.f32.gmra.mrb[0].mxu0 %v2278
  %v2355 = vpop.f32.mrb[0].mxu0
  %v2356 = vadd.f32 %v2262, %v2355
  %v2357 = vpop.f32.mrb[0].mxu0
  %2358 = vmatprep.mubr.f32.mxu0 0.0
  %2359 = vmatmul.mubr.f32.gmra.mrb[0].mxu0 %v2280
  %v2360 = vpop.f32.mrb[0].mxu0
  %v2361 = vadd.f32 %v2262, %v2360
  %v2362 = vpop.f32.mrb[0].mxu0
  %2363 = vmatprep.mubr.f32.mxu0 0.0
  %2364 = vmatmul.mubr.f32.gmra.mrb[0].mxu0 %v2282
  %v2365 = vpop.f32.mrb[0].mxu0
  %v2366 = vadd.f32 %v2262, %v2365
  %v2367 = vpop.f32.mrb[0].mxu0
  %2368 = vdwg.mxu0
  %vm2369 = vcmask 523264
  %v2371 = vsel %vm2369, 0.0, 0
  %2373 = vmatprep.subr.mxu0 0.0
  %2374 = vmatpush1.msra.mxu0 %v89
  %2375 = vmatprep.subr.mxu0 0.0
  %2376 = vmatpush1.msra.mxu0 %v90
  %2377 = vmatprep.subr.mxu0 0.0
  %2378 = vmatpush1.msra.mxu0 %v91
  %2379 = vmatprep.subr.mxu0 0.0
  %2380 = vmatpush1.msra.mxu0 %v92
  %2381 = vmatprep.subr.mxu0 0.0
  %2382 = vmatpush1.msra.mxu0 %v93
  %2383 = vmatprep.subr.mxu0 0.0
  %2384 = vmatpush1.msra.mxu0 %v94
  %2385 = vmatprep.subr.mxu0 0.0
  %2386 = vmatpush1.msra.mxu0 %v95
  %2387 = vmatprep.subr.mxu0 0.0
  %2388 = vmatpush1.msra.mxu0 %v96
  %2389 = vmatprep.subr.mxu0 0.0
  %2390 = vmatpush1.msra.mxu0 0.0
  %2391 = vmatprep.subr.mxu0 0.0
  %2392 = vmatpush1.msra.mxu0 0.0
  %2393 = vmatprep.subr.mxu0 0.0
  %2394 = vmatpush1.msra.mxu0 0.0
  %2395 = vmatprep.subr.mxu0 0.0
  %2396 = vmatpush1.msra.mxu0 0.0
  %2397 = vmatprep.subr.mxu0 0.0
  %2398 = vmatpush1.msra.mxu0 0.0
  %2399 = vmatprep.subr.mxu0 0.0
  %2400 = vmatpush1.msra.mxu0 0.0
  %2401 = vmatprep.subr.mxu0 0.0
  %2402 = vmatpush1.msra.mxu0 0.0
  %2403 = vmatprep.subr.mxu0 0.0
  %2404 = vmatpush1.msra.mxu0 0.0
  %2405 = vmatprep.subr.mxu0 0.0
  %2406 = vmatpush1.msra.mxu0 0.0
  %2407 = vmatprep.subr.mxu0 0.0
  %2408 = vmatpush1.msra.mxu0 0.0
  %2409 = vmatprep.subr.mxu0 0.0
  %2410 = vmatpush1.msra.mxu0 0.0
  %2411 = vmatprep.subr.mxu0 0.0
  %2412 = vmatpush1.msra.mxu0 0.0
  %2413 = vmatprep.subr.mxu0 0.0
  %2414 = vmatpush1.msra.mxu0 0.0
  %2415 = vmatprep.subr.mxu0 0.0
  %2416 = vmatpush1.msra.mxu0 0.0
  %2417 = vmatprep.subr.mxu0 0.0
  %2418 = vmatpush1.msra.mxu0 0.0
  %2419 = vmatprep.subr.mxu0 0.0
  %2420 = vmatpush1.msra.mxu0 0.0
  %2421 = vmatprep.subr.mxu0 0.0
  %2422 = vmatpush1.msra.mxu0 0.0
  %2423 = vmatprep.subr.mxu0 0.0
  %2424 = vmatpush1.msra.mxu0 0.0
  %2425 = vmatprep.subr.mxu0 0.0
  %2426 = vmatpush1.msra.mxu0 0.0
  %2427 = vmatprep.subr.mxu0 0.0
  %2428 = vmatpush1.msra.mxu0 0.0
  %2429 = vmatprep.subr.mxu0 0.0
  %2430 = vmatpush1.msra.mxu0 0.0
  %2431 = vmatprep.subr.mxu0 0.0
  %2432 = vmatpush1.msra.mxu0 0.0
  %2433 = vmatprep.subr.mxu0 0.0
  %2434 = vmatpush1.msra.mxu0 0.0
  %2435 = vmatprep.subr.mxu0 0.0
  %2436 = vmatpush1.msra.mxu0 0.0
  %2437 = vmatprep.mubr.f32.mxu0 0.0
  %2438 = vmatmul.mubr.f32.gmra.mrb[0].mxu0 %v2371
  %v2439 = vpop.f32.mrb[0].mxu0
  %v2440 = vadd.f32 0.0, %v2439
  %v2441 = vpop.f32.mrb[0].mxu0
  %2442 = vdwg.mxu0
  %v2445 = vunpack.c.l.s4 1966171168
  %v2446 = vunpack.c.0.s8 %v2445
  %v2447 = vlaneseq
  %v2448 = vshrl.u32 %v2447, 7
  %v2449 = vsub.s32 %v2446, %v2448
  %v2450 = vrot.slane %v2440, %v2449
  %v2451 = vcombine.high %v2450, %v2450
  %v2453 = vunpack.c.l.s4 1966171168
  %v2454 = vunpack.c.0.s8 %v2453
  %v2455 = vlaneseq
  %v2456 = vshrl.u32 %v2455, 7
  %v2457 = vsub.s32 %v2454, %v2456
  %v2458 = vrot.slane %v2450, %v2457
  %v2460 = vunpack.c.l.s4 1966171168
  %v2461 = vunpack.c.0.s8 %v2460
  %v2462 = vlaneseq
  %v2463 = vshrl.u32 %v2462, 7
  %v2464 = vsub.s32 %v2461, %v2463
  %v2465 = vrot.slane %v2451, %v2464
  %v2466 = vcombine.high %v2458, %v2458
  %v2467 = vcombine.high %v2465, %v2465
  %v2468 = vlaneseq
  %v2469 = vshrl.u32 %v2468, 7
  %v2470 = vsub.s32 0, %v2469
  %v2471 = vrot.slane %v2458, %v2470
  %v2472 = vlaneseq
  %v2473 = vshrl.u32 %v2472, 7
  %v2474 = vsub.s32 0, %v2473
  %v2475 = vrot.slane %v2465, %v2474
  %v2476 = vlaneseq
  %v2477 = vshrl.u32 %v2476, 7
  %v2478 = vsub.s32 0, %v2477
  %v2479 = vrot.slane %v2466, %v2478
  %v2480 = vlaneseq
  %v2481 = vshrl.u32 %v2480, 7
  %v2482 = vsub.s32 0, %v2481
  %v2483 = vrot.slane %v2467, %v2482
  %v2488 = vadd.f32 %v2351, %v2471
  %v2489 = vadd.f32 %v2356, %v2475
  %v2490 = vadd.f32 %v2361, %v2479
  %v2491 = vadd.f32 %v2366, %v2483
  %v2492 = vtanh.pop %v2488
  %v2493 = vtanh.pop %v2489
  %v2494 = vtanh.pop %v2490
  %v2495 = vtanh.pop %v2491
  %v2496 = vmul.f32 %v2492, %v159
  %v2497 = vmul.f32 %v2493, %v159
  %v2498 = vmul.f32 %v2494, %v159
  %v2499 = vmul.f32 %v2495, %v159
  %v2500 = vsel %vm207, %v2496, 0.0
  %2501 = vadd.xlane.f32.xlu0 %v2500
  %v2502 = vpop.xlane.xlu0 %2501
  %v2503 = vsel %vm207, %v2497, 0.0
  %2504 = vadd.xlane.f32.xlu0 %v2503
  %v2505 = vpop.xlane.xlu0 %2504
  %v2506 = vsel %vm207, %v2498, 0.0
  %2507 = vadd.xlane.f32.xlu0 %v2506
  %v2508 = vpop.xlane.xlu0 %2507
  %v2509 = vsel %vm207, %v2499, 0.0
  %2510 = vadd.xlane.f32.xlu0 %v2509
  %v2511 = vpop.xlane.xlu0 %2510
  %v2512 = vstv %s103
  %v2513 = vadd.f32 %v2502, %v2512
  %v2514 = vadd.f32 %v2505, %v2512
  %v2515 = vadd.f32 %v2508, %v2512
  %v2516 = vadd.f32 %v2511, %v2512
  %v2517 = vrot.slane %v2513, 4
  %v2518 = vmax.f32 %v2513, %v2517
  %v2519 = vrot.slane %v2518, 2
  %v2520 = vmax.f32 %v2518, %v2519
  %v2521 = vrot.slane %v2520, 1
  %v2522 = vmax.f32 %v2520, %v2521
  %v2523 = vrot.slane %v2514, 4
  %v2524 = vmax.f32 %v2514, %v2523
  %v2525 = vrot.slane %v2524, 2
  %v2526 = vmax.f32 %v2524, %v2525
  %v2527 = vrot.slane %v2526, 1
  %v2528 = vmax.f32 %v2526, %v2527
  %v2529 = vrot.slane %v2515, 4
  %v2530 = vmax.f32 %v2515, %v2529
  %v2531 = vrot.slane %v2530, 2
  %v2532 = vmax.f32 %v2530, %v2531
  %v2533 = vrot.slane %v2532, 1
  %v2534 = vmax.f32 %v2532, %v2533
  %v2535 = vrot.slane %v2516, 4
  %v2536 = vmax.f32 %v2516, %v2535
  %v2537 = vrot.slane %v2536, 2
  %v2538 = vmax.f32 %v2536, %v2537
  %v2539 = vrot.slane %v2538, 1
  %v2540 = vmax.f32 %v2538, %v2539
  %v2541 = vsub.f32 %v2513, %v2522
  %v2542 = vsub.f32 %v2514, %v2528
  %v2543 = vsub.f32 %v2515, %v2534
  %v2544 = vsub.f32 %v2516, %v2540
  %v2545 = vmul.f32 %v2541, 1.442695
  %v2546 = vpow.pop %v2545
  %v2547 = vmul.f32 %v2542, 1.442695
  %v2548 = vpow.pop %v2547
  %v2549 = vmul.f32 %v2543, 1.442695
  %v2550 = vpow.pop %v2549
  %v2551 = vmul.f32 %v2544, 1.442695
  %v2552 = vpow.pop %v2551
  %v2553 = vrot.slane %v2546, 4
  %v2554 = vadd.f32 %v2546, %v2553
  %v2555 = vrot.slane %v2554, 2
  %v2556 = vadd.f32 %v2554, %v2555
  %v2557 = vrot.slane %v2556, 1
  %v2558 = vadd.f32 %v2556, %v2557
  %v2559 = vrot.slane %v2548, 4
  %v2560 = vadd.f32 %v2548, %v2559
  %v2561 = vrot.slane %v2560, 2
  %v2562 = vadd.f32 %v2560, %v2561
  %v2563 = vrot.slane %v2562, 1
  %v2564 = vadd.f32 %v2562, %v2563
  %v2565 = vrot.slane %v2550, 4
  %v2566 = vadd.f32 %v2550, %v2565
  %v2567 = vrot.slane %v2566, 2
  %v2568 = vadd.f32 %v2566, %v2567
  %v2569 = vrot.slane %v2568, 1
  %v2570 = vadd.f32 %v2568, %v2569
  %v2571 = vrot.slane %v2552, 4
  %v2572 = vadd.f32 %v2552, %v2571
  %v2573 = vrot.slane %v2572, 2
  %v2574 = vadd.f32 %v2572, %v2573
  %v2575 = vrot.slane %v2574, 1
  %v2576 = vadd.f32 %v2574, %v2575
  %v2577 = vrcp.pop %v2558
  %v2578 = vrcp.pop %v2564
  %v2579 = vrcp.pop %v2570
  %v2580 = vrcp.pop %v2576
  %v2581 = vmul.f32 %v2546, %v2577
  %v2582 = vmul.f32 %v2548, %v2578
  %v2583 = vmul.f32 %v2550, %v2579
  %v2584 = vmul.f32 %v2552, %v2580
  %v2585 = vmul.f32 %v2581, %v2254
  %v2586 = vmul.f32 %v2582, %v2255
  %v2587 = vmul.f32 %v2583, %v2256
  %v2588 = vmul.f32 %v2584, %v2257
  %vm2589 = vcmask 1048320
  %v2590 = vsel %vm2589, %v2585, 0.0
  %v2591 = vrot.slane %v2590, 4
  %v2592 = vadd.f32 %v2590, %v2591
  %v2593 = vrot.slane %v2592, 2
  %v2594 = vadd.f32 %v2592, %v2593
  %v2595 = vrot.slane %v2594, 1
  %v2596 = vadd.f32 %v2594, %v2595
  %v2597 = vsel %vm2589, %v2586, 0.0
  %v2598 = vrot.slane %v2597, 4
  %v2599 = vadd.f32 %v2597, %v2598
  %v2600 = vrot.slane %v2599, 2
  %v2601 = vadd.f32 %v2599, %v2600
  %v2602 = vrot.slane %v2601, 1
  %v2603 = vadd.f32 %v2601, %v2602
  %v2604 = vsel %vm2589, %v2587, 0.0
  %v2605 = vrot.slane %v2604, 4
  %v2606 = vadd.f32 %v2604, %v2605
  %v2607 = vrot.slane %v2606, 2
  %v2608 = vadd.f32 %v2606, %v2607
  %v2609 = vrot.slane %v2608, 1
  %v2610 = vadd.f32 %v2608, %v2609
  %v2611 = vsel %vm2589, %v2588, 0.0
  %v2612 = vrot.slane %v2611, 4
  %v2613 = vadd.f32 %v2611, %v2612
  %v2614 = vrot.slane %v2613, 2
  %v2615 = vadd.f32 %v2613, %v2614
  %v2616 = vrot.slane %v2615, 1
  %v2617 = vadd.f32 %v2615, %v2616
  %v2619 = vlaneseq
  %v2620 = vshrl.u32 %v2619, 7
  %v2621 = vsub.s32 0, %v2620
  %v2622 = vrot.slane %v114, %v2621
  %v2624 = vmul.f32 %v77, %v2622
  %v2629 = vsel %vm219, %v2603, %v2596
  %v2630 = vsel %vm221, %v2610, %v2629
  %v2631 = vsel %vm223, %v2617, %v2630
  %2632 = vrot.lane.b32.xlu0 %v2631, 32
  %v2633 = vpop.permute.xlu0 %2632
  %v2634 = vsel %vm207, %v2633, 0
  %2636 = vmatprep.subr.mxu0 0.0
  %2637 = vmatpush1.msra.mxu0 %v110
  %2638 = vmatprep.subr.mxu0 0.0
  %2639 = vmatpush1.msra.mxu0 %v111
  %2640 = vmatprep.subr.mxu0 0.0
  %2641 = vmatpush1.msra.mxu0 %v112
  %2642 = vmatprep.subr.mxu0 0.0
  %2643 = vmatpush1.msra.mxu0 %v113
  %2644 = vmatprep.subr.mxu0 0.0
  %2645 = vmatpush1.msra.mxu0 0.0
  %2646 = vmatprep.subr.mxu0 0.0
  %2647 = vmatpush1.msra.mxu0 0.0
  %2648 = vmatprep.subr.mxu0 0.0
  %2649 = vmatpush1.msra.mxu0 0.0
  %2650 = vmatprep.subr.mxu0 0.0
  %2651 = vmatpush1.msra.mxu0 0.0
  %2652 = vmatprep.subr.mxu0 0.0
  %2653 = vmatpush1.msra.mxu0 0.0
  %2654 = vmatprep.subr.mxu0 0.0
  %2655 = vmatpush1.msra.mxu0 0.0
  %2656 = vmatprep.subr.mxu0 0.0
  %2657 = vmatpush1.msra.mxu0 0.0
  %2658 = vmatprep.subr.mxu0 0.0
  %2659 = vmatpush1.msra.mxu0 0.0
  %2660 = vmatprep.subr.mxu0 0.0
  %2661 = vmatpush1.msra.mxu0 0.0
  %2662 = vmatprep.subr.mxu0 0.0
  %2663 = vmatpush1.msra.mxu0 0.0
  %2664 = vmatprep.subr.mxu0 0.0
  %2665 = vmatpush1.msra.mxu0 0.0
  %2666 = vmatprep.subr.mxu0 0.0
  %2667 = vmatpush1.msra.mxu0 0.0
  %2668 = vmatprep.subr.mxu0 0.0
  %2669 = vmatpush1.msra.mxu0 0.0
  %2670 = vmatprep.subr.mxu0 0.0
  %2671 = vmatpush1.msra.mxu0 0.0
  %2672 = vmatprep.subr.mxu0 0.0
  %2673 = vmatpush1.msra.mxu0 0.0
  %2674 = vmatprep.subr.mxu0 0.0
  %2675 = vmatpush1.msra.mxu0 0.0
  %2676 = vmatprep.subr.mxu0 0.0
  %2677 = vmatpush1.msra.mxu0 0.0
  %2678 = vmatprep.subr.mxu0 0.0
  %2679 = vmatpush1.msra.mxu0 0.0
  %2680 = vmatprep.subr.mxu0 0.0
  %2681 = vmatpush1.msra.mxu0 0.0
  %2682 = vmatprep.subr.mxu0 0.0
  %2683 = vmatpush1.msra.mxu0 0.0
  %2684 = vmatprep.subr.mxu0 0.0
  %2685 = vmatpush1.msra.mxu0 0.0
  %2686 = vmatprep.subr.mxu0 0.0
  %2687 = vmatpush1.msra.mxu0 0.0
  %2688 = vmatprep.subr.mxu0 0.0
  %2689 = vmatpush1.msra.mxu0 0.0
  %2690 = vmatprep.subr.mxu0 0.0
  %2691 = vmatpush1.msra.mxu0 0.0
  %2692 = vmatprep.subr.mxu0 0.0
  %2693 = vmatpush1.msra.mxu0 0.0
  %2694 = vmatprep.subr.mxu0 0.0
  %2695 = vmatpush1.msra.mxu0 0.0
  %2696 = vmatprep.subr.mxu0 0.0
  %2697 = vmatpush1.msra.mxu0 0.0
  %2698 = vmatprep.subr.mxu0 0.0
  %2699 = vmatpush1.msra.mxu0 0.0
  %2700 = vmatprep.mubr.f32.mxu0 0.0
  %2701 = vmatmul.mubr.f32.gmra.mrb[0].mxu0 %v2634
  %v2702 = vpop.f32.mrb[0].mxu0
  %v2703 = vadd.f32 %v2624, %v2702
  %v2704 = vpop.f32.mrb[0].mxu0
  %2705 = vdwg.mxu0
  %v2706 = vadd.f32 %v2703, %v141
  %vm2707 = vcmask 7168
  %v2708 = vsel %vm2707, %v2706, 0.0
  %vm2709 = vcmask 269312
  %v2711 = vsel %vm2709, %v2708, 0
  %v2714 = vsel %vm2223, %v108, 0
  %2716 = vmatprep.subr.mxu0 0.0
  %2717 = vmatpush1.msra.mxu0 %v104
  %2718 = vmatprep.subr.mxu0 0.0
  %2719 = vmatpush1.msra.mxu0 %v105
  %2720 = vmatprep.subr.mxu0 0.0
  %2721 = vmatpush1.msra.mxu0 %v106
  %2722 = vmatprep.subr.mxu0 0.0
  %2723 = vmatpush1.msra.mxu0 %v107
  %2724 = vmatprep.subr.mxu0 0.0
  %2725 = vmatpush1.msra.mxu0 %v2714
  %2726 = vmatprep.subr.mxu0 0.0
  %2727 = vmatpush1.msra.mxu0 0.0
  %2728 = vmatprep.subr.mxu0 0.0
  %2729 = vmatpush1.msra.mxu0 0.0
  %2730 = vmatprep.subr.mxu0 0.0
  %2731 = vmatpush1.msra.mxu0 0.0
  %2732 = vmatprep.subr.mxu0 0.0
  %2733 = vmatpush1.msra.mxu0 0.0
  %2734 = vmatprep.subr.mxu0 0.0
  %2735 = vmatpush1.msra.mxu0 0.0
  %2736 = vmatprep.subr.mxu0 0.0
  %2737 = vmatpush1.msra.mxu0 0.0
  %2738 = vmatprep.subr.mxu0 0.0
  %2739 = vmatpush1.msra.mxu0 0.0
  %2740 = vmatprep.subr.mxu0 0.0
  %2741 = vmatpush1.msra.mxu0 0.0
  %2742 = vmatprep.subr.mxu0 0.0
  %2743 = vmatpush1.msra.mxu0 0.0
  %2744 = vmatprep.subr.mxu0 0.0
  %2745 = vmatpush1.msra.mxu0 0.0
  %2746 = vmatprep.subr.mxu0 0.0
  %2747 = vmatpush1.msra.mxu0 0.0
  %2748 = vmatprep.subr.mxu0 0.0
  %2749 = vmatpush1.msra.mxu0 0.0
  %2750 = vmatprep.subr.mxu0 0.0
  %2751 = vmatpush1.msra.mxu0 0.0
  %2752 = vmatprep.subr.mxu0 0.0
  %2753 = vmatpush1.msra.mxu0 0.0
  %2754 = vmatprep.subr.mxu0 0.0
  %2755 = vmatpush1.msra.mxu0 0.0
  %2756 = vmatprep.subr.mxu0 0.0
  %2757 = vmatpush1.msra.mxu0 0.0
  %2758 = vmatprep.subr.mxu0 0.0
  %2759 = vmatpush1.msra.mxu0 0.0
  %2760 = vmatprep.subr.mxu0 0.0
  %2761 = vmatpush1.msra.mxu0 0.0
  %2762 = vmatprep.subr.mxu0 0.0
  %2763 = vmatpush1.msra.mxu0 0.0
  %2764 = vmatprep.subr.mxu0 0.0
  %2765 = vmatpush1.msra.mxu0 0.0
  %2766 = vmatprep.subr.mxu0 0.0
  %2767 = vmatpush1.msra.mxu0 0.0
  %2768 = vmatprep.subr.mxu0 0.0
  %2769 = vmatpush1.msra.mxu0 0.0
  %2770 = vmatprep.subr.mxu0 0.0
  %2771 = vmatpush1.msra.mxu0 0.0
  %2772 = vmatprep.subr.mxu0 0.0
  %2773 = vmatpush1.msra.mxu0 0.0
  %2774 = vmatprep.subr.mxu0 0.0
  %2775 = vmatpush1.msra.mxu0 0.0
  %2776 = vmatprep.subr.mxu0 0.0
  %2777 = vmatpush1.msra.mxu0 0.0
  %2778 = vmatprep.subr.mxu0 0.0
  %2779 = vmatpush1.msra.mxu0 0.0
  %2780 = vmatprep.mubr.f32.mxu0 0.0
  %2781 = vmatmul.mubr.f32.gmra.mrb[0].mxu0 %v2711
  %v2782 = vpop.f32.mrb[0].mxu0
  %v2783 = vadd.f32 %v135, %v2782
  %v2784 = vpop.f32.mrb[0].mxu0
  %2785 = vdwg.mxu0
  %v2786 = vxor.u32 %v2783, 2147483648
  %v2787 = vmul.f32 %v2786, 1.442695
  %v2788 = vpow.pop %v2787
  %v2789 = vadd.f32 %v2788, 1.0
  %v2790 = vrcp.pop %v2789
  %v2791 = vmul.f32 1.0, %v2790
  %v2792 = vtanh.pop %v2783
  %v2793 = vmul.f32 %v2791, 0.0
  %2795 = vrot.lane.b32.xlu0 %v2792, 64
  %v2796 = vpop.permute.xlu0 %2795
  %v2798 = vmul.f32 %v2791, %v2796
  %2800 = vrot.lane.b32.xlu0 %v2798, 32
  %v2801 = vpop.permute.xlu0 %2800
  %v2803 = vadd.f32 %v2793, %v2801
  %v2804 = vtanh.pop %v2803
  %2806 = vrot.lane.b32.xlu0 %v2804, 64
  %v2807 = vpop.permute.xlu0 %2806
  %v2809 = vmul.f32 %v2791, %v2807
  %2811 = vrot.lane.b32.xlu0 %v2809, 32
  %v2812 = vpop.permute.xlu0 %2811
  %v2814 = vsel %vm207, %v2812, %v2803
  %v2816 = vsel %vm2369, %v2814, 0
  %2818 = vmatprep.subr.mxu0 0.0
  %2819 = vmatpush1.msra.mxu0 %v89
  %2820 = vmatprep.subr.mxu0 0.0
  %2821 = vmatpush1.msra.mxu0 %v90
  %2822 = vmatprep.subr.mxu0 0.0
  %2823 = vmatpush1.msra.mxu0 %v91
  %2824 = vmatprep.subr.mxu0 0.0
  %2825 = vmatpush1.msra.mxu0 %v92
  %2826 = vmatprep.subr.mxu0 0.0
  %2827 = vmatpush1.msra.mxu0 %v93
  %2828 = vmatprep.subr.mxu0 0.0
  %2829 = vmatpush1.msra.mxu0 %v94
  %2830 = vmatprep.subr.mxu0 0.0
  %2831 = vmatpush1.msra.mxu0 %v95
  %2832 = vmatprep.subr.mxu0 0.0
  %2833 = vmatpush1.msra.mxu0 %v96
  %2834 = vmatprep.subr.mxu0 0.0
  %2835 = vmatpush1.msra.mxu0 0.0
  %2836 = vmatprep.subr.mxu0 0.0
  %2837 = vmatpush1.msra.mxu0 0.0
  %2838 = vmatprep.subr.mxu0 0.0
  %2839 = vmatpush1.msra.mxu0 0.0
  %2840 = vmatprep.subr.mxu0 0.0
  %2841 = vmatpush1.msra.mxu0 0.0
  %2842 = vmatprep.subr.mxu0 0.0
  %2843 = vmatpush1.msra.mxu0 0.0
  %2844 = vmatprep.subr.mxu0 0.0
  %2845 = vmatpush1.msra.mxu0 0.0
  %2846 = vmatprep.subr.mxu0 0.0
  %2847 = vmatpush1.msra.mxu0 0.0
  %2848 = vmatprep.subr.mxu0 0.0
  %2849 = vmatpush1.msra.mxu0 0.0
  %2850 = vmatprep.subr.mxu0 0.0
  %2851 = vmatpush1.msra.mxu0 0.0
  %2852 = vmatprep.subr.mxu0 0.0
  %2853 = vmatpush1.msra.mxu0 0.0
  %2854 = vmatprep.subr.mxu0 0.0
  %2855 = vmatpush1.msra.mxu0 0.0
  %2856 = vmatprep.subr.mxu0 0.0
  %2857 = vmatpush1.msra.mxu0 0.0
  %2858 = vmatprep.subr.mxu0 0.0
  %2859 = vmatpush1.msra.mxu0 0.0
  %2860 = vmatprep.subr.mxu0 0.0
  %2861 = vmatpush1.msra.mxu0 0.0
  %2862 = vmatprep.subr.mxu0 0.0
  %2863 = vmatpush1.msra.mxu0 0.0
  %2864 = vmatprep.subr.mxu0 0.0
  %2865 = vmatpush1.msra.mxu0 0.0
  %2866 = vmatprep.subr.mxu0 0.0
  %2867 = vmatpush1.msra.mxu0 0.0
  %2868 = vmatprep.subr.mxu0 0.0
  %2869 = vmatpush1.msra.mxu0 0.0
  %2870 = vmatprep.subr.mxu0 0.0
  %2871 = vmatpush1.msra.mxu0 0.0
  %2872 = vmatprep.subr.mxu0 0.0
  %2873 = vmatpush1.msra.mxu0 0.0
  %2874 = vmatprep.subr.mxu0 0.0
  %2875 = vmatpush1.msra.mxu0 0.0
  %2876 = vmatprep.subr.mxu0 0.0
  %2877 = vmatpush1.msra.mxu0 0.0
  %2878 = vmatprep.subr.mxu0 0.0
  %2879 = vmatpush1.msra.mxu0 0.0
  %2880 = vmatprep.subr.mxu0 0.0
  %2881 = vmatpush1.msra.mxu0 0.0
  %2882 = vmatprep.mubr.f32.mxu0 0.0
  %2883 = vmatmul.mubr.f32.gmra.mrb[0].mxu0 %v2816
  %v2884 = vpop.f32.mrb[0].mxu0
  %v2885 = vadd.f32 0.0, %v2884
  %v2886 = vpop.f32.mrb[0].mxu0
  %2887 = vdwg.mxu0
  %v2890 = vunpack.c.l.s4 1966171168
  %v2891 = vunpack.c.0.s8 %v2890
  %v2892 = vlaneseq
  %v2893 = vshrl.u32 %v2892, 7
  %v2894 = vsub.s32 %v2891, %v2893
  %v2895 = vrot.slane %v2885, %v2894
  %v2896 = vcombine.high %v2895, %v2895
  %v2898 = vunpack.c.l.s4 1966171168
  %v2899 = vunpack.c.0.s8 %v2898
  %v2900 = vlaneseq
  %v2901 = vshrl.u32 %v2900, 7
  %v2902 = vsub.s32 %v2899, %v2901
  %v2903 = vrot.slane %v2895, %v2902
  %v2905 = vunpack.c.l.s4 1966171168
  %v2906 = vunpack.c.0.s8 %v2905
  %v2907 = vlaneseq
  %v2908 = vshrl.u32 %v2907, 7
  %v2909 = vsub.s32 %v2906, %v2908
  %v2910 = vrot.slane %v2896, %v2909
  %v2911 = vcombine.high %v2903, %v2903
  %v2912 = vcombine.high %v2910, %v2910
  %v2913 = vlaneseq
  %v2914 = vshrl.u32 %v2913, 7
  %v2915 = vsub.s32 0, %v2914
  %v2916 = vrot.slane %v2903, %v2915
  %v2917 = vlaneseq
  %v2918 = vshrl.u32 %v2917, 7
  %v2919 = vsub.s32 0, %v2918
  %v2920 = vrot.slane %v2910, %v2919
  %v2921 = vlaneseq
  %v2922 = vshrl.u32 %v2921, 7
  %v2923 = vsub.s32 0, %v2922
  %v2924 = vrot.slane %v2911, %v2923
  %v2925 = vlaneseq
  %v2926 = vshrl.u32 %v2925, 7
  %v2927 = vsub.s32 0, %v2926
  %v2928 = vrot.slane %v2912, %v2927
  %v2933 = vadd.f32 %v2351, %v2916
  %v2934 = vadd.f32 %v2356, %v2920
  %v2935 = vadd.f32 %v2361, %v2924
  %v2936 = vadd.f32 %v2366, %v2928
  %v2937 = vtanh.pop %v2933
  %v2938 = vtanh.pop %v2934
  %v2939 = vtanh.pop %v2935
  %v2940 = vtanh.pop %v2936
  %v2941 = vmul.f32 %v2937, %v159
  %v2942 = vmul.f32 %v2938, %v159
  %v2943 = vmul.f32 %v2939, %v159
  %v2944 = vmul.f32 %v2940, %v159
  %v2945 = vsel %vm207, %v2941, 0.0
  %2946 = vadd.xlane.f32.xlu0 %v2945
  %v2947 = vpop.xlane.xlu0 %2946
  %v2948 = vsel %vm207, %v2942, 0.0
  %2949 = vadd.xlane.f32.xlu0 %v2948
  %v2950 = vpop.xlane.xlu0 %2949
  %v2951 = vsel %vm207, %v2943, 0.0
  %2952 = vadd.xlane.f32.xlu0 %v2951
  %v2953 = vpop.xlane.xlu0 %2952
  %v2954 = vsel %vm207, %v2944, 0.0
  %2955 = vadd.xlane.f32.xlu0 %v2954
  %v2956 = vpop.xlane.xlu0 %2955
  %v2957 = vadd.f32 %v2947, %v2512
  %v2958 = vadd.f32 %v2950, %v2512
  %v2959 = vadd.f32 %v2953, %v2512
  %v2960 = vadd.f32 %v2956, %v2512
  %v2961 = vrot.slane %v2957, 4
  %v2962 = vmax.f32 %v2957, %v2961
  %v2963 = vrot.slane %v2962, 2
  %v2964 = vmax.f32 %v2962, %v2963
  %v2965 = vrot.slane %v2964, 1
  %v2966 = vmax.f32 %v2964, %v2965
  %v2967 = vrot.slane %v2958, 4
  %v2968 = vmax.f32 %v2958, %v2967
  %v2969 = vrot.slane %v2968, 2
  %v2970 = vmax.f32 %v2968, %v2969
  %v2971 = vrot.slane %v2970, 1
  %v2972 = vmax.f32 %v2970, %v2971
  %v2973 = vrot.slane %v2959, 4
  %v2974 = vmax.f32 %v2959, %v2973
  %v2975 = vrot.slane %v2974, 2
  %v2976 = vmax.f32 %v2974, %v2975
  %v2977 = vrot.slane %v2976, 1
  %v2978 = vmax.f32 %v2976, %v2977
  %v2979 = vrot.slane %v2960, 4
  %v2980 = vmax.f32 %v2960, %v2979
  %v2981 = vrot.slane %v2980, 2
  %v2982 = vmax.f32 %v2980, %v2981
  %v2983 = vrot.slane %v2982, 1
  %v2984 = vmax.f32 %v2982, %v2983
  %v2985 = vsub.f32 %v2957, %v2966
  %v2986 = vsub.f32 %v2958, %v2972
  %v2987 = vsub.f32 %v2959, %v2978
  %v2988 = vsub.f32 %v2960, %v2984
  %v2989 = vmul.f32 %v2985, 1.442695
  %v2990 = vpow.pop %v2989
  %v2991 = vmul.f32 %v2986, 1.442695
  %v2992 = vpow.pop %v2991
  %v2993 = vmul.f32 %v2987, 1.442695
  %v2994 = vpow.pop %v2993
  %v2995 = vmul.f32 %v2988, 1.442695
  %v2996 = vpow.pop %v2995
  %v2997 = vrot.slane %v2990, 4
  %v2998 = vadd.f32 %v2990, %v2997
  %v2999 = vrot.slane %v2998, 2
  %v3000 = vadd.f32 %v2998, %v2999
  %v3001 = vrot.slane %v3000, 1
  %v3002 = vadd.f32 %v3000, %v3001
  %v3003 = vrot.slane %v2992, 4
  %v3004 = vadd.f32 %v2992, %v3003
  %v3005 = vrot.slane %v3004, 2
  %v3006 = vadd.f32 %v3004, %v3005
  %v3007 = vrot.slane %v3006, 1
  %v3008 = vadd.f32 %v3006, %v3007
  %v3009 = vrot.slane %v2994, 4
  %v3010 = vadd.f32 %v2994, %v3009
  %v3011 = vrot.slane %v3010, 2
  %v3012 = vadd.f32 %v3010, %v3011
  %v3013 = vrot.slane %v3012, 1
  %v3014 = vadd.f32 %v3012, %v3013
  %v3015 = vrot.slane %v2996, 4
  %v3016 = vadd.f32 %v2996, %v3015
  %v3017 = vrot.slane %v3016, 2
  %v3018 = vadd.f32 %v3016, %v3017
  %v3019 = vrot.slane %v3018, 1
  %v3020 = vadd.f32 %v3018, %v3019
  %v3021 = vrcp.pop %v3002
  %v3022 = vrcp.pop %v3008
  %v3023 = vrcp.pop %v3014
  %v3024 = vrcp.pop %v3020
  %v3025 = vmul.f32 %v2990, %v3021
  %v3026 = vmul.f32 %v2992, %v3022
  %v3027 = vmul.f32 %v2994, %v3023
  %v3028 = vmul.f32 %v2996, %v3024
  %v3029 = vmul.f32 %v3025, %v2254
  %v3030 = vmul.f32 %v3026, %v2255
  %v3031 = vmul.f32 %v3027, %v2256
  %v3032 = vmul.f32 %v3028, %v2257
  %v3033 = vsel %vm2589, %v3029, 0.0
  %v3034 = vrot.slane %v3033, 4
  %v3035 = vadd.f32 %v3033, %v3034
  %v3036 = vrot.slane %v3035, 2
  %v3037 = vadd.f32 %v3035, %v3036
  %v3038 = vrot.slane %v3037, 1
  %v3039 = vadd.f32 %v3037, %v3038
  %v3040 = vsel %vm2589, %v3030, 0.0
  %v3041 = vrot.slane %v3040, 4
  %v3042 = vadd.f32 %v3040, %v3041
  %v3043 = vrot.slane %v3042, 2
  %v3044 = vadd.f32 %v3042, %v3043
  %v3045 = vrot.slane %v3044, 1
  %v3046 = vadd.f32 %v3044, %v3045
  %v3047 = vsel %vm2589, %v3031, 0.0
  %v3048 = vrot.slane %v3047, 4
  %v3049 = vadd.f32 %v3047, %v3048
  %v3050 = vrot.slane %v3049, 2
  %v3051 = vadd.f32 %v3049, %v3050
  %v3052 = vrot.slane %v3051, 1
  %v3053 = vadd.f32 %v3051, %v3052
  %v3054 = vsel %vm2589, %v3032, 0.0
  %v3055 = vrot.slane %v3054, 4
  %v3056 = vadd.f32 %v3054, %v3055
  %v3057 = vrot.slane %v3056, 2
  %v3058 = vadd.f32 %v3056, %v3057
  %v3059 = vrot.slane %v3058, 1
  %v3060 = vadd.f32 %v3058, %v3059
  %3061 = vrot.lane.b32.xlu0 %v2622, 1
  %v3062 = vpop.permute.xlu0 %3061
  %v3064 = vmul.f32 %v77, %v3062
  %v3069 = vsel %vm219, %v3046, %v3039
  %v3070 = vsel %vm221, %v3053, %v3069
  %v3071 = vsel %vm223, %v3060, %v3070
  %3072 = vrot.lane.b32.xlu0 %v3071, 32
  %v3073 = vpop.permute.xlu0 %3072
  %3075 = vrot.lane.b32.xlu0 %v3064, 127
  %v3076 = vpop.permute.xlu0 %3075
  %v3078 = vsel %vm207, %v3073, 0
  %3080 = vmatprep.subr.mxu0 0.0
  %3081 = vmatpush1.msra.mxu0 %v110
  %3082 = vmatprep.subr.mxu0 0.0
  %3083 = vmatpush1.msra.mxu0 %v111
  %3084 = vmatprep.subr.mxu0 0.0
  %3085 = vmatpush1.msra.mxu0 %v112
  %3086 = vmatprep.subr.mxu0 0.0
  %3087 = vmatpush1.msra.mxu0 %v113
  %3088 = vmatprep.subr.mxu0 0.0
  %3089 = vmatpush1.msra.mxu0 0.0
  %3090 = vmatprep.subr.mxu0 0.0
  %3091 = vmatpush1.msra.mxu0 0.0
  %3092 = vmatprep.subr.mxu0 0.0
  %3093 = vmatpush1.msra.mxu0 0.0
  %3094 = vmatprep.subr.mxu0 0.0
  %3095 = vmatpush1.msra.mxu0 0.0
  %3096 = vmatprep.subr.mxu0 0.0
  %3097 = vmatpush1.msra.mxu0 0.0
  %3098 = vmatprep.subr.mxu0 0.0
  %3099 = vmatpush1.msra.mxu0 0.0
  %3100 = vmatprep.subr.mxu0 0.0
  %3101 = vmatpush1.msra.mxu0 0.0
  %3102 = vmatprep.subr.mxu0 0.0
  %3103 = vmatpush1.msra.mxu0 0.0
  %3104 = vmatprep.subr.mxu0 0.0
  %3105 = vmatpush1.msra.mxu0 0.0
  %3106 = vmatprep.subr.mxu0 0.0
  %3107 = vmatpush1.msra.mxu0 0.0
  %3108 = vmatprep.subr.mxu0 0.0
  %3109 = vmatpush1.msra.mxu0 0.0
  %3110 = vmatprep.subr.mxu0 0.0
  %3111 = vmatpush1.msra.mxu0 0.0
  %3112 = vmatprep.subr.mxu0 0.0
  %3113 = vmatpush1.msra.mxu0 0.0
  %3114 = vmatprep.subr.mxu0 0.0
  %3115 = vmatpush1.msra.mxu0 0.0
  %3116 = vmatprep.subr.mxu0 0.0
  %3117 = vmatpush1.msra.mxu0 0.0
  %3118 = vmatprep.subr.mxu0 0.0
  %3119 = vmatpush1.msra.mxu0 0.0
  %3120 = vmatprep.subr.mxu0 0.0
  %3121 = vmatpush1.msra.mxu0 0.0
  %3122 = vmatprep.subr.mxu0 0.0
  %3123 = vmatpush1.msra.mxu0 0.0
  %3124 = vmatprep.subr.mxu0 0.0
  %3125 = vmatpush1.msra.mxu0 0.0
  %3126 = vmatprep.subr.mxu0 0.0
  %3127 = vmatpush1.msra.mxu0 0.0
  %3128 = vmatprep.subr.mxu0 0.0
  %3129 = vmatpush1.msra.mxu0 0.0
  %3130 = vmatprep.subr.mxu0 0.0
  %3131 = vmatpush1.msra.mxu0 0.0
  %3132 = vmatprep.subr.mxu0 0.0
  %3133 = vmatpush1.msra.mxu0 0.0
  %3134 = vmatprep.subr.mxu0 0.0
  %3135 = vmatpush1.msra.mxu0 0.0
  %3136 = vmatprep.subr.mxu0 0.0
  %3137 = vmatpush1.msra.mxu0 0.0
  %3138 = vmatprep.subr.mxu0 0.0
  %3139 = vmatpush1.msra.mxu0 0.0
  %3140 = vmatprep.subr.mxu0 0.0
  %3141 = vmatpush1.msra.mxu0 0.0
  %3142 = vmatprep.subr.mxu0 0.0
  %3143 = vmatpush1.msra.mxu0 0.0
  %3144 = vmatprep.mubr.f32.mxu0 0.0
  %3145 = vmatmul.mubr.f32.gmra.mrb[0].mxu0 %v3078
  %v3146 = vpop.f32.mrb[0].mxu0
  %v3147 = vadd.f32 %v3076, %v3146
  %v3148 = vpop.f32.mrb[0].mxu0
  %3149 = vdwg.mxu0
  %v3150 = vadd.f32 %v3147, %v141
  %3151 = vrot.lane.b32.xlu0 %v2809, 33
  %v3152 = vpop.permute.xlu0 %3151
  %v3154 = vsel %vm2707, %v3150, %v3152
  %v3156 = vsel %vm2709, %v3154, 0
  %3158 = vmatprep.subr.mxu0 0.0
  %3159 = vmatpush1.msra.mxu0 %v104
  %3160 = vmatprep.subr.mxu0 0.0
  %3161 = vmatpush1.msra.mxu0 %v105
  %3162 = vmatprep.subr.mxu0 0.0
  %3163 = vmatpush1.msra.mxu0 %v106
  %3164 = vmatprep.subr.mxu0 0.0
  %3165 = vmatpush1.msra.mxu0 %v107
  %3166 = vmatprep.subr.mxu0 0.0
  %3167 = vmatpush1.msra.mxu0 %v2714
  %3168 = vmatprep.subr.mxu0 0.0
  %3169 = vmatpush1.msra.mxu0 0.0
  %3170 = vmatprep.subr.mxu0 0.0
  %3171 = vmatpush1.msra.mxu0 0.0
  %3172 = vmatprep.subr.mxu0 0.0
  %3173 = vmatpush1.msra.mxu0 0.0
  %3174 = vmatprep.subr.mxu0 0.0
  %3175 = vmatpush1.msra.mxu0 0.0
  %3176 = vmatprep.subr.mxu0 0.0
  %3177 = vmatpush1.msra.mxu0 0.0
  %3178 = vmatprep.subr.mxu0 0.0
  %3179 = vmatpush1.msra.mxu0 0.0
  %3180 = vmatprep.subr.mxu0 0.0
  %3181 = vmatpush1.msra.mxu0 0.0
  %3182 = vmatprep.subr.mxu0 0.0
  %3183 = vmatpush1.msra.mxu0 0.0
  %3184 = vmatprep.subr.mxu0 0.0
  %3185 = vmatpush1.msra.mxu0 0.0
  %3186 = vmatprep.subr.mxu0 0.0
  %3187 = vmatpush1.msra.mxu0 0.0
  %3188 = vmatprep.subr.mxu0 0.0
  %3189 = vmatpush1.msra.mxu0 0.0
  %3190 = vmatprep.subr.mxu0 0.0
  %3191 = vmatpush1.msra.mxu0 0.0
  %3192 = vmatprep.subr.mxu0 0.0
  %3193 = vmatpush1.msra.mxu0 0.0
  %3194 = vmatprep.subr.mxu0 0.0
  %3195 = vmatpush1.msra.mxu0 0.0
  %3196 = vmatprep.subr.mxu0 0.0
  %3197 = vmatpush1.msra.mxu0 0.0
  %3198 = vmatprep.subr.mxu0 0.0
  %3199 = vmatpush1.msra.mxu0 0.0
  %3200 = vmatprep.subr.mxu0 0.0
  %3201 = vmatpush1.msra.mxu0 0.0
  %3202 = vmatprep.subr.mxu0 0.0
  %3203 = vmatpush1.msra.mxu0 0.0
  %3204 = vmatprep.subr.mxu0 0.0
  %3205 = vmatpush1.msra.mxu0 0.0
  %3206 = vmatprep.subr.mxu0 0.0
  %3207 = vmatpush1.msra.mxu0 0.0
  %3208 = vmatprep.subr.mxu0 0.0
  %3209 = vmatpush1.msra.mxu0 0.0
  %3210 = vmatprep.subr.mxu0 0.0
  %3211 = vmatpush1.msra.mxu0 0.0
  %3212 = vmatprep.subr.mxu0 0.0
  %3213 = vmatpush1.msra.mxu0 0.0
  %3214 = vmatprep.subr.mxu0 0.0
  %3215 = vmatpush1.msra.mxu0 0.0
  %3216 = vmatprep.subr.mxu0 0.0
  %3217 = vmatpush1.msra.mxu0 0.0
  %3218 = vmatprep.subr.mxu0 0.0
  %3219 = vmatpush1.msra.mxu0 0.0
  %3220 = vmatprep.subr.mxu0 0.0
  %3221 = vmatpush1.msra.mxu0 0.0
  %3222 = vmatprep.mubr.f32.mxu0 0.0
  %3223 = vmatmul.mubr.f32.gmra.mrb[0].mxu0 %v3156
  %v3224 = vpop.f32.mrb[0].mxu0
  %v3225 = vadd.f32 %v135, %v3224
  %v3226 = vpop.f32.mrb[0].mxu0
  %3227 = vdwg.mxu0
  %v3228 = vxor.u32 %v3225, 2147483648
  %v3229 = vmul.f32 %v3228, 1.442695
  %v3230 = vpow.pop %v3229
  %v3231 = vadd.f32 %v3230, 1.0
  %v3232 = vrcp.pop %v3231
  %v3233 = vmul.f32 1.0, %v3232
  %v3234 = vtanh.pop %v3225
  %v3235 = vmul.f32 %v3233, %v2803
  %3237 = vrot.lane.b32.xlu0 %v3234, 64
  %v3238 = vpop.permute.xlu0 %3237
  %v3240 = vmul.f32 %v3233, %v3238
  %3242 = vrot.lane.b32.xlu0 %v3240, 32
  %v3243 = vpop.permute.xlu0 %3242
  %v3245 = vadd.f32 %v3235, %v3243
  %v3246 = vtanh.pop %v3245
  %3248 = vrot.lane.b32.xlu0 %v3246, 64
  %v3249 = vpop.permute.xlu0 %3248
  %v3251 = vmul.f32 %v3233, %v3249
  %3253 = vrot.lane.b32.xlu0 %v3251, 32
  %v3254 = vpop.permute.xlu0 %3253
  %v3256 = vsel %vm207, %v3254, %v3245
  %v3258 = vsel %vm2369, %v3256, 0
  %3260 = vmatprep.subr.mxu0 0.0
  %3261 = vmatpush1.msra.mxu0 %v89
  %3262 = vmatprep.subr.mxu0 0.0
  %3263 = vmatpush1.msra.mxu0 %v90
  %3264 = vmatprep.subr.mxu0 0.0
  %3265 = vmatpush1.msra.mxu0 %v91
  %3266 = vmatprep.subr.mxu0 0.0
  %3267 = vmatpush1.msra.mxu0 %v92
  %3268 = vmatprep.subr.mxu0 0.0
  %3269 = vmatpush1.msra.mxu0 %v93
  %3270 = vmatprep.subr.mxu0 0.0
  %3271 = vmatpush1.msra.mxu0 %v94
  %3272 = vmatprep.subr.mxu0 0.0
  %3273 = vmatpush1.msra.mxu0 %v95
  %3274 = vmatprep.subr.mxu0 0.0
  %3275 = vmatpush1.msra.mxu0 %v96
  %3276 = vmatprep.subr.mxu0 0.0
  %3277 = vmatpush1.msra.mxu0 0.0
  %3278 = vmatprep.subr.mxu0 0.0
  %3279 = vmatpush1.msra.mxu0 0.0
  %3280 = vmatprep.subr.mxu0 0.0
  %3281 = vmatpush1.msra.mxu0 0.0
  %3282 = vmatprep.subr.mxu0 0.0
  %3283 = vmatpush1.msra.mxu0 0.0
  %3284 = vmatprep.subr.mxu0 0.0
  %3285 = vmatpush1.msra.mxu0 0.0
  %3286 = vmatprep.subr.mxu0 0.0
  %3287 = vmatpush1.msra.mxu0 0.0
  %3288 = vmatprep.subr.mxu0 0.0
  %3289 = vmatpush1.msra.mxu0 0.0
  %3290 = vmatprep.subr.mxu0 0.0
  %3291 = vmatpush1.msra.mxu0 0.0
  %3292 = vmatprep.subr.mxu0 0.0
  %3293 = vmatpush1.msra.mxu0 0.0
  %3294 = vmatprep.subr.mxu0 0.0
  %3295 = vmatpush1.msra.mxu0 0.0
  %3296 = vmatprep.subr.mxu0 0.0
  %3297 = vmatpush1.msra.mxu0 0.0
  %3298 = vmatprep.subr.mxu0 0.0
  %3299 = vmatpush1.msra.mxu0 0.0
  %3300 = vmatprep.subr.mxu0 0.0
  %3301 = vmatpush1.msra.mxu0 0.0
  %3302 = vmatprep.subr.mxu0 0.0
  %3303 = vmatpush1.msra.mxu0 0.0
  %3304 = vmatprep.subr.mxu0 0.0
  %3305 = vmatpush1.msra.mxu0 0.0
  %3306 = vmatprep.subr.mxu0 0.0
  %3307 = vmatpush1.msra.mxu0 0.0
  %3308 = vmatprep.subr.mxu0 0.0
  %3309 = vmatpush1.msra.mxu0 0.0
  %3310 = vmatprep.subr.mxu0 0.0
  %3311 = vmatpush1.msra.mxu0 0.0
  %3312 = vmatprep.subr.mxu0 0.0
  %3313 = vmatpush1.msra.mxu0 0.0
  %3314 = vmatprep.subr.mxu0 0.0
  %3315 = vmatpush1.msra.mxu0 0.0
  %3316 = vmatprep.subr.mxu0 0.0
  %3317 = vmatpush1.msra.mxu0 0.0
  %3318 = vmatprep.subr.mxu0 0.0
  %3319 = vmatpush1.msra.mxu0 0.0
  %3320 = vmatprep.subr.mxu0 0.0
  %3321 = vmatpush1.msra.mxu0 0.0
  %3322 = vmatprep.subr.mxu0 0.0
  %3323 = vmatpush1.msra.mxu0 0.0
  %3324 = vmatprep.mubr.f32.mxu0 0.0
  %3325 = vmatmul.mubr.f32.gmra.mrb[0].mxu0 %v3258
  %v3326 = vpop.f32.mrb[0].mxu0
  %v3327 = vadd.f32 0.0, %v3326
  %v3328 = vpop.f32.mrb[0].mxu0
  %3329 = vdwg.mxu0
  %v3332 = vunpack.c.l.s4 1966171168
  %v3333 = vunpack.c.0.s8 %v3332
  %v3334 = vlaneseq
  %v3335 = vshrl.u32 %v3334, 7
  %v3336 = vsub.s32 %v3333, %v3335
  %v3337 = vrot.slane %v3327, %v3336
  %v3338 = vcombine.high %v3337, %v3337
  %v3340 = vunpack.c.l.s4 1966171168
  %v3341 = vunpack.c.0.s8 %v3340
  %v3342 = vlaneseq
  %v3343 = vshrl.u32 %v3342, 7
  %v3344 = vsub.s32 %v3341, %v3343
  %v3345 = vrot.slane %v3337, %v3344
  %v3347 = vunpack.c.l.s4 1966171168
  %v3348 = vunpack.c.0.s8 %v3347
  %v3349 = vlaneseq
  %v3350 = vshrl.u32 %v3349, 7
  %v3351 = vsub.s32 %v3348, %v3350
  %v3352 = vrot.slane %v3338, %v3351
  %v3353 = vcombine.high %v3345, %v3345
  %v3354 = vcombine.high %v3352, %v3352
  %v3355 = vlaneseq
  %v3356 = vshrl.u32 %v3355, 7
  %v3357 = vsub.s32 0, %v3356
  %v3358 = vrot.slane %v3345, %v3357
  %v3359 = vlaneseq
  %v3360 = vshrl.u32 %v3359, 7
  %v3361 = vsub.s32 0, %v3360
  %v3362 = vrot.slane %v3352, %v3361
  %v3363 = vlaneseq
  %v3364 = vshrl.u32 %v3363, 7
  %v3365 = vsub.s32 0, %v3364
  %v3366 = vrot.slane %v3353, %v3365
  %v3367 = vlaneseq
  %v3368 = vshrl.u32 %v3367, 7
  %v3369 = vsub.s32 0, %v3368
  %v3370 = vrot.slane %v3354, %v3369
  %v3375 = vadd.f32 %v2351, %v3358
  %v3376 = vadd.f32 %v2356, %v3362
  %v3377 = vadd.f32 %v2361, %v3366
  %v3378 = vadd.f32 %v2366, %v3370
  %v3379 = vtanh.pop %v3375
  %v3380 = vtanh.pop %v3376
  %v3381 = vtanh.pop %v3377
  %v3382 = vtanh.pop %v3378
  %v3383 = vmul.f32 %v3379, %v159
  %v3384 = vmul.f32 %v3380, %v159
  %v3385 = vmul.f32 %v3381, %v159
  %v3386 = vmul.f32 %v3382, %v159
  %v3387 = vsel %vm207, %v3383, 0.0
  %3388 = vadd.xlane.f32.xlu0 %v3387
  %v3389 = vpop.xlane.xlu0 %3388
  %v3390 = vsel %vm207, %v3384, 0.0
  %3391 = vadd.xlane.f32.xlu0 %v3390
  %v3392 = vpop.xlane.xlu0 %3391
  %v3393 = vsel %vm207, %v3385, 0.0
  %3394 = vadd.xlane.f32.xlu0 %v3393
  %v3395 = vpop.xlane.xlu0 %3394
  %v3396 = vsel %vm207, %v3386, 0.0
  %3397 = vadd.xlane.f32.xlu0 %v3396
  %v3398 = vpop.xlane.xlu0 %3397
  %v3399 = vadd.f32 %v3389, %v2512
  %v3400 = vadd.f32 %v3392, %v2512
  %v3401 = vadd.f32 %v3395, %v2512
  %v3402 = vadd.f32 %v3398, %v2512
  %v3403 = vrot.slane %v3399, 4
  %v3404 = vmax.f32 %v3399, %v3403
  %v3405 = vrot.slane %v3404, 2
  %v3406 = vmax.f32 %v3404, %v3405
  %v3407 = vrot.slane %v3406, 1
  %v3408 = vmax.f32 %v3406, %v3407
  %v3409 = vrot.slane %v3400, 4
  %v3410 = vmax.f32 %v3400, %v3409
  %v3411 = vrot.slane %v3410, 2
  %v3412 = vmax.f32 %v3410, %v3411
  %v3413 = vrot.slane %v3412, 1
  %v3414 = vmax.f32 %v3412, %v3413
  %v3415 = vrot.slane %v3401, 4
  %v3416 = vmax.f32 %v3401, %v3415
  %v3417 = vrot.slane %v3416, 2
  %v3418 = vmax.f32 %v3416, %v3417
  %v3419 = vrot.slane %v3418, 1
  %v3420 = vmax.f32 %v3418, %v3419
  %v3421 = vrot.slane %v3402, 4
  %v3422 = vmax.f32 %v3402, %v3421
  %v3423 = vrot.slane %v3422, 2
  %v3424 = vmax.f32 %v3422, %v3423
  %v3425 = vrot.slane %v3424, 1
  %v3426 = vmax.f32 %v3424, %v3425
  %v3427 = vsub.f32 %v3399, %v3408
  %v3428 = vsub.f32 %v3400, %v3414
  %v3429 = vsub.f32 %v3401, %v3420
  %v3430 = vsub.f32 %v3402, %v3426
  %v3431 = vmul.f32 %v3427, 1.442695
  %v3432 = vpow.pop %v3431
  %v3433 = vmul.f32 %v3428, 1.442695
  %v3434 = vpow.pop %v3433
  %v3435 = vmul.f32 %v3429, 1.442695
  %v3436 = vpow.pop %v3435
  %v3437 = vmul.f32 %v3430, 1.442695
  %v3438 = vpow.pop %v3437
  %v3439 = vrot.slane %v3432, 4
  %v3440 = vadd.f32 %v3432, %v3439
  %v3441 = vrot.slane %v3440, 2
  %v3442 = vadd.f32 %v3440, %v3441
  %v3443 = vrot.slane %v3442, 1
  %v3444 = vadd.f32 %v3442, %v3443
  %v3445 = vrot.slane %v3434, 4
  %v3446 = vadd.f32 %v3434, %v3445
  %v3447 = vrot.slane %v3446, 2
  %v3448 = vadd.f32 %v3446, %v3447
  %v3449 = vrot.slane %v3448, 1
  %v3450 = vadd.f32 %v3448, %v3449
  %v3451 = vrot.slane %v3436, 4
  %v3452 = vadd.f32 %v3436, %v3451
  %v3453 = vrot.slane %v3452, 2
  %v3454 = vadd.f32 %v3452, %v3453
  %v3455 = vrot.slane %v3454, 1
  %v3456 = vadd.f32 %v3454, %v3455
  %v3457 = vrot.slane %v3438, 4
  %v3458 = vadd.f32 %v3438, %v3457
  %v3459 = vrot.slane %v3458, 2
  %v3460 = vadd.f32 %v3458, %v3459
  %v3461 = vrot.slane %v3460, 1
  %v3462 = vadd.f32 %v3460, %v3461
  %v3463 = vrcp.pop %v3444
  %v3464 = vrcp.pop %v3450
  %v3465 = vrcp.pop %v3456
  %v3466 = vrcp.pop %v3462
  %v3467 = vmul.f32 %v3432, %v3463
  %v3468 = vmul.f32 %v3434, %v3464
  %v3469 = vmul.f32 %v3436, %v3465
  %v3470 = vmul.f32 %v3438, %v3466
  %v3471 = vmul.f32 %v3467, %v2254
  %v3472 = vmul.f32 %v3468, %v2255
  %v3473 = vmul.f32 %v3469, %v2256
  %v3474 = vmul.f32 %v3470, %v2257
  %v3475 = vsel %vm2589, %v3471, 0.0
  %v3476 = vrot.slane %v3475, 4
  %v3477 = vadd.f32 %v3475, %v3476
  %v3478 = vrot.slane %v3477, 2
  %v3479 = vadd.f32 %v3477, %v3478
  %v3480 = vrot.slane %v3479, 1
  %v3481 = vadd.f32 %v3479, %v3480
  %v3482 = vsel %vm2589, %v3472, 0.0
  %v3483 = vrot.slane %v3482, 4
  %v3484 = vadd.f32 %v3482, %v3483
  %v3485 = vrot.slane %v3484, 2
  %v3486 = vadd.f32 %v3484, %v3485
  %v3487 = vrot.slane %v3486, 1
  %v3488 = vadd.f32 %v3486, %v3487
  %v3489 = vsel %vm2589, %v3473, 0.0
  %v3490 = vrot.slane %v3489, 4
  %v3491 = vadd.f32 %v3489, %v3490
  %v3492 = vrot.slane %v3491, 2
  %v3493 = vadd.f32 %v3491, %v3492
  %v3494 = vrot.slane %v3493, 1
  %v3495 = vadd.f32 %v3493, %v3494
  %v3496 = vsel %vm2589, %v3474, 0.0
  %v3497 = vrot.slane %v3496, 4
  %v3498 = vadd.f32 %v3496, %v3497
  %v3499 = vrot.slane %v3498, 2
  %v3500 = vadd.f32 %v3498, %v3499
  %v3501 = vrot.slane %v3500, 1
  %v3502 = vadd.f32 %v3500, %v3501
  %3503 = vrot.lane.b32.xlu0 %v2622, 2
  %v3504 = vpop.permute.xlu0 %3503
  %v3506 = vmul.f32 %v77, %v3504
  %v3511 = vsel %vm219, %v3488, %v3481
  %v3512 = vsel %vm221, %v3495, %v3511
  %v3513 = vsel %vm223, %v3502, %v3512
  %3514 = vrot.lane.b32.xlu0 %v3513, 32
  %v3515 = vpop.permute.xlu0 %3514
  %3517 = vrot.lane.b32.xlu0 %v3506, 126
  %v3518 = vpop.permute.xlu0 %3517
  %v3520 = vsel %vm207, %v3515, 0
  %3522 = vmatprep.subr.mxu0 0.0
  %3523 = vmatpush1.msra.mxu0 %v110
  %3524 = vmatprep.subr.mxu0 0.0
  %3525 = vmatpush1.msra.mxu0 %v111
  %3526 = vmatprep.subr.mxu0 0.0
  %3527 = vmatpush1.msra.mxu0 %v112
  %3528 = vmatprep.subr.mxu0 0.0
  %3529 = vmatpush1.msra.mxu0 %v113
  %3530 = vmatprep.subr.mxu0 0.0
  %3531 = vmatpush1.msra.mxu0 0.0
  %3532 = vmatprep.subr.mxu0 0.0
  %3533 = vmatpush1.msra.mxu0 0.0
  %3534 = vmatprep.subr.mxu0 0.0
  %3535 = vmatpush1.msra.mxu0 0.0
  %3536 = vmatprep.subr.mxu0 0.0
  %3537 = vmatpush1.msra.mxu0 0.0
  %3538 = vmatprep.subr.mxu0 0.0
  %3539 = vmatpush1.msra.mxu0 0.0
  %3540 = vmatprep.subr.mxu0 0.0
  %3541 = vmatpush1.msra.mxu0 0.0
  %3542 = vmatprep.subr.mxu0 0.0
  %3543 = vmatpush1.msra.mxu0 0.0
  %3544 = vmatprep.subr.mxu0 0.0
  %3545 = vmatpush1.msra.mxu0 0.0
  %3546 = vmatprep.subr.mxu0 0.0
  %3547 = vmatpush1.msra.mxu0 0.0
  %3548 = vmatprep.subr.mxu0 0.0
  %3549 = vmatpush1.msra.mxu0 0.0
  %3550 = vmatprep.subr.mxu0 0.0
  %3551 = vmatpush1.msra.mxu0 0.0
  %3552 = vmatprep.subr.mxu0 0.0
  %3553 = vmatpush1.msra.mxu0 0.0
  %3554 = vmatprep.subr.mxu0 0.0
  %3555 = vmatpush1.msra.mxu0 0.0
  %3556 = vmatprep.subr.mxu0 0.0
  %3557 = vmatpush1.msra.mxu0 0.0
  %3558 = vmatprep.subr.mxu0 0.0
  %3559 = vmatpush1.msra.mxu0 0.0
  %3560 = vmatprep.subr.mxu0 0.0
  %3561 = vmatpush1.msra.mxu0 0.0
  %3562 = vmatprep.subr.mxu0 0.0
  %3563 = vmatpush1.msra.mxu0 0.0
  %3564 = vmatprep.subr.mxu0 0.0
  %3565 = vmatpush1.msra.mxu0 0.0
  %3566 = vmatprep.subr.mxu0 0.0
  %3567 = vmatpush1.msra.mxu0 0.0
  %3568 = vmatprep.subr.mxu0 0.0
  %3569 = vmatpush1.msra.mxu0 0.0
  %3570 = vmatprep.subr.mxu0 0.0
  %3571 = vmatpush1.msra.mxu0 0.0
  %3572 = vmatprep.subr.mxu0 0.0
  %3573 = vmatpush1.msra.mxu0 0.0
  %3574 = vmatprep.subr.mxu0 0.0
  %3575 = vmatpush1.msra.mxu0 0.0
  %3576 = vmatprep.subr.mxu0 0.0
  %3577 = vmatpush1.msra.mxu0 0.0
  %3578 = vmatprep.subr.mxu0 0.0
  %3579 = vmatpush1.msra.mxu0 0.0
  %3580 = vmatprep.subr.mxu0 0.0
  %3581 = vmatpush1.msra.mxu0 0.0
  %3582 = vmatprep.subr.mxu0 0.0
  %3583 = vmatpush1.msra.mxu0 0.0
  %3584 = vmatprep.subr.mxu0 0.0
  %3585 = vmatpush1.msra.mxu0 0.0
  %3586 = vmatprep.mubr.f32.mxu0 0.0
  %3587 = vmatmul.mubr.f32.gmra.mrb[0].mxu0 %v3520
  %v3588 = vpop.f32.mrb[0].mxu0
  %v3589 = vadd.f32 %v3518, %v3588
  %v3590 = vpop.f32.mrb[0].mxu0
  %3591 = vdwg.mxu0
  %v3592 = vadd.f32 %v3589, %v141
  %3593 = vrot.lane.b32.xlu0 %v3251, 33
  %v3594 = vpop.permute.xlu0 %3593
  %v3596 = vsel %vm2707, %v3592, %v3594
  %v3598 = vsel %vm2709, %v3596, 0
  %3600 = vmatprep.subr.mxu0 0.0
  %3601 = vmatpush1.msra.mxu0 %v104
  %3602 = vmatprep.subr.mxu0 0.0
  %3603 = vmatpush1.msra.mxu0 %v105
  %3604 = vmatprep.subr.mxu0 0.0
  %3605 = vmatpush1.msra.mxu0 %v106
  %3606 = vmatprep.subr.mxu0 0.0
  %3607 = vmatpush1.msra.mxu0 %v107
  %3608 = vmatprep.subr.mxu0 0.0
  %3609 = vmatpush1.msra.mxu0 %v2714
  %3610 = vmatprep.subr.mxu0 0.0
  %3611 = vmatpush1.msra.mxu0 0.0
  %3612 = vmatprep.subr.mxu0 0.0
  %3613 = vmatpush1.msra.mxu0 0.0
  %3614 = vmatprep.subr.mxu0 0.0
  %3615 = vmatpush1.msra.mxu0 0.0
  %3616 = vmatprep.subr.mxu0 0.0
  %3617 = vmatpush1.msra.mxu0 0.0
  %3618 = vmatprep.subr.mxu0 0.0
  %3619 = vmatpush1.msra.mxu0 0.0
  %3620 = vmatprep.subr.mxu0 0.0
  %3621 = vmatpush1.msra.mxu0 0.0
  %3622 = vmatprep.subr.mxu0 0.0
  %3623 = vmatpush1.msra.mxu0 0.0
  %3624 = vmatprep.subr.mxu0 0.0
  %3625 = vmatpush1.msra.mxu0 0.0
  %3626 = vmatprep.subr.mxu0 0.0
  %3627 = vmatpush1.msra.mxu0 0.0
  %3628 = vmatprep.subr.mxu0 0.0
  %3629 = vmatpush1.msra.mxu0 0.0
  %3630 = vmatprep.subr.mxu0 0.0
  %3631 = vmatpush1.msra.mxu0 0.0
  %3632 = vmatprep.subr.mxu0 0.0
  %3633 = vmatpush1.msra.mxu0 0.0
  %3634 = vmatprep.subr.mxu0 0.0
  %3635 = vmatpush1.msra.mxu0 0.0
  %3636 = vmatprep.subr.mxu0 0.0
  %3637 = vmatpush1.msra.mxu0 0.0
  %3638 = vmatprep.subr.mxu0 0.0
  %3639 = vmatpush1.msra.mxu0 0.0
  %3640 = vmatprep.subr.mxu0 0.0
  %3641 = vmatpush1.msra.mxu0 0.0
  %3642 = vmatprep.subr.mxu0 0.0
  %3643 = vmatpush1.msra.mxu0 0.0
  %3644 = vmatprep.subr.mxu0 0.0
  %3645 = vmatpush1.msra.mxu0 0.0
  %3646 = vmatprep.subr.mxu0 0.0
  %3647 = vmatpush1.msra.mxu0 0.0
  %3648 = vmatprep.subr.mxu0 0.0
  %3649 = vmatpush1.msra.mxu0 0.0
  %3650 = vmatprep.subr.mxu0 0.0
  %3651 = vmatpush1.msra.mxu0 0.0
  %3652 = vmatprep.subr.mxu0 0.0
  %3653 = vmatpush1.msra.mxu0 0.0
  %3654 = vmatprep.subr.mxu0 0.0
  %3655 = vmatpush1.msra.mxu0 0.0
  %3656 = vmatprep.subr.mxu0 0.0
  %3657 = vmatpush1.msra.mxu0 0.0
  %3658 = vmatprep.subr.mxu0 0.0
  %3659 = vmatpush1.msra.mxu0 0.0
  %3660 = vmatprep.subr.mxu0 0.0
  %3661 = vmatpush1.msra.mxu0 0.0
  %3662 = vmatprep.subr.mxu0 0.0
  %3663 = vmatpush1.msra.mxu0 0.0
  %3664 = vmatprep.mubr.f32.mxu0 0.0
  %3665 = vmatmul.mubr.f32.gmra.mrb[0].mxu0 %v3598
  %v3666 = vpop.f32.mrb[0].mxu0
  %v3667 = vadd.f32 %v135, %v3666
  %v3668 = vpop.f32.mrb[0].mxu0
  %3669 = vdwg.mxu0
  %v3670 = vxor.u32 %v3667, 2147483648
  %v3671 = vmul.f32 %v3670, 1.442695
  %v3672 = vpow.pop %v3671
  %v3673 = vadd.f32 %v3672, 1.0
  %v3674 = vrcp.pop %v3673
  %v3675 = vmul.f32 1.0, %v3674
  %v3676 = vtanh.pop %v3667
  %v3677 = vmul.f32 %v3675, %v3245
  %3679 = vrot.lane.b32.xlu0 %v3676, 64
  %v3680 = vpop.permute.xlu0 %3679
  %v3682 = vmul.f32 %v3675, %v3680
  %3684 = vrot.lane.b32.xlu0 %v3682, 32
  %v3685 = vpop.permute.xlu0 %3684
  %v3687 = vadd.f32 %v3677, %v3685
  %v3688 = vtanh.pop %v3687
  %3690 = vrot.lane.b32.xlu0 %v3688, 64
  %v3691 = vpop.permute.xlu0 %3690
  %v3693 = vmul.f32 %v3675, %v3691
  %3695 = vrot.lane.b32.xlu0 %v3693, 32
  %v3696 = vpop.permute.xlu0 %3695
  %v3698 = vsel %vm207, %v3696, %v3687
  %v3700 = vsel %vm2369, %v3698, 0
  %3702 = vmatprep.subr.mxu0 0.0
  %3703 = vmatpush1.msra.mxu0 %v89
  %3704 = vmatprep.subr.mxu0 0.0
  %3705 = vmatpush1.msra.mxu0 %v90
  %3706 = vmatprep.subr.mxu0 0.0
  %3707 = vmatpush1.msra.mxu0 %v91
  %3708 = vmatprep.subr.mxu0 0.0
  %3709 = vmatpush1.msra.mxu0 %v92
  %3710 = vmatprep.subr.mxu0 0.0
  %3711 = vmatpush1.msra.mxu0 %v93
  %3712 = vmatprep.subr.mxu0 0.0
  %3713 = vmatpush1.msra.mxu0 %v94
  %3714 = vmatprep.subr.mxu0 0.0
  %3715 = vmatpush1.msra.mxu0 %v95
  %3716 = vmatprep.subr.mxu0 0.0
  %3717 = vmatpush1.msra.mxu0 %v96
  %3718 = vmatprep.subr.mxu0 0.0
  %3719 = vmatpush1.msra.mxu0 0.0
  %3720 = vmatprep.subr.mxu0 0.0
  %3721 = vmatpush1.msra.mxu0 0.0
  %3722 = vmatprep.subr.mxu0 0.0
  %3723 = vmatpush1.msra.mxu0 0.0
  %3724 = vmatprep.subr.mxu0 0.0
  %3725 = vmatpush1.msra.mxu0 0.0
  %3726 = vmatprep.subr.mxu0 0.0
  %3727 = vmatpush1.msra.mxu0 0.0
  %3728 = vmatprep.subr.mxu0 0.0
  %3729 = vmatpush1.msra.mxu0 0.0
  %3730 = vmatprep.subr.mxu0 0.0
  %3731 = vmatpush1.msra.mxu0 0.0
  %3732 = vmatprep.subr.mxu0 0.0
  %3733 = vmatpush1.msra.mxu0 0.0
  %3734 = vmatprep.subr.mxu0 0.0
  %3735 = vmatpush1.msra.mxu0 0.0
  %3736 = vmatprep.subr.mxu0 0.0
  %3737 = vmatpush1.msra.mxu0 0.0
  %3738 = vmatprep.subr.mxu0 0.0
  %3739 = vmatpush1.msra.mxu0 0.0
  %3740 = vmatprep.subr.mxu0 0.0
  %3741 = vmatpush1.msra.mxu0 0.0
  %3742 = vmatprep.subr.mxu0 0.0
  %3743 = vmatpush1.msra.mxu0 0.0
  %3744 = vmatprep.subr.mxu0 0.0
  %3745 = vmatpush1.msra.mxu0 0.0
  %3746 = vmatprep.subr.mxu0 0.0
  %3747 = vmatpush1.msra.mxu0 0.0
  %3748 = vmatprep.subr.mxu0 0.0
  %3749 = vmatpush1.msra.mxu0 0.0
  %3750 = vmatprep.subr.mxu0 0.0
  %3751 = vmatpush1.msra.mxu0 0.0
  %3752 = vmatprep.subr.mxu0 0.0
  %3753 = vmatpush1.msra.mxu0 0.0
  %3754 = vmatprep.subr.mxu0 0.0
  %3755 = vmatpush1.msra.mxu0 0.0
  %3756 = vmatprep.subr.mxu0 0.0
  %3757 = vmatpush1.msra.mxu0 0.0
  %3758 = vmatprep.subr.mxu0 0.0
  %3759 = vmatpush1.msra.mxu0 0.0
  %3760 = vmatprep.subr.mxu0 0.0
  %3761 = vmatpush1.msra.mxu0 0.0
  %3762 = vmatprep.subr.mxu0 0.0
  %3763 = vmatpush1.msra.mxu0 0.0
  %3764 = vmatprep.subr.mxu0 0.0
  %3765 = vmatpush1.msra.mxu0 0.0
  %3766 = vmatprep.mubr.f32.mxu0 0.0
  %3767 = vmatmul.mubr.f32.gmra.mrb[0].mxu0 %v3700
  %v3768 = vpop.f32.mrb[0].mxu0
  %v3769 = vadd.f32 0.0, %v3768
  %v3770 = vpop.f32.mrb[0].mxu0
  %3771 = vdwg.mxu0
  %v3774 = vunpack.c.l.s4 1966171168
  %v3775 = vunpack.c.0.s8 %v3774
  %v3776 = vlaneseq
  %v3777 = vshrl.u32 %v3776, 7
  %v3778 = vsub.s32 %v3775, %v3777
  %v3779 = vrot.slane %v3769, %v3778
  %v3780 = vcombine.high %v3779, %v3779
  %v3782 = vunpack.c.l.s4 1966171168
  %v3783 = vunpack.c.0.s8 %v3782
  %v3784 = vlaneseq
  %v3785 = vshrl.u32 %v3784, 7
  %v3786 = vsub.s32 %v3783, %v3785
  %v3787 = vrot.slane %v3779, %v3786
  %v3789 = vunpack.c.l.s4 1966171168
  %v3790 = vunpack.c.0.s8 %v3789
  %v3791 = vlaneseq
  %v3792 = vshrl.u32 %v3791, 7
  %v3793 = vsub.s32 %v3790, %v3792
  %v3794 = vrot.slane %v3780, %v3793
  %v3795 = vcombine.high %v3787, %v3787
  %v3796 = vcombine.high %v3794, %v3794
  %v3797 = vlaneseq
  %v3798 = vshrl.u32 %v3797, 7
  %v3799 = vsub.s32 0, %v3798
  %v3800 = vrot.slane %v3787, %v3799
  %v3801 = vlaneseq
  %v3802 = vshrl.u32 %v3801, 7
  %v3803 = vsub.s32 0, %v3802
  %v3804 = vrot.slane %v3794, %v3803
  %v3805 = vlaneseq
  %v3806 = vshrl.u32 %v3805, 7
  %v3807 = vsub.s32 0, %v3806
  %v3808 = vrot.slane %v3795, %v3807
  %v3809 = vlaneseq
  %v3810 = vshrl.u32 %v3809, 7
  %v3811 = vsub.s32 0, %v3810
  %v3812 = vrot.slane %v3796, %v3811
  %v3817 = vadd.f32 %v2351, %v3800
  %v3818 = vadd.f32 %v2356, %v3804
  %v3819 = vadd.f32 %v2361, %v3808
  %v3820 = vadd.f32 %v2366, %v3812
  %v3821 = vtanh.pop %v3817
  %v3822 = vtanh.pop %v3818
  %v3823 = vtanh.pop %v3819
  %v3824 = vtanh.pop %v3820
  %v3825 = vmul.f32 %v3821, %v159
  %v3826 = vmul.f32 %v3822, %v159
  %v3827 = vmul.f32 %v3823, %v159
  %v3828 = vmul.f32 %v3824, %v159
  %v3829 = vsel %vm207, %v3825, 0.0
  %3830 = vadd.xlane.f32.xlu0 %v3829
  %v3831 = vpop.xlane.xlu0 %3830
  %v3832 = vsel %vm207, %v3826, 0.0
  %3833 = vadd.xlane.f32.xlu0 %v3832
  %v3834 = vpop.xlane.xlu0 %3833
  %v3835 = vsel %vm207, %v3827, 0.0
  %3836 = vadd.xlane.f32.xlu0 %v3835
  %v3837 = vpop.xlane.xlu0 %3836
  %v3838 = vsel %vm207, %v3828, 0.0
  %3839 = vadd.xlane.f32.xlu0 %v3838
  %v3840 = vpop.xlane.xlu0 %3839
  %v3841 = vadd.f32 %v3831, %v2512
  %v3842 = vadd.f32 %v3834, %v2512
  %v3843 = vadd.f32 %v3837, %v2512
  %v3844 = vadd.f32 %v3840, %v2512
  %v3845 = vrot.slane %v3841, 4
  %v3846 = vmax.f32 %v3841, %v3845
  %v3847 = vrot.slane %v3846, 2
  %v3848 = vmax.f32 %v3846, %v3847
  %v3849 = vrot.slane %v3848, 1
  %v3850 = vmax.f32 %v3848, %v3849
  %v3851 = vrot.slane %v3842, 4
  %v3852 = vmax.f32 %v3842, %v3851
  %v3853 = vrot.slane %v3852, 2
  %v3854 = vmax.f32 %v3852, %v3853
  %v3855 = vrot.slane %v3854, 1
  %v3856 = vmax.f32 %v3854, %v3855
  %v3857 = vrot.slane %v3843, 4
  %v3858 = vmax.f32 %v3843, %v3857
  %v3859 = vrot.slane %v3858, 2
  %v3860 = vmax.f32 %v3858, %v3859
  %v3861 = vrot.slane %v3860, 1
  %v3862 = vmax.f32 %v3860, %v3861
  %v3863 = vrot.slane %v3844, 4
  %v3864 = vmax.f32 %v3844, %v3863
  %v3865 = vrot.slane %v3864, 2
  %v3866 = vmax.f32 %v3864, %v3865
  %v3867 = vrot.slane %v3866, 1
  %v3868 = vmax.f32 %v3866, %v3867
  %v3869 = vsub.f32 %v3841, %v3850
  %v3870 = vsub.f32 %v3842, %v3856
  %v3871 = vsub.f32 %v3843, %v3862
  %v3872 = vsub.f32 %v3844, %v3868
  %v3873 = vmul.f32 %v3869, 1.442695
  %v3874 = vpow.pop %v3873
  %v3875 = vmul.f32 %v3870, 1.442695
  %v3876 = vpow.pop %v3875
  %v3877 = vmul.f32 %v3871, 1.442695
  %v3878 = vpow.pop %v3877
  %v3879 = vmul.f32 %v3872, 1.442695
  %v3880 = vpow.pop %v3879
  %v3881 = vrot.slane %v3874, 4
  %v3882 = vadd.f32 %v3874, %v3881
  %v3883 = vrot.slane %v3882, 2
  %v3884 = vadd.f32 %v3882, %v3883
  %v3885 = vrot.slane %v3884, 1
  %v3886 = vadd.f32 %v3884, %v3885
  %v3887 = vrot.slane %v3876, 4
  %v3888 = vadd.f32 %v3876, %v3887
  %v3889 = vrot.slane %v3888, 2
  %v3890 = vadd.f32 %v3888, %v3889
  %v3891 = vrot.slane %v3890, 1
  %v3892 = vadd.f32 %v3890, %v3891
  %v3893 = vrot.slane %v3878, 4
  %v3894 = vadd.f32 %v3878, %v3893
  %v3895 = vrot.slane %v3894, 2
  %v3896 = vadd.f32 %v3894, %v3895
  %v3897 = vrot.slane %v3896, 1
  %v3898 = vadd.f32 %v3896, %v3897
  %v3899 = vrot.slane %v3880, 4
  %v3900 = vadd.f32 %v3880, %v3899
  %v3901 = vrot.slane %v3900, 2
  %v3902 = vadd.f32 %v3900, %v3901
  %v3903 = vrot.slane %v3902, 1
  %v3904 = vadd.f32 %v3902, %v3903
  %v3905 = vrcp.pop %v3886
  %v3906 = vrcp.pop %v3892
  %v3907 = vrcp.pop %v3898
  %v3908 = vrcp.pop %v3904
  %v3909 = vmul.f32 %v3874, %v3905
  %v3910 = vmul.f32 %v3876, %v3906
  %v3911 = vmul.f32 %v3878, %v3907
  %v3912 = vmul.f32 %v3880, %v3908
  %v3913 = vmul.f32 %v3909, %v2254
  %v3914 = vmul.f32 %v3910, %v2255
  %v3915 = vmul.f32 %v3911, %v2256
  %v3916 = vmul.f32 %v3912, %v2257
  %v3917 = vsel %vm2589, %v3913, 0.0
  %v3918 = vrot.slane %v3917, 4
  %v3919 = vadd.f32 %v3917, %v3918
  %v3920 = vrot.slane %v3919, 2
  %v3921 = vadd.f32 %v3919, %v3920
  %v3922 = vrot.slane %v3921, 1
  %v3923 = vadd.f32 %v3921, %v3922
  %v3924 = vsel %vm2589, %v3914, 0.0
  %v3925 = vrot.slane %v3924, 4
  %v3926 = vadd.f32 %v3924, %v3925
  %v3927 = vrot.slane %v3926, 2
  %v3928 = vadd.f32 %v3926, %v3927
  %v3929 = vrot.slane %v3928, 1
  %v3930 = vadd.f32 %v3928, %v3929
  %v3931 = vsel %vm2589, %v3915, 0.0
  %v3932 = vrot.slane %v3931, 4
  %v3933 = vadd.f32 %v3931, %v3932
  %v3934 = vrot.slane %v3933, 2
  %v3935 = vadd.f32 %v3933, %v3934
  %v3936 = vrot.slane %v3935, 1
  %v3937 = vadd.f32 %v3935, %v3936
  %v3938 = vsel %vm2589, %v3916, 0.0
  %v3939 = vrot.slane %v3938, 4
  %v3940 = vadd.f32 %v3938, %v3939
  %v3941 = vrot.slane %v3940, 2
  %v3942 = vadd.f32 %v3940, %v3941
  %v3943 = vrot.slane %v3942, 1
  %v3944 = vadd.f32 %v3942, %v3943
  %3945 = vrot.lane.b32.xlu0 %v2622, 3
  %v3946 = vpop.permute.xlu0 %3945
  %v3948 = vmul.f32 %v77, %v3946
  %v3953 = vsel %vm219, %v3930, %v3923
  %v3954 = vsel %vm221, %v3937, %v3953
  %v3955 = vsel %vm223, %v3944, %v3954
  %3956 = vrot.lane.b32.xlu0 %v3955, 32
  %v3957 = vpop.permute.xlu0 %3956
  %3959 = vrot.lane.b32.xlu0 %v3948, 125
  %v3960 = vpop.permute.xlu0 %3959
  %v3962 = vsel %vm207, %v3957, 0
  %3964 = vmatprep.subr.mxu0 0.0
  %3965 = vmatpush1.msra.mxu0 %v110
  %3966 = vmatprep.subr.mxu0 0.0
  %3967 = vmatpush1.msra.mxu0 %v111
  %3968 = vmatprep.subr.mxu0 0.0
  %3969 = vmatpush1.msra.mxu0 %v112
  %3970 = vmatprep.subr.mxu0 0.0
  %3971 = vmatpush1.msra.mxu0 %v113
  %3972 = vmatprep.subr.mxu0 0.0
  %3973 = vmatpush1.msra.mxu0 0.0
  %3974 = vmatprep.subr.mxu0 0.0
  %3975 = vmatpush1.msra.mxu0 0.0
  %3976 = vmatprep.subr.mxu0 0.0
  %3977 = vmatpush1.msra.mxu0 0.0
  %3978 = vmatprep.subr.mxu0 0.0
  %3979 = vmatpush1.msra.mxu0 0.0
  %3980 = vmatprep.subr.mxu0 0.0
  %3981 = vmatpush1.msra.mxu0 0.0
  %3982 = vmatprep.subr.mxu0 0.0
  %3983 = vmatpush1.msra.mxu0 0.0
  %3984 = vmatprep.subr.mxu0 0.0
  %3985 = vmatpush1.msra.mxu0 0.0
  %3986 = vmatprep.subr.mxu0 0.0
  %3987 = vmatpush1.msra.mxu0 0.0
  %3988 = vmatprep.subr.mxu0 0.0
  %3989 = vmatpush1.msra.mxu0 0.0
  %3990 = vmatprep.subr.mxu0 0.0
  %3991 = vmatpush1.msra.mxu0 0.0
  %3992 = vmatprep.subr.mxu0 0.0
  %3993 = vmatpush1.msra.mxu0 0.0
  %3994 = vmatprep.subr.mxu0 0.0
  %3995 = vmatpush1.msra.mxu0 0.0
  %3996 = vmatprep.subr.mxu0 0.0
  %3997 = vmatpush1.msra.mxu0 0.0
  %3998 = vmatprep.subr.mxu0 0.0
  %3999 = vmatpush1.msra.mxu0 0.0
  %4000 = vmatprep.subr.mxu0 0.0
  %4001 = vmatpush1.msra.mxu0 0.0
  %4002 = vmatprep.subr.mxu0 0.0
  %4003 = vmatpush1.msra.mxu0 0.0
  %4004 = vmatprep.subr.mxu0 0.0
  %4005 = vmatpush1.msra.mxu0 0.0
  %4006 = vmatprep.subr.mxu0 0.0
  %4007 = vmatpush1.msra.mxu0 0.0
  %4008 = vmatprep.subr.mxu0 0.0
  %4009 = vmatpush1.msra.mxu0 0.0
  %4010 = vmatprep.subr.mxu0 0.0
  %4011 = vmatpush1.msra.mxu0 0.0
  %4012 = vmatprep.subr.mxu0 0.0
  %4013 = vmatpush1.msra.mxu0 0.0
  %4014 = vmatprep.subr.mxu0 0.0
  %4015 = vmatpush1.msra.mxu0 0.0
  %4016 = vmatprep.subr.mxu0 0.0
  %4017 = vmatpush1.msra.mxu0 0.0
  %4018 = vmatprep.subr.mxu0 0.0
  %4019 = vmatpush1.msra.mxu0 0.0
  %4020 = vmatprep.subr.mxu0 0.0
  %4021 = vmatpush1.msra.mxu0 0.0
  %4022 = vmatprep.subr.mxu0 0.0
  %4023 = vmatpush1.msra.mxu0 0.0
  %4024 = vmatprep.subr.mxu0 0.0
  %4025 = vmatpush1.msra.mxu0 0.0
  %4026 = vmatprep.subr.mxu0 0.0
  %4027 = vmatpush1.msra.mxu0 0.0
  %4028 = vmatprep.mubr.f32.mxu0 0.0
  %4029 = vmatmul.mubr.f32.gmra.mrb[0].mxu0 %v3962
  %v4030 = vpop.f32.mrb[0].mxu0
  %v4031 = vadd.f32 %v3960, %v4030
  %v4032 = vpop.f32.mrb[0].mxu0
  %4033 = vdwg.mxu0
  %v4034 = vadd.f32 %v4031, %v141
  %4035 = vrot.lane.b32.xlu0 %v3693, 33
  %v4036 = vpop.permute.xlu0 %4035
  %v4038 = vsel %vm2707, %v4034, %v4036
  %v4040 = vsel %vm2709, %v4038, 0
  %4042 = vmatprep.subr.mxu0 0.0
  %4043 = vmatpush1.msra.mxu0 %v104
  %4044 = vmatprep.subr.mxu0 0.0
  %4045 = vmatpush1.msra.mxu0 %v105
  %4046 = vmatprep.subr.mxu0 0.0
  %4047 = vmatpush1.msra.mxu0 %v106
  %4048 = vmatprep.subr.mxu0 0.0
  %4049 = vmatpush1.msra.mxu0 %v107
  %4050 = vmatprep.subr.mxu0 0.0
  %4051 = vmatpush1.msra.mxu0 %v2714
  %4052 = vmatprep.subr.mxu0 0.0
  %4053 = vmatpush1.msra.mxu0 0.0
  %4054 = vmatprep.subr.mxu0 0.0
  %4055 = vmatpush1.msra.mxu0 0.0
  %4056 = vmatprep.subr.mxu0 0.0
  %4057 = vmatpush1.msra.mxu0 0.0
  %4058 = vmatprep.subr.mxu0 0.0
  %4059 = vmatpush1.msra.mxu0 0.0
  %4060 = vmatprep.subr.mxu0 0.0
  %4061 = vmatpush1.msra.mxu0 0.0
  %4062 = vmatprep.subr.mxu0 0.0
  %4063 = vmatpush1.msra.mxu0 0.0
  %4064 = vmatprep.subr.mxu0 0.0
  %4065 = vmatpush1.msra.mxu0 0.0
  %4066 = vmatprep.subr.mxu0 0.0
  %4067 = vmatpush1.msra.mxu0 0.0
  %4068 = vmatprep.subr.mxu0 0.0
  %4069 = vmatpush1.msra.mxu0 0.0
  %4070 = vmatprep.subr.mxu0 0.0
  %4071 = vmatpush1.msra.mxu0 0.0
  %4072 = vmatprep.subr.mxu0 0.0
  %4073 = vmatpush1.msra.mxu0 0.0
  %4074 = vmatprep.subr.mxu0 0.0
  %4075 = vmatpush1.msra.mxu0 0.0
  %4076 = vmatprep.subr.mxu0 0.0
  %4077 = vmatpush1.msra.mxu0 0.0
  %4078 = vmatprep.subr.mxu0 0.0
  %4079 = vmatpush1.msra.mxu0 0.0
  %4080 = vmatprep.subr.mxu0 0.0
  %4081 = vmatpush1.msra.mxu0 0.0
  %4082 = vmatprep.subr.mxu0 0.0
  %4083 = vmatpush1.msra.mxu0 0.0
  %4084 = vmatprep.subr.mxu0 0.0
  %4085 = vmatpush1.msra.mxu0 0.0
  %4086 = vmatprep.subr.mxu0 0.0
  %4087 = vmatpush1.msra.mxu0 0.0
  %4088 = vmatprep.subr.mxu0 0.0
  %4089 = vmatpush1.msra.mxu0 0.0
  %4090 = vmatprep.subr.mxu0 0.0
  %4091 = vmatpush1.msra.mxu0 0.0
  %4092 = vmatprep.subr.mxu0 0.0
  %4093 = vmatpush1.msra.mxu0 0.0
  %4094 = vmatprep.subr.mxu0 0.0
  %4095 = vmatpush1.msra.mxu0 0.0
  %4096 = vmatprep.subr.mxu0 0.0
  %4097 = vmatpush1.msra.mxu0 0.0
  %4098 = vmatprep.subr.mxu0 0.0
  %4099 = vmatpush1.msra.mxu0 0.0
  %4100 = vmatprep.subr.mxu0 0.0
  %4101 = vmatpush1.msra.mxu0 0.0
  %4102 = vmatprep.subr.mxu0 0.0
  %4103 = vmatpush1.msra.mxu0 0.0
  %4104 = vmatprep.subr.mxu0 0.0
  %4105 = vmatpush1.msra.mxu0 0.0
  %4106 = vmatprep.mubr.f32.mxu0 0.0
  %4107 = vmatmul.mubr.f32.gmra.mrb[0].mxu0 %v4040
  %v4108 = vpop.f32.mrb[0].mxu0
  %v4109 = vadd.f32 %v135, %v4108
  %v4110 = vpop.f32.mrb[0].mxu0
  %4111 = vdwg.mxu0
  %v4112 = vxor.u32 %v4109, 2147483648
  %v4113 = vmul.f32 %v4112, 1.442695
  %v4114 = vpow.pop %v4113
  %v4115 = vadd.f32 %v4114, 1.0
  %v4116 = vrcp.pop %v4115
  %v4117 = vmul.f32 1.0, %v4116
  %v4118 = vtanh.pop %v4109
  %v4119 = vmul.f32 %v4117, %v3687
  %4121 = vrot.lane.b32.xlu0 %v4118, 64
  %v4122 = vpop.permute.xlu0 %4121
  %v4124 = vmul.f32 %v4117, %v4122
  %4126 = vrot.lane.b32.xlu0 %v4124, 32
  %v4127 = vpop.permute.xlu0 %4126
  %v4129 = vadd.f32 %v4119, %v4127
  %v4130 = vtanh.pop %v4129
  %4132 = vrot.lane.b32.xlu0 %v4130, 64
  %v4133 = vpop.permute.xlu0 %4132
  %v4135 = vmul.f32 %v4117, %v4133
  %4137 = vrot.lane.b32.xlu0 %v4135, 32
  %v4138 = vpop.permute.xlu0 %4137
  %v4140 = vsel %vm207, %v4138, %v4129
  %v4142 = vsel %vm2369, %v4140, 0
  %4144 = vmatprep.subr.mxu0 0.0
  %4145 = vmatpush1.msra.mxu0 %v89
  %4146 = vmatprep.subr.mxu0 0.0
  %4147 = vmatpush1.msra.mxu0 %v90
  %4148 = vmatprep.subr.mxu0 0.0
  %4149 = vmatpush1.msra.mxu0 %v91
  %4150 = vmatprep.subr.mxu0 0.0
  %4151 = vmatpush1.msra.mxu0 %v92
  %4152 = vmatprep.subr.mxu0 0.0
  %4153 = vmatpush1.msra.mxu0 %v93
  %4154 = vmatprep.subr.mxu0 0.0
  %4155 = vmatpush1.msra.mxu0 %v94
  %4156 = vmatprep.subr.mxu0 0.0
  %4157 = vmatpush1.msra.mxu0 %v95
  %4158 = vmatprep.subr.mxu0 0.0
  %4159 = vmatpush1.msra.mxu0 %v96
  %4160 = vmatprep.subr.mxu0 0.0
  %4161 = vmatpush1.msra.mxu0 0.0
  %4162 = vmatprep.subr.mxu0 0.0
  %4163 = vmatpush1.msra.mxu0 0.0
  %4164 = vmatprep.subr.mxu0 0.0
  %4165 = vmatpush1.msra.mxu0 0.0
  %4166 = vmatprep.subr.mxu0 0.0
  %4167 = vmatpush1.msra.mxu0 0.0
  %4168 = vmatprep.subr.mxu0 0.0
  %4169 = vmatpush1.msra.mxu0 0.0
  %4170 = vmatprep.subr.mxu0 0.0
  %4171 = vmatpush1.msra.mxu0 0.0
  %4172 = vmatprep.subr.mxu0 0.0
  %4173 = vmatpush1.msra.mxu0 0.0
  %4174 = vmatprep.subr.mxu0 0.0
  %4175 = vmatpush1.msra.mxu0 0.0
  %4176 = vmatprep.subr.mxu0 0.0
  %4177 = vmatpush1.msra.mxu0 0.0
  %4178 = vmatprep.subr.mxu0 0.0
  %4179 = vmatpush1.msra.mxu0 0.0
  %4180 = vmatprep.subr.mxu0 0.0
  %4181 = vmatpush1.msra.mxu0 0.0
  %4182 = vmatprep.subr.mxu0 0.0
  %4183 = vmatpush1.msra.mxu0 0.0
  %4184 = vmatprep.subr.mxu0 0.0
  %4185 = vmatpush1.msra.mxu0 0.0
  %4186 = vmatprep.subr.mxu0 0.0
  %4187 = vmatpush1.msra.mxu0 0.0
  %4188 = vmatprep.subr.mxu0 0.0
  %4189 = vmatpush1.msra.mxu0 0.0
  %4190 = vmatprep.subr.mxu0 0.0
  %4191 = vmatpush1.msra.mxu0 0.0
  %4192 = vmatprep.subr.mxu0 0.0
  %4193 = vmatpush1.msra.mxu0 0.0
  %4194 = vmatprep.subr.mxu0 0.0
  %4195 = vmatpush1.msra.mxu0 0.0
  %4196 = vmatprep.subr.mxu0 0.0
  %4197 = vmatpush1.msra.mxu0 0.0
  %4198 = vmatprep.subr.mxu0 0.0
  %4199 = vmatpush1.msra.mxu0 0.0
  %4200 = vmatprep.subr.mxu0 0.0
  %4201 = vmatpush1.msra.mxu0 0.0
  %4202 = vmatprep.subr.mxu0 0.0
  %4203 = vmatpush1.msra.mxu0 0.0
  %4204 = vmatprep.subr.mxu0 0.0
  %4205 = vmatpush1.msra.mxu0 0.0
  %4206 = vmatprep.subr.mxu0 0.0
  %4207 = vmatpush1.msra.mxu0 0.0
  %4208 = vmatprep.mubr.f32.mxu0 0.0
  %4209 = vmatmul.mubr.f32.gmra.mrb[0].mxu0 %v4142
  %v4210 = vpop.f32.mrb[0].mxu0
  %v4211 = vadd.f32 0.0, %v4210
  %v4212 = vpop.f32.mrb[0].mxu0
  %4213 = vdwg.mxu0
  %v4216 = vunpack.c.l.s4 1966171168
  %v4217 = vunpack.c.0.s8 %v4216
  %v4218 = vlaneseq
  %v4219 = vshrl.u32 %v4218, 7
  %v4220 = vsub.s32 %v4217, %v4219
  %v4221 = vrot.slane %v4211, %v4220
  %v4222 = vcombine.high %v4221, %v4221
  %v4224 = vunpack.c.l.s4 1966171168
  %v4225 = vunpack.c.0.s8 %v4224
  %v4226 = vlaneseq
  %v4227 = vshrl.u32 %v4226, 7
  %v4228 = vsub.s32 %v4225, %v4227
  %v4229 = vrot.slane %v4221, %v4228
  %v4231 = vunpack.c.l.s4 1966171168
  %v4232 = vunpack.c.0.s8 %v4231
  %v4233 = vlaneseq
  %v4234 = vshrl.u32 %v4233, 7
  %v4235 = vsub.s32 %v4232, %v4234
  %v4236 = vrot.slane %v4222, %v4235
  %v4237 = vcombine.high %v4229, %v4229
  %v4238 = vcombine.high %v4236, %v4236
  %v4239 = vlaneseq
  %v4240 = vshrl.u32 %v4239, 7
  %v4241 = vsub.s32 0, %v4240
  %v4242 = vrot.slane %v4229, %v4241
  %v4243 = vlaneseq
  %v4244 = vshrl.u32 %v4243, 7
  %v4245 = vsub.s32 0, %v4244
  %v4246 = vrot.slane %v4236, %v4245
  %v4247 = vlaneseq
  %v4248 = vshrl.u32 %v4247, 7
  %v4249 = vsub.s32 0, %v4248
  %v4250 = vrot.slane %v4237, %v4249
  %v4251 = vlaneseq
  %v4252 = vshrl.u32 %v4251, 7
  %v4253 = vsub.s32 0, %v4252
  %v4254 = vrot.slane %v4238, %v4253
  %v4259 = vadd.f32 %v2351, %v4242
  %v4260 = vadd.f32 %v2356, %v4246
  %v4261 = vadd.f32 %v2361, %v4250
  %v4262 = vadd.f32 %v2366, %v4254
  %v4263 = vtanh.pop %v4259
  %v4264 = vtanh.pop %v4260
  %v4265 = vtanh.pop %v4261
  %v4266 = vtanh.pop %v4262
  %v4267 = vmul.f32 %v4263, %v159
  %v4268 = vmul.f32 %v4264, %v159
  %v4269 = vmul.f32 %v4265, %v159
  %v4270 = vmul.f32 %v4266, %v159
  %v4271 = vsel %vm207, %v4267, 0.0
  %4272 = vadd.xlane.f32.xlu0 %v4271
  %v4273 = vpop.xlane.xlu0 %4272
  %v4274 = vsel %vm207, %v4268, 0.0
  %4275 = vadd.xlane.f32.xlu0 %v4274
  %v4276 = vpop.xlane.xlu0 %4275
  %v4277 = vsel %vm207, %v4269, 0.0
  %4278 = vadd.xlane.f32.xlu0 %v4277
  %v4279 = vpop.xlane.xlu0 %4278
  %v4280 = vsel %vm207, %v4270, 0.0
  %4281 = vadd.xlane.f32.xlu0 %v4280
  %v4282 = vpop.xlane.xlu0 %4281
  %v4283 = vadd.f32 %v4273, %v2512
  %v4284 = vadd.f32 %v4276, %v2512
  %v4285 = vadd.f32 %v4279, %v2512
  %v4286 = vadd.f32 %v4282, %v2512
  %v4287 = vrot.slane %v4283, 4
  %v4288 = vmax.f32 %v4283, %v4287
  %v4289 = vrot.slane %v4288, 2
  %v4290 = vmax.f32 %v4288, %v4289
  %v4291 = vrot.slane %v4290, 1
  %v4292 = vmax.f32 %v4290, %v4291
  %v4293 = vrot.slane %v4284, 4
  %v4294 = vmax.f32 %v4284, %v4293
  %v4295 = vrot.slane %v4294, 2
  %v4296 = vmax.f32 %v4294, %v4295
  %v4297 = vrot.slane %v4296, 1
  %v4298 = vmax.f32 %v4296, %v4297
  %v4299 = vrot.slane %v4285, 4
  %v4300 = vmax.f32 %v4285, %v4299
  %v4301 = vrot.slane %v4300, 2
  %v4302 = vmax.f32 %v4300, %v4301
  %v4303 = vrot.slane %v4302, 1
  %v4304 = vmax.f32 %v4302, %v4303
  %v4305 = vrot.slane %v4286, 4
  %v4306 = vmax.f32 %v4286, %v4305
  %v4307 = vrot.slane %v4306, 2
  %v4308 = vmax.f32 %v4306, %v4307
  %v4309 = vrot.slane %v4308, 1
  %v4310 = vmax.f32 %v4308, %v4309
  %v4311 = vsub.f32 %v4283, %v4292
  %v4312 = vsub.f32 %v4284, %v4298
  %v4313 = vsub.f32 %v4285, %v4304
  %v4314 = vsub.f32 %v4286, %v4310
  %v4315 = vmul.f32 %v4311, 1.442695
  %v4316 = vpow.pop %v4315
  %v4317 = vmul.f32 %v4312, 1.442695
  %v4318 = vpow.pop %v4317
  %v4319 = vmul.f32 %v4313, 1.442695
  %v4320 = vpow.pop %v4319
  %v4321 = vmul.f32 %v4314, 1.442695
  %v4322 = vpow.pop %v4321
  %v4323 = vrot.slane %v4316, 4
  %v4324 = vadd.f32 %v4316, %v4323
  %v4325 = vrot.slane %v4324, 2
  %v4326 = vadd.f32 %v4324, %v4325
  %v4327 = vrot.slane %v4326, 1
  %v4328 = vadd.f32 %v4326, %v4327
  %v4329 = vrot.slane %v4318, 4
  %v4330 = vadd.f32 %v4318, %v4329
  %v4331 = vrot.slane %v4330, 2
  %v4332 = vadd.f32 %v4330, %v4331
  %v4333 = vrot.slane %v4332, 1
  %v4334 = vadd.f32 %v4332, %v4333
  %v4335 = vrot.slane %v4320, 4
  %v4336 = vadd.f32 %v4320, %v4335
  %v4337 = vrot.slane %v4336, 2
  %v4338 = vadd.f32 %v4336, %v4337
  %v4339 = vrot.slane %v4338, 1
  %v4340 = vadd.f32 %v4338, %v4339
  %v4341 = vrot.slane %v4322, 4
  %v4342 = vadd.f32 %v4322, %v4341
  %v4343 = vrot.slane %v4342, 2
  %v4344 = vadd.f32 %v4342, %v4343
  %v4345 = vrot.slane %v4344, 1
  %v4346 = vadd.f32 %v4344, %v4345
  %v4347 = vrcp.pop %v4328
  %v4348 = vrcp.pop %v4334
  %v4349 = vrcp.pop %v4340
  %v4350 = vrcp.pop %v4346
  %v4351 = vmul.f32 %v4316, %v4347
  %v4352 = vmul.f32 %v4318, %v4348
  %v4353 = vmul.f32 %v4320, %v4349
  %v4354 = vmul.f32 %v4322, %v4350
  %v4355 = vmul.f32 %v4351, %v2254
  %v4356 = vmul.f32 %v4352, %v2255
  %v4357 = vmul.f32 %v4353, %v2256
  %v4358 = vmul.f32 %v4354, %v2257
  %v4359 = vsel %vm2589, %v4355, 0.0
  %v4360 = vrot.slane %v4359, 4
  %v4361 = vadd.f32 %v4359, %v4360
  %v4362 = vrot.slane %v4361, 2
  %v4363 = vadd.f32 %v4361, %v4362
  %v4364 = vrot.slane %v4363, 1
  %v4365 = vadd.f32 %v4363, %v4364
  %v4366 = vsel %vm2589, %v4356, 0.0
  %v4367 = vrot.slane %v4366, 4
  %v4368 = vadd.f32 %v4366, %v4367
  %v4369 = vrot.slane %v4368, 2
  %v4370 = vadd.f32 %v4368, %v4369
  %v4371 = vrot.slane %v4370, 1
  %v4372 = vadd.f32 %v4370, %v4371
  %v4373 = vsel %vm2589, %v4357, 0.0
  %v4374 = vrot.slane %v4373, 4
  %v4375 = vadd.f32 %v4373, %v4374
  %v4376 = vrot.slane %v4375, 2
  %v4377 = vadd.f32 %v4375, %v4376
  %v4378 = vrot.slane %v4377, 1
  %v4379 = vadd.f32 %v4377, %v4378
  %v4380 = vsel %vm2589, %v4358, 0.0
  %v4381 = vrot.slane %v4380, 4
  %v4382 = vadd.f32 %v4380, %v4381
  %v4383 = vrot.slane %v4382, 2
  %v4384 = vadd.f32 %v4382, %v4383
  %v4385 = vrot.slane %v4384, 1
  %v4386 = vadd.f32 %v4384, %v4385
  %4387 = vrot.lane.b32.xlu0 %v2622, 4
  %v4388 = vpop.permute.xlu0 %4387
  %v4390 = vmul.f32 %v77, %v4388
  %v4395 = vsel %vm219, %v4372, %v4365
  %v4396 = vsel %vm221, %v4379, %v4395
  %v4397 = vsel %vm223, %v4386, %v4396
  %4398 = vrot.lane.b32.xlu0 %v4397, 32
  %v4399 = vpop.permute.xlu0 %4398
  %4401 = vrot.lane.b32.xlu0 %v4390, 124
  %v4402 = vpop.permute.xlu0 %4401
  %v4404 = vsel %vm207, %v4399, 0
  %4406 = vmatprep.subr.mxu0 0.0
  %4407 = vmatpush1.msra.mxu0 %v110
  %4408 = vmatprep.subr.mxu0 0.0
  %4409 = vmatpush1.msra.mxu0 %v111
  %4410 = vmatprep.subr.mxu0 0.0
  %4411 = vmatpush1.msra.mxu0 %v112
  %4412 = vmatprep.subr.mxu0 0.0
  %4413 = vmatpush1.msra.mxu0 %v113
  %4414 = vmatprep.subr.mxu0 0.0
  %4415 = vmatpush1.msra.mxu0 0.0
  %4416 = vmatprep.subr.mxu0 0.0
  %4417 = vmatpush1.msra.mxu0 0.0
  %4418 = vmatprep.subr.mxu0 0.0
  %4419 = vmatpush1.msra.mxu0 0.0
  %4420 = vmatprep.subr.mxu0 0.0
  %4421 = vmatpush1.msra.mxu0 0.0
  %4422 = vmatprep.subr.mxu0 0.0
  %4423 = vmatpush1.msra.mxu0 0.0
  %4424 = vmatprep.subr.mxu0 0.0
  %4425 = vmatpush1.msra.mxu0 0.0
  %4426 = vmatprep.subr.mxu0 0.0
  %4427 = vmatpush1.msra.mxu0 0.0
  %4428 = vmatprep.subr.mxu0 0.0
  %4429 = vmatpush1.msra.mxu0 0.0
  %4430 = vmatprep.subr.mxu0 0.0
  %4431 = vmatpush1.msra.mxu0 0.0
  %4432 = vmatprep.subr.mxu0 0.0
  %4433 = vmatpush1.msra.mxu0 0.0
  %4434 = vmatprep.subr.mxu0 0.0
  %4435 = vmatpush1.msra.mxu0 0.0
  %4436 = vmatprep.subr.mxu0 0.0
  %4437 = vmatpush1.msra.mxu0 0.0
  %4438 = vmatprep.subr.mxu0 0.0
  %4439 = vmatpush1.msra.mxu0 0.0
  %4440 = vmatprep.subr.mxu0 0.0
  %4441 = vmatpush1.msra.mxu0 0.0
  %4442 = vmatprep.subr.mxu0 0.0
  %4443 = vmatpush1.msra.mxu0 0.0
  %4444 = vmatprep.subr.mxu0 0.0
  %4445 = vmatpush1.msra.mxu0 0.0
  %4446 = vmatprep.subr.mxu0 0.0
  %4447 = vmatpush1.msra.mxu0 0.0
  %4448 = vmatprep.subr.mxu0 0.0
  %4449 = vmatpush1.msra.mxu0 0.0
  %4450 = vmatprep.subr.mxu0 0.0
  %4451 = vmatpush1.msra.mxu0 0.0
  %4452 = vmatprep.subr.mxu0 0.0
  %4453 = vmatpush1.msra.mxu0 0.0
  %4454 = vmatprep.subr.mxu0 0.0
  %4455 = vmatpush1.msra.mxu0 0.0
  %4456 = vmatprep.subr.mxu0 0.0
  %4457 = vmatpush1.msra.mxu0 0.0
  %4458 = vmatprep.subr.mxu0 0.0
  %4459 = vmatpush1.msra.mxu0 0.0
  %4460 = vmatprep.subr.mxu0 0.0
  %4461 = vmatpush1.msra.mxu0 0.0
  %4462 = vmatprep.subr.mxu0 0.0
  %4463 = vmatpush1.msra.mxu0 0.0
  %4464 = vmatprep.subr.mxu0 0.0
  %4465 = vmatpush1.msra.mxu0 0.0
  %4466 = vmatprep.subr.mxu0 0.0
  %4467 = vmatpush1.msra.mxu0 0.0
  %4468 = vmatprep.subr.mxu0 0.0
  %4469 = vmatpush1.msra.mxu0 0.0
  %4470 = vmatprep.mubr.f32.mxu0 0.0
  %4471 = vmatmul.mubr.f32.gmra.mrb[0].mxu0 %v4404
  %v4472 = vpop.f32.mrb[0].mxu0
  %v4473 = vadd.f32 %v4402, %v4472
  %v4474 = vpop.f32.mrb[0].mxu0
  %4475 = vdwg.mxu0
  %v4476 = vadd.f32 %v4473, %v141
  %4477 = vrot.lane.b32.xlu0 %v4135, 33
  %v4478 = vpop.permute.xlu0 %4477
  %v4480 = vsel %vm2707, %v4476, %v4478
  %v4482 = vsel %vm2709, %v4480, 0
  %4484 = vmatprep.subr.mxu0 0.0
  %4485 = vmatpush1.msra.mxu0 %v104
  %4486 = vmatprep.subr.mxu0 0.0
  %4487 = vmatpush1.msra.mxu0 %v105
  %4488 = vmatprep.subr.mxu0 0.0
  %4489 = vmatpush1.msra.mxu0 %v106
  %4490 = vmatprep.subr.mxu0 0.0
  %4491 = vmatpush1.msra.mxu0 %v107
  %4492 = vmatprep.subr.mxu0 0.0
  %4493 = vmatpush1.msra.mxu0 %v2714
  %4494 = vmatprep.subr.mxu0 0.0
  %4495 = vmatpush1.msra.mxu0 0.0
  %4496 = vmatprep.subr.mxu0 0.0
  %4497 = vmatpush1.msra.mxu0 0.0
  %4498 = vmatprep.subr.mxu0 0.0
  %4499 = vmatpush1.msra.mxu0 0.0
  %4500 = vmatprep.subr.mxu0 0.0
  %4501 = vmatpush1.msra.mxu0 0.0
  %4502 = vmatprep.subr.mxu0 0.0
  %4503 = vmatpush1.msra.mxu0 0.0
  %4504 = vmatprep.subr.mxu0 0.0
  %4505 = vmatpush1.msra.mxu0 0.0
  %4506 = vmatprep.subr.mxu0 0.0
  %4507 = vmatpush1.msra.mxu0 0.0
  %4508 = vmatprep.subr.mxu0 0.0
  %4509 = vmatpush1.msra.mxu0 0.0
  %4510 = vmatprep.subr.mxu0 0.0
  %4511 = vmatpush1.msra.mxu0 0.0
  %4512 = vmatprep.subr.mxu0 0.0
  %4513 = vmatpush1.msra.mxu0 0.0
  %4514 = vmatprep.subr.mxu0 0.0
  %4515 = vmatpush1.msra.mxu0 0.0
  %4516 = vmatprep.subr.mxu0 0.0
  %4517 = vmatpush1.msra.mxu0 0.0
  %4518 = vmatprep.subr.mxu0 0.0
  %4519 = vmatpush1.msra.mxu0 0.0
  %4520 = vmatprep.subr.mxu0 0.0
  %4521 = vmatpush1.msra.mxu0 0.0
  %4522 = vmatprep.subr.mxu0 0.0
  %4523 = vmatpush1.msra.mxu0 0.0
  %4524 = vmatprep.subr.mxu0 0.0
  %4525 = vmatpush1.msra.mxu0 0.0
  %4526 = vmatprep.subr.mxu0 0.0
  %4527 = vmatpush1.msra.mxu0 0.0
  %4528 = vmatprep.subr.mxu0 0.0
  %4529 = vmatpush1.msra.mxu0 0.0
  %4530 = vmatprep.subr.mxu0 0.0
  %4531 = vmatpush1.msra.mxu0 0.0
  %4532 = vmatprep.subr.mxu0 0.0
  %4533 = vmatpush1.msra.mxu0 0.0
  %4534 = vmatprep.subr.mxu0 0.0
  %4535 = vmatpush1.msra.mxu0 0.0
  %4536 = vmatprep.subr.mxu0 0.0
  %4537 = vmatpush1.msra.mxu0 0.0
  %4538 = vmatprep.subr.mxu0 0.0
  %4539 = vmatpush1.msra.mxu0 0.0
  %4540 = vmatprep.subr.mxu0 0.0
  %4541 = vmatpush1.msra.mxu0 0.0
  %4542 = vmatprep.subr.mxu0 0.0
  %4543 = vmatpush1.msra.mxu0 0.0
  %4544 = vmatprep.subr.mxu0 0.0
  %4545 = vmatpush1.msra.mxu0 0.0
  %4546 = vmatprep.subr.mxu0 0.0
  %4547 = vmatpush1.msra.mxu0 0.0
  %4548 = vmatprep.mubr.f32.mxu0 0.0
  %4549 = vmatmul.mubr.f32.gmra.mrb[0].mxu0 %v4482
  %v4550 = vpop.f32.mrb[0].mxu0
  %v4551 = vadd.f32 %v135, %v4550
  %v4552 = vpop.f32.mrb[0].mxu0
  %4553 = vdwg.mxu0
  %v4554 = vxor.u32 %v4551, 2147483648
  %v4555 = vmul.f32 %v4554, 1.442695
  %v4556 = vpow.pop %v4555
  %v4557 = vadd.f32 %v4556, 1.0
  %v4558 = vrcp.pop %v4557
  %v4559 = vmul.f32 1.0, %v4558
  %v4560 = vtanh.pop %v4551
  %v4561 = vmul.f32 %v4559, %v4129
  %4563 = vrot.lane.b32.xlu0 %v4560, 64
  %v4564 = vpop.permute.xlu0 %4563
  %v4566 = vmul.f32 %v4559, %v4564
  %4568 = vrot.lane.b32.xlu0 %v4566, 32
  %v4569 = vpop.permute.xlu0 %4568
  %v4571 = vadd.f32 %v4561, %v4569
  %v4572 = vtanh.pop %v4571
  %4574 = vrot.lane.b32.xlu0 %v4572, 64
  %v4575 = vpop.permute.xlu0 %4574
  %v4577 = vmul.f32 %v4559, %v4575
  %4579 = vrot.lane.b32.xlu0 %v4577, 32
  %v4580 = vpop.permute.xlu0 %4579
  %v4582 = vsel %vm207, %v4580, %v4571
  %v4584 = vsel %vm2369, %v4582, 0
  %4586 = vmatprep.subr.mxu0 0.0
  %4587 = vmatpush1.msra.mxu0 %v89
  %4588 = vmatprep.subr.mxu0 0.0
  %4589 = vmatpush1.msra.mxu0 %v90
  %4590 = vmatprep.subr.mxu0 0.0
  %4591 = vmatpush1.msra.mxu0 %v91
  %4592 = vmatprep.subr.mxu0 0.0
  %4593 = vmatpush1.msra.mxu0 %v92
  %4594 = vmatprep.subr.mxu0 0.0
  %4595 = vmatpush1.msra.mxu0 %v93
  %4596 = vmatprep.subr.mxu0 0.0
  %4597 = vmatpush1.msra.mxu0 %v94
  %4598 = vmatprep.subr.mxu0 0.0
  %4599 = vmatpush1.msra.mxu0 %v95
  %4600 = vmatprep.subr.mxu0 0.0
  %4601 = vmatpush1.msra.mxu0 %v96
  %4602 = vmatprep.subr.mxu0 0.0
  %4603 = vmatpush1.msra.mxu0 0.0
  %4604 = vmatprep.subr.mxu0 0.0
  %4605 = vmatpush1.msra.mxu0 0.0
  %4606 = vmatprep.subr.mxu0 0.0
  %4607 = vmatpush1.msra.mxu0 0.0
  %4608 = vmatprep.subr.mxu0 0.0
  %4609 = vmatpush1.msra.mxu0 0.0
  %4610 = vmatprep.subr.mxu0 0.0
  %4611 = vmatpush1.msra.mxu0 0.0
  %4612 = vmatprep.subr.mxu0 0.0
  %4613 = vmatpush1.msra.mxu0 0.0
  %4614 = vmatprep.subr.mxu0 0.0
  %4615 = vmatpush1.msra.mxu0 0.0
  %4616 = vmatprep.subr.mxu0 0.0
  %4617 = vmatpush1.msra.mxu0 0.0
  %4618 = vmatprep.subr.mxu0 0.0
  %4619 = vmatpush1.msra.mxu0 0.0
  %4620 = vmatprep.subr.mxu0 0.0
  %4621 = vmatpush1.msra.mxu0 0.0
  %4622 = vmatprep.subr.mxu0 0.0
  %4623 = vmatpush1.msra.mxu0 0.0
  %4624 = vmatprep.subr.mxu0 0.0
  %4625 = vmatpush1.msra.mxu0 0.0
  %4626 = vmatprep.subr.mxu0 0.0
  %4627 = vmatpush1.msra.mxu0 0.0
  %4628 = vmatprep.subr.mxu0 0.0
  %4629 = vmatpush1.msra.mxu0 0.0
  %4630 = vmatprep.subr.mxu0 0.0
  %4631 = vmatpush1.msra.mxu0 0.0
  %4632 = vmatprep.subr.mxu0 0.0
  %4633 = vmatpush1.msra.mxu0 0.0
  %4634 = vmatprep.subr.mxu0 0.0
  %4635 = vmatpush1.msra.mxu0 0.0
  %4636 = vmatprep.subr.mxu0 0.0
  %4637 = vmatpush1.msra.mxu0 0.0
  %4638 = vmatprep.subr.mxu0 0.0
  %4639 = vmatpush1.msra.mxu0 0.0
  %4640 = vmatprep.subr.mxu0 0.0
  %4641 = vmatpush1.msra.mxu0 0.0
  %4642 = vmatprep.subr.mxu0 0.0
  %4643 = vmatpush1.msra.mxu0 0.0
  %4644 = vmatprep.subr.mxu0 0.0
  %4645 = vmatpush1.msra.mxu0 0.0
  %4646 = vmatprep.subr.mxu0 0.0
  %4647 = vmatpush1.msra.mxu0 0.0
  %4648 = vmatprep.subr.mxu0 0.0
  %4649 = vmatpush1.msra.mxu0 0.0
  %4650 = vmatprep.mubr.f32.mxu0 0.0
  %4651 = vmatmul.mubr.f32.gmra.mrb[0].mxu0 %v4584
  %v4652 = vpop.f32.mrb[0].mxu0
  %v4653 = vadd.f32 0.0, %v4652
  %v4654 = vpop.f32.mrb[0].mxu0
  %4655 = vdwg.mxu0
  %v4658 = vunpack.c.l.s4 1966171168
  %v4659 = vunpack.c.0.s8 %v4658
  %v4660 = vlaneseq
  %v4661 = vshrl.u32 %v4660, 7
  %v4662 = vsub.s32 %v4659, %v4661
  %v4663 = vrot.slane %v4653, %v4662
  %v4664 = vcombine.high %v4663, %v4663
  %v4666 = vunpack.c.l.s4 1966171168
  %v4667 = vunpack.c.0.s8 %v4666
  %v4668 = vlaneseq
  %v4669 = vshrl.u32 %v4668, 7
  %v4670 = vsub.s32 %v4667, %v4669
  %v4671 = vrot.slane %v4663, %v4670
  %v4673 = vunpack.c.l.s4 1966171168
  %v4674 = vunpack.c.0.s8 %v4673
  %v4675 = vlaneseq
  %v4676 = vshrl.u32 %v4675, 7
  %v4677 = vsub.s32 %v4674, %v4676
  %v4678 = vrot.slane %v4664, %v4677
  %v4679 = vcombine.high %v4671, %v4671
  %v4680 = vcombine.high %v4678, %v4678
  %v4681 = vlaneseq
  %v4682 = vshrl.u32 %v4681, 7
  %v4683 = vsub.s32 0, %v4682
  %v4684 = vrot.slane %v4671, %v4683
  %v4685 = vlaneseq
  %v4686 = vshrl.u32 %v4685, 7
  %v4687 = vsub.s32 0, %v4686
  %v4688 = vrot.slane %v4678, %v4687
  %v4689 = vlaneseq
  %v4690 = vshrl.u32 %v4689, 7
  %v4691 = vsub.s32 0, %v4690
  %v4692 = vrot.slane %v4679, %v4691
  %v4693 = vlaneseq
  %v4694 = vshrl.u32 %v4693, 7
  %v4695 = vsub.s32 0, %v4694
  %v4696 = vrot.slane %v4680, %v4695
  %v4701 = vadd.f32 %v2351, %v4684
  %v4702 = vadd.f32 %v2356, %v4688
  %v4703 = vadd.f32 %v2361, %v4692
  %v4704 = vadd.f32 %v2366, %v4696
  %v4705 = vtanh.pop %v4701
  %v4706 = vtanh.pop %v4702
  %v4707 = vtanh.pop %v4703
  %v4708 = vtanh.pop %v4704
  %v4709 = vmul.f32 %v4705, %v159
  %v4710 = vmul.f32 %v4706, %v159
  %v4711 = vmul.f32 %v4707, %v159
  %v4712 = vmul.f32 %v4708, %v159
  %v4713 = vsel %vm207, %v4709, 0.0
  %4714 = vadd.xlane.f32.xlu0 %v4713
  %v4715 = vpop.xlane.xlu0 %4714
  %v4716 = vsel %vm207, %v4710, 0.0
  %4717 = vadd.xlane.f32.xlu0 %v4716
  %v4718 = vpop.xlane.xlu0 %4717
  %v4719 = vsel %vm207, %v4711, 0.0
  %4720 = vadd.xlane.f32.xlu0 %v4719
  %v4721 = vpop.xlane.xlu0 %4720
  %v4722 = vsel %vm207, %v4712, 0.0
  %4723 = vadd.xlane.f32.xlu0 %v4722
  %v4724 = vpop.xlane.xlu0 %4723
  %v4725 = vadd.f32 %v4715, %v2512
  %v4726 = vadd.f32 %v4718, %v2512
  %v4727 = vadd.f32 %v4721, %v2512
  %v4728 = vadd.f32 %v4724, %v2512
  %v4729 = vrot.slane %v4725, 4
  %v4730 = vmax.f32 %v4725, %v4729
  %v4731 = vrot.slane %v4730, 2
  %v4732 = vmax.f32 %v4730, %v4731
  %v4733 = vrot.slane %v4732, 1
  %v4734 = vmax.f32 %v4732, %v4733
  %v4735 = vrot.slane %v4726, 4
  %v4736 = vmax.f32 %v4726, %v4735
  %v4737 = vrot.slane %v4736, 2
  %v4738 = vmax.f32 %v4736, %v4737
  %v4739 = vrot.slane %v4738, 1
  %v4740 = vmax.f32 %v4738, %v4739
  %v4741 = vrot.slane %v4727, 4
  %v4742 = vmax.f32 %v4727, %v4741
  %v4743 = vrot.slane %v4742, 2
  %v4744 = vmax.f32 %v4742, %v4743
  %v4745 = vrot.slane %v4744, 1
  %v4746 = vmax.f32 %v4744, %v4745
  %v4747 = vrot.slane %v4728, 4
  %v4748 = vmax.f32 %v4728, %v4747
  %v4749 = vrot.slane %v4748, 2
  %v4750 = vmax.f32 %v4748, %v4749
  %v4751 = vrot.slane %v4750, 1
  %v4752 = vmax.f32 %v4750, %v4751
  %v4753 = vsub.f32 %v4725, %v4734
  %v4754 = vsub.f32 %v4726, %v4740
  %v4755 = vsub.f32 %v4727, %v4746
  %v4756 = vsub.f32 %v4728, %v4752
  %v4757 = vmul.f32 %v4753, 1.442695
  %v4758 = vpow.pop %v4757
  %v4759 = vmul.f32 %v4754, 1.442695
  %v4760 = vpow.pop %v4759
  %v4761 = vmul.f32 %v4755, 1.442695
  %v4762 = vpow.pop %v4761
  %v4763 = vmul.f32 %v4756, 1.442695
  %v4764 = vpow.pop %v4763
  %v4765 = vrot.slane %v4758, 4
  %v4766 = vadd.f32 %v4758, %v4765
  %v4767 = vrot.slane %v4766, 2
  %v4768 = vadd.f32 %v4766, %v4767
  %v4769 = vrot.slane %v4768, 1
  %v4770 = vadd.f32 %v4768, %v4769
  %v4771 = vrot.slane %v4760, 4
  %v4772 = vadd.f32 %v4760, %v4771
  %v4773 = vrot.slane %v4772, 2
  %v4774 = vadd.f32 %v4772, %v4773
  %v4775 = vrot.slane %v4774, 1
  %v4776 = vadd.f32 %v4774, %v4775
  %v4777 = vrot.slane %v4762, 4
  %v4778 = vadd.f32 %v4762, %v4777
  %v4779 = vrot.slane %v4778, 2
  %v4780 = vadd.f32 %v4778, %v4779
  %v4781 = vrot.slane %v4780, 1
  %v4782 = vadd.f32 %v4780, %v4781
  %v4783 = vrot.slane %v4764, 4
  %v4784 = vadd.f32 %v4764, %v4783
  %v4785 = vrot.slane %v4784, 2
  %v4786 = vadd.f32 %v4784, %v4785
  %v4787 = vrot.slane %v4786, 1
  %v4788 = vadd.f32 %v4786, %v4787
  %v4789 = vrcp.pop %v4770
  %v4790 = vrcp.pop %v4776
  %v4791 = vrcp.pop %v4782
  %v4792 = vrcp.pop %v4788
  %v4793 = vmul.f32 %v4758, %v4789
  %v4794 = vmul.f32 %v4760, %v4790
  %v4795 = vmul.f32 %v4762, %v4791
  %v4796 = vmul.f32 %v4764, %v4792
  %v4797 = vmul.f32 %v4793, %v2254
  %v4798 = vmul.f32 %v4794, %v2255
  %v4799 = vmul.f32 %v4795, %v2256
  %v4800 = vmul.f32 %v4796, %v2257
  %v4801 = vsel %vm2589, %v4797, 0.0
  %v4802 = vrot.slane %v4801, 4
  %v4803 = vadd.f32 %v4801, %v4802
  %v4804 = vrot.slane %v4803, 2
  %v4805 = vadd.f32 %v4803, %v4804
  %v4806 = vrot.slane %v4805, 1
  %v4807 = vadd.f32 %v4805, %v4806
  %v4808 = vsel %vm2589, %v4798, 0.0
  %v4809 = vrot.slane %v4808, 4
  %v4810 = vadd.f32 %v4808, %v4809
  %v4811 = vrot.slane %v4810, 2
  %v4812 = vadd.f32 %v4810, %v4811
  %v4813 = vrot.slane %v4812, 1
  %v4814 = vadd.f32 %v4812, %v4813
  %v4815 = vsel %vm2589, %v4799, 0.0
  %v4816 = vrot.slane %v4815, 4
  %v4817 = vadd.f32 %v4815, %v4816
  %v4818 = vrot.slane %v4817, 2
  %v4819 = vadd.f32 %v4817, %v4818
  %v4820 = vrot.slane %v4819, 1
  %v4821 = vadd.f32 %v4819, %v4820
  %v4822 = vsel %vm2589, %v4800, 0.0
  %v4823 = vrot.slane %v4822, 4
  %v4824 = vadd.f32 %v4822, %v4823
  %v4825 = vrot.slane %v4824, 2
  %v4826 = vadd.f32 %v4824, %v4825
  %v4827 = vrot.slane %v4826, 1
  %v4828 = vadd.f32 %v4826, %v4827
  %4829 = vrot.lane.b32.xlu0 %v2622, 5
  %v4830 = vpop.permute.xlu0 %4829
  %v4832 = vmul.f32 %v77, %v4830
  %v4837 = vsel %vm219, %v4814, %v4807
  %v4838 = vsel %vm221, %v4821, %v4837
  %v4839 = vsel %vm223, %v4828, %v4838
  %4840 = vrot.lane.b32.xlu0 %v4839, 32
  %v4841 = vpop.permute.xlu0 %4840
  %4843 = vrot.lane.b32.xlu0 %v4832, 123
  %v4844 = vpop.permute.xlu0 %4843
  %v4846 = vsel %vm207, %v4841, 0
  %4848 = vmatprep.subr.mxu0 0.0
  %4849 = vmatpush1.msra.mxu0 %v110
  %4850 = vmatprep.subr.mxu0 0.0
  %4851 = vmatpush1.msra.mxu0 %v111
  %4852 = vmatprep.subr.mxu0 0.0
  %4853 = vmatpush1.msra.mxu0 %v112
  %4854 = vmatprep.subr.mxu0 0.0
  %4855 = vmatpush1.msra.mxu0 %v113
  %4856 = vmatprep.subr.mxu0 0.0
  %4857 = vmatpush1.msra.mxu0 0.0
  %4858 = vmatprep.subr.mxu0 0.0
  %4859 = vmatpush1.msra.mxu0 0.0
  %4860 = vmatprep.subr.mxu0 0.0
  %4861 = vmatpush1.msra.mxu0 0.0
  %4862 = vmatprep.subr.mxu0 0.0
  %4863 = vmatpush1.msra.mxu0 0.0
  %4864 = vmatprep.subr.mxu0 0.0
  %4865 = vmatpush1.msra.mxu0 0.0
  %4866 = vmatprep.subr.mxu0 0.0
  %4867 = vmatpush1.msra.mxu0 0.0
  %4868 = vmatprep.subr.mxu0 0.0
  %4869 = vmatpush1.msra.mxu0 0.0
  %4870 = vmatprep.subr.mxu0 0.0
  %4871 = vmatpush1.msra.mxu0 0.0
  %4872 = vmatprep.subr.mxu0 0.0
  %4873 = vmatpush1.msra.mxu0 0.0
  %4874 = vmatprep.subr.mxu0 0.0
  %4875 = vmatpush1.msra.mxu0 0.0
  %4876 = vmatprep.subr.mxu0 0.0
  %4877 = vmatpush1.msra.mxu0 0.0
  %4878 = vmatprep.subr.mxu0 0.0
  %4879 = vmatpush1.msra.mxu0 0.0
  %4880 = vmatprep.subr.mxu0 0.0
  %4881 = vmatpush1.msra.mxu0 0.0
  %4882 = vmatprep.subr.mxu0 0.0
  %4883 = vmatpush1.msra.mxu0 0.0
  %4884 = vmatprep.subr.mxu0 0.0
  %4885 = vmatpush1.msra.mxu0 0.0
  %4886 = vmatprep.subr.mxu0 0.0
  %4887 = vmatpush1.msra.mxu0 0.0
  %4888 = vmatprep.subr.mxu0 0.0
  %4889 = vmatpush1.msra.mxu0 0.0
  %4890 = vmatprep.subr.mxu0 0.0
  %4891 = vmatpush1.msra.mxu0 0.0
  %4892 = vmatprep.subr.mxu0 0.0
  %4893 = vmatpush1.msra.mxu0 0.0
  %4894 = vmatprep.subr.mxu0 0.0
  %4895 = vmatpush1.msra.mxu0 0.0
  %4896 = vmatprep.subr.mxu0 0.0
  %4897 = vmatpush1.msra.mxu0 0.0
  %4898 = vmatprep.subr.mxu0 0.0
  %4899 = vmatpush1.msra.mxu0 0.0
  %4900 = vmatprep.subr.mxu0 0.0
  %4901 = vmatpush1.msra.mxu0 0.0
  %4902 = vmatprep.subr.mxu0 0.0
  %4903 = vmatpush1.msra.mxu0 0.0
  %4904 = vmatprep.subr.mxu0 0.0
  %4905 = vmatpush1.msra.mxu0 0.0
  %4906 = vmatprep.subr.mxu0 0.0
  %4907 = vmatpush1.msra.mxu0 0.0
  %4908 = vmatprep.subr.mxu0 0.0
  %4909 = vmatpush1.msra.mxu0 0.0
  %4910 = vmatprep.subr.mxu0 0.0
  %4911 = vmatpush1.msra.mxu0 0.0
  %4912 = vmatprep.mubr.f32.mxu0 0.0
  %4913 = vmatmul.mubr.f32.gmra.mrb[0].mxu0 %v4846
  %v4914 = vpop.f32.mrb[0].mxu0
  %v4915 = vadd.f32 %v4844, %v4914
  %v4916 = vpop.f32.mrb[0].mxu0
  %4917 = vdwg.mxu0
  %v4918 = vadd.f32 %v4915, %v141
  %4919 = vrot.lane.b32.xlu0 %v4577, 33
  %v4920 = vpop.permute.xlu0 %4919
  %v4922 = vsel %vm2707, %v4918, %v4920
  %v4924 = vsel %vm2709, %v4922, 0
  %4926 = vmatprep.subr.mxu0 0.0
  %4927 = vmatpush1.msra.mxu0 %v104
  %4928 = vmatprep.subr.mxu0 0.0
  %4929 = vmatpush1.msra.mxu0 %v105
  %4930 = vmatprep.subr.mxu0 0.0
  %4931 = vmatpush1.msra.mxu0 %v106
  %4932 = vmatprep.subr.mxu0 0.0
  %4933 = vmatpush1.msra.mxu0 %v107
  %4934 = vmatprep.subr.mxu0 0.0
  %4935 = vmatpush1.msra.mxu0 %v2714
  %4936 = vmatprep.subr.mxu0 0.0
  %4937 = vmatpush1.msra.mxu0 0.0
  %4938 = vmatprep.subr.mxu0 0.0
  %4939 = vmatpush1.msra.mxu0 0.0
  %4940 = vmatprep.subr.mxu0 0.0
  %4941 = vmatpush1.msra.mxu0 0.0
  %4942 = vmatprep.subr.mxu0 0.0
  %4943 = vmatpush1.msra.mxu0 0.0
  %4944 = vmatprep.subr.mxu0 0.0
  %4945 = vmatpush1.msra.mxu0 0.0
  %4946 = vmatprep.subr.mxu0 0.0
  %4947 = vmatpush1.msra.mxu0 0.0
  %4948 = vmatprep.subr.mxu0 0.0
  %4949 = vmatpush1.msra.mxu0 0.0
  %4950 = vmatprep.subr.mxu0 0.0
  %4951 = vmatpush1.msra.mxu0 0.0
  %4952 = vmatprep.subr.mxu0 0.0
  %4953 = vmatpush1.msra.mxu0 0.0
  %4954 = vmatprep.subr.mxu0 0.0
  %4955 = vmatpush1.msra.mxu0 0.0
  %4956 = vmatprep.subr.mxu0 0.0
  %4957 = vmatpush1.msra.mxu0 0.0
  %4958 = vmatprep.subr.mxu0 0.0
  %4959 = vmatpush1.msra.mxu0 0.0
  %4960 = vmatprep.subr.mxu0 0.0
  %4961 = vmatpush1.msra.mxu0 0.0
  %4962 = vmatprep.subr.mxu0 0.0
  %4963 = vmatpush1.msra.mxu0 0.0
  %4964 = vmatprep.subr.mxu0 0.0
  %4965 = vmatpush1.msra.mxu0 0.0
  %4966 = vmatprep.subr.mxu0 0.0
  %4967 = vmatpush1.msra.mxu0 0.0
  %4968 = vmatprep.subr.mxu0 0.0
  %4969 = vmatpush1.msra.mxu0 0.0
  %4970 = vmatprep.subr.mxu0 0.0
  %4971 = vmatpush1.msra.mxu0 0.0
  %4972 = vmatprep.subr.mxu0 0.0
  %4973 = vmatpush1.msra.mxu0 0.0
  %4974 = vmatprep.subr.mxu0 0.0
  %4975 = vmatpush1.msra.mxu0 0.0
  %4976 = vmatprep.subr.mxu0 0.0
  %4977 = vmatpush1.msra.mxu0 0.0
  %4978 = vmatprep.subr.mxu0 0.0
  %4979 = vmatpush1.msra.mxu0 0.0
  %4980 = vmatprep.subr.mxu0 0.0
  %4981 = vmatpush1.msra.mxu0 0.0
  %4982 = vmatprep.subr.mxu0 0.0
  %4983 = vmatpush1.msra.mxu0 0.0
  %4984 = vmatprep.subr.mxu0 0.0
  %4985 = vmatpush1.msra.mxu0 0.0
  %4986 = vmatprep.subr.mxu0 0.0
  %4987 = vmatpush1.msra.mxu0 0.0
  %4988 = vmatprep.subr.mxu0 0.0
  %4989 = vmatpush1.msra.mxu0 0.0
  %4990 = vmatprep.mubr.f32.mxu0 0.0
  %4991 = vmatmul.mubr.f32.gmra.mrb[0].mxu0 %v4924
  %v4992 = vpop.f32.mrb[0].mxu0
  %v4993 = vadd.f32 %v135, %v4992
  %v4994 = vpop.f32.mrb[0].mxu0
  %4995 = vdwg.mxu0
  %v4996 = vxor.u32 %v4993, 2147483648
  %v4997 = vmul.f32 %v4996, 1.442695
  %v4998 = vpow.pop %v4997
  %v4999 = vadd.f32 %v4998, 1.0
  %v5000 = vrcp.pop %v4999
  %v5001 = vmul.f32 1.0, %v5000
  %v5002 = vtanh.pop %v4993
  %v5003 = vmul.f32 %v5001, %v4571
  %5005 = vrot.lane.b32.xlu0 %v5002, 64
  %v5006 = vpop.permute.xlu0 %5005
  %v5008 = vmul.f32 %v5001, %v5006
  %5010 = vrot.lane.b32.xlu0 %v5008, 32
  %v5011 = vpop.permute.xlu0 %5010
  %v5013 = vadd.f32 %v5003, %v5011
  %v5014 = vtanh.pop %v5013
  %5016 = vrot.lane.b32.xlu0 %v5014, 64
  %v5017 = vpop.permute.xlu0 %5016
  %v5019 = vmul.f32 %v5001, %v5017
  %5021 = vrot.lane.b32.xlu0 %v5019, 32
  %v5022 = vpop.permute.xlu0 %5021
  %v5024 = vsel %vm207, %v5022, %v5013
  %v5026 = vsel %vm2369, %v5024, 0
  %5028 = vmatprep.subr.mxu0 0.0
  %5029 = vmatpush1.msra.mxu0 %v89
  %5030 = vmatprep.subr.mxu0 0.0
  %5031 = vmatpush1.msra.mxu0 %v90
  %5032 = vmatprep.subr.mxu0 0.0
  %5033 = vmatpush1.msra.mxu0 %v91
  %5034 = vmatprep.subr.mxu0 0.0
  %5035 = vmatpush1.msra.mxu0 %v92
  %5036 = vmatprep.subr.mxu0 0.0
  %5037 = vmatpush1.msra.mxu0 %v93
  %5038 = vmatprep.subr.mxu0 0.0
  %5039 = vmatpush1.msra.mxu0 %v94
  %5040 = vmatprep.subr.mxu0 0.0
  %5041 = vmatpush1.msra.mxu0 %v95
  %5042 = vmatprep.subr.mxu0 0.0
  %5043 = vmatpush1.msra.mxu0 %v96
  %5044 = vmatprep.subr.mxu0 0.0
  %5045 = vmatpush1.msra.mxu0 0.0
  %5046 = vmatprep.subr.mxu0 0.0
  %5047 = vmatpush1.msra.mxu0 0.0
  %5048 = vmatprep.subr.mxu0 0.0
  %5049 = vmatpush1.msra.mxu0 0.0
  %5050 = vmatprep.subr.mxu0 0.0
  %5051 = vmatpush1.msra.mxu0 0.0
  %5052 = vmatprep.subr.mxu0 0.0
  %5053 = vmatpush1.msra.mxu0 0.0
  %5054 = vmatprep.subr.mxu0 0.0
  %5055 = vmatpush1.msra.mxu0 0.0
  %5056 = vmatprep.subr.mxu0 0.0
  %5057 = vmatpush1.msra.mxu0 0.0
  %5058 = vmatprep.subr.mxu0 0.0
  %5059 = vmatpush1.msra.mxu0 0.0
  %5060 = vmatprep.subr.mxu0 0.0
  %5061 = vmatpush1.msra.mxu0 0.0
  %5062 = vmatprep.subr.mxu0 0.0
  %5063 = vmatpush1.msra.mxu0 0.0
  %5064 = vmatprep.subr.mxu0 0.0
  %5065 = vmatpush1.msra.mxu0 0.0
  %5066 = vmatprep.subr.mxu0 0.0
  %5067 = vmatpush1.msra.mxu0 0.0
  %5068 = vmatprep.subr.mxu0 0.0
  %5069 = vmatpush1.msra.mxu0 0.0
  %5070 = vmatprep.subr.mxu0 0.0
  %5071 = vmatpush1.msra.mxu0 0.0
  %5072 = vmatprep.subr.mxu0 0.0
  %5073 = vmatpush1.msra.mxu0 0.0
  %5074 = vmatprep.subr.mxu0 0.0
  %5075 = vmatpush1.msra.mxu0 0.0
  %5076 = vmatprep.subr.mxu0 0.0
  %5077 = vmatpush1.msra.mxu0 0.0
  %5078 = vmatprep.subr.mxu0 0.0
  %5079 = vmatpush1.msra.mxu0 0.0
  %5080 = vmatprep.subr.mxu0 0.0
  %5081 = vmatpush1.msra.mxu0 0.0
  %5082 = vmatprep.subr.mxu0 0.0
  %5083 = vmatpush1.msra.mxu0 0.0
  %5084 = vmatprep.subr.mxu0 0.0
  %5085 = vmatpush1.msra.mxu0 0.0
  %5086 = vmatprep.subr.mxu0 0.0
  %5087 = vmatpush1.msra.mxu0 0.0
  %5088 = vmatprep.subr.mxu0 0.0
  %5089 = vmatpush1.msra.mxu0 0.0
  %5090 = vmatprep.subr.mxu0 0.0
  %5091 = vmatpush1.msra.mxu0 0.0
  %5092 = vmatprep.mubr.f32.mxu0 0.0
  %5093 = vmatmul.mubr.f32.gmra.mrb[0].mxu0 %v5026
  %v5094 = vpop.f32.mrb[0].mxu0
  %v5095 = vadd.f32 0.0, %v5094
  %v5096 = vpop.f32.mrb[0].mxu0
  %5097 = vdwg.mxu0
  %v5100 = vunpack.c.l.s4 1966171168
  %v5101 = vunpack.c.0.s8 %v5100
  %v5102 = vlaneseq
  %v5103 = vshrl.u32 %v5102, 7
  %v5104 = vsub.s32 %v5101, %v5103
  %v5105 = vrot.slane %v5095, %v5104
  %v5106 = vcombine.high %v5105, %v5105
  %v5108 = vunpack.c.l.s4 1966171168
  %v5109 = vunpack.c.0.s8 %v5108
  %v5110 = vlaneseq
  %v5111 = vshrl.u32 %v5110, 7
  %v5112 = vsub.s32 %v5109, %v5111
  %v5113 = vrot.slane %v5105, %v5112
  %v5115 = vunpack.c.l.s4 1966171168
  %v5116 = vunpack.c.0.s8 %v5115
  %v5117 = vlaneseq
  %v5118 = vshrl.u32 %v5117, 7
  %v5119 = vsub.s32 %v5116, %v5118
  %v5120 = vrot.slane %v5106, %v5119
  %v5121 = vcombine.high %v5113, %v5113
  %v5122 = vcombine.high %v5120, %v5120
  %v5123 = vlaneseq
  %v5124 = vshrl.u32 %v5123, 7
  %v5125 = vsub.s32 0, %v5124
  %v5126 = vrot.slane %v5113, %v5125
  %v5127 = vlaneseq
  %v5128 = vshrl.u32 %v5127, 7
  %v5129 = vsub.s32 0, %v5128
  %v5130 = vrot.slane %v5120, %v5129
  %v5131 = vlaneseq
  %v5132 = vshrl.u32 %v5131, 7
  %v5133 = vsub.s32 0, %v5132
  %v5134 = vrot.slane %v5121, %v5133
  %v5135 = vlaneseq
  %v5136 = vshrl.u32 %v5135, 7
  %v5137 = vsub.s32 0, %v5136
  %v5138 = vrot.slane %v5122, %v5137
  %v5143 = vadd.f32 %v2351, %v5126
  %v5144 = vadd.f32 %v2356, %v5130
  %v5145 = vadd.f32 %v2361, %v5134
  %v5146 = vadd.f32 %v2366, %v5138
  %v5147 = vtanh.pop %v5143
  %v5148 = vtanh.pop %v5144
  %v5149 = vtanh.pop %v5145
  %v5150 = vtanh.pop %v5146
  %v5151 = vmul.f32 %v5147, %v159
  %v5152 = vmul.f32 %v5148, %v159
  %v5153 = vmul.f32 %v5149, %v159
  %v5154 = vmul.f32 %v5150, %v159
  %v5155 = vsel %vm207, %v5151, 0.0
  %5156 = vadd.xlane.f32.xlu0 %v5155
  %v5157 = vpop.xlane.xlu0 %5156
  %v5158 = vsel %vm207, %v5152, 0.0
  %5159 = vadd.xlane.f32.xlu0 %v5158
  %v5160 = vpop.xlane.xlu0 %5159
  %v5161 = vsel %vm207, %v5153, 0.0
  %5162 = vadd.xlane.f32.xlu0 %v5161
  %v5163 = vpop.xlane.xlu0 %5162
  %v5164 = vsel %vm207, %v5154, 0.0
  %5165 = vadd.xlane.f32.xlu0 %v5164
  %v5166 = vpop.xlane.xlu0 %5165
  %v5167 = vadd.f32 %v5157, %v2512
  %v5168 = vadd.f32 %v5160, %v2512
  %v5169 = vadd.f32 %v5163, %v2512
  %v5170 = vadd.f32 %v5166, %v2512
  %v5171 = vrot.slane %v5167, 4
  %v5172 = vmax.f32 %v5167, %v5171
  %v5173 = vrot.slane %v5172, 2
  %v5174 = vmax.f32 %v5172, %v5173
  %v5175 = vrot.slane %v5174, 1
  %v5176 = vmax.f32 %v5174, %v5175
  %v5177 = vrot.slane %v5168, 4
  %v5178 = vmax.f32 %v5168, %v5177
  %v5179 = vrot.slane %v5178, 2
  %v5180 = vmax.f32 %v5178, %v5179
  %v5181 = vrot.slane %v5180, 1
  %v5182 = vmax.f32 %v5180, %v5181
  %v5183 = vrot.slane %v5169, 4
  %v5184 = vmax.f32 %v5169, %v5183
  %v5185 = vrot.slane %v5184, 2
  %v5186 = vmax.f32 %v5184, %v5185
  %v5187 = vrot.slane %v5186, 1
  %v5188 = vmax.f32 %v5186, %v5187
  %v5189 = vrot.slane %v5170, 4
  %v5190 = vmax.f32 %v5170, %v5189
  %v5191 = vrot.slane %v5190, 2
  %v5192 = vmax.f32 %v5190, %v5191
  %v5193 = vrot.slane %v5192, 1
  %v5194 = vmax.f32 %v5192, %v5193
  %v5195 = vsub.f32 %v5167, %v5176
  %v5196 = vsub.f32 %v5168, %v5182
  %v5197 = vsub.f32 %v5169, %v5188
  %v5198 = vsub.f32 %v5170, %v5194
  %v5199 = vmul.f32 %v5195, 1.442695
  %v5200 = vpow.pop %v5199
  %v5201 = vmul.f32 %v5196, 1.442695
  %v5202 = vpow.pop %v5201
  %v5203 = vmul.f32 %v5197, 1.442695
  %v5204 = vpow.pop %v5203
  %v5205 = vmul.f32 %v5198, 1.442695
  %v5206 = vpow.pop %v5205
  %v5207 = vrot.slane %v5200, 4
  %v5208 = vadd.f32 %v5200, %v5207
  %v5209 = vrot.slane %v5208, 2
  %v5210 = vadd.f32 %v5208, %v5209
  %v5211 = vrot.slane %v5210, 1
  %v5212 = vadd.f32 %v5210, %v5211
  %v5213 = vrot.slane %v5202, 4
  %v5214 = vadd.f32 %v5202, %v5213
  %v5215 = vrot.slane %v5214, 2
  %v5216 = vadd.f32 %v5214, %v5215
  %v5217 = vrot.slane %v5216, 1
  %v5218 = vadd.f32 %v5216, %v5217
  %v5219 = vrot.slane %v5204, 4
  %v5220 = vadd.f32 %v5204, %v5219
  %v5221 = vrot.slane %v5220, 2
  %v5222 = vadd.f32 %v5220, %v5221
  %v5223 = vrot.slane %v5222, 1
  %v5224 = vadd.f32 %v5222, %v5223
  %v5225 = vrot.slane %v5206, 4
  %v5226 = vadd.f32 %v5206, %v5225
  %v5227 = vrot.slane %v5226, 2
  %v5228 = vadd.f32 %v5226, %v5227
  %v5229 = vrot.slane %v5228, 1
  %v5230 = vadd.f32 %v5228, %v5229
  %v5231 = vrcp.pop %v5212
  %v5232 = vrcp.pop %v5218
  %v5233 = vrcp.pop %v5224
  %v5234 = vrcp.pop %v5230
  %v5235 = vmul.f32 %v5200, %v5231
  %v5236 = vmul.f32 %v5202, %v5232
  %v5237 = vmul.f32 %v5204, %v5233
  %v5238 = vmul.f32 %v5206, %v5234
  %v5239 = vmul.f32 %v5235, %v2254
  %v5240 = vmul.f32 %v5236, %v2255
  %v5241 = vmul.f32 %v5237, %v2256
  %v5242 = vmul.f32 %v5238, %v2257
  %v5243 = vsel %vm2589, %v5239, 0.0
  %v5244 = vrot.slane %v5243, 4
  %v5245 = vadd.f32 %v5243, %v5244
  %v5246 = vrot.slane %v5245, 2
  %v5247 = vadd.f32 %v5245, %v5246
  %v5248 = vrot.slane %v5247, 1
  %v5249 = vadd.f32 %v5247, %v5248
  %v5250 = vsel %vm2589, %v5240, 0.0
  %v5251 = vrot.slane %v5250, 4
  %v5252 = vadd.f32 %v5250, %v5251
  %v5253 = vrot.slane %v5252, 2
  %v5254 = vadd.f32 %v5252, %v5253
  %v5255 = vrot.slane %v5254, 1
  %v5256 = vadd.f32 %v5254, %v5255
  %v5257 = vsel %vm2589, %v5241, 0.0
  %v5258 = vrot.slane %v5257, 4
  %v5259 = vadd.f32 %v5257, %v5258
  %v5260 = vrot.slane %v5259, 2
  %v5261 = vadd.f32 %v5259, %v5260
  %v5262 = vrot.slane %v5261, 1
  %v5263 = vadd.f32 %v5261, %v5262
  %v5264 = vsel %vm2589, %v5242, 0.0
  %v5265 = vrot.slane %v5264, 4
  %v5266 = vadd.f32 %v5264, %v5265
  %v5267 = vrot.slane %v5266, 2
  %v5268 = vadd.f32 %v5266, %v5267
  %v5269 = vrot.slane %v5268, 1
  %v5270 = vadd.f32 %v5268, %v5269
  %5271 = vrot.lane.b32.xlu0 %v2622, 6
  %v5272 = vpop.permute.xlu0 %5271
  %v5274 = vmul.f32 %v77, %v5272
  %v5279 = vsel %vm219, %v5256, %v5249
  %v5280 = vsel %vm221, %v5263, %v5279
  %v5281 = vsel %vm223, %v5270, %v5280
  %5282 = vrot.lane.b32.xlu0 %v5281, 32
  %v5283 = vpop.permute.xlu0 %5282
  %5285 = vrot.lane.b32.xlu0 %v5274, 122
  %v5286 = vpop.permute.xlu0 %5285
  %v5288 = vsel %vm207, %v5283, 0
  %5290 = vmatprep.subr.mxu0 0.0
  %5291 = vmatpush1.msra.mxu0 %v110
  %5292 = vmatprep.subr.mxu0 0.0
  %5293 = vmatpush1.msra.mxu0 %v111
  %5294 = vmatprep.subr.mxu0 0.0
  %5295 = vmatpush1.msra.mxu0 %v112
  %5296 = vmatprep.subr.mxu0 0.0
  %5297 = vmatpush1.msra.mxu0 %v113
  %5298 = vmatprep.subr.mxu0 0.0
  %5299 = vmatpush1.msra.mxu0 0.0
  %5300 = vmatprep.subr.mxu0 0.0
  %5301 = vmatpush1.msra.mxu0 0.0
  %5302 = vmatprep.subr.mxu0 0.0
  %5303 = vmatpush1.msra.mxu0 0.0
  %5304 = vmatprep.subr.mxu0 0.0
  %5305 = vmatpush1.msra.mxu0 0.0
  %5306 = vmatprep.subr.mxu0 0.0
  %5307 = vmatpush1.msra.mxu0 0.0
  %5308 = vmatprep.subr.mxu0 0.0
  %5309 = vmatpush1.msra.mxu0 0.0
  %5310 = vmatprep.subr.mxu0 0.0
  %5311 = vmatpush1.msra.mxu0 0.0
  %5312 = vmatprep.subr.mxu0 0.0
  %5313 = vmatpush1.msra.mxu0 0.0
  %5314 = vmatprep.subr.mxu0 0.0
  %5315 = vmatpush1.msra.mxu0 0.0
  %5316 = vmatprep.subr.mxu0 0.0
  %5317 = vmatpush1.msra.mxu0 0.0
  %5318 = vmatprep.subr.mxu0 0.0
  %5319 = vmatpush1.msra.mxu0 0.0
  %5320 = vmatprep.subr.mxu0 0.0
  %5321 = vmatpush1.msra.mxu0 0.0
  %5322 = vmatprep.subr.mxu0 0.0
  %5323 = vmatpush1.msra.mxu0 0.0
  %5324 = vmatprep.subr.mxu0 0.0
  %5325 = vmatpush1.msra.mxu0 0.0
  %5326 = vmatprep.subr.mxu0 0.0
  %5327 = vmatpush1.msra.mxu0 0.0
  %5328 = vmatprep.subr.mxu0 0.0
  %5329 = vmatpush1.msra.mxu0 0.0
  %5330 = vmatprep.subr.mxu0 0.0
  %5331 = vmatpush1.msra.mxu0 0.0
  %5332 = vmatprep.subr.mxu0 0.0
  %5333 = vmatpush1.msra.mxu0 0.0
  %5334 = vmatprep.subr.mxu0 0.0
  %5335 = vmatpush1.msra.mxu0 0.0
  %5336 = vmatprep.subr.mxu0 0.0
  %5337 = vmatpush1.msra.mxu0 0.0
  %5338 = vmatprep.subr.mxu0 0.0
  %5339 = vmatpush1.msra.mxu0 0.0
  %5340 = vmatprep.subr.mxu0 0.0
  %5341 = vmatpush1.msra.mxu0 0.0
  %5342 = vmatprep.subr.mxu0 0.0
  %5343 = vmatpush1.msra.mxu0 0.0
  %5344 = vmatprep.subr.mxu0 0.0
  %5345 = vmatpush1.msra.mxu0 0.0
  %5346 = vmatprep.subr.mxu0 0.0
  %5347 = vmatpush1.msra.mxu0 0.0
  %5348 = vmatprep.subr.mxu0 0.0
  %5349 = vmatpush1.msra.mxu0 0.0
  %5350 = vmatprep.subr.mxu0 0.0
  %5351 = vmatpush1.msra.mxu0 0.0
  %5352 = vmatprep.subr.mxu0 0.0
  %5353 = vmatpush1.msra.mxu0 0.0
  %5354 = vmatprep.mubr.f32.mxu0 0.0
  %5355 = vmatmul.mubr.f32.gmra.mrb[0].mxu0 %v5288
  %v5356 = vpop.f32.mrb[0].mxu0
  %v5357 = vadd.f32 %v5286, %v5356
  %v5358 = vpop.f32.mrb[0].mxu0
  %5359 = vdwg.mxu0
  %v5360 = vadd.f32 %v5357, %v141
  %5361 = vrot.lane.b32.xlu0 %v5019, 33
  %v5362 = vpop.permute.xlu0 %5361
  %v5364 = vsel %vm2707, %v5360, %v5362
  %v5366 = vsel %vm2709, %v5364, 0
  %5368 = vmatprep.subr.mxu0 0.0
  %5369 = vmatpush1.msra.mxu0 %v104
  %5370 = vmatprep.subr.mxu0 0.0
  %5371 = vmatpush1.msra.mxu0 %v105
  %5372 = vmatprep.subr.mxu0 0.0
  %5373 = vmatpush1.msra.mxu0 %v106
  %5374 = vmatprep.subr.mxu0 0.0
  %5375 = vmatpush1.msra.mxu0 %v107
  %5376 = vmatprep.subr.mxu0 0.0
  %5377 = vmatpush1.msra.mxu0 %v2714
  %5378 = vmatprep.subr.mxu0 0.0
  %5379 = vmatpush1.msra.mxu0 0.0
  %5380 = vmatprep.subr.mxu0 0.0
  %5381 = vmatpush1.msra.mxu0 0.0
  %5382 = vmatprep.subr.mxu0 0.0
  %5383 = vmatpush1.msra.mxu0 0.0
  %5384 = vmatprep.subr.mxu0 0.0
  %5385 = vmatpush1.msra.mxu0 0.0
  %5386 = vmatprep.subr.mxu0 0.0
  %5387 = vmatpush1.msra.mxu0 0.0
  %5388 = vmatprep.subr.mxu0 0.0
  %5389 = vmatpush1.msra.mxu0 0.0
  %5390 = vmatprep.subr.mxu0 0.0
  %5391 = vmatpush1.msra.mxu0 0.0
  %5392 = vmatprep.subr.mxu0 0.0
  %5393 = vmatpush1.msra.mxu0 0.0
  %5394 = vmatprep.subr.mxu0 0.0
  %5395 = vmatpush1.msra.mxu0 0.0
  %5396 = vmatprep.subr.mxu0 0.0
  %5397 = vmatpush1.msra.mxu0 0.0
  %5398 = vmatprep.subr.mxu0 0.0
  %5399 = vmatpush1.msra.mxu0 0.0
  %5400 = vmatprep.subr.mxu0 0.0
  %5401 = vmatpush1.msra.mxu0 0.0
  %5402 = vmatprep.subr.mxu0 0.0
  %5403 = vmatpush1.msra.mxu0 0.0
  %5404 = vmatprep.subr.mxu0 0.0
  %5405 = vmatpush1.msra.mxu0 0.0
  %5406 = vmatprep.subr.mxu0 0.0
  %5407 = vmatpush1.msra.mxu0 0.0
  %5408 = vmatprep.subr.mxu0 0.0
  %5409 = vmatpush1.msra.mxu0 0.0
  %5410 = vmatprep.subr.mxu0 0.0
  %5411 = vmatpush1.msra.mxu0 0.0
  %5412 = vmatprep.subr.mxu0 0.0
  %5413 = vmatpush1.msra.mxu0 0.0
  %5414 = vmatprep.subr.mxu0 0.0
  %5415 = vmatpush1.msra.mxu0 0.0
  %5416 = vmatprep.subr.mxu0 0.0
  %5417 = vmatpush1.msra.mxu0 0.0
  %5418 = vmatprep.subr.mxu0 0.0
  %5419 = vmatpush1.msra.mxu0 0.0
  %5420 = vmatprep.subr.mxu0 0.0
  %5421 = vmatpush1.msra.mxu0 0.0
  %5422 = vmatprep.subr.mxu0 0.0
  %5423 = vmatpush1.msra.mxu0 0.0
  %5424 = vmatprep.subr.mxu0 0.0
  %5425 = vmatpush1.msra.mxu0 0.0
  %5426 = vmatprep.subr.mxu0 0.0
  %5427 = vmatpush1.msra.mxu0 0.0
  %5428 = vmatprep.subr.mxu0 0.0
  %5429 = vmatpush1.msra.mxu0 0.0
  %5430 = vmatprep.subr.mxu0 0.0
  %5431 = vmatpush1.msra.mxu0 0.0
  %5432 = vmatprep.mubr.f32.mxu0 0.0
  %5433 = vmatmul.mubr.f32.gmra.mrb[0].mxu0 %v5366
  %v5434 = vpop.f32.mrb[0].mxu0
  %v5435 = vadd.f32 %v135, %v5434
  %v5436 = vpop.f32.mrb[0].mxu0
  %5437 = vdwg.mxu0
  %v5438 = vxor.u32 %v5435, 2147483648
  %v5439 = vmul.f32 %v5438, 1.442695
  %v5440 = vpow.pop %v5439
  %v5441 = vadd.f32 %v5440, 1.0
  %v5442 = vrcp.pop %v5441
  %v5443 = vmul.f32 1.0, %v5442
  %v5444 = vtanh.pop %v5435
  %v5445 = vmul.f32 %v5443, %v5013
  %5447 = vrot.lane.b32.xlu0 %v5444, 64
  %v5448 = vpop.permute.xlu0 %5447
  %v5450 = vmul.f32 %v5443, %v5448
  %5452 = vrot.lane.b32.xlu0 %v5450, 32
  %v5453 = vpop.permute.xlu0 %5452
  %v5455 = vadd.f32 %v5445, %v5453
  %v5456 = vtanh.pop %v5455
  %5458 = vrot.lane.b32.xlu0 %v5456, 64
  %v5459 = vpop.permute.xlu0 %5458
  %v5461 = vmul.f32 %v5443, %v5459
  %5463 = vrot.lane.b32.xlu0 %v5461, 32
  %v5464 = vpop.permute.xlu0 %5463
  %v5466 = vsel %vm207, %v5464, %v5455
  %v5468 = vsel %vm2369, %v5466, 0
  %5470 = vmatprep.subr.mxu0 0.0
  %5471 = vmatpush1.msra.mxu0 %v89
  %5472 = vmatprep.subr.mxu0 0.0
  %5473 = vmatpush1.msra.mxu0 %v90
  %5474 = vmatprep.subr.mxu0 0.0
  %5475 = vmatpush1.msra.mxu0 %v91
  %5476 = vmatprep.subr.mxu0 0.0
  %5477 = vmatpush1.msra.mxu0 %v92
  %5478 = vmatprep.subr.mxu0 0.0
  %5479 = vmatpush1.msra.mxu0 %v93
  %5480 = vmatprep.subr.mxu0 0.0
  %5481 = vmatpush1.msra.mxu0 %v94
  %5482 = vmatprep.subr.mxu0 0.0
  %5483 = vmatpush1.msra.mxu0 %v95
  %5484 = vmatprep.subr.mxu0 0.0
  %5485 = vmatpush1.msra.mxu0 %v96
  %5486 = vmatprep.subr.mxu0 0.0
  %5487 = vmatpush1.msra.mxu0 0.0
  %5488 = vmatprep.subr.mxu0 0.0
  %5489 = vmatpush1.msra.mxu0 0.0
  %5490 = vmatprep.subr.mxu0 0.0
  %5491 = vmatpush1.msra.mxu0 0.0
  %5492 = vmatprep.subr.mxu0 0.0
  %5493 = vmatpush1.msra.mxu0 0.0
  %5494 = vmatprep.subr.mxu0 0.0
  %5495 = vmatpush1.msra.mxu0 0.0
  %5496 = vmatprep.subr.mxu0 0.0
  %5497 = vmatpush1.msra.mxu0 0.0
  %5498 = vmatprep.subr.mxu0 0.0
  %5499 = vmatpush1.msra.mxu0 0.0
  %5500 = vmatprep.subr.mxu0 0.0
  %5501 = vmatpush1.msra.mxu0 0.0
  %5502 = vmatprep.subr.mxu0 0.0
  %5503 = vmatpush1.msra.mxu0 0.0
  %5504 = vmatprep.subr.mxu0 0.0
  %5505 = vmatpush1.msra.mxu0 0.0
  %5506 = vmatprep.subr.mxu0 0.0
  %5507 = vmatpush1.msra.mxu0 0.0
  %5508 = vmatprep.subr.mxu0 0.0
  %5509 = vmatpush1.msra.mxu0 0.0
  %5510 = vmatprep.subr.mxu0 0.0
  %5511 = vmatpush1.msra.mxu0 0.0
  %5512 = vmatprep.subr.mxu0 0.0
  %5513 = vmatpush1.msra.mxu0 0.0
  %5514 = vmatprep.subr.mxu0 0.0
  %5515 = vmatpush1.msra.mxu0 0.0
  %5516 = vmatprep.subr.mxu0 0.0
  %5517 = vmatpush1.msra.mxu0 0.0
  %5518 = vmatprep.subr.mxu0 0.0
  %5519 = vmatpush1.msra.mxu0 0.0
  %5520 = vmatprep.subr.mxu0 0.0
  %5521 = vmatpush1.msra.mxu0 0.0
  %5522 = vmatprep.subr.mxu0 0.0
  %5523 = vmatpush1.msra.mxu0 0.0
  %5524 = vmatprep.subr.mxu0 0.0
  %5525 = vmatpush1.msra.mxu0 0.0
  %5526 = vmatprep.subr.mxu0 0.0
  %5527 = vmatpush1.msra.mxu0 0.0
  %5528 = vmatprep.subr.mxu0 0.0
  %5529 = vmatpush1.msra.mxu0 0.0
  %5530 = vmatprep.subr.mxu0 0.0
  %5531 = vmatpush1.msra.mxu0 0.0
  %5532 = vmatprep.subr.mxu0 0.0
  %5533 = vmatpush1.msra.mxu0 0.0
  %5534 = vmatprep.mubr.f32.mxu0 0.0
  %5535 = vmatmul.mubr.f32.gmra.mrb[0].mxu0 %v5468
  %v5536 = vpop.f32.mrb[0].mxu0
  %v5537 = vadd.f32 0.0, %v5536
  %v5538 = vpop.f32.mrb[0].mxu0
  %5539 = vdwg.mxu0
  %v5542 = vunpack.c.l.s4 1966171168
  %v5543 = vunpack.c.0.s8 %v5542
  %v5544 = vlaneseq
  %v5545 = vshrl.u32 %v5544, 7
  %v5546 = vsub.s32 %v5543, %v5545
  %v5547 = vrot.slane %v5537, %v5546
  %v5548 = vcombine.high %v5547, %v5547
  %v5550 = vunpack.c.l.s4 1966171168
  %v5551 = vunpack.c.0.s8 %v5550
  %v5552 = vlaneseq
  %v5553 = vshrl.u32 %v5552, 7
  %v5554 = vsub.s32 %v5551, %v5553
  %v5555 = vrot.slane %v5547, %v5554
  %v5557 = vunpack.c.l.s4 1966171168
  %v5558 = vunpack.c.0.s8 %v5557
  %v5559 = vlaneseq
  %v5560 = vshrl.u32 %v5559, 7
  %v5561 = vsub.s32 %v5558, %v5560
  %v5562 = vrot.slane %v5548, %v5561
  %v5563 = vcombine.high %v5555, %v5555
  %v5564 = vcombine.high %v5562, %v5562
  %v5565 = vlaneseq
  %v5566 = vshrl.u32 %v5565, 7
  %v5567 = vsub.s32 0, %v5566
  %v5568 = vrot.slane %v5555, %v5567
  %v5569 = vlaneseq
  %v5570 = vshrl.u32 %v5569, 7
  %v5571 = vsub.s32 0, %v5570
  %v5572 = vrot.slane %v5562, %v5571
  %v5573 = vlaneseq
  %v5574 = vshrl.u32 %v5573, 7
  %v5575 = vsub.s32 0, %v5574
  %v5576 = vrot.slane %v5563, %v5575
  %v5577 = vlaneseq
  %v5578 = vshrl.u32 %v5577, 7
  %v5579 = vsub.s32 0, %v5578
  %v5580 = vrot.slane %v5564, %v5579
  %v5585 = vadd.f32 %v2351, %v5568
  %v5586 = vadd.f32 %v2356, %v5572
  %v5587 = vadd.f32 %v2361, %v5576
  %v5588 = vadd.f32 %v2366, %v5580
  %v5589 = vtanh.pop %v5585
  %v5590 = vtanh.pop %v5586
  %v5591 = vtanh.pop %v5587
  %v5592 = vtanh.pop %v5588
  %v5593 = vmul.f32 %v5589, %v159
  %v5594 = vmul.f32 %v5590, %v159
  %v5595 = vmul.f32 %v5591, %v159
  %v5596 = vmul.f32 %v5592, %v159
  %v5597 = vsel %vm207, %v5593, 0.0
  %5598 = vadd.xlane.f32.xlu0 %v5597
  %v5599 = vpop.xlane.xlu0 %5598
  %v5600 = vsel %vm207, %v5594, 0.0
  %5601 = vadd.xlane.f32.xlu0 %v5600
  %v5602 = vpop.xlane.xlu0 %5601
  %v5603 = vsel %vm207, %v5595, 0.0
  %5604 = vadd.xlane.f32.xlu0 %v5603
  %v5605 = vpop.xlane.xlu0 %5604
  %v5606 = vsel %vm207, %v5596, 0.0
  %5607 = vadd.xlane.f32.xlu0 %v5606
  %v5608 = vpop.xlane.xlu0 %5607
  %v5609 = vadd.f32 %v5599, %v2512
  %v5610 = vadd.f32 %v5602, %v2512
  %v5611 = vadd.f32 %v5605, %v2512
  %v5612 = vadd.f32 %v5608, %v2512
  %v5613 = vrot.slane %v5609, 4
  %v5614 = vmax.f32 %v5609, %v5613
  %v5615 = vrot.slane %v5614, 2
  %v5616 = vmax.f32 %v5614, %v5615
  %v5617 = vrot.slane %v5616, 1
  %v5618 = vmax.f32 %v5616, %v5617
  %v5619 = vrot.slane %v5610, 4
  %v5620 = vmax.f32 %v5610, %v5619
  %v5621 = vrot.slane %v5620, 2
  %v5622 = vmax.f32 %v5620, %v5621
  %v5623 = vrot.slane %v5622, 1
  %v5624 = vmax.f32 %v5622, %v5623
  %v5625 = vrot.slane %v5611, 4
  %v5626 = vmax.f32 %v5611, %v5625
  %v5627 = vrot.slane %v5626, 2
  %v5628 = vmax.f32 %v5626, %v5627
  %v5629 = vrot.slane %v5628, 1
  %v5630 = vmax.f32 %v5628, %v5629
  %v5631 = vrot.slane %v5612, 4
  %v5632 = vmax.f32 %v5612, %v5631
  %v5633 = vrot.slane %v5632, 2
  %v5634 = vmax.f32 %v5632, %v5633
  %v5635 = vrot.slane %v5634, 1
  %v5636 = vmax.f32 %v5634, %v5635
  %v5637 = vsub.f32 %v5609, %v5618
  %v5638 = vsub.f32 %v5610, %v5624
  %v5639 = vsub.f32 %v5611, %v5630
  %v5640 = vsub.f32 %v5612, %v5636
  %v5641 = vmul.f32 %v5637, 1.442695
  %v5642 = vpow.pop %v5641
  %v5643 = vmul.f32 %v5638, 1.442695
  %v5644 = vpow.pop %v5643
  %v5645 = vmul.f32 %v5639, 1.442695
  %v5646 = vpow.pop %v5645
  %v5647 = vmul.f32 %v5640, 1.442695
  %v5648 = vpow.pop %v5647
  %v5649 = vrot.slane %v5642, 4
  %v5650 = vadd.f32 %v5642, %v5649
  %v5651 = vrot.slane %v5650, 2
  %v5652 = vadd.f32 %v5650, %v5651
  %v5653 = vrot.slane %v5652, 1
  %v5654 = vadd.f32 %v5652, %v5653
  %v5655 = vrot.slane %v5644, 4
  %v5656 = vadd.f32 %v5644, %v5655
  %v5657 = vrot.slane %v5656, 2
  %v5658 = vadd.f32 %v5656, %v5657
  %v5659 = vrot.slane %v5658, 1
  %v5660 = vadd.f32 %v5658, %v5659
  %v5661 = vrot.slane %v5646, 4
  %v5662 = vadd.f32 %v5646, %v5661
  %v5663 = vrot.slane %v5662, 2
  %v5664 = vadd.f32 %v5662, %v5663
  %v5665 = vrot.slane %v5664, 1
  %v5666 = vadd.f32 %v5664, %v5665
  %v5667 = vrot.slane %v5648, 4
  %v5668 = vadd.f32 %v5648, %v5667
  %v5669 = vrot.slane %v5668, 2
  %v5670 = vadd.f32 %v5668, %v5669
  %v5671 = vrot.slane %v5670, 1
  %v5672 = vadd.f32 %v5670, %v5671
  %v5673 = vrcp.pop %v5654
  %v5674 = vrcp.pop %v5660
  %v5675 = vrcp.pop %v5666
  %v5676 = vrcp.pop %v5672
  %v5677 = vmul.f32 %v5642, %v5673
  %v5678 = vmul.f32 %v5644, %v5674
  %v5679 = vmul.f32 %v5646, %v5675
  %v5680 = vmul.f32 %v5648, %v5676
  %v5681 = vmul.f32 %v5677, %v2254
  %v5682 = vmul.f32 %v5678, %v2255
  %v5683 = vmul.f32 %v5679, %v2256
  %v5684 = vmul.f32 %v5680, %v2257
  %v5685 = vsel %vm2589, %v5681, 0.0
  %v5686 = vrot.slane %v5685, 4
  %v5687 = vadd.f32 %v5685, %v5686
  %v5688 = vrot.slane %v5687, 2
  %v5689 = vadd.f32 %v5687, %v5688
  %v5690 = vrot.slane %v5689, 1
  %v5691 = vadd.f32 %v5689, %v5690
  %v5692 = vsel %vm2589, %v5682, 0.0
  %v5693 = vrot.slane %v5692, 4
  %v5694 = vadd.f32 %v5692, %v5693
  %v5695 = vrot.slane %v5694, 2
  %v5696 = vadd.f32 %v5694, %v5695
  %v5697 = vrot.slane %v5696, 1
  %v5698 = vadd.f32 %v5696, %v5697
  %v5699 = vsel %vm2589, %v5683, 0.0
  %v5700 = vrot.slane %v5699, 4
  %v5701 = vadd.f32 %v5699, %v5700
  %v5702 = vrot.slane %v5701, 2
  %v5703 = vadd.f32 %v5701, %v5702
  %v5704 = vrot.slane %v5703, 1
  %v5705 = vadd.f32 %v5703, %v5704
  %v5706 = vsel %vm2589, %v5684, 0.0
  %v5707 = vrot.slane %v5706, 4
  %v5708 = vadd.f32 %v5706, %v5707
  %v5709 = vrot.slane %v5708, 2
  %v5710 = vadd.f32 %v5708, %v5709
  %v5711 = vrot.slane %v5710, 1
  %v5712 = vadd.f32 %v5710, %v5711
  %5713 = vrot.lane.b32.xlu0 %v2622, 7
  %v5714 = vpop.permute.xlu0 %5713
  %v5716 = vmul.f32 %v77, %v5714
  %v5721 = vsel %vm219, %v5698, %v5691
  %v5722 = vsel %vm221, %v5705, %v5721
  %v5723 = vsel %vm223, %v5712, %v5722
  %5724 = vrot.lane.b32.xlu0 %v5723, 32
  %v5725 = vpop.permute.xlu0 %5724
  %5727 = vrot.lane.b32.xlu0 %v5716, 121
  %v5728 = vpop.permute.xlu0 %5727
  %v5730 = vsel %vm207, %v5725, 0
  %5732 = vmatprep.subr.mxu0 0.0
  %5733 = vmatpush1.msra.mxu0 %v110
  %5734 = vmatprep.subr.mxu0 0.0
  %5735 = vmatpush1.msra.mxu0 %v111
  %5736 = vmatprep.subr.mxu0 0.0
  %5737 = vmatpush1.msra.mxu0 %v112
  %5738 = vmatprep.subr.mxu0 0.0
  %5739 = vmatpush1.msra.mxu0 %v113
  %5740 = vmatprep.subr.mxu0 0.0
  %5741 = vmatpush1.msra.mxu0 0.0
  %5742 = vmatprep.subr.mxu0 0.0
  %5743 = vmatpush1.msra.mxu0 0.0
  %5744 = vmatprep.subr.mxu0 0.0
  %5745 = vmatpush1.msra.mxu0 0.0
  %5746 = vmatprep.subr.mxu0 0.0
  %5747 = vmatpush1.msra.mxu0 0.0
  %5748 = vmatprep.subr.mxu0 0.0
  %5749 = vmatpush1.msra.mxu0 0.0
  %5750 = vmatprep.subr.mxu0 0.0
  %5751 = vmatpush1.msra.mxu0 0.0
  %5752 = vmatprep.subr.mxu0 0.0
  %5753 = vmatpush1.msra.mxu0 0.0
  %5754 = vmatprep.subr.mxu0 0.0
  %5755 = vmatpush1.msra.mxu0 0.0
  %5756 = vmatprep.subr.mxu0 0.0
  %5757 = vmatpush1.msra.mxu0 0.0
  %5758 = vmatprep.subr.mxu0 0.0
  %5759 = vmatpush1.msra.mxu0 0.0
  %5760 = vmatprep.subr.mxu0 0.0
  %5761 = vmatpush1.msra.mxu0 0.0
  %5762 = vmatprep.subr.mxu0 0.0
  %5763 = vmatpush1.msra.mxu0 0.0
  %5764 = vmatprep.subr.mxu0 0.0
  %5765 = vmatpush1.msra.mxu0 0.0
  %5766 = vmatprep.subr.mxu0 0.0
  %5767 = vmatpush1.msra.mxu0 0.0
  %5768 = vmatprep.subr.mxu0 0.0
  %5769 = vmatpush1.msra.mxu0 0.0
  %5770 = vmatprep.subr.mxu0 0.0
  %5771 = vmatpush1.msra.mxu0 0.0
  %5772 = vmatprep.subr.mxu0 0.0
  %5773 = vmatpush1.msra.mxu0 0.0
  %5774 = vmatprep.subr.mxu0 0.0
  %5775 = vmatpush1.msra.mxu0 0.0
  %5776 = vmatprep.subr.mxu0 0.0
  %5777 = vmatpush1.msra.mxu0 0.0
  %5778 = vmatprep.subr.mxu0 0.0
  %5779 = vmatpush1.msra.mxu0 0.0
  %5780 = vmatprep.subr.mxu0 0.0
  %5781 = vmatpush1.msra.mxu0 0.0
  %5782 = vmatprep.subr.mxu0 0.0
  %5783 = vmatpush1.msra.mxu0 0.0
  %5784 = vmatprep.subr.mxu0 0.0
  %5785 = vmatpush1.msra.mxu0 0.0
  %5786 = vmatprep.subr.mxu0 0.0
  %5787 = vmatpush1.msra.mxu0 0.0
  %5788 = vmatprep.subr.mxu0 0.0
  %5789 = vmatpush1.msra.mxu0 0.0
  %5790 = vmatprep.subr.mxu0 0.0
  %5791 = vmatpush1.msra.mxu0 0.0
  %5792 = vmatprep.subr.mxu0 0.0
  %5793 = vmatpush1.msra.mxu0 0.0
  %5794 = vmatprep.subr.mxu0 0.0
  %5795 = vmatpush1.msra.mxu0 0.0
  %5796 = vmatprep.mubr.f32.mxu0 0.0
  %5797 = vmatmul.mubr.f32.gmra.mrb[0].mxu0 %v5730
  %v5798 = vpop.f32.mrb[0].mxu0
  %v5799 = vadd.f32 %v5728, %v5798
  %v5800 = vpop.f32.mrb[0].mxu0
  %5801 = vdwg.mxu0
  %v5802 = vadd.f32 %v5799, %v141
  %5803 = vrot.lane.b32.xlu0 %v5461, 33
  %v5804 = vpop.permute.xlu0 %5803
  %v5806 = vsel %vm2707, %v5802, %v5804
  %v5808 = vsel %vm2709, %v5806, 0
  %5810 = vmatprep.subr.mxu0 0.0
  %5811 = vmatpush1.msra.mxu0 %v104
  %5812 = vmatprep.subr.mxu0 0.0
  %5813 = vmatpush1.msra.mxu0 %v105
  %5814 = vmatprep.subr.mxu0 0.0
  %5815 = vmatpush1.msra.mxu0 %v106
  %5816 = vmatprep.subr.mxu0 0.0
  %5817 = vmatpush1.msra.mxu0 %v107
  %5818 = vmatprep.subr.mxu0 0.0
  %5819 = vmatpush1.msra.mxu0 %v2714
  %5820 = vmatprep.subr.mxu0 0.0
  %5821 = vmatpush1.msra.mxu0 0.0
  %5822 = vmatprep.subr.mxu0 0.0
  %5823 = vmatpush1.msra.mxu0 0.0
  %5824 = vmatprep.subr.mxu0 0.0
  %5825 = vmatpush1.msra.mxu0 0.0
  %5826 = vmatprep.subr.mxu0 0.0
  %5827 = vmatpush1.msra.mxu0 0.0
  %5828 = vmatprep.subr.mxu0 0.0
  %5829 = vmatpush1.msra.mxu0 0.0
  %5830 = vmatprep.subr.mxu0 0.0
  %5831 = vmatpush1.msra.mxu0 0.0
  %5832 = vmatprep.subr.mxu0 0.0
  %5833 = vmatpush1.msra.mxu0 0.0
  %5834 = vmatprep.subr.mxu0 0.0
  %5835 = vmatpush1.msra.mxu0 0.0
  %5836 = vmatprep.subr.mxu0 0.0
  %5837 = vmatpush1.msra.mxu0 0.0
  %5838 = vmatprep.subr.mxu0 0.0
  %5839 = vmatpush1.msra.mxu0 0.0
  %5840 = vmatprep.subr.mxu0 0.0
  %5841 = vmatpush1.msra.mxu0 0.0
  %5842 = vmatprep.subr.mxu0 0.0
  %5843 = vmatpush1.msra.mxu0 0.0
  %5844 = vmatprep.subr.mxu0 0.0
  %5845 = vmatpush1.msra.mxu0 0.0
  %5846 = vmatprep.subr.mxu0 0.0
  %5847 = vmatpush1.msra.mxu0 0.0
  %5848 = vmatprep.subr.mxu0 0.0
  %5849 = vmatpush1.msra.mxu0 0.0
  %5850 = vmatprep.subr.mxu0 0.0
  %5851 = vmatpush1.msra.mxu0 0.0
  %5852 = vmatprep.subr.mxu0 0.0
  %5853 = vmatpush1.msra.mxu0 0.0
  %5854 = vmatprep.subr.mxu0 0.0
  %5855 = vmatpush1.msra.mxu0 0.0
  %5856 = vmatprep.subr.mxu0 0.0
  %5857 = vmatpush1.msra.mxu0 0.0
  %5858 = vmatprep.subr.mxu0 0.0
  %5859 = vmatpush1.msra.mxu0 0.0
  %5860 = vmatprep.subr.mxu0 0.0
  %5861 = vmatpush1.msra.mxu0 0.0
  %5862 = vmatprep.subr.mxu0 0.0
  %5863 = vmatpush1.msra.mxu0 0.0
  %5864 = vmatprep.subr.mxu0 0.0
  %5865 = vmatpush1.msra.mxu0 0.0
  %5866 = vmatprep.subr.mxu0 0.0
  %5867 = vmatpush1.msra.mxu0 0.0
  %5868 = vmatprep.subr.mxu0 0.0
  %5869 = vmatpush1.msra.mxu0 0.0
  %5870 = vmatprep.subr.mxu0 0.0
  %5871 = vmatpush1.msra.mxu0 0.0
  %5872 = vmatprep.subr.mxu0 0.0
  %5873 = vmatpush1.msra.mxu0 0.0
  %5874 = vmatprep.mubr.f32.mxu0 0.0
  %5875 = vmatmul.mubr.f32.gmra.mrb[0].mxu0 %v5808
  %v5876 = vpop.f32.mrb[0].mxu0
  %v5877 = vadd.f32 %v135, %v5876
  %v5878 = vpop.f32.mrb[0].mxu0
  %5879 = vdwg.mxu0
  %v5880 = vxor.u32 %v5877, 2147483648
  %v5881 = vmul.f32 %v5880, 1.442695
  %v5882 = vpow.pop %v5881
  %v5883 = vadd.f32 %v5882, 1.0
  %v5884 = vrcp.pop %v5883
  %v5885 = vmul.f32 1.0, %v5884
  %v5886 = vtanh.pop %v5877
  %v5887 = vmul.f32 %v5885, %v5455
  %5889 = vrot.lane.b32.xlu0 %v5886, 64
  %v5890 = vpop.permute.xlu0 %5889
  %v5892 = vmul.f32 %v5885, %v5890
  %5894 = vrot.lane.b32.xlu0 %v5892, 32
  %v5895 = vpop.permute.xlu0 %5894
  %v5897 = vadd.f32 %v5887, %v5895
  %v5898 = vtanh.pop %v5897
  %5900 = vrot.lane.b32.xlu0 %v5898, 64
  %v5901 = vpop.permute.xlu0 %5900
  %v5903 = vmul.f32 %v5885, %v5901
  %5905 = vrot.lane.b32.xlu0 %v5903, 32
  %v5906 = vpop.permute.xlu0 %5905
  %5908 = vrot.lane.b32.xlu0 %v5723, 64
  %v5909 = vpop.permute.xlu0 %5908
  %v5911 = vsel %vm207, %v5906, %v5909
  %v5913 = vlaneseq
  %v5914 = vshrl.u32 %v5913, 7
  %v5915 = vsub.s32 0, %v5914
  %v5916 = vrot.slane %v124, %v5915
  %v5919 = vsel %vm2369, %v5911, 0
  %5921 = vmatprep.subr.mxu0 0.0
  %5922 = vmatpush1.msra.mxu0 %v116
  %5923 = vmatprep.subr.mxu0 0.0
  %5924 = vmatpush1.msra.mxu0 %v117
  %5925 = vmatprep.subr.mxu0 0.0
  %5926 = vmatpush1.msra.mxu0 %v118
  %5927 = vmatprep.subr.mxu0 0.0
  %5928 = vmatpush1.msra.mxu0 %v119
  %5929 = vmatprep.subr.mxu0 0.0
  %5930 = vmatpush1.msra.mxu0 %v120
  %5931 = vmatprep.subr.mxu0 0.0
  %5932 = vmatpush1.msra.mxu0 %v121
  %5933 = vmatprep.subr.mxu0 0.0
  %5934 = vmatpush1.msra.mxu0 %v122
  %5935 = vmatprep.subr.mxu0 0.0
  %5936 = vmatpush1.msra.mxu0 %v123
  %5937 = vmatprep.subr.mxu0 0.0
  %5938 = vmatpush1.msra.mxu0 0.0
  %5939 = vmatprep.subr.mxu0 0.0
  %5940 = vmatpush1.msra.mxu0 0.0
  %5941 = vmatprep.subr.mxu0 0.0
  %5942 = vmatpush1.msra.mxu0 0.0
  %5943 = vmatprep.subr.mxu0 0.0
  %5944 = vmatpush1.msra.mxu0 0.0
  %5945 = vmatprep.subr.mxu0 0.0
  %5946 = vmatpush1.msra.mxu0 0.0
  %5947 = vmatprep.subr.mxu0 0.0
  %5948 = vmatpush1.msra.mxu0 0.0
  %5949 = vmatprep.subr.mxu0 0.0
  %5950 = vmatpush1.msra.mxu0 0.0
  %5951 = vmatprep.subr.mxu0 0.0
  %5952 = vmatpush1.msra.mxu0 0.0
  %5953 = vmatprep.subr.mxu0 0.0
  %5954 = vmatpush1.msra.mxu0 0.0
  %5955 = vmatprep.subr.mxu0 0.0
  %5956 = vmatpush1.msra.mxu0 0.0
  %5957 = vmatprep.subr.mxu0 0.0
  %5958 = vmatpush1.msra.mxu0 0.0
  %5959 = vmatprep.subr.mxu0 0.0
  %5960 = vmatpush1.msra.mxu0 0.0
  %5961 = vmatprep.subr.mxu0 0.0
  %5962 = vmatpush1.msra.mxu0 0.0
  %5963 = vmatprep.subr.mxu0 0.0
  %5964 = vmatpush1.msra.mxu0 0.0
  %5965 = vmatprep.subr.mxu0 0.0
  %5966 = vmatpush1.msra.mxu0 0.0
  %5967 = vmatprep.subr.mxu0 0.0
  %5968 = vmatpush1.msra.mxu0 0.0
  %5969 = vmatprep.subr.mxu0 0.0
  %5970 = vmatpush1.msra.mxu0 0.0
  %5971 = vmatprep.subr.mxu0 0.0
  %5972 = vmatpush1.msra.mxu0 0.0
  %5973 = vmatprep.subr.mxu0 0.0
  %5974 = vmatpush1.msra.mxu0 0.0
  %5975 = vmatprep.subr.mxu0 0.0
  %5976 = vmatpush1.msra.mxu0 0.0
  %5977 = vmatprep.subr.mxu0 0.0
  %5978 = vmatpush1.msra.mxu0 0.0
  %5979 = vmatprep.subr.mxu0 0.0
  %5980 = vmatpush1.msra.mxu0 0.0
  %5981 = vmatprep.subr.mxu0 0.0
  %5982 = vmatpush1.msra.mxu0 0.0
  %5983 = vmatprep.subr.mxu0 0.0
  %5984 = vmatpush1.msra.mxu0 0.0
  %5985 = vmatprep.mubr.f32.mxu0 0.0
  %5986 = vmatmul.mubr.f32.gmra.mrb[0].mxu0 %v5919
  %v5987 = vpop.f32.mrb[0].mxu0
  %v5988 = vadd.f32 %v5916, %v5987
  %v5989 = vpop.f32.mrb[0].mxu0
  %5990 = vdwg.mxu0
  %vm5991 = vcmask 3072
  %5992 = vst.msk [vmem:[%s20] sm:$0xf] %vm5991, %v5988
  // Predicated region
  $region82: #{tpu_custom_call.1} parent=0 // pred_check
    _
  $region83: #{tpu_custom_call.1} parent=0 // pred_check_branch
    %5994 = sbr.rel (0) target = $region85
  $region84: #{tpu_custom_call.1} parent=0 // pred_region
    _
  $region85: #{tpu_custom_call.1} parent=0 // pred_fallthru
    _
  // Predicated region
  $region86: #{tpu_custom_call.1} parent=0 // pred_check
    _
  $region87: #{tpu_custom_call.1} parent=0 // pred_check_branch
    %5996 = sbr.rel (0) target = $region89
  $region88: #{tpu_custom_call.1} parent=0 // pred_region
    _
  $region89: #{tpu_custom_call.1} parent=0 // pred_fallthru
    _

</llo_original>
